<compile_context>
chip_gen: v6e
topology: v6e:2x2x1
jax: 0.10.0
libtpu: 0.0.40
codegen_flags: <defaults>
</compile_context>

<pallas_src>
import functools

import jax
import jax.numpy as jnp
from jax.experimental import pallas as pl
from jax.experimental.pallas import tpu as pltpu


# ----------------------------- Pallas kernels -------------------------------


def _pick_tile_m(m):
    for t in (1024, 512, 256, 128):
        if m % t == 0:
            return t
    return m


def _linear_kernel(relu, n_in, *refs):
    """o = sum_i x_i @ w_i + b, optional ReLU.  bf16 operands, f32 accumulate."""
    xs = refs[:n_in]
    ws = refs[n_in:2 * n_in]
    b_ref = refs[2 * n_in]
    o_ref = refs[2 * n_in + 1]
    y = jnp.dot(xs[0][...], ws[0][...], preferred_element_type=jnp.float32)
    for i in range(1, n_in):
        y = y + jnp.dot(xs[i][...], ws[i][...], preferred_element_type=jnp.float32)
    y = y + b_ref[...]
    if relu:
        y = jnp.maximum(y, 0.0)
    o_ref[...] = y.astype(o_ref.dtype)


def pallas_linear(xs, ws_t, b, relu=False, out_dtype=jnp.float32):
    """y = sum_i xs[i] @ ws_t[i] + b.  xs[i]:[M,Ki]  ws_t[i]:[Ki,N]  b:[1,N]."""
    xs = [x.astype(jnp.bfloat16) for x in xs]
    ws_t = [w.astype(jnp.bfloat16) for w in ws_t]
    b = b.astype(jnp.float32)
    n_in = len(xs)
    M = xs[0].shape[0]
    N = ws_t[0].shape[1]
    tm = _pick_tile_m(M)

    in_specs = (
        [pl.BlockSpec((tm, x.shape[1]), lambda i: (i, 0)) for x in xs]
        + [pl.BlockSpec((w.shape[0], N), lambda i: (0, 0)) for w in ws_t]
        + [pl.BlockSpec((1, N), lambda i: (0, 0))]
    )
    out_specs = pl.BlockSpec((tm, N), lambda i: (i, 0))

    flops = 2 * M * N * sum(x.shape[1] for x in xs)
    bytes_accessed = (sum(x.size * 2 for x in xs)
                      + sum(w.size * 2 for w in ws_t)
                      + b.size * 4 + M * N * jnp.dtype(out_dtype).itemsize)

    return pl.pallas_call(
        functools.partial(_linear_kernel, relu, n_in),
        out_shape=jax.ShapeDtypeStruct((M, N), out_dtype),
        grid=(M // tm,),
        in_specs=in_specs,
        out_specs=out_specs,
        compiler_params=pltpu.CompilerParams(
            dimension_semantics=("parallel",),          # megacore on v7x
            vmem_limit_bytes=64 * 1024 * 1024),
        cost_estimate=pl.CostEstimate(flops=flops, transcendentals=0,
                                      bytes_accessed=bytes_accessed),
    )(*xs, *ws_t, b)


def _dual_linear_kernel(n_in, *refs):
    """Two linears sharing the same inputs: of = sum_i x_i@wf_i + bf, ob likewise."""
    xs = refs[:n_in]
    wf = refs[n_in:2 * n_in]
    wb = refs[2 * n_in:3 * n_in]
    bf_ref = refs[3 * n_in]
    bb_ref = refs[3 * n_in + 1]
    of_ref = refs[3 * n_in + 2]
    ob_ref = refs[3 * n_in + 3]
    xv = [x[...] for x in xs]                            # load each x chunk once
    yf = jnp.dot(xv[0], wf[0][...], preferred_element_type=jnp.float32)
    yb = jnp.dot(xv[0], wb[0][...], preferred_element_type=jnp.float32)
    for i in range(1, n_in):
        yf = yf + jnp.dot(xv[i], wf[i][...], preferred_element_type=jnp.float32)
        yb = yb + jnp.dot(xv[i], wb[i][...], preferred_element_type=jnp.float32)
    of_ref[...] = (yf + bf_ref[...]).astype(of_ref.dtype)
    ob_ref[...] = (yb + bb_ref[...]).astype(ob_ref.dtype)


def pallas_dual_linear(xs, wf_t, wb_t, bf, bb, out_dtype=jnp.float32):
    """(yf, yb) with yf = sum_i xs[i]@wf_t[i] + bf (same for yb); x read once."""
    xs = [x.astype(jnp.bfloat16) for x in xs]
    wf_t = [w.astype(jnp.bfloat16) for w in wf_t]
    wb_t = [w.astype(jnp.bfloat16) for w in wb_t]
    n_in = len(xs)
    M = xs[0].shape[0]
    N = wf_t[0].shape[1]
    tm = _pick_tile_m(M)

    in_specs = (
        [pl.BlockSpec((tm, x.shape[1]), lambda i: (i, 0)) for x in xs]
        + [pl.BlockSpec((w.shape[0], N), lambda i: (0, 0)) for w in (wf_t + wb_t)]
        + [pl.BlockSpec((1, N), lambda i: (0, 0))] * 2
    )
    out_specs = (pl.BlockSpec((tm, N), lambda i: (i, 0)),
                 pl.BlockSpec((tm, N), lambda i: (i, 0)))

    flops = 4 * M * N * sum(x.shape[1] for x in xs)
    bytes_accessed = (sum(x.size * 2 for x in xs)
                      + sum(w.size * 2 for w in (wf_t + wb_t))
                      + (bf.size + bb.size) * 4
                      + 2 * M * N * jnp.dtype(out_dtype).itemsize)

    return pl.pallas_call(
        functools.partial(_dual_linear_kernel, n_in),
        out_shape=(jax.ShapeDtypeStruct((M, N), out_dtype),
                   jax.ShapeDtypeStruct((M, N), out_dtype)),
        grid=(M // tm,),
        in_specs=in_specs,
        out_specs=out_specs,
        compiler_params=pltpu.CompilerParams(
            dimension_semantics=("parallel",),
            vmem_limit_bytes=64 * 1024 * 1024),
        cost_estimate=pl.CostEstimate(flops=flops, transcendentals=0,
                                      bytes_accessed=bytes_accessed),
    )(*xs, *wf_t, *wb_t, bf.astype(jnp.float32), bb.astype(jnp.float32))


def _conv_kernel(L, B, K, xpad_ref, w_ref, b_ref, o_ref):
    """Conv1d(E,E,K,pad=K//2)+ReLU on time-major-flattened input (no unfold).

    xpad_ref: [(L+K-1)*B, E_in] bf16   (time padded, then flattened time*batch)
    w_ref:    [K, E_in, E_out] bf16    (w_taps[k] = torch_w[:, :, k].T)
    """
    E_out = o_ref.shape[-1]
    acc = jnp.zeros((L * B, E_out), jnp.float32)
    for k in range(K):                                   # static taps
        win = xpad_ref[k * B:k * B + L * B, :]           # shift by k steps = k*B rows
        acc = acc + jnp.dot(win, w_ref[k], preferred_element_type=jnp.float32)
    o_ref[...] = jnp.maximum(acc + b_ref[...], 0.0).astype(o_ref.dtype)


def conv1d_layer_tm(x_tm, w, b):
    """PyTorch Conv1d(E, E, K, stride=1, padding=K//2) + ReLU, time-major [L,B,E]."""
    # TODO(synk): whole-array-in-VMEM kernel; very large L*B would need tiling.
    L, B, E_in = x_tm.shape
    E_out = w.shape[0]
    K = w.shape[2]
    p = K // 2
    xpad_flat = jnp.pad(x_tm, ((p, p), (0, 0), (0, 0))).reshape((L + 2 * p) * B, E_in)
    w_taps = jnp.transpose(w, (2, 1, 0)).astype(jnp.bfloat16)     # [K, E_in, E_out]
    y = pl.pallas_call(
        functools.partial(_conv_kernel, L, B, K),
        out_shape=jax.ShapeDtypeStruct((L * B, E_out), jnp.bfloat16),
        in_specs=[pl.BlockSpec(memory_space=pltpu.MemorySpace.VMEM)] * 3,
        out_specs=pl.BlockSpec(memory_space=pltpu.MemorySpace.VMEM),
    )(xpad_flat.astype(jnp.bfloat16), w_taps, b.reshape(1, -1).astype(jnp.float32))
    return y.reshape(L, B, E_out)


def _bilstm_kernel(H, L, gxf_ref, gxb_ref, whhf_ref, whhb_ref, mk_ref,
                   of_ref, ob_ref):
    """Fused forward+backward LSTM direction, full time loop in one kernel.

    gxf/gxb: [L, B, 4H] f32 precomputed x@Wih^T + b (original time order)
    whh:     [H, 4H] bf16;  mk: [L, B, 1] f32;  outputs [L, B, H] f32.
    """
    B = mk_ref.shape[1]
    whh_f = whhf_ref[...]
    whh_b = whhb_ref[...]
    zeros = jnp.zeros((B, H), jnp.float32)

    def cell(g, c):                                      # PyTorch gate order i,f,g,o
        i = jax.nn.sigmoid(g[:, 0 * H:1 * H])
        f = jax.nn.sigmoid(g[:, 1 * H:2 * H])
        gg = jnp.tanh(g[:, 2 * H:3 * H])
        o = jax.nn.sigmoid(g[:, 3 * H:4 * H])
        c_new = f * c + i * gg
        return o * jnp.tanh(c_new), c_new

    def step(t, carry):
        hf, cf, hb, cb = carry
        tb = L - 1 - t                                   # reversed time for backward dir
        gf = gxf_ref[t] + jnp.dot(hf.astype(jnp.bfloat16), whh_f,
                                  preferred_element_type=jnp.float32)
        gb = gxb_ref[tb] + jnp.dot(hb.astype(jnp.bfloat16), whh_b,
                                   preferred_element_type=jnp.float32)
        hfn, cfn = cell(gf, cf)
        hbn, cbn = cell(gb, cb)
        mf = mk_ref[t]                                   # [B, 1]
        mb = mk_ref[tb]
        of_ref[t] = mf * hfn                             # padded steps -> zero output
        ob_ref[tb] = mb * hbn
        return (mf * hfn + (1.0 - mf) * hf,
                mf * cfn + (1.0 - mf) * cf,
                mb * hbn + (1.0 - mb) * hb,
                mb * cbn + (1.0 - mb) * cb)

    jax.lax.fori_loop(0, L, step, (zeros, zeros, zeros, zeros),
                      unroll=(L <= 32))


def bilstm_layer(gx_f, gx_b, whh_f_t, whh_b_t, mk_tb1, hidden):
    L, B, _ = gx_f.shape
    H = hidden
    return pl.pallas_call(
        functools.partial(_bilstm_kernel, H, L),
        out_shape=(jax.ShapeDtypeStruct((L, B, H), jnp.float32),
                   jax.ShapeDtypeStruct((L, B, H), jnp.float32)),
        in_specs=[pl.BlockSpec(memory_space=pltpu.MemorySpace.VMEM)] * 5,
        out_specs=(pl.BlockSpec(memory_space=pltpu.MemorySpace.VMEM),
                   pl.BlockSpec(memory_space=pltpu.MemorySpace.VMEM)),
    )(gx_f, gx_b, whh_f_t.astype(jnp.bfloat16), whh_b_t.astype(jnp.bfloat16),
      mk_tb1)


def _crf_viterbi_kernel(L, start_idx, stop_idx, x_ref, tr_ref, mk_ref,
                        fscr_ref, tol_ref, ms_out_ref):
    """Fused CRF partition-function + Viterbi forward pass (one time loop, f32).

    Logits [L,B,C], transitions [C,C] and the mask are read once; backpointers
    are written into the VMEM-resident output block.
    """
    B = x_ref.shape[1]
    C = x_ref.shape[2]
    tr = tr_ref[...]
    col = jax.lax.broadcasted_iota(jnp.int32, (B, C), 1)
    init = jnp.where(col == start_idx, 0.0, -100000.0).astype(jnp.float32)

    def step(t, carry):
        fs, ms = carry
        emit = x_ref[t]                                  # [B, C]
        m = mk_ref[t]                                    # [B, 1]
        # --- CRF logsumexp recurrence ---
        newer = fs[:, None, :] + tr[None, :, :] + emit[:, :, None]
        mx = jnp.max(newer, axis=-1)
        score_t = mx + jnp.log(jnp.sum(jnp.exp(newer - mx[..., None]), axis=-1))
        fs_new = score_t * m + fs * (1.0 - m)
        # --- Viterbi max recurrence + backpointers ---
        scores = ms[:, None, :] + tr[None, :, :]         # [B, C, C]
        best = jnp.max(scores, axis=-1)
        jidx = jax.lax.broadcasted_iota(jnp.int32, scores.shape, 2)
        bp = jnp.min(jnp.where(scores == best[..., None], jidx, jnp.int32(C)),
                     axis=-1)
        tol_ref[t] = bp                                  # written on padded steps too;
        ms_new = (best + emit) * m + ms * (1.0 - m)      # backtrack masks them.
        return fs_new, ms_new

    fs, ms = jax.lax.fori_loop(0, L, step, (init, init), unroll=(L <= 32))
    outda = fs + tr[stop_idx:stop_idx + 1, :]
    mb = jnp.max(outda, axis=-1, keepdims=True)
    fscr_ref[...] = mb + jnp.log(jnp.sum(jnp.exp(outda - mb), axis=-1, keepdims=True))
    ms_out_ref[...] = ms + tr[stop_idx:stop_idx + 1, :]


def crf_and_viterbi(x_tm, trans, mk_tb1, start_idx, stop_idx):
    L, B, C = x_tm.shape
    return pl.pallas_call(
        functools.partial(_crf_viterbi_kernel, L, start_idx, stop_idx),
        out_shape=(jax.ShapeDtypeStruct((B, 1), jnp.float32),
                   jax.ShapeDtypeStruct((L, B, C), jnp.int32),
                   jax.ShapeDtypeStruct((B, C), jnp.float32)),
        in_specs=[pl.BlockSpec(memory_space=pltpu.MemorySpace.VMEM)] * 3,
        out_specs=(pl.BlockSpec(memory_space=pltpu.MemorySpace.VMEM),
                   pl.BlockSpec(memory_space=pltpu.MemorySpace.VMEM),
                   pl.BlockSpec(memory_space=pltpu.MemorySpace.VMEM)),
    )(x_tm.astype(jnp.float32), trans.astype(jnp.float32), mk_tb1)


# ------------------------------ model glue -----------------------------------


def bilstm_stack(feats, mk_tb1, lstm_params, hidden):
    """Multi-layer bidirectional LSTM (packed-sequence semantics via masking).

    `feats` is a list of time-major feature chunks whose concatenation along the
    last dim is the layer input; keeping them separate avoids an HBM concat
    (the gx projection sums one matmul per chunk instead).
    """
    L, B, _ = feats[0].shape
    H = hidden
    for lp in lstm_params:
        flats = [f.reshape(L * B, f.shape[-1]) for f in feats]
        widths = [f.shape[-1] for f in flats]

        def split_w(wih, widths=widths):
            outs, off = [], 0
            for wd in widths:
                outs.append(jnp.transpose(wih[:, off:off + wd]))
                off += wd
            return outs

        gx_f_flat, gx_b_flat = pallas_dual_linear(
            flats, split_w(lp['wih_f']), split_w(lp['wih_b']),
            (lp['bih_f'] + lp['bhh_f']).reshape(1, -1),
            (lp['bih_b'] + lp['bhh_b']).reshape(1, -1))
        gx_f = gx_f_flat.reshape(L, B, 4 * H)
        gx_b = gx_b_flat.reshape(L, B, 4 * H)
        out_f, out_b = bilstm_layer(gx_f, gx_b, lp['whh_f'].T, lp['whh_b'].T,
                                    mk_tb1, H)
        feats = [out_f, out_b]
    return feats


def seq_tagging_forward(params, tokens, lens, mk, tags, num_class, hidden):
    del lens  # lengths are carried by the mask (no host sync / truncation)
    C = num_class + 2
    start_idx, stop_idx = C - 2, C - 1
    B, L = tokens.shape
    H = hidden

    # embedding lookup directly in time-major layout [L, B, E]; bf16 for MXU
    x_tm = params['embedding'][tokens.T].astype(jnp.bfloat16)

    for cp in params['conv']:
        x_tm = conv1d_layer_tm(x_tm, cp['w'], cp['b'])

    mk = mk.astype(jnp.float32)
    mk_tb1 = mk.T[:, :, None]                              # [L, B, 1]

    out_f, out_b = bilstm_stack([x_tm], mk_tb1, params['lstm'], H)

    # fc on the two direction chunks (split-weight matmul, no concat)
    fc_w = params['fc_w']                                  # [C, 2H]
    logits_tm = pallas_linear(
        [out_f.reshape(L * B, H), out_b.reshape(L * B, H)],
        [fc_w[:, :H].T, fc_w[:, H:].T],
        params['fc_b'].reshape(1, -1)).reshape(L, B, C)
    trans = params['transitions']

    # --- fused CRF forward + Viterbi forward (one Pallas kernel) ---
    f_scr_b1, tol, max_score = crf_and_viterbi(logits_tm, trans, mk_tb1,
                                               start_idx, stop_idx)
    f_scr = f_scr_b1[:, 0]

    # --- gold path score: tiny gathers, left to XLA ---
    tags_ext = jnp.concatenate(
        [jnp.full((B, 1), start_idx, dtype=tags.dtype), tags], axis=1)
    emit = jnp.take_along_axis(logits_tm, tags.T[:, :, None], axis=2)[..., 0].T
    trans_sc = trans[tags_ext[:, 1:], tags_ext[:, :-1]]
    lens_i = jnp.sum(mk, axis=-1).astype(jnp.int32)
    last_tag = jnp.take_along_axis(tags_ext, lens_i[:, None], axis=1)[:, 0]
    src = trans[stop_idx, last_tag]
    g_scr = jnp.sum((emit + trans_sc) * mk, axis=-1) + src
    loss = jnp.mean(f_scr - g_scr)

    # --- Viterbi backtrack as a reversed scan (XLA; tiny, gather-heavy) ---
    best_tags = jnp.argmax(max_score, axis=-1).astype(jnp.int32)

    def step(carry, inp):
        t, tol_t = inp
        active = t < lens_i
        is_last = t == (lens_i - 1)
        cur = jnp.where(is_last, best_tags, carry)
        path_t = jnp.where(active, cur, 0)
        nxt_bp = jnp.take_along_axis(tol_t, cur[:, None], axis=1)[:, 0]
        nxt = jnp.where(active, nxt_bp, carry)
        return nxt, path_t

    ts = jnp.arange(L - 1, -1, -1, dtype=jnp.int32)
    tol_rev = jnp.flip(tol, axis=0)
    _, paths_rev = jax.lax.scan(step, best_tags, (ts, tol_rev))
    best_paths = jnp.flip(paths_rev, axis=0).T             # [B, L]

    return {'loss': loss, 'max_score': max_score, 'pred_labels': best_paths}


# ------------------------------ parameters -----------------------------------


def init_params(key, vocab, embed_dim, layers_cnn, hidden, layers_lstm, num_class):
    C = num_class + 2
    keys = iter(jax.random.split(key, 64))
    params = {}
    params['embedding'] = jax.random.normal(next(keys), (vocab, embed_dim), jnp.float32) * 0.1
    params['conv'] = []
    for _ in range(layers_cnn):
        params['conv'].append({
            'w': jax.random.normal(next(keys), (embed_dim, embed_dim, 5), jnp.float32) * 0.1,
            'b': jax.random.normal(next(keys), (embed_dim,), jnp.float32) * 0.1,
        })
    params['lstm'] = []
    in_dim = embed_dim
    for _ in range(layers_lstm):
        lp = {}
        for d in ('f', 'b'):
            lp['wih_' + d] = jax.random.normal(next(keys), (4 * hidden, in_dim), jnp.float32) * 0.1
            lp['whh_' + d] = jax.random.normal(next(keys), (4 * hidden, hidden), jnp.float32) * 0.1
            lp['bih_' + d] = jax.random.normal(next(keys), (4 * hidden,), jnp.float32) * 0.1
            lp['bhh_' + d] = jax.random.normal(next(keys), (4 * hidden,), jnp.float32) * 0.1
        params['lstm'].append(lp)
        in_dim = 2 * hidden
    params['fc_w'] = jax.random.normal(next(keys), (C, 2 * hidden), jnp.float32) * 0.1
    params['fc_b'] = jax.random.normal(next(keys), (C,), jnp.float32) * 0.1
    trans = jax.random.normal(next(keys), (C, C), jnp.float32)
    trans = trans.at[C - 2, :].set(-100000.0)    # transitions[start_idx, :]
    trans = trans.at[:, C - 1].set(-100000.0)    # transitions[:, stop_idx]
    params['transitions'] = trans
    return params


if __name__ == "__main__":
    B, L = 2, 8
    VOCAB, EMBED = 20, 16
    HIDDEN = 16
    LAYERS_CNN = 2
    LAYERS_LSTM = 2
    NUM_CLASS = 5

    key = jax.random.PRNGKey(0)
    kp, kt, kg = jax.random.split(key, 3)
    params = init_params(kp, VOCAB, EMBED, LAYERS_CNN, HIDDEN, LAYERS_LSTM, NUM_CLASS)

    tokens = jax.random.randint(kt, (B, L), 0, VOCAB, dtype=jnp.int32)
    tags = jax.random.randint(kg, (B, L), 0, NUM_CLASS, dtype=jnp.int32)
    lens = jnp.array([8, 6], dtype=jnp.int32)        # sorted (pack_padded_sequence)
    mk = (jnp.arange(L)[None, :] < lens[:, None]).astype(jnp.float32)

    fwd = jax.jit(lambda p, tk, ln, m, tg:
                  seq_tagging_forward(p, tk, ln, m, tg, NUM_CLASS, HIDDEN))
    out = fwd(params, tokens, lens, mk, tags)
    jax.block_until_ready((out['loss'], out['max_score'], out['pred_labels']))
    print("KERNEL_OK")
</pallas_src>

<mosaic_0001>
module attributes {stable_mosaic.version = 11 : i64} {
  func.func @_bilstm_kernel(%arg0: memref<8x2x64xf32, #tpu.memory_space<vmem>>, %arg1: memref<8x2x64xf32, #tpu.memory_space<vmem>>, %arg2: memref<16x64xbf16, #tpu.memory_space<vmem>>, %arg3: memref<16x64xbf16, #tpu.memory_space<vmem>>, %arg4: memref<8x2x1xf32, #tpu.memory_space<vmem>>, %arg5: memref<8x2x16xf32, #tpu.memory_space<vmem>>, %arg6: memref<8x2x16xf32, #tpu.memory_space<vmem>>) attributes {dimension_semantics = [], scalar_prefetch = 0 : i64, scratch_operands = 0 : i64, tpu.core_type = #tpu.core_type<tc>} {
    %c0 = arith.constant 0 : index
    %c0_0 = arith.constant 0 : index
    %0 = vector.load %arg2[%c0, %c0_0] : memref<16x64xbf16, #tpu.memory_space<vmem>>, vector<16x64xbf16>
    %c0_1 = arith.constant 0 : index
    %c0_2 = arith.constant 0 : index
    %1 = vector.load %arg3[%c0_1, %c0_2] : memref<16x64xbf16, #tpu.memory_space<vmem>>, vector<16x64xbf16>
    %cst = arith.constant 0.000000e+00 : f32
    %2 = vector.broadcast %cst : f32 to vector<2x16xf32>
    %c0_i32 = arith.constant 0 : i32
    %c7_i32 = arith.constant 7 : i32
    %3 = arith.subi %c7_i32, %c0_i32 : i32
    %4 = arith.index_cast %c0_i32 : i32 to index
    %c0_3 = arith.constant 0 : index
    %c0_4 = arith.constant 0 : index
    %5 = vector.load %arg0[%4, %c0_3, %c0_4] : memref<8x2x64xf32, #tpu.memory_space<vmem>>, vector<1x2x64xf32>
    %6 = vector.shape_cast %5 : vector<1x2x64xf32> to vector<2x64xf32>
    %7 = arith.truncf %2 : vector<2x16xf32> to vector<2x16xbf16>
    %cst_5 = arith.constant dense<0.000000e+00> : vector<2x64xf32>
    %8 = tpu.matmul %7, %0, %cst_5 {dimension_numbers = #tpu.dot_dimension_numbers<[1], [0], [0], [1], [0, 0, 1, 1], [], []>} : vector<2x16xbf16>, vector<16x64xbf16>, vector<2x64xf32> -> vector<2x64xf32>
    %9 = arith.addf %6, %8 : vector<2x64xf32>
    %10 = arith.index_cast %3 : i32 to index
    %c0_6 = arith.constant 0 : index
    %c0_7 = arith.constant 0 : index
    %11 = vector.load %arg1[%10, %c0_6, %c0_7] : memref<8x2x64xf32, #tpu.memory_space<vmem>>, vector<1x2x64xf32>
    %12 = vector.shape_cast %11 : vector<1x2x64xf32> to vector<2x64xf32>
    %13 = arith.truncf %2 : vector<2x16xf32> to vector<2x16xbf16>
    %cst_8 = arith.constant dense<0.000000e+00> : vector<2x64xf32>
    %14 = tpu.matmul %13, %1, %cst_8 {dimension_numbers = #tpu.dot_dimension_numbers<[1], [0], [0], [1], [0, 0, 1, 1], [], []>} : vector<2x16xbf16>, vector<16x64xbf16>, vector<2x64xf32> -> vector<2x64xf32>
    %15 = arith.addf %12, %14 : vector<2x64xf32>
    %16 = vector.extract_strided_slice %9 {offsets = [0, 0], sizes = [2, 16], strides = [1, 1]} : vector<2x64xf32> to vector<2x16xf32>
    %17 = arith.negf %16 : vector<2x16xf32>
    %18 = math.exp %17 : vector<2x16xf32>
    %cst_9 = arith.constant 1.000000e+00 : f32
    %19 = vector.broadcast %cst_9 : f32 to vector<2x16xf32>
    %20 = arith.addf %19, %18 : vector<2x16xf32>
    %21 = arith.divf %19, %20 : vector<2x16xf32>
    %22 = vector.extract_strided_slice %9 {offsets = [0, 16], sizes = [2, 16], strides = [1, 1]} : vector<2x64xf32> to vector<2x16xf32>
    %23 = arith.negf %22 : vector<2x16xf32>
    %24 = math.exp %23 : vector<2x16xf32>
    %cst_10 = arith.constant 1.000000e+00 : f32
    %25 = vector.broadcast %cst_10 : f32 to vector<2x16xf32>
    %26 = arith.addf %25, %24 : vector<2x16xf32>
    %27 = arith.divf %25, %26 : vector<2x16xf32>
    %28 = vector.extract_strided_slice %9 {offsets = [0, 32], sizes = [2, 16], strides = [1, 1]} : vector<2x64xf32> to vector<2x16xf32>
    %29 = math.tanh %28 : vector<2x16xf32>
    %30 = vector.extract_strided_slice %9 {offsets = [0, 48], sizes = [2, 16], strides = [1, 1]} : vector<2x64xf32> to vector<2x16xf32>
    %31 = arith.negf %30 : vector<2x16xf32>
    %32 = math.exp %31 : vector<2x16xf32>
    %cst_11 = arith.constant 1.000000e+00 : f32
    %33 = vector.broadcast %cst_11 : f32 to vector<2x16xf32>
    %34 = arith.addf %33, %32 : vector<2x16xf32>
    %35 = arith.divf %33, %34 : vector<2x16xf32>
    %36 = arith.mulf %27, %2 : vector<2x16xf32>
    %37 = arith.mulf %21, %29 : vector<2x16xf32>
    %38 = arith.addf %36, %37 : vector<2x16xf32>
    %39 = math.tanh %38 : vector<2x16xf32>
    %40 = arith.mulf %35, %39 : vector<2x16xf32>
    %41 = vector.extract_strided_slice %15 {offsets = [0, 0], sizes = [2, 16], strides = [1, 1]} : vector<2x64xf32> to vector<2x16xf32>
    %42 = arith.negf %41 : vector<2x16xf32>
    %43 = math.exp %42 : vector<2x16xf32>
    %cst_12 = arith.constant 1.000000e+00 : f32
    %44 = vector.broadcast %cst_12 : f32 to vector<2x16xf32>
    %45 = arith.addf %44, %43 : vector<2x16xf32>
    %46 = arith.divf %44, %45 : vector<2x16xf32>
    %47 = vector.extract_strided_slice %15 {offsets = [0, 16], sizes = [2, 16], strides = [1, 1]} : vector<2x64xf32> to vector<2x16xf32>
    %48 = arith.negf %47 : vector<2x16xf32>
    %49 = math.exp %48 : vector<2x16xf32>
    %cst_13 = arith.constant 1.000000e+00 : f32
    %50 = vector.broadcast %cst_13 : f32 to vector<2x16xf32>
    %51 = arith.addf %50, %49 : vector<2x16xf32>
    %52 = arith.divf %50, %51 : vector<2x16xf32>
    %53 = vector.extract_strided_slice %15 {offsets = [0, 32], sizes = [2, 16], strides = [1, 1]} : vector<2x64xf32> to vector<2x16xf32>
    %54 = math.tanh %53 : vector<2x16xf32>
    %55 = vector.extract_strided_slice %15 {offsets = [0, 48], sizes = [2, 16], strides = [1, 1]} : vector<2x64xf32> to vector<2x16xf32>
    %56 = arith.negf %55 : vector<2x16xf32>
    %57 = math.exp %56 : vector<2x16xf32>
    %cst_14 = arith.constant 1.000000e+00 : f32
    %58 = vector.broadcast %cst_14 : f32 to vector<2x16xf32>
    %59 = arith.addf %58, %57 : vector<2x16xf32>
    %60 = arith.divf %58, %59 : vector<2x16xf32>
    %61 = arith.mulf %52, %2 : vector<2x16xf32>
    %62 = arith.mulf %46, %54 : vector<2x16xf32>
    %63 = arith.addf %61, %62 : vector<2x16xf32>
    %64 = math.tanh %63 : vector<2x16xf32>
    %65 = arith.mulf %60, %64 : vector<2x16xf32>
    %66 = arith.index_cast %c0_i32 : i32 to index
    %c0_15 = arith.constant 0 : index
    %c0_16 = arith.constant 0 : index
    %67 = vector.load %arg4[%66, %c0_15, %c0_16] : memref<8x2x1xf32, #tpu.memory_space<vmem>>, vector<1x2x1xf32>
    %68 = vector.shape_cast %67 : vector<1x2x1xf32> to vector<2x1xf32>
    %69 = arith.index_cast %3 : i32 to index
    %c0_17 = arith.constant 0 : index
    %c0_18 = arith.constant 0 : index
    %70 = vector.load %arg4[%69, %c0_17, %c0_18] : memref<8x2x1xf32, #tpu.memory_space<vmem>>, vector<1x2x1xf32>
    %71 = vector.shape_cast %70 : vector<1x2x1xf32> to vector<2x1xf32>
    %72 = vector.broadcast %68 : vector<2x1xf32> to vector<2x16xf32>
    %73 = arith.mulf %72, %40 : vector<2x16xf32>
    %74 = arith.index_cast %c0_i32 : i32 to index
    %c0_19 = arith.constant 0 : index
    %c0_20 = arith.constant 0 : index
    %75 = vector.load %arg5[%74, %c0_19, %c0_20] : memref<8x2x16xf32, #tpu.memory_space<vmem>>, vector<1x2x16xf32>
    %76 = vector.shape_cast %75 : vector<1x2x16xf32> to vector<2x16xf32>
    %77 = vector.shape_cast %73 : vector<2x16xf32> to vector<1x2x16xf32>
    tpu.vector_store %arg5[%74, %c0_19, %c0_20], %77 {strides = array<i32>} : memref<8x2x16xf32, #tpu.memory_space<vmem>>, vector<1x2x16xf32>,
    %78 = vector.broadcast %71 : vector<2x1xf32> to vector<2x16xf32>
    %79 = arith.mulf %78, %65 : vector<2x16xf32>
    %80 = arith.index_cast %3 : i32 to index
    %c0_21 = arith.constant 0 : index
    %c0_22 = arith.constant 0 : index
    %81 = vector.load %arg6[%80, %c0_21, %c0_22] : memref<8x2x16xf32, #tpu.memory_space<vmem>>, vector<1x2x16xf32>
    %82 = vector.shape_cast %81 : vector<1x2x16xf32> to vector<2x16xf32>
    %83 = vector.shape_cast %79 : vector<2x16xf32> to vector<1x2x16xf32>
    tpu.vector_store %arg6[%80, %c0_21, %c0_22], %83 {strides = array<i32>} : memref<8x2x16xf32, #tpu.memory_space<vmem>>, vector<1x2x16xf32>,
    %84 = vector.broadcast %68 : vector<2x1xf32> to vector<2x16xf32>
    %85 = arith.mulf %84, %40 : vector<2x16xf32>
    %cst_23 = arith.constant 1.000000e+00 : f32
    %86 = vector.broadcast %cst_23 : f32 to vector<2x1xf32>
    %87 = arith.subf %86, %68 : vector<2x1xf32>
    %88 = vector.broadcast %87 : vector<2x1xf32> to vector<2x16xf32>
    %89 = arith.mulf %88, %2 : vector<2x16xf32>
    %90 = arith.addf %85, %89 : vector<2x16xf32>
    %91 = vector.broadcast %68 : vector<2x1xf32> to vector<2x16xf32>
    %92 = arith.mulf %91, %38 : vector<2x16xf32>
    %cst_24 = arith.constant 1.000000e+00 : f32
    %93 = vector.broadcast %cst_24 : f32 to vector<2x1xf32>
    %94 = arith.subf %93, %68 : vector<2x1xf32>
    %95 = vector.broadcast %94 : vector<2x1xf32> to vector<2x16xf32>
    %96 = arith.mulf %95, %2 : vector<2x16xf32>
    %97 = arith.addf %92, %96 : vector<2x16xf32>
    %98 = vector.broadcast %71 : vector<2x1xf32> to vector<2x16xf32>
    %99 = arith.mulf %98, %65 : vector<2x16xf32>
    %cst_25 = arith.constant 1.000000e+00 : f32
    %100 = vector.broadcast %cst_25 : f32 to vector<2x1xf32>
    %101 = arith.subf %100, %71 : vector<2x1xf32>
    %102 = vector.broadcast %101 : vector<2x1xf32> to vector<2x16xf32>
    %103 = arith.mulf %102, %2 : vector<2x16xf32>
    %104 = arith.addf %99, %103 : vector<2x16xf32>
    %105 = vector.broadcast %71 : vector<2x1xf32> to vector<2x16xf32>
    %106 = arith.mulf %105, %63 : vector<2x16xf32>
    %cst_26 = arith.constant 1.000000e+00 : f32
    %107 = vector.broadcast %cst_26 : f32 to vector<2x1xf32>
    %108 = arith.subf %107, %71 : vector<2x1xf32>
    %109 = vector.broadcast %108 : vector<2x1xf32> to vector<2x16xf32>
    %110 = arith.mulf %109, %2 : vector<2x16xf32>
    %111 = arith.addf %106, %110 : vector<2x16xf32>
    %c1_i32 = arith.constant 1 : i32
    %c7_i32_27 = arith.constant 7 : i32
    %112 = arith.subi %c7_i32_27, %c1_i32 : i32
    %113 = arith.index_cast %c1_i32 : i32 to index
    %c0_28 = arith.constant 0 : index
    %c0_29 = arith.constant 0 : index
    %114 = vector.load %arg0[%113, %c0_28, %c0_29] : memref<8x2x64xf32, #tpu.memory_space<vmem>>, vector<1x2x64xf32>
    %115 = vector.shape_cast %114 : vector<1x2x64xf32> to vector<2x64xf32>
    %116 = arith.truncf %90 : vector<2x16xf32> to vector<2x16xbf16>
    %cst_30 = arith.constant dense<0.000000e+00> : vector<2x64xf32>
    %117 = tpu.matmul %116, %0, %cst_30 {dimension_numbers = #tpu.dot_dimension_numbers<[1], [0], [0], [1], [0, 0, 1, 1], [], []>} : vector<2x16xbf16>, vector<16x64xbf16>, vector<2x64xf32> -> vector<2x64xf32>
    %118 = arith.addf %115, %117 : vector<2x64xf32>
    %119 = arith.index_cast %112 : i32 to index
    %c0_31 = arith.constant 0 : index
    %c0_32 = arith.constant 0 : index
    %120 = vector.load %arg1[%119, %c0_31, %c0_32] : memref<8x2x64xf32, #tpu.memory_space<vmem>>, vector<1x2x64xf32>
    %121 = vector.shape_cast %120 : vector<1x2x64xf32> to vector<2x64xf32>
    %122 = arith.truncf %104 : vector<2x16xf32> to vector<2x16xbf16>
    %cst_33 = arith.constant dense<0.000000e+00> : vector<2x64xf32>
    %123 = tpu.matmul %122, %1, %cst_33 {dimension_numbers = #tpu.dot_dimension_numbers<[1], [0], [0], [1], [0, 0, 1, 1], [], []>} : vector<2x16xbf16>, vector<16x64xbf16>, vector<2x64xf32> -> vector<2x64xf32>
    %124 = arith.addf %121, %123 : vector<2x64xf32>
    %125 = vector.extract_strided_slice %118 {offsets = [0, 0], sizes = [2, 16], strides = [1, 1]} : vector<2x64xf32> to vector<2x16xf32>
    %126 = arith.negf %125 : vector<2x16xf32>
    %127 = math.exp %126 : vector<2x16xf32>
    %cst_34 = arith.constant 1.000000e+00 : f32
    %128 = vector.broadcast %cst_34 : f32 to vector<2x16xf32>
    %129 = arith.addf %128, %127 : vector<2x16xf32>
    %130 = arith.divf %128, %129 : vector<2x16xf32>
    %131 = vector.extract_strided_slice %118 {offsets = [0, 16], sizes = [2, 16], strides = [1, 1]} : vector<2x64xf32> to vector<2x16xf32>
    %132 = arith.negf %131 : vector<2x16xf32>
    %133 = math.exp %132 : vector<2x16xf32>
    %cst_35 = arith.constant 1.000000e+00 : f32
    %134 = vector.broadcast %cst_35 : f32 to vector<2x16xf32>
    %135 = arith.addf %134, %133 : vector<2x16xf32>
    %136 = arith.divf %134, %135 : vector<2x16xf32>
    %137 = vector.extract_strided_slice %118 {offsets = [0, 32], sizes = [2, 16], strides = [1, 1]} : vector<2x64xf32> to vector<2x16xf32>
    %138 = math.tanh %137 : vector<2x16xf32>
    %139 = vector.extract_strided_slice %118 {offsets = [0, 48], sizes = [2, 16], strides = [1, 1]} : vector<2x64xf32> to vector<2x16xf32>
    %140 = arith.negf %139 : vector<2x16xf32>
    %141 = math.exp %140 : vector<2x16xf32>
    %cst_36 = arith.constant 1.000000e+00 : f32
    %142 = vector.broadcast %cst_36 : f32 to vector<2x16xf32>
    %143 = arith.addf %142, %141 : vector<2x16xf32>
    %144 = arith.divf %142, %143 : vector<2x16xf32>
    %145 = arith.mulf %136, %97 : vector<2x16xf32>
    %146 = arith.mulf %130, %138 : vector<2x16xf32>
    %147 = arith.addf %145, %146 : vector<2x16xf32>
    %148 = math.tanh %147 : vector<2x16xf32>
    %149 = arith.mulf %144, %148 : vector<2x16xf32>
    %150 = vector.extract_strided_slice %124 {offsets = [0, 0], sizes = [2, 16], strides = [1, 1]} : vector<2x64xf32> to vector<2x16xf32>
    %151 = arith.negf %150 : vector<2x16xf32>
    %152 = math.exp %151 : vector<2x16xf32>
    %cst_37 = arith.constant 1.000000e+00 : f32
    %153 = vector.broadcast %cst_37 : f32 to vector<2x16xf32>
    %154 = arith.addf %153, %152 : vector<2x16xf32>
    %155 = arith.divf %153, %154 : vector<2x16xf32>
    %156 = vector.extract_strided_slice %124 {offsets = [0, 16], sizes = [2, 16], strides = [1, 1]} : vector<2x64xf32> to vector<2x16xf32>
    %157 = arith.negf %156 : vector<2x16xf32>
    %158 = math.exp %157 : vector<2x16xf32>
    %cst_38 = arith.constant 1.000000e+00 : f32
    %159 = vector.broadcast %cst_38 : f32 to vector<2x16xf32>
    %160 = arith.addf %159, %158 : vector<2x16xf32>
    %161 = arith.divf %159, %160 : vector<2x16xf32>
    %162 = vector.extract_strided_slice %124 {offsets = [0, 32], sizes = [2, 16], strides = [1, 1]} : vector<2x64xf32> to vector<2x16xf32>
    %163 = math.tanh %162 : vector<2x16xf32>
    %164 = vector.extract_strided_slice %124 {offsets = [0, 48], sizes = [2, 16], strides = [1, 1]} : vector<2x64xf32> to vector<2x16xf32>
    %165 = arith.negf %164 : vector<2x16xf32>
    %166 = math.exp %165 : vector<2x16xf32>
    %cst_39 = arith.constant 1.000000e+00 : f32
    %167 = vector.broadcast %cst_39 : f32 to vector<2x16xf32>
    %168 = arith.addf %167, %166 : vector<2x16xf32>
    %169 = arith.divf %167, %168 : vector<2x16xf32>
    %170 = arith.mulf %161, %111 : vector<2x16xf32>
    %171 = arith.mulf %155, %163 : vector<2x16xf32>
    %172 = arith.addf %170, %171 : vector<2x16xf32>
    %173 = math.tanh %172 : vector<2x16xf32>
    %174 = arith.mulf %169, %173 : vector<2x16xf32>
    %175 = arith.index_cast %c1_i32 : i32 to index
    %c0_40 = arith.constant 0 : index
    %c0_41 = arith.constant 0 : index
    %176 = vector.load %arg4[%175, %c0_40, %c0_41] : memref<8x2x1xf32, #tpu.memory_space<vmem>>, vector<1x2x1xf32>
    %177 = vector.shape_cast %176 : vector<1x2x1xf32> to vector<2x1xf32>
    %178 = arith.index_cast %112 : i32 to index
    %c0_42 = arith.constant 0 : index
    %c0_43 = arith.constant 0 : index
    %179 = vector.load %arg4[%178, %c0_42, %c0_43] : memref<8x2x1xf32, #tpu.memory_space<vmem>>, vector<1x2x1xf32>
    %180 = vector.shape_cast %179 : vector<1x2x1xf32> to vector<2x1xf32>
    %181 = vector.broadcast %177 : vector<2x1xf32> to vector<2x16xf32>
    %182 = arith.mulf %181, %149 : vector<2x16xf32>
    %183 = arith.index_cast %c1_i32 : i32 to index
    %c0_44 = arith.constant 0 : index
    %c0_45 = arith.constant 0 : index
    %184 = vector.load %arg5[%183, %c0_44, %c0_45] : memref<8x2x16xf32, #tpu.memory_space<vmem>>, vector<1x2x16xf32>
    %185 = vector.shape_cast %184 : vector<1x2x16xf32> to vector<2x16xf32>
    %186 = vector.shape_cast %182 : vector<2x16xf32> to vector<1x2x16xf32>
    tpu.vector_store %arg5[%183, %c0_44, %c0_45], %186 {strides = array<i32>} : memref<8x2x16xf32, #tpu.memory_space<vmem>>, vector<1x2x16xf32>,
    %187 = vector.broadcast %180 : vector<2x1xf32> to vector<2x16xf32>
    %188 = arith.mulf %187, %174 : vector<2x16xf32>
    %189 = arith.index_cast %112 : i32 to index
    %c0_46 = arith.constant 0 : index
    %c0_47 = arith.constant 0 : index
    %190 = vector.load %arg6[%189, %c0_46, %c0_47] : memref<8x2x16xf32, #tpu.memory_space<vmem>>, vector<1x2x16xf32>
    %191 = vector.shape_cast %190 : vector<1x2x16xf32> to vector<2x16xf32>
    %192 = vector.shape_cast %188 : vector<2x16xf32> to vector<1x2x16xf32>
    tpu.vector_store %arg6[%189, %c0_46, %c0_47], %192 {strides = array<i32>} : memref<8x2x16xf32, #tpu.memory_space<vmem>>, vector<1x2x16xf32>,
    %193 = vector.broadcast %177 : vector<2x1xf32> to vector<2x16xf32>
    %194 = arith.mulf %193, %149 : vector<2x16xf32>
    %cst_48 = arith.constant 1.000000e+00 : f32
    %195 = vector.broadcast %cst_48 : f32 to vector<2x1xf32>
    %196 = arith.subf %195, %177 : vector<2x1xf32>
    %197 = vector.broadcast %196 : vector<2x1xf32> to vector<2x16xf32>
    %198 = arith.mulf %197, %90 : vector<2x16xf32>
    %199 = arith.addf %194, %198 : vector<2x16xf32>
    %200 = vector.broadcast %177 : vector<2x1xf32> to vector<2x16xf32>
    %201 = arith.mulf %200, %147 : vector<2x16xf32>
    %cst_49 = arith.constant 1.000000e+00 : f32
    %202 = vector.broadcast %cst_49 : f32 to vector<2x1xf32>
    %203 = arith.subf %202, %177 : vector<2x1xf32>
    %204 = vector.broadcast %203 : vector<2x1xf32> to vector<2x16xf32>
    %205 = arith.mulf %204, %97 : vector<2x16xf32>
    %206 = arith.addf %201, %205 : vector<2x16xf32>
    %207 = vector.broadcast %180 : vector<2x1xf32> to vector<2x16xf32>
    %208 = arith.mulf %207, %174 : vector<2x16xf32>
    %cst_50 = arith.constant 1.000000e+00 : f32
    %209 = vector.broadcast %cst_50 : f32 to vector<2x1xf32>
    %210 = arith.subf %209, %180 : vector<2x1xf32>
    %211 = vector.broadcast %210 : vector<2x1xf32> to vector<2x16xf32>
    %212 = arith.mulf %211, %104 : vector<2x16xf32>
    %213 = arith.addf %208, %212 : vector<2x16xf32>
    %214 = vector.broadcast %180 : vector<2x1xf32> to vector<2x16xf32>
    %215 = arith.mulf %214, %172 : vector<2x16xf32>
    %cst_51 = arith.constant 1.000000e+00 : f32
    %216 = vector.broadcast %cst_51 : f32 to vector<2x1xf32>
    %217 = arith.subf %216, %180 : vector<2x1xf32>
    %218 = vector.broadcast %217 : vector<2x1xf32> to vector<2x16xf32>
    %219 = arith.mulf %218, %111 : vector<2x16xf32>
    %220 = arith.addf %215, %219 : vector<2x16xf32>
    %c2_i32 = arith.constant 2 : i32
    %c7_i32_52 = arith.constant 7 : i32
    %221 = arith.subi %c7_i32_52, %c2_i32 : i32
    %222 = arith.index_cast %c2_i32 : i32 to index
    %c0_53 = arith.constant 0 : index
    %c0_54 = arith.constant 0 : index
    %223 = vector.load %arg0[%222, %c0_53, %c0_54] : memref<8x2x64xf32, #tpu.memory_space<vmem>>, vector<1x2x64xf32>
    %224 = vector.shape_cast %223 : vector<1x2x64xf32> to vector<2x64xf32>
    %225 = arith.truncf %199 : vector<2x16xf32> to vector<2x16xbf16>
    %cst_55 = arith.constant dense<0.000000e+00> : vector<2x64xf32>
    %226 = tpu.matmul %225, %0, %cst_55 {dimension_numbers = #tpu.dot_dimension_numbers<[1], [0], [0], [1], [0, 0, 1, 1], [], []>} : vector<2x16xbf16>, vector<16x64xbf16>, vector<2x64xf32> -> vector<2x64xf32>
    %227 = arith.addf %224, %226 : vector<2x64xf32>
    %228 = arith.index_cast %221 : i32 to index
    %c0_56 = arith.constant 0 : index
    %c0_57 = arith.constant 0 : index
    %229 = vector.load %arg1[%228, %c0_56, %c0_57] : memref<8x2x64xf32, #tpu.memory_space<vmem>>, vector<1x2x64xf32>
    %230 = vector.shape_cast %229 : vector<1x2x64xf32> to vector<2x64xf32>
    %231 = arith.truncf %213 : vector<2x16xf32> to vector<2x16xbf16>
    %cst_58 = arith.constant dense<0.000000e+00> : vector<2x64xf32>
    %232 = tpu.matmul %231, %1, %cst_58 {dimension_numbers = #tpu.dot_dimension_numbers<[1], [0], [0], [1], [0, 0, 1, 1], [], []>} : vector<2x16xbf16>, vector<16x64xbf16>, vector<2x64xf32> -> vector<2x64xf32>
    %233 = arith.addf %230, %232 : vector<2x64xf32>
    %234 = vector.extract_strided_slice %227 {offsets = [0, 0], sizes = [2, 16], strides = [1, 1]} : vector<2x64xf32> to vector<2x16xf32>
    %235 = arith.negf %234 : vector<2x16xf32>
    %236 = math.exp %235 : vector<2x16xf32>
    %cst_59 = arith.constant 1.000000e+00 : f32
    %237 = vector.broadcast %cst_59 : f32 to vector<2x16xf32>
    %238 = arith.addf %237, %236 : vector<2x16xf32>
    %239 = arith.divf %237, %238 : vector<2x16xf32>
    %240 = vector.extract_strided_slice %227 {offsets = [0, 16], sizes = [2, 16], strides = [1, 1]} : vector<2x64xf32> to vector<2x16xf32>
    %241 = arith.negf %240 : vector<2x16xf32>
    %242 = math.exp %241 : vector<2x16xf32>
    %cst_60 = arith.constant 1.000000e+00 : f32
    %243 = vector.broadcast %cst_60 : f32 to vector<2x16xf32>
    %244 = arith.addf %243, %242 : vector<2x16xf32>
    %245 = arith.divf %243, %244 : vector<2x16xf32>
    %246 = vector.extract_strided_slice %227 {offsets = [0, 32], sizes = [2, 16], strides = [1, 1]} : vector<2x64xf32> to vector<2x16xf32>
    %247 = math.tanh %246 : vector<2x16xf32>
    %248 = vector.extract_strided_slice %227 {offsets = [0, 48], sizes = [2, 16], strides = [1, 1]} : vector<2x64xf32> to vector<2x16xf32>
    %249 = arith.negf %248 : vector<2x16xf32>
    %250 = math.exp %249 : vector<2x16xf32>
    %cst_61 = arith.constant 1.000000e+00 : f32
    %251 = vector.broadcast %cst_61 : f32 to vector<2x16xf32>
    %252 = arith.addf %251, %250 : vector<2x16xf32>
    %253 = arith.divf %251, %252 : vector<2x16xf32>
    %254 = arith.mulf %245, %206 : vector<2x16xf32>
    %255 = arith.mulf %239, %247 : vector<2x16xf32>
    %256 = arith.addf %254, %255 : vector<2x16xf32>
    %257 = math.tanh %256 : vector<2x16xf32>
    %258 = arith.mulf %253, %257 : vector<2x16xf32>
    %259 = vector.extract_strided_slice %233 {offsets = [0, 0], sizes = [2, 16], strides = [1, 1]} : vector<2x64xf32> to vector<2x16xf32>
    %260 = arith.negf %259 : vector<2x16xf32>
    %261 = math.exp %260 : vector<2x16xf32>
    %cst_62 = arith.constant 1.000000e+00 : f32
    %262 = vector.broadcast %cst_62 : f32 to vector<2x16xf32>
    %263 = arith.addf %262, %261 : vector<2x16xf32>
    %264 = arith.divf %262, %263 : vector<2x16xf32>
    %265 = vector.extract_strided_slice %233 {offsets = [0, 16], sizes = [2, 16], strides = [1, 1]} : vector<2x64xf32> to vector<2x16xf32>
    %266 = arith.negf %265 : vector<2x16xf32>
    %267 = math.exp %266 : vector<2x16xf32>
    %cst_63 = arith.constant 1.000000e+00 : f32
    %268 = vector.broadcast %cst_63 : f32 to vector<2x16xf32>
    %269 = arith.addf %268, %267 : vector<2x16xf32>
    %270 = arith.divf %268, %269 : vector<2x16xf32>
    %271 = vector.extract_strided_slice %233 {offsets = [0, 32], sizes = [2, 16], strides = [1, 1]} : vector<2x64xf32> to vector<2x16xf32>
    %272 = math.tanh %271 : vector<2x16xf32>
    %273 = vector.extract_strided_slice %233 {offsets = [0, 48], sizes = [2, 16], strides = [1, 1]} : vector<2x64xf32> to vector<2x16xf32>
    %274 = arith.negf %273 : vector<2x16xf32>
    %275 = math.exp %274 : vector<2x16xf32>
    %cst_64 = arith.constant 1.000000e+00 : f32
    %276 = vector.broadcast %cst_64 : f32 to vector<2x16xf32>
    %277 = arith.addf %276, %275 : vector<2x16xf32>
    %278 = arith.divf %276, %277 : vector<2x16xf32>
    %279 = arith.mulf %270, %220 : vector<2x16xf32>
    %280 = arith.mulf %264, %272 : vector<2x16xf32>
    %281 = arith.addf %279, %280 : vector<2x16xf32>
    %282 = math.tanh %281 : vector<2x16xf32>
    %283 = arith.mulf %278, %282 : vector<2x16xf32>
    %284 = arith.index_cast %c2_i32 : i32 to index
    %c0_65 = arith.constant 0 : index
    %c0_66 = arith.constant 0 : index
    %285 = vector.load %arg4[%284, %c0_65, %c0_66] : memref<8x2x1xf32, #tpu.memory_space<vmem>>, vector<1x2x1xf32>
    %286 = vector.shape_cast %285 : vector<1x2x1xf32> to vector<2x1xf32>
    %287 = arith.index_cast %221 : i32 to index
    %c0_67 = arith.constant 0 : index
    %c0_68 = arith.constant 0 : index
    %288 = vector.load %arg4[%287, %c0_67, %c0_68] : memref<8x2x1xf32, #tpu.memory_space<vmem>>, vector<1x2x1xf32>
    %289 = vector.shape_cast %288 : vector<1x2x1xf32> to vector<2x1xf32>
    %290 = vector.broadcast %286 : vector<2x1xf32> to vector<2x16xf32>
    %291 = arith.mulf %290, %258 : vector<2x16xf32>
    %292 = arith.index_cast %c2_i32 : i32 to index
    %c0_69 = arith.constant 0 : index
    %c0_70 = arith.constant 0 : index
    %293 = vector.load %arg5[%292, %c0_69, %c0_70] : memref<8x2x16xf32, #tpu.memory_space<vmem>>, vector<1x2x16xf32>
    %294 = vector.shape_cast %293 : vector<1x2x16xf32> to vector<2x16xf32>
    %295 = vector.shape_cast %291 : vector<2x16xf32> to vector<1x2x16xf32>
    tpu.vector_store %arg5[%292, %c0_69, %c0_70], %295 {strides = array<i32>} : memref<8x2x16xf32, #tpu.memory_space<vmem>>, vector<1x2x16xf32>,
    %296 = vector.broadcast %289 : vector<2x1xf32> to vector<2x16xf32>
    %297 = arith.mulf %296, %283 : vector<2x16xf32>
    %298 = arith.index_cast %221 : i32 to index
    %c0_71 = arith.constant 0 : index
    %c0_72 = arith.constant 0 : index
    %299 = vector.load %arg6[%298, %c0_71, %c0_72] : memref<8x2x16xf32, #tpu.memory_space<vmem>>, vector<1x2x16xf32>
    %300 = vector.shape_cast %299 : vector<1x2x16xf32> to vector<2x16xf32>
    %301 = vector.shape_cast %297 : vector<2x16xf32> to vector<1x2x16xf32>
    tpu.vector_store %arg6[%298, %c0_71, %c0_72], %301 {strides = array<i32>} : memref<8x2x16xf32, #tpu.memory_space<vmem>>, vector<1x2x16xf32>,
    %302 = vector.broadcast %286 : vector<2x1xf32> to vector<2x16xf32>
    %303 = arith.mulf %302, %258 : vector<2x16xf32>
    %cst_73 = arith.constant 1.000000e+00 : f32
    %304 = vector.broadcast %cst_73 : f32 to vector<2x1xf32>
    %305 = arith.subf %304, %286 : vector<2x1xf32>
    %306 = vector.broadcast %305 : vector<2x1xf32> to vector<2x16xf32>
    %307 = arith.mulf %306, %199 : vector<2x16xf32>
    %308 = arith.addf %303, %307 : vector<2x16xf32>
    %309 = vector.broadcast %286 : vector<2x1xf32> to vector<2x16xf32>
    %310 = arith.mulf %309, %256 : vector<2x16xf32>
    %cst_74 = arith.constant 1.000000e+00 : f32
    %311 = vector.broadcast %cst_74 : f32 to vector<2x1xf32>
    %312 = arith.subf %311, %286 : vector<2x1xf32>
    %313 = vector.broadcast %312 : vector<2x1xf32> to vector<2x16xf32>
    %314 = arith.mulf %313, %206 : vector<2x16xf32>
    %315 = arith.addf %310, %314 : vector<2x16xf32>
    %316 = vector.broadcast %289 : vector<2x1xf32> to vector<2x16xf32>
    %317 = arith.mulf %316, %283 : vector<2x16xf32>
    %cst_75 = arith.constant 1.000000e+00 : f32
    %318 = vector.broadcast %cst_75 : f32 to vector<2x1xf32>
    %319 = arith.subf %318, %289 : vector<2x1xf32>
    %320 = vector.broadcast %319 : vector<2x1xf32> to vector<2x16xf32>
    %321 = arith.mulf %320, %213 : vector<2x16xf32>
    %322 = arith.addf %317, %321 : vector<2x16xf32>
    %323 = vector.broadcast %289 : vector<2x1xf32> to vector<2x16xf32>
    %324 = arith.mulf %323, %281 : vector<2x16xf32>
    %cst_76 = arith.constant 1.000000e+00 : f32
    %325 = vector.broadcast %cst_76 : f32 to vector<2x1xf32>
    %326 = arith.subf %325, %289 : vector<2x1xf32>
    %327 = vector.broadcast %326 : vector<2x1xf32> to vector<2x16xf32>
    %328 = arith.mulf %327, %220 : vector<2x16xf32>
    %329 = arith.addf %324, %328 : vector<2x16xf32>
    %c3_i32 = arith.constant 3 : i32
    %c7_i32_77 = arith.constant 7 : i32
    %330 = arith.subi %c7_i32_77, %c3_i32 : i32
    %331 = arith.index_cast %c3_i32 : i32 to index
    %c0_78 = arith.constant 0 : index
    %c0_79 = arith.constant 0 : index
    %332 = vector.load %arg0[%331, %c0_78, %c0_79] : memref<8x2x64xf32, #tpu.memory_space<vmem>>, vector<1x2x64xf32>
    %333 = vector.shape_cast %332 : vector<1x2x64xf32> to vector<2x64xf32>
    %334 = arith.truncf %308 : vector<2x16xf32> to vector<2x16xbf16>
    %cst_80 = arith.constant dense<0.000000e+00> : vector<2x64xf32>
    %335 = tpu.matmul %334, %0, %cst_80 {dimension_numbers = #tpu.dot_dimension_numbers<[1], [0], [0], [1], [0, 0, 1, 1], [], []>} : vector<2x16xbf16>, vector<16x64xbf16>, vector<2x64xf32> -> vector<2x64xf32>
    %336 = arith.addf %333, %335 : vector<2x64xf32>
    %337 = arith.index_cast %330 : i32 to index
    %c0_81 = arith.constant 0 : index
    %c0_82 = arith.constant 0 : index
    %338 = vector.load %arg1[%337, %c0_81, %c0_82] : memref<8x2x64xf32, #tpu.memory_space<vmem>>, vector<1x2x64xf32>
    %339 = vector.shape_cast %338 : vector<1x2x64xf32> to vector<2x64xf32>
    %340 = arith.truncf %322 : vector<2x16xf32> to vector<2x16xbf16>
    %cst_83 = arith.constant dense<0.000000e+00> : vector<2x64xf32>
    %341 = tpu.matmul %340, %1, %cst_83 {dimension_numbers = #tpu.dot_dimension_numbers<[1], [0], [0], [1], [0, 0, 1, 1], [], []>} : vector<2x16xbf16>, vector<16x64xbf16>, vector<2x64xf32> -> vector<2x64xf32>
    %342 = arith.addf %339, %341 : vector<2x64xf32>
    %343 = vector.extract_strided_slice %336 {offsets = [0, 0], sizes = [2, 16], strides = [1, 1]} : vector<2x64xf32> to vector<2x16xf32>
    %344 = arith.negf %343 : vector<2x16xf32>
    %345 = math.exp %344 : vector<2x16xf32>
    %cst_84 = arith.constant 1.000000e+00 : f32
    %346 = vector.broadcast %cst_84 : f32 to vector<2x16xf32>
    %347 = arith.addf %346, %345 : vector<2x16xf32>
    %348 = arith.divf %346, %347 : vector<2x16xf32>
    %349 = vector.extract_strided_slice %336 {offsets = [0, 16], sizes = [2, 16], strides = [1, 1]} : vector<2x64xf32> to vector<2x16xf32>
    %350 = arith.negf %349 : vector<2x16xf32>
    %351 = math.exp %350 : vector<2x16xf32>
    %cst_85 = arith.constant 1.000000e+00 : f32
    %352 = vector.broadcast %cst_85 : f32 to vector<2x16xf32>
    %353 = arith.addf %352, %351 : vector<2x16xf32>
    %354 = arith.divf %352, %353 : vector<2x16xf32>
    %355 = vector.extract_strided_slice %336 {offsets = [0, 32], sizes = [2, 16], strides = [1, 1]} : vector<2x64xf32> to vector<2x16xf32>
    %356 = math.tanh %355 : vector<2x16xf32>
    %357 = vector.extract_strided_slice %336 {offsets = [0, 48], sizes = [2, 16], strides = [1, 1]} : vector<2x64xf32> to vector<2x16xf32>
    %358 = arith.negf %357 : vector<2x16xf32>
    %359 = math.exp %358 : vector<2x16xf32>
    %cst_86 = arith.constant 1.000000e+00 : f32
    %360 = vector.broadcast %cst_86 : f32 to vector<2x16xf32>
    %361 = arith.addf %360, %359 : vector<2x16xf32>
    %362 = arith.divf %360, %361 : vector<2x16xf32>
    %363 = arith.mulf %354, %315 : vector<2x16xf32>
    %364 = arith.mulf %348, %356 : vector<2x16xf32>
    %365 = arith.addf %363, %364 : vector<2x16xf32>
    %366 = math.tanh %365 : vector<2x16xf32>
    %367 = arith.mulf %362, %366 : vector<2x16xf32>
    %368 = vector.extract_strided_slice %342 {offsets = [0, 0], sizes = [2, 16], strides = [1, 1]} : vector<2x64xf32> to vector<2x16xf32>
    %369 = arith.negf %368 : vector<2x16xf32>
    %370 = math.exp %369 : vector<2x16xf32>
    %cst_87 = arith.constant 1.000000e+00 : f32
    %371 = vector.broadcast %cst_87 : f32 to vector<2x16xf32>
    %372 = arith.addf %371, %370 : vector<2x16xf32>
    %373 = arith.divf %371, %372 : vector<2x16xf32>
    %374 = vector.extract_strided_slice %342 {offsets = [0, 16], sizes = [2, 16], strides = [1, 1]} : vector<2x64xf32> to vector<2x16xf32>
    %375 = arith.negf %374 : vector<2x16xf32>
    %376 = math.exp %375 : vector<2x16xf32>
    %cst_88 = arith.constant 1.000000e+00 : f32
    %377 = vector.broadcast %cst_88 : f32 to vector<2x16xf32>
    %378 = arith.addf %377, %376 : vector<2x16xf32>
    %379 = arith.divf %377, %378 : vector<2x16xf32>
    %380 = vector.extract_strided_slice %342 {offsets = [0, 32], sizes = [2, 16], strides = [1, 1]} : vector<2x64xf32> to vector<2x16xf32>
    %381 = math.tanh %380 : vector<2x16xf32>
    %382 = vector.extract_strided_slice %342 {offsets = [0, 48], sizes = [2, 16], strides = [1, 1]} : vector<2x64xf32> to vector<2x16xf32>
    %383 = arith.negf %382 : vector<2x16xf32>
    %384 = math.exp %383 : vector<2x16xf32>
    %cst_89 = arith.constant 1.000000e+00 : f32
    %385 = vector.broadcast %cst_89 : f32 to vector<2x16xf32>
    %386 = arith.addf %385, %384 : vector<2x16xf32>
    %387 = arith.divf %385, %386 : vector<2x16xf32>
    %388 = arith.mulf %379, %329 : vector<2x16xf32>
    %389 = arith.mulf %373, %381 : vector<2x16xf32>
    %390 = arith.addf %388, %389 : vector<2x16xf32>
    %391 = math.tanh %390 : vector<2x16xf32>
    %392 = arith.mulf %387, %391 : vector<2x16xf32>
    %393 = arith.index_cast %c3_i32 : i32 to index
    %c0_90 = arith.constant 0 : index
    %c0_91 = arith.constant 0 : index
    %394 = vector.load %arg4[%393, %c0_90, %c0_91] : memref<8x2x1xf32, #tpu.memory_space<vmem>>, vector<1x2x1xf32>
    %395 = vector.shape_cast %394 : vector<1x2x1xf32> to vector<2x1xf32>
    %396 = arith.index_cast %330 : i32 to index
    %c0_92 = arith.constant 0 : index
    %c0_93 = arith.constant 0 : index
    %397 = vector.load %arg4[%396, %c0_92, %c0_93] : memref<8x2x1xf32, #tpu.memory_space<vmem>>, vector<1x2x1xf32>
    %398 = vector.shape_cast %397 : vector<1x2x1xf32> to vector<2x1xf32>
    %399 = vector.broadcast %395 : vector<2x1xf32> to vector<2x16xf32>
    %400 = arith.mulf %399, %367 : vector<2x16xf32>
    %401 = arith.index_cast %c3_i32 : i32 to index
    %c0_94 = arith.constant 0 : index
    %c0_95 = arith.constant 0 : index
    %402 = vector.load %arg5[%401, %c0_94, %c0_95] : memref<8x2x16xf32, #tpu.memory_space<vmem>>, vector<1x2x16xf32>
    %403 = vector.shape_cast %402 : vector<1x2x16xf32> to vector<2x16xf32>
    %404 = vector.shape_cast %400 : vector<2x16xf32> to vector<1x2x16xf32>
    tpu.vector_store %arg5[%401, %c0_94, %c0_95], %404 {strides = array<i32>} : memref<8x2x16xf32, #tpu.memory_space<vmem>>, vector<1x2x16xf32>,
    %405 = vector.broadcast %398 : vector<2x1xf32> to vector<2x16xf32>
    %406 = arith.mulf %405, %392 : vector<2x16xf32>
    %407 = arith.index_cast %330 : i32 to index
    %c0_96 = arith.constant 0 : index
    %c0_97 = arith.constant 0 : index
    %408 = vector.load %arg6[%407, %c0_96, %c0_97] : memref<8x2x16xf32, #tpu.memory_space<vmem>>, vector<1x2x16xf32>
    %409 = vector.shape_cast %408 : vector<1x2x16xf32> to vector<2x16xf32>
    %410 = vector.shape_cast %406 : vector<2x16xf32> to vector<1x2x16xf32>
    tpu.vector_store %arg6[%407, %c0_96, %c0_97], %410 {strides = array<i32>} : memref<8x2x16xf32, #tpu.memory_space<vmem>>, vector<1x2x16xf32>,
    %411 = vector.broadcast %395 : vector<2x1xf32> to vector<2x16xf32>
    %412 = arith.mulf %411, %367 : vector<2x16xf32>
    %cst_98 = arith.constant 1.000000e+00 : f32
    %413 = vector.broadcast %cst_98 : f32 to vector<2x1xf32>
    %414 = arith.subf %413, %395 : vector<2x1xf32>
    %415 = vector.broadcast %414 : vector<2x1xf32> to vector<2x16xf32>
    %416 = arith.mulf %415, %308 : vector<2x16xf32>
    %417 = arith.addf %412, %416 : vector<2x16xf32>
    %418 = vector.broadcast %395 : vector<2x1xf32> to vector<2x16xf32>
    %419 = arith.mulf %418, %365 : vector<2x16xf32>
    %cst_99 = arith.constant 1.000000e+00 : f32
    %420 = vector.broadcast %cst_99 : f32 to vector<2x1xf32>
    %421 = arith.subf %420, %395 : vector<2x1xf32>
    %422 = vector.broadcast %421 : vector<2x1xf32> to vector<2x16xf32>
    %423 = arith.mulf %422, %315 : vector<2x16xf32>
    %424 = arith.addf %419, %423 : vector<2x16xf32>
    %425 = vector.broadcast %398 : vector<2x1xf32> to vector<2x16xf32>
    %426 = arith.mulf %425, %392 : vector<2x16xf32>
    %cst_100 = arith.constant 1.000000e+00 : f32
    %427 = vector.broadcast %cst_100 : f32 to vector<2x1xf32>
    %428 = arith.subf %427, %398 : vector<2x1xf32>
    %429 = vector.broadcast %428 : vector<2x1xf32> to vector<2x16xf32>
    %430 = arith.mulf %429, %322 : vector<2x16xf32>
    %431 = arith.addf %426, %430 : vector<2x16xf32>
    %432 = vector.broadcast %398 : vector<2x1xf32> to vector<2x16xf32>
    %433 = arith.mulf %432, %390 : vector<2x16xf32>
    %cst_101 = arith.constant 1.000000e+00 : f32
    %434 = vector.broadcast %cst_101 : f32 to vector<2x1xf32>
    %435 = arith.subf %434, %398 : vector<2x1xf32>
    %436 = vector.broadcast %435 : vector<2x1xf32> to vector<2x16xf32>
    %437 = arith.mulf %436, %329 : vector<2x16xf32>
    %438 = arith.addf %433, %437 : vector<2x16xf32>
    %c4_i32 = arith.constant 4 : i32
    %c7_i32_102 = arith.constant 7 : i32
    %439 = arith.subi %c7_i32_102, %c4_i32 : i32
    %440 = arith.index_cast %c4_i32 : i32 to index
    %c0_103 = arith.constant 0 : index
    %c0_104 = arith.constant 0 : index
    %441 = vector.load %arg0[%440, %c0_103, %c0_104] : memref<8x2x64xf32, #tpu.memory_space<vmem>>, vector<1x2x64xf32>
    %442 = vector.shape_cast %441 : vector<1x2x64xf32> to vector<2x64xf32>
    %443 = arith.truncf %417 : vector<2x16xf32> to vector<2x16xbf16>
    %cst_105 = arith.constant dense<0.000000e+00> : vector<2x64xf32>
    %444 = tpu.matmul %443, %0, %cst_105 {dimension_numbers = #tpu.dot_dimension_numbers<[1], [0], [0], [1], [0, 0, 1, 1], [], []>} : vector<2x16xbf16>, vector<16x64xbf16>, vector<2x64xf32> -> vector<2x64xf32>
    %445 = arith.addf %442, %444 : vector<2x64xf32>
    %446 = arith.index_cast %439 : i32 to index
    %c0_106 = arith.constant 0 : index
    %c0_107 = arith.constant 0 : index
    %447 = vector.load %arg1[%446, %c0_106, %c0_107] : memref<8x2x64xf32, #tpu.memory_space<vmem>>, vector<1x2x64xf32>
    %448 = vector.shape_cast %447 : vector<1x2x64xf32> to vector<2x64xf32>
    %449 = arith.truncf %431 : vector<2x16xf32> to vector<2x16xbf16>
    %cst_108 = arith.constant dense<0.000000e+00> : vector<2x64xf32>
    %450 = tpu.matmul %449, %1, %cst_108 {dimension_numbers = #tpu.dot_dimension_numbers<[1], [0], [0], [1], [0, 0, 1, 1], [], []>} : vector<2x16xbf16>, vector<16x64xbf16>, vector<2x64xf32> -> vector<2x64xf32>
    %451 = arith.addf %448, %450 : vector<2x64xf32>
    %452 = vector.extract_strided_slice %445 {offsets = [0, 0], sizes = [2, 16], strides = [1, 1]} : vector<2x64xf32> to vector<2x16xf32>
    %453 = arith.negf %452 : vector<2x16xf32>
    %454 = math.exp %453 : vector<2x16xf32>
    %cst_109 = arith.constant 1.000000e+00 : f32
    %455 = vector.broadcast %cst_109 : f32 to vector<2x16xf32>
    %456 = arith.addf %455, %454 : vector<2x16xf32>
    %457 = arith.divf %455, %456 : vector<2x16xf32>
    %458 = vector.extract_strided_slice %445 {offsets = [0, 16], sizes = [2, 16], strides = [1, 1]} : vector<2x64xf32> to vector<2x16xf32>
    %459 = arith.negf %458 : vector<2x16xf32>
    %460 = math.exp %459 : vector<2x16xf32>
    %cst_110 = arith.constant 1.000000e+00 : f32
    %461 = vector.broadcast %cst_110 : f32 to vector<2x16xf32>
    %462 = arith.addf %461, %460 : vector<2x16xf32>
    %463 = arith.divf %461, %462 : vector<2x16xf32>
    %464 = vector.extract_strided_slice %445 {offsets = [0, 32], sizes = [2, 16], strides = [1, 1]} : vector<2x64xf32> to vector<2x16xf32>
    %465 = math.tanh %464 : vector<2x16xf32>
    %466 = vector.extract_strided_slice %445 {offsets = [0, 48], sizes = [2, 16], strides = [1, 1]} : vector<2x64xf32> to vector<2x16xf32>
    %467 = arith.negf %466 : vector<2x16xf32>
    %468 = math.exp %467 : vector<2x16xf32>
    %cst_111 = arith.constant 1.000000e+00 : f32
    %469 = vector.broadcast %cst_111 : f32 to vector<2x16xf32>
    %470 = arith.addf %469, %468 : vector<2x16xf32>
    %471 = arith.divf %469, %470 : vector<2x16xf32>
    %472 = arith.mulf %463, %424 : vector<2x16xf32>
    %473 = arith.mulf %457, %465 : vector<2x16xf32>
    %474 = arith.addf %472, %473 : vector<2x16xf32>
    %475 = math.tanh %474 : vector<2x16xf32>
    %476 = arith.mulf %471, %475 : vector<2x16xf32>
    %477 = vector.extract_strided_slice %451 {offsets = [0, 0], sizes = [2, 16], strides = [1, 1]} : vector<2x64xf32> to vector<2x16xf32>
    %478 = arith.negf %477 : vector<2x16xf32>
    %479 = math.exp %478 : vector<2x16xf32>
    %cst_112 = arith.constant 1.000000e+00 : f32
    %480 = vector.broadcast %cst_112 : f32 to vector<2x16xf32>
    %481 = arith.addf %480, %479 : vector<2x16xf32>
    %482 = arith.divf %480, %481 : vector<2x16xf32>
    %483 = vector.extract_strided_slice %451 {offsets = [0, 16], sizes = [2, 16], strides = [1, 1]} : vector<2x64xf32> to vector<2x16xf32>
    %484 = arith.negf %483 : vector<2x16xf32>
    %485 = math.exp %484 : vector<2x16xf32>
    %cst_113 = arith.constant 1.000000e+00 : f32
    %486 = vector.broadcast %cst_113 : f32 to vector<2x16xf32>
    %487 = arith.addf %486, %485 : vector<2x16xf32>
    %488 = arith.divf %486, %487 : vector<2x16xf32>
    %489 = vector.extract_strided_slice %451 {offsets = [0, 32], sizes = [2, 16], strides = [1, 1]} : vector<2x64xf32> to vector<2x16xf32>
    %490 = math.tanh %489 : vector<2x16xf32>
    %491 = vector.extract_strided_slice %451 {offsets = [0, 48], sizes = [2, 16], strides = [1, 1]} : vector<2x64xf32> to vector<2x16xf32>
    %492 = arith.negf %491 : vector<2x16xf32>
    %493 = math.exp %492 : vector<2x16xf32>
    %cst_114 = arith.constant 1.000000e+00 : f32
    %494 = vector.broadcast %cst_114 : f32 to vector<2x16xf32>
    %495 = arith.addf %494, %493 : vector<2x16xf32>
    %496 = arith.divf %494, %495 : vector<2x16xf32>
    %497 = arith.mulf %488, %438 : vector<2x16xf32>
    %498 = arith.mulf %482, %490 : vector<2x16xf32>
    %499 = arith.addf %497, %498 : vector<2x16xf32>
    %500 = math.tanh %499 : vector<2x16xf32>
    %501 = arith.mulf %496, %500 : vector<2x16xf32>
    %502 = arith.index_cast %c4_i32 : i32 to index
    %c0_115 = arith.constant 0 : index
    %c0_116 = arith.constant 0 : index
    %503 = vector.load %arg4[%502, %c0_115, %c0_116] : memref<8x2x1xf32, #tpu.memory_space<vmem>>, vector<1x2x1xf32>
    %504 = vector.shape_cast %503 : vector<1x2x1xf32> to vector<2x1xf32>
    %505 = arith.index_cast %439 : i32 to index
    %c0_117 = arith.constant 0 : index
    %c0_118 = arith.constant 0 : index
    %506 = vector.load %arg4[%505, %c0_117, %c0_118] : memref<8x2x1xf32, #tpu.memory_space<vmem>>, vector<1x2x1xf32>
    %507 = vector.shape_cast %506 : vector<1x2x1xf32> to vector<2x1xf32>
    %508 = vector.broadcast %504 : vector<2x1xf32> to vector<2x16xf32>
    %509 = arith.mulf %508, %476 : vector<2x16xf32>
    %510 = arith.index_cast %c4_i32 : i32 to index
    %c0_119 = arith.constant 0 : index
    %c0_120 = arith.constant 0 : index
    %511 = vector.load %arg5[%510, %c0_119, %c0_120] : memref<8x2x16xf32, #tpu.memory_space<vmem>>, vector<1x2x16xf32>
    %512 = vector.shape_cast %511 : vector<1x2x16xf32> to vector<2x16xf32>
    %513 = vector.shape_cast %509 : vector<2x16xf32> to vector<1x2x16xf32>
    tpu.vector_store %arg5[%510, %c0_119, %c0_120], %513 {strides = array<i32>} : memref<8x2x16xf32, #tpu.memory_space<vmem>>, vector<1x2x16xf32>,
    %514 = vector.broadcast %507 : vector<2x1xf32> to vector<2x16xf32>
    %515 = arith.mulf %514, %501 : vector<2x16xf32>
    %516 = arith.index_cast %439 : i32 to index
    %c0_121 = arith.constant 0 : index
    %c0_122 = arith.constant 0 : index
    %517 = vector.load %arg6[%516, %c0_121, %c0_122] : memref<8x2x16xf32, #tpu.memory_space<vmem>>, vector<1x2x16xf32>
    %518 = vector.shape_cast %517 : vector<1x2x16xf32> to vector<2x16xf32>
    %519 = vector.shape_cast %515 : vector<2x16xf32> to vector<1x2x16xf32>
    tpu.vector_store %arg6[%516, %c0_121, %c0_122], %519 {strides = array<i32>} : memref<8x2x16xf32, #tpu.memory_space<vmem>>, vector<1x2x16xf32>,
    %520 = vector.broadcast %504 : vector<2x1xf32> to vector<2x16xf32>
    %521 = arith.mulf %520, %476 : vector<2x16xf32>
    %cst_123 = arith.constant 1.000000e+00 : f32
    %522 = vector.broadcast %cst_123 : f32 to vector<2x1xf32>
    %523 = arith.subf %522, %504 : vector<2x1xf32>
    %524 = vector.broadcast %523 : vector<2x1xf32> to vector<2x16xf32>
    %525 = arith.mulf %524, %417 : vector<2x16xf32>
    %526 = arith.addf %521, %525 : vector<2x16xf32>
    %527 = vector.broadcast %504 : vector<2x1xf32> to vector<2x16xf32>
    %528 = arith.mulf %527, %474 : vector<2x16xf32>
    %cst_124 = arith.constant 1.000000e+00 : f32
    %529 = vector.broadcast %cst_124 : f32 to vector<2x1xf32>
    %530 = arith.subf %529, %504 : vector<2x1xf32>
    %531 = vector.broadcast %530 : vector<2x1xf32> to vector<2x16xf32>
    %532 = arith.mulf %531, %424 : vector<2x16xf32>
    %533 = arith.addf %528, %532 : vector<2x16xf32>
    %534 = vector.broadcast %507 : vector<2x1xf32> to vector<2x16xf32>
    %535 = arith.mulf %534, %501 : vector<2x16xf32>
    %cst_125 = arith.constant 1.000000e+00 : f32
    %536 = vector.broadcast %cst_125 : f32 to vector<2x1xf32>
    %537 = arith.subf %536, %507 : vector<2x1xf32>
    %538 = vector.broadcast %537 : vector<2x1xf32> to vector<2x16xf32>
    %539 = arith.mulf %538, %431 : vector<2x16xf32>
    %540 = arith.addf %535, %539 : vector<2x16xf32>
    %541 = vector.broadcast %507 : vector<2x1xf32> to vector<2x16xf32>
    %542 = arith.mulf %541, %499 : vector<2x16xf32>
    %cst_126 = arith.constant 1.000000e+00 : f32
    %543 = vector.broadcast %cst_126 : f32 to vector<2x1xf32>
    %544 = arith.subf %543, %507 : vector<2x1xf32>
    %545 = vector.broadcast %544 : vector<2x1xf32> to vector<2x16xf32>
    %546 = arith.mulf %545, %438 : vector<2x16xf32>
    %547 = arith.addf %542, %546 : vector<2x16xf32>
    %c5_i32 = arith.constant 5 : i32
    %c7_i32_127 = arith.constant 7 : i32
    %548 = arith.subi %c7_i32_127, %c5_i32 : i32
    %549 = arith.index_cast %c5_i32 : i32 to index
    %c0_128 = arith.constant 0 : index
    %c0_129 = arith.constant 0 : index
    %550 = vector.load %arg0[%549, %c0_128, %c0_129] : memref<8x2x64xf32, #tpu.memory_space<vmem>>, vector<1x2x64xf32>
    %551 = vector.shape_cast %550 : vector<1x2x64xf32> to vector<2x64xf32>
    %552 = arith.truncf %526 : vector<2x16xf32> to vector<2x16xbf16>
    %cst_130 = arith.constant dense<0.000000e+00> : vector<2x64xf32>
    %553 = tpu.matmul %552, %0, %cst_130 {dimension_numbers = #tpu.dot_dimension_numbers<[1], [0], [0], [1], [0, 0, 1, 1], [], []>} : vector<2x16xbf16>, vector<16x64xbf16>, vector<2x64xf32> -> vector<2x64xf32>
    %554 = arith.addf %551, %553 : vector<2x64xf32>
    %555 = arith.index_cast %548 : i32 to index
    %c0_131 = arith.constant 0 : index
    %c0_132 = arith.constant 0 : index
    %556 = vector.load %arg1[%555, %c0_131, %c0_132] : memref<8x2x64xf32, #tpu.memory_space<vmem>>, vector<1x2x64xf32>
    %557 = vector.shape_cast %556 : vector<1x2x64xf32> to vector<2x64xf32>
    %558 = arith.truncf %540 : vector<2x16xf32> to vector<2x16xbf16>
    %cst_133 = arith.constant dense<0.000000e+00> : vector<2x64xf32>
    %559 = tpu.matmul %558, %1, %cst_133 {dimension_numbers = #tpu.dot_dimension_numbers<[1], [0], [0], [1], [0, 0, 1, 1], [], []>} : vector<2x16xbf16>, vector<16x64xbf16>, vector<2x64xf32> -> vector<2x64xf32>
    %560 = arith.addf %557, %559 : vector<2x64xf32>
    %561 = vector.extract_strided_slice %554 {offsets = [0, 0], sizes = [2, 16], strides = [1, 1]} : vector<2x64xf32> to vector<2x16xf32>
    %562 = arith.negf %561 : vector<2x16xf32>
    %563 = math.exp %562 : vector<2x16xf32>
    %cst_134 = arith.constant 1.000000e+00 : f32
    %564 = vector.broadcast %cst_134 : f32 to vector<2x16xf32>
    %565 = arith.addf %564, %563 : vector<2x16xf32>
    %566 = arith.divf %564, %565 : vector<2x16xf32>
    %567 = vector.extract_strided_slice %554 {offsets = [0, 16], sizes = [2, 16], strides = [1, 1]} : vector<2x64xf32> to vector<2x16xf32>
    %568 = arith.negf %567 : vector<2x16xf32>
    %569 = math.exp %568 : vector<2x16xf32>
    %cst_135 = arith.constant 1.000000e+00 : f32
    %570 = vector.broadcast %cst_135 : f32 to vector<2x16xf32>
    %571 = arith.addf %570, %569 : vector<2x16xf32>
    %572 = arith.divf %570, %571 : vector<2x16xf32>
    %573 = vector.extract_strided_slice %554 {offsets = [0, 32], sizes = [2, 16], strides = [1, 1]} : vector<2x64xf32> to vector<2x16xf32>
    %574 = math.tanh %573 : vector<2x16xf32>
    %575 = vector.extract_strided_slice %554 {offsets = [0, 48], sizes = [2, 16], strides = [1, 1]} : vector<2x64xf32> to vector<2x16xf32>
    %576 = arith.negf %575 : vector<2x16xf32>
    %577 = math.exp %576 : vector<2x16xf32>
    %cst_136 = arith.constant 1.000000e+00 : f32
    %578 = vector.broadcast %cst_136 : f32 to vector<2x16xf32>
    %579 = arith.addf %578, %577 : vector<2x16xf32>
    %580 = arith.divf %578, %579 : vector<2x16xf32>
    %581 = arith.mulf %572, %533 : vector<2x16xf32>
    %582 = arith.mulf %566, %574 : vector<2x16xf32>
    %583 = arith.addf %581, %582 : vector<2x16xf32>
    %584 = math.tanh %583 : vector<2x16xf32>
    %585 = arith.mulf %580, %584 : vector<2x16xf32>
    %586 = vector.extract_strided_slice %560 {offsets = [0, 0], sizes = [2, 16], strides = [1, 1]} : vector<2x64xf32> to vector<2x16xf32>
    %587 = arith.negf %586 : vector<2x16xf32>
    %588 = math.exp %587 : vector<2x16xf32>
    %cst_137 = arith.constant 1.000000e+00 : f32
    %589 = vector.broadcast %cst_137 : f32 to vector<2x16xf32>
    %590 = arith.addf %589, %588 : vector<2x16xf32>
    %591 = arith.divf %589, %590 : vector<2x16xf32>
    %592 = vector.extract_strided_slice %560 {offsets = [0, 16], sizes = [2, 16], strides = [1, 1]} : vector<2x64xf32> to vector<2x16xf32>
    %593 = arith.negf %592 : vector<2x16xf32>
    %594 = math.exp %593 : vector<2x16xf32>
    %cst_138 = arith.constant 1.000000e+00 : f32
    %595 = vector.broadcast %cst_138 : f32 to vector<2x16xf32>
    %596 = arith.addf %595, %594 : vector<2x16xf32>
    %597 = arith.divf %595, %596 : vector<2x16xf32>
    %598 = vector.extract_strided_slice %560 {offsets = [0, 32], sizes = [2, 16], strides = [1, 1]} : vector<2x64xf32> to vector<2x16xf32>
    %599 = math.tanh %598 : vector<2x16xf32>
    %600 = vector.extract_strided_slice %560 {offsets = [0, 48], sizes = [2, 16], strides = [1, 1]} : vector<2x64xf32> to vector<2x16xf32>
    %601 = arith.negf %600 : vector<2x16xf32>
    %602 = math.exp %601 : vector<2x16xf32>
    %cst_139 = arith.constant 1.000000e+00 : f32
    %603 = vector.broadcast %cst_139 : f32 to vector<2x16xf32>
    %604 = arith.addf %603, %602 : vector<2x16xf32>
    %605 = arith.divf %603, %604 : vector<2x16xf32>
    %606 = arith.mulf %597, %547 : vector<2x16xf32>
    %607 = arith.mulf %591, %599 : vector<2x16xf32>
    %608 = arith.addf %606, %607 : vector<2x16xf32>
    %609 = math.tanh %608 : vector<2x16xf32>
    %610 = arith.mulf %605, %609 : vector<2x16xf32>
    %611 = arith.index_cast %c5_i32 : i32 to index
    %c0_140 = arith.constant 0 : index
    %c0_141 = arith.constant 0 : index
    %612 = vector.load %arg4[%611, %c0_140, %c0_141] : memref<8x2x1xf32, #tpu.memory_space<vmem>>, vector<1x2x1xf32>
    %613 = vector.shape_cast %612 : vector<1x2x1xf32> to vector<2x1xf32>
    %614 = arith.index_cast %548 : i32 to index
    %c0_142 = arith.constant 0 : index
    %c0_143 = arith.constant 0 : index
    %615 = vector.load %arg4[%614, %c0_142, %c0_143] : memref<8x2x1xf32, #tpu.memory_space<vmem>>, vector<1x2x1xf32>
    %616 = vector.shape_cast %615 : vector<1x2x1xf32> to vector<2x1xf32>
    %617 = vector.broadcast %613 : vector<2x1xf32> to vector<2x16xf32>
    %618 = arith.mulf %617, %585 : vector<2x16xf32>
    %619 = arith.index_cast %c5_i32 : i32 to index
    %c0_144 = arith.constant 0 : index
    %c0_145 = arith.constant 0 : index
    %620 = vector.load %arg5[%619, %c0_144, %c0_145] : memref<8x2x16xf32, #tpu.memory_space<vmem>>, vector<1x2x16xf32>
    %621 = vector.shape_cast %620 : vector<1x2x16xf32> to vector<2x16xf32>
    %622 = vector.shape_cast %618 : vector<2x16xf32> to vector<1x2x16xf32>
    tpu.vector_store %arg5[%619, %c0_144, %c0_145], %622 {strides = array<i32>} : memref<8x2x16xf32, #tpu.memory_space<vmem>>, vector<1x2x16xf32>,
    %623 = vector.broadcast %616 : vector<2x1xf32> to vector<2x16xf32>
    %624 = arith.mulf %623, %610 : vector<2x16xf32>
    %625 = arith.index_cast %548 : i32 to index
    %c0_146 = arith.constant 0 : index
    %c0_147 = arith.constant 0 : index
    %626 = vector.load %arg6[%625, %c0_146, %c0_147] : memref<8x2x16xf32, #tpu.memory_space<vmem>>, vector<1x2x16xf32>
    %627 = vector.shape_cast %626 : vector<1x2x16xf32> to vector<2x16xf32>
    %628 = vector.shape_cast %624 : vector<2x16xf32> to vector<1x2x16xf32>
    tpu.vector_store %arg6[%625, %c0_146, %c0_147], %628 {strides = array<i32>} : memref<8x2x16xf32, #tpu.memory_space<vmem>>, vector<1x2x16xf32>,
    %629 = vector.broadcast %613 : vector<2x1xf32> to vector<2x16xf32>
    %630 = arith.mulf %629, %585 : vector<2x16xf32>
    %cst_148 = arith.constant 1.000000e+00 : f32
    %631 = vector.broadcast %cst_148 : f32 to vector<2x1xf32>
    %632 = arith.subf %631, %613 : vector<2x1xf32>
    %633 = vector.broadcast %632 : vector<2x1xf32> to vector<2x16xf32>
    %634 = arith.mulf %633, %526 : vector<2x16xf32>
    %635 = arith.addf %630, %634 : vector<2x16xf32>
    %636 = vector.broadcast %613 : vector<2x1xf32> to vector<2x16xf32>
    %637 = arith.mulf %636, %583 : vector<2x16xf32>
    %cst_149 = arith.constant 1.000000e+00 : f32
    %638 = vector.broadcast %cst_149 : f32 to vector<2x1xf32>
    %639 = arith.subf %638, %613 : vector<2x1xf32>
    %640 = vector.broadcast %639 : vector<2x1xf32> to vector<2x16xf32>
    %641 = arith.mulf %640, %533 : vector<2x16xf32>
    %642 = arith.addf %637, %641 : vector<2x16xf32>
    %643 = vector.broadcast %616 : vector<2x1xf32> to vector<2x16xf32>
    %644 = arith.mulf %643, %610 : vector<2x16xf32>
    %cst_150 = arith.constant 1.000000e+00 : f32
    %645 = vector.broadcast %cst_150 : f32 to vector<2x1xf32>
    %646 = arith.subf %645, %616 : vector<2x1xf32>
    %647 = vector.broadcast %646 : vector<2x1xf32> to vector<2x16xf32>
    %648 = arith.mulf %647, %540 : vector<2x16xf32>
    %649 = arith.addf %644, %648 : vector<2x16xf32>
    %650 = vector.broadcast %616 : vector<2x1xf32> to vector<2x16xf32>
    %651 = arith.mulf %650, %608 : vector<2x16xf32>
    %cst_151 = arith.constant 1.000000e+00 : f32
    %652 = vector.broadcast %cst_151 : f32 to vector<2x1xf32>
    %653 = arith.subf %652, %616 : vector<2x1xf32>
    %654 = vector.broadcast %653 : vector<2x1xf32> to vector<2x16xf32>
    %655 = arith.mulf %654, %547 : vector<2x16xf32>
    %656 = arith.addf %651, %655 : vector<2x16xf32>
    %c6_i32 = arith.constant 6 : i32
    %c7_i32_152 = arith.constant 7 : i32
    %657 = arith.subi %c7_i32_152, %c6_i32 : i32
    %658 = arith.index_cast %c6_i32 : i32 to index
    %c0_153 = arith.constant 0 : index
    %c0_154 = arith.constant 0 : index
    %659 = vector.load %arg0[%658, %c0_153, %c0_154] : memref<8x2x64xf32, #tpu.memory_space<vmem>>, vector<1x2x64xf32>
    %660 = vector.shape_cast %659 : vector<1x2x64xf32> to vector<2x64xf32>
    %661 = arith.truncf %635 : vector<2x16xf32> to vector<2x16xbf16>
    %cst_155 = arith.constant dense<0.000000e+00> : vector<2x64xf32>
    %662 = tpu.matmul %661, %0, %cst_155 {dimension_numbers = #tpu.dot_dimension_numbers<[1], [0], [0], [1], [0, 0, 1, 1], [], []>} : vector<2x16xbf16>, vector<16x64xbf16>, vector<2x64xf32> -> vector<2x64xf32>
    %663 = arith.addf %660, %662 : vector<2x64xf32>
    %664 = arith.index_cast %657 : i32 to index
    %c0_156 = arith.constant 0 : index
    %c0_157 = arith.constant 0 : index
    %665 = vector.load %arg1[%664, %c0_156, %c0_157] : memref<8x2x64xf32, #tpu.memory_space<vmem>>, vector<1x2x64xf32>
    %666 = vector.shape_cast %665 : vector<1x2x64xf32> to vector<2x64xf32>
    %667 = arith.truncf %649 : vector<2x16xf32> to vector<2x16xbf16>
    %cst_158 = arith.constant dense<0.000000e+00> : vector<2x64xf32>
    %668 = tpu.matmul %667, %1, %cst_158 {dimension_numbers = #tpu.dot_dimension_numbers<[1], [0], [0], [1], [0, 0, 1, 1], [], []>} : vector<2x16xbf16>, vector<16x64xbf16>, vector<2x64xf32> -> vector<2x64xf32>
    %669 = arith.addf %666, %668 : vector<2x64xf32>
    %670 = vector.extract_strided_slice %663 {offsets = [0, 0], sizes = [2, 16], strides = [1, 1]} : vector<2x64xf32> to vector<2x16xf32>
    %671 = arith.negf %670 : vector<2x16xf32>
    %672 = math.exp %671 : vector<2x16xf32>
    %cst_159 = arith.constant 1.000000e+00 : f32
    %673 = vector.broadcast %cst_159 : f32 to vector<2x16xf32>
    %674 = arith.addf %673, %672 : vector<2x16xf32>
    %675 = arith.divf %673, %674 : vector<2x16xf32>
    %676 = vector.extract_strided_slice %663 {offsets = [0, 16], sizes = [2, 16], strides = [1, 1]} : vector<2x64xf32> to vector<2x16xf32>
    %677 = arith.negf %676 : vector<2x16xf32>
    %678 = math.exp %677 : vector<2x16xf32>
    %cst_160 = arith.constant 1.000000e+00 : f32
    %679 = vector.broadcast %cst_160 : f32 to vector<2x16xf32>
    %680 = arith.addf %679, %678 : vector<2x16xf32>
    %681 = arith.divf %679, %680 : vector<2x16xf32>
    %682 = vector.extract_strided_slice %663 {offsets = [0, 32], sizes = [2, 16], strides = [1, 1]} : vector<2x64xf32> to vector<2x16xf32>
    %683 = math.tanh %682 : vector<2x16xf32>
    %684 = vector.extract_strided_slice %663 {offsets = [0, 48], sizes = [2, 16], strides = [1, 1]} : vector<2x64xf32> to vector<2x16xf32>
    %685 = arith.negf %684 : vector<2x16xf32>
    %686 = math.exp %685 : vector<2x16xf32>
    %cst_161 = arith.constant 1.000000e+00 : f32
    %687 = vector.broadcast %cst_161 : f32 to vector<2x16xf32>
    %688 = arith.addf %687, %686 : vector<2x16xf32>
    %689 = arith.divf %687, %688 : vector<2x16xf32>
    %690 = arith.mulf %681, %642 : vector<2x16xf32>
    %691 = arith.mulf %675, %683 : vector<2x16xf32>
    %692 = arith.addf %690, %691 : vector<2x16xf32>
    %693 = math.tanh %692 : vector<2x16xf32>
    %694 = arith.mulf %689, %693 : vector<2x16xf32>
    %695 = vector.extract_strided_slice %669 {offsets = [0, 0], sizes = [2, 16], strides = [1, 1]} : vector<2x64xf32> to vector<2x16xf32>
    %696 = arith.negf %695 : vector<2x16xf32>
    %697 = math.exp %696 : vector<2x16xf32>
    %cst_162 = arith.constant 1.000000e+00 : f32
    %698 = vector.broadcast %cst_162 : f32 to vector<2x16xf32>
    %699 = arith.addf %698, %697 : vector<2x16xf32>
    %700 = arith.divf %698, %699 : vector<2x16xf32>
    %701 = vector.extract_strided_slice %669 {offsets = [0, 16], sizes = [2, 16], strides = [1, 1]} : vector<2x64xf32> to vector<2x16xf32>
    %702 = arith.negf %701 : vector<2x16xf32>
    %703 = math.exp %702 : vector<2x16xf32>
    %cst_163 = arith.constant 1.000000e+00 : f32
    %704 = vector.broadcast %cst_163 : f32 to vector<2x16xf32>
    %705 = arith.addf %704, %703 : vector<2x16xf32>
    %706 = arith.divf %704, %705 : vector<2x16xf32>
    %707 = vector.extract_strided_slice %669 {offsets = [0, 32], sizes = [2, 16], strides = [1, 1]} : vector<2x64xf32> to vector<2x16xf32>
    %708 = math.tanh %707 : vector<2x16xf32>
    %709 = vector.extract_strided_slice %669 {offsets = [0, 48], sizes = [2, 16], strides = [1, 1]} : vector<2x64xf32> to vector<2x16xf32>
    %710 = arith.negf %709 : vector<2x16xf32>
    %711 = math.exp %710 : vector<2x16xf32>
    %cst_164 = arith.constant 1.000000e+00 : f32
    %712 = vector.broadcast %cst_164 : f32 to vector<2x16xf32>
    %713 = arith.addf %712, %711 : vector<2x16xf32>
    %714 = arith.divf %712, %713 : vector<2x16xf32>
    %715 = arith.mulf %706, %656 : vector<2x16xf32>
    %716 = arith.mulf %700, %708 : vector<2x16xf32>
    %717 = arith.addf %715, %716 : vector<2x16xf32>
    %718 = math.tanh %717 : vector<2x16xf32>
    %719 = arith.mulf %714, %718 : vector<2x16xf32>
    %720 = arith.index_cast %c6_i32 : i32 to index
    %c0_165 = arith.constant 0 : index
    %c0_166 = arith.constant 0 : index
    %721 = vector.load %arg4[%720, %c0_165, %c0_166] : memref<8x2x1xf32, #tpu.memory_space<vmem>>, vector<1x2x1xf32>
    %722 = vector.shape_cast %721 : vector<1x2x1xf32> to vector<2x1xf32>
    %723 = arith.index_cast %657 : i32 to index
    %c0_167 = arith.constant 0 : index
    %c0_168 = arith.constant 0 : index
    %724 = vector.load %arg4[%723, %c0_167, %c0_168] : memref<8x2x1xf32, #tpu.memory_space<vmem>>, vector<1x2x1xf32>
    %725 = vector.shape_cast %724 : vector<1x2x1xf32> to vector<2x1xf32>
    %726 = vector.broadcast %722 : vector<2x1xf32> to vector<2x16xf32>
    %727 = arith.mulf %726, %694 : vector<2x16xf32>
    %728 = arith.index_cast %c6_i32 : i32 to index
    %c0_169 = arith.constant 0 : index
    %c0_170 = arith.constant 0 : index
    %729 = vector.load %arg5[%728, %c0_169, %c0_170] : memref<8x2x16xf32, #tpu.memory_space<vmem>>, vector<1x2x16xf32>
    %730 = vector.shape_cast %729 : vector<1x2x16xf32> to vector<2x16xf32>
    %731 = vector.shape_cast %727 : vector<2x16xf32> to vector<1x2x16xf32>
    tpu.vector_store %arg5[%728, %c0_169, %c0_170], %731 {strides = array<i32>} : memref<8x2x16xf32, #tpu.memory_space<vmem>>, vector<1x2x16xf32>,
    %732 = vector.broadcast %725 : vector<2x1xf32> to vector<2x16xf32>
    %733 = arith.mulf %732, %719 : vector<2x16xf32>
    %734 = arith.index_cast %657 : i32 to index
    %c0_171 = arith.constant 0 : index
    %c0_172 = arith.constant 0 : index
    %735 = vector.load %arg6[%734, %c0_171, %c0_172] : memref<8x2x16xf32, #tpu.memory_space<vmem>>, vector<1x2x16xf32>
    %736 = vector.shape_cast %735 : vector<1x2x16xf32> to vector<2x16xf32>
    %737 = vector.shape_cast %733 : vector<2x16xf32> to vector<1x2x16xf32>
    tpu.vector_store %arg6[%734, %c0_171, %c0_172], %737 {strides = array<i32>} : memref<8x2x16xf32, #tpu.memory_space<vmem>>, vector<1x2x16xf32>,
    %738 = vector.broadcast %722 : vector<2x1xf32> to vector<2x16xf32>
    %739 = arith.mulf %738, %694 : vector<2x16xf32>
    %cst_173 = arith.constant 1.000000e+00 : f32
    %740 = vector.broadcast %cst_173 : f32 to vector<2x1xf32>
    %741 = arith.subf %740, %722 : vector<2x1xf32>
    %742 = vector.broadcast %741 : vector<2x1xf32> to vector<2x16xf32>
    %743 = arith.mulf %742, %635 : vector<2x16xf32>
    %744 = arith.addf %739, %743 : vector<2x16xf32>
    %745 = vector.broadcast %722 : vector<2x1xf32> to vector<2x16xf32>
    %746 = arith.mulf %745, %692 : vector<2x16xf32>
    %cst_174 = arith.constant 1.000000e+00 : f32
    %747 = vector.broadcast %cst_174 : f32 to vector<2x1xf32>
    %748 = arith.subf %747, %722 : vector<2x1xf32>
    %749 = vector.broadcast %748 : vector<2x1xf32> to vector<2x16xf32>
    %750 = arith.mulf %749, %642 : vector<2x16xf32>
    %751 = arith.addf %746, %750 : vector<2x16xf32>
    %752 = vector.broadcast %725 : vector<2x1xf32> to vector<2x16xf32>
    %753 = arith.mulf %752, %719 : vector<2x16xf32>
    %cst_175 = arith.constant 1.000000e+00 : f32
    %754 = vector.broadcast %cst_175 : f32 to vector<2x1xf32>
    %755 = arith.subf %754, %725 : vector<2x1xf32>
    %756 = vector.broadcast %755 : vector<2x1xf32> to vector<2x16xf32>
    %757 = arith.mulf %756, %649 : vector<2x16xf32>
    %758 = arith.addf %753, %757 : vector<2x16xf32>
    %759 = vector.broadcast %725 : vector<2x1xf32> to vector<2x16xf32>
    %760 = arith.mulf %759, %717 : vector<2x16xf32>
    %cst_176 = arith.constant 1.000000e+00 : f32
    %761 = vector.broadcast %cst_176 : f32 to vector<2x1xf32>
    %762 = arith.subf %761, %725 : vector<2x1xf32>
    %763 = vector.broadcast %762 : vector<2x1xf32> to vector<2x16xf32>
    %764 = arith.mulf %763, %656 : vector<2x16xf32>
    %765 = arith.addf %760, %764 : vector<2x16xf32>
    %c7_i32_177 = arith.constant 7 : i32
    %c7_i32_178 = arith.constant 7 : i32
    %766 = arith.subi %c7_i32_178, %c7_i32_177 : i32
    %767 = arith.index_cast %c7_i32_177 : i32 to index
    %c0_179 = arith.constant 0 : index
    %c0_180 = arith.constant 0 : index
    %768 = vector.load %arg0[%767, %c0_179, %c0_180] : memref<8x2x64xf32, #tpu.memory_space<vmem>>, vector<1x2x64xf32>
    %769 = vector.shape_cast %768 : vector<1x2x64xf32> to vector<2x64xf32>
    %770 = arith.truncf %744 : vector<2x16xf32> to vector<2x16xbf16>
    %cst_181 = arith.constant dense<0.000000e+00> : vector<2x64xf32>
    %771 = tpu.matmul %770, %0, %cst_181 {dimension_numbers = #tpu.dot_dimension_numbers<[1], [0], [0], [1], [0, 0, 1, 1], [], []>} : vector<2x16xbf16>, vector<16x64xbf16>, vector<2x64xf32> -> vector<2x64xf32>
    %772 = arith.addf %769, %771 : vector<2x64xf32>
    %773 = arith.index_cast %766 : i32 to index
    %c0_182 = arith.constant 0 : index
    %c0_183 = arith.constant 0 : index
    %774 = vector.load %arg1[%773, %c0_182, %c0_183] : memref<8x2x64xf32, #tpu.memory_space<vmem>>, vector<1x2x64xf32>
    %775 = vector.shape_cast %774 : vector<1x2x64xf32> to vector<2x64xf32>
    %776 = arith.truncf %758 : vector<2x16xf32> to vector<2x16xbf16>
    %cst_184 = arith.constant dense<0.000000e+00> : vector<2x64xf32>
    %777 = tpu.matmul %776, %1, %cst_184 {dimension_numbers = #tpu.dot_dimension_numbers<[1], [0], [0], [1], [0, 0, 1, 1], [], []>} : vector<2x16xbf16>, vector<16x64xbf16>, vector<2x64xf32> -> vector<2x64xf32>
    %778 = arith.addf %775, %777 : vector<2x64xf32>
    %779 = vector.extract_strided_slice %772 {offsets = [0, 0], sizes = [2, 16], strides = [1, 1]} : vector<2x64xf32> to vector<2x16xf32>
    %780 = arith.negf %779 : vector<2x16xf32>
    %781 = math.exp %780 : vector<2x16xf32>
    %cst_185 = arith.constant 1.000000e+00 : f32
    %782 = vector.broadcast %cst_185 : f32 to vector<2x16xf32>
    %783 = arith.addf %782, %781 : vector<2x16xf32>
    %784 = arith.divf %782, %783 : vector<2x16xf32>
    %785 = vector.extract_strided_slice %772 {offsets = [0, 16], sizes = [2, 16], strides = [1, 1]} : vector<2x64xf32> to vector<2x16xf32>
    %786 = arith.negf %785 : vector<2x16xf32>
    %787 = math.exp %786 : vector<2x16xf32>
    %cst_186 = arith.constant 1.000000e+00 : f32
    %788 = vector.broadcast %cst_186 : f32 to vector<2x16xf32>
    %789 = arith.addf %788, %787 : vector<2x16xf32>
    %790 = arith.divf %788, %789 : vector<2x16xf32>
    %791 = vector.extract_strided_slice %772 {offsets = [0, 32], sizes = [2, 16], strides = [1, 1]} : vector<2x64xf32> to vector<2x16xf32>
    %792 = math.tanh %791 : vector<2x16xf32>
    %793 = vector.extract_strided_slice %772 {offsets = [0, 48], sizes = [2, 16], strides = [1, 1]} : vector<2x64xf32> to vector<2x16xf32>
    %794 = arith.negf %793 : vector<2x16xf32>
    %795 = math.exp %794 : vector<2x16xf32>
    %cst_187 = arith.constant 1.000000e+00 : f32
    %796 = vector.broadcast %cst_187 : f32 to vector<2x16xf32>
    %797 = arith.addf %796, %795 : vector<2x16xf32>
    %798 = arith.divf %796, %797 : vector<2x16xf32>
    %799 = arith.mulf %790, %751 : vector<2x16xf32>
    %800 = arith.mulf %784, %792 : vector<2x16xf32>
    %801 = arith.addf %799, %800 : vector<2x16xf32>
    %802 = math.tanh %801 : vector<2x16xf32>
    %803 = arith.mulf %798, %802 : vector<2x16xf32>
    %804 = vector.extract_strided_slice %778 {offsets = [0, 0], sizes = [2, 16], strides = [1, 1]} : vector<2x64xf32> to vector<2x16xf32>
    %805 = arith.negf %804 : vector<2x16xf32>
    %806 = math.exp %805 : vector<2x16xf32>
    %cst_188 = arith.constant 1.000000e+00 : f32
    %807 = vector.broadcast %cst_188 : f32 to vector<2x16xf32>
    %808 = arith.addf %807, %806 : vector<2x16xf32>
    %809 = arith.divf %807, %808 : vector<2x16xf32>
    %810 = vector.extract_strided_slice %778 {offsets = [0, 16], sizes = [2, 16], strides = [1, 1]} : vector<2x64xf32> to vector<2x16xf32>
    %811 = arith.negf %810 : vector<2x16xf32>
    %812 = math.exp %811 : vector<2x16xf32>
    %cst_189 = arith.constant 1.000000e+00 : f32
    %813 = vector.broadcast %cst_189 : f32 to vector<2x16xf32>
    %814 = arith.addf %813, %812 : vector<2x16xf32>
    %815 = arith.divf %813, %814 : vector<2x16xf32>
    %816 = vector.extract_strided_slice %778 {offsets = [0, 32], sizes = [2, 16], strides = [1, 1]} : vector<2x64xf32> to vector<2x16xf32>
    %817 = math.tanh %816 : vector<2x16xf32>
    %818 = vector.extract_strided_slice %778 {offsets = [0, 48], sizes = [2, 16], strides = [1, 1]} : vector<2x64xf32> to vector<2x16xf32>
    %819 = arith.negf %818 : vector<2x16xf32>
    %820 = math.exp %819 : vector<2x16xf32>
    %cst_190 = arith.constant 1.000000e+00 : f32
    %821 = vector.broadcast %cst_190 : f32 to vector<2x16xf32>
    %822 = arith.addf %821, %820 : vector<2x16xf32>
    %823 = arith.divf %821, %822 : vector<2x16xf32>
    %824 = arith.mulf %815, %765 : vector<2x16xf32>
    %825 = arith.mulf %809, %817 : vector<2x16xf32>
    %826 = arith.addf %824, %825 : vector<2x16xf32>
    %827 = math.tanh %826 : vector<2x16xf32>
    %828 = arith.mulf %823, %827 : vector<2x16xf32>
    %829 = arith.index_cast %c7_i32_177 : i32 to index
    %c0_191 = arith.constant 0 : index
    %c0_192 = arith.constant 0 : index
    %830 = vector.load %arg4[%829, %c0_191, %c0_192] : memref<8x2x1xf32, #tpu.memory_space<vmem>>, vector<1x2x1xf32>
    %831 = vector.shape_cast %830 : vector<1x2x1xf32> to vector<2x1xf32>
    %832 = arith.index_cast %766 : i32 to index
    %c0_193 = arith.constant 0 : index
    %c0_194 = arith.constant 0 : index
    %833 = vector.load %arg4[%832, %c0_193, %c0_194] : memref<8x2x1xf32, #tpu.memory_space<vmem>>, vector<1x2x1xf32>
    %834 = vector.shape_cast %833 : vector<1x2x1xf32> to vector<2x1xf32>
    %835 = vector.broadcast %831 : vector<2x1xf32> to vector<2x16xf32>
    %836 = arith.mulf %835, %803 : vector<2x16xf32>
    %837 = arith.index_cast %c7_i32_177 : i32 to index
    %c0_195 = arith.constant 0 : index
    %c0_196 = arith.constant 0 : index
    %838 = vector.load %arg5[%837, %c0_195, %c0_196] : memref<8x2x16xf32, #tpu.memory_space<vmem>>, vector<1x2x16xf32>
    %839 = vector.shape_cast %838 : vector<1x2x16xf32> to vector<2x16xf32>
    %840 = vector.shape_cast %836 : vector<2x16xf32> to vector<1x2x16xf32>
    tpu.vector_store %arg5[%837, %c0_195, %c0_196], %840 {strides = array<i32>} : memref<8x2x16xf32, #tpu.memory_space<vmem>>, vector<1x2x16xf32>,
    %841 = vector.broadcast %834 : vector<2x1xf32> to vector<2x16xf32>
    %842 = arith.mulf %841, %828 : vector<2x16xf32>
    %843 = arith.index_cast %766 : i32 to index
    %c0_197 = arith.constant 0 : index
    %c0_198 = arith.constant 0 : index
    %844 = vector.load %arg6[%843, %c0_197, %c0_198] : memref<8x2x16xf32, #tpu.memory_space<vmem>>, vector<1x2x16xf32>
    %845 = vector.shape_cast %844 : vector<1x2x16xf32> to vector<2x16xf32>
    %846 = vector.shape_cast %842 : vector<2x16xf32> to vector<1x2x16xf32>
    tpu.vector_store %arg6[%843, %c0_197, %c0_198], %846 {strides = array<i32>} : memref<8x2x16xf32, #tpu.memory_space<vmem>>, vector<1x2x16xf32>,
    %847 = vector.broadcast %831 : vector<2x1xf32> to vector<2x16xf32>
    %848 = arith.mulf %847, %803 : vector<2x16xf32>
    %cst_199 = arith.constant 1.000000e+00 : f32
    %849 = vector.broadcast %cst_199 : f32 to vector<2x1xf32>
    %850 = arith.subf %849, %831 : vector<2x1xf32>
    %851 = vector.broadcast %850 : vector<2x1xf32> to vector<2x16xf32>
    %852 = arith.mulf %851, %744 : vector<2x16xf32>
    %853 = arith.addf %848, %852 : vector<2x16xf32>
    %854 = vector.broadcast %831 : vector<2x1xf32> to vector<2x16xf32>
    %855 = arith.mulf %854, %801 : vector<2x16xf32>
    %cst_200 = arith.constant 1.000000e+00 : f32
    %856 = vector.broadcast %cst_200 : f32 to vector<2x1xf32>
    %857 = arith.subf %856, %831 : vector<2x1xf32>
    %858 = vector.broadcast %857 : vector<2x1xf32> to vector<2x16xf32>
    %859 = arith.mulf %858, %751 : vector<2x16xf32>
    %860 = arith.addf %855, %859 : vector<2x16xf32>
    %861 = vector.broadcast %834 : vector<2x1xf32> to vector<2x16xf32>
    %862 = arith.mulf %861, %828 : vector<2x16xf32>
    %cst_201 = arith.constant 1.000000e+00 : f32
    %863 = vector.broadcast %cst_201 : f32 to vector<2x1xf32>
    %864 = arith.subf %863, %834 : vector<2x1xf32>
    %865 = vector.broadcast %864 : vector<2x1xf32> to vector<2x16xf32>
    %866 = arith.mulf %865, %758 : vector<2x16xf32>
    %867 = arith.addf %862, %866 : vector<2x16xf32>
    %868 = vector.broadcast %834 : vector<2x1xf32> to vector<2x16xf32>
    %869 = arith.mulf %868, %826 : vector<2x16xf32>
    %cst_202 = arith.constant 1.000000e+00 : f32
    %870 = vector.broadcast %cst_202 : f32 to vector<2x1xf32>
    %871 = arith.subf %870, %834 : vector<2x1xf32>
    %872 = vector.broadcast %871 : vector<2x1xf32> to vector<2x16xf32>
    %873 = arith.mulf %872, %765 : vector<2x16xf32>
    %874 = arith.addf %869, %873 : vector<2x16xf32>
    %c8_i32 = arith.constant 8 : i32
    return
  }
}

module attributes {stable_mosaic.version = 11 : i64} {
  func.func @_conv_kernel(%arg0: memref<24x16xbf16, #tpu.memory_space<vmem>>, %arg1: memref<5x16x16xbf16, #tpu.memory_space<vmem>>, %arg2: memref<1x16xf32, #tpu.memory_space<vmem>>, %arg3: memref<16x16xbf16, #tpu.memory_space<vmem>>) attributes {dimension_semantics = [], scalar_prefetch = 0 : i64, scratch_operands = 0 : i64, tpu.core_type = #tpu.core_type<tc>} {
    %cst = arith.constant 0.000000e+00 : f32
    %0 = vector.broadcast %cst : f32 to vector<16x16xf32>
    %c0 = arith.constant 0 : index
    %c0_0 = arith.constant 0 : index
    %1 = vector.load %arg0[%c0, %c0_0] : memref<24x16xbf16, #tpu.memory_space<vmem>>, vector<16x16xbf16>
    %c0_1 = arith.constant 0 : index
    %c0_2 = arith.constant 0 : index
    %c0_3 = arith.constant 0 : index
    %2 = vector.load %arg1[%c0_1, %c0_2, %c0_3] : memref<5x16x16xbf16, #tpu.memory_space<vmem>>, vector<1x16x16xbf16>
    %3 = vector.shape_cast %2 : vector<1x16x16xbf16> to vector<16x16xbf16>
    %cst_4 = arith.constant dense<0.000000e+00> : vector<16x16xf32>
    %4 = tpu.matmul %1, %3, %cst_4 {dimension_numbers = #tpu.dot_dimension_numbers<[1], [0], [0], [1], [0, 0, 1, 1], [], []>} : vector<16x16xbf16>, vector<16x16xbf16>, vector<16x16xf32> -> vector<16x16xf32>
    %5 = arith.addf %0, %4 : vector<16x16xf32>
    %c2 = arith.constant 2 : index
    %c0_5 = arith.constant 0 : index
    %6 = vector.load %arg0[%c2, %c0_5] : memref<24x16xbf16, #tpu.memory_space<vmem>>, vector<16x16xbf16>
    %c1 = arith.constant 1 : index
    %c0_6 = arith.constant 0 : index
    %c0_7 = arith.constant 0 : index
    %7 = vector.load %arg1[%c1, %c0_6, %c0_7] : memref<5x16x16xbf16, #tpu.memory_space<vmem>>, vector<1x16x16xbf16>
    %8 = vector.shape_cast %7 : vector<1x16x16xbf16> to vector<16x16xbf16>
    %cst_8 = arith.constant dense<0.000000e+00> : vector<16x16xf32>
    %9 = tpu.matmul %6, %8, %cst_8 {dimension_numbers = #tpu.dot_dimension_numbers<[1], [0], [0], [1], [0, 0, 1, 1], [], []>} : vector<16x16xbf16>, vector<16x16xbf16>, vector<16x16xf32> -> vector<16x16xf32>
    %10 = arith.addf %5, %9 : vector<16x16xf32>
    %c4 = arith.constant 4 : index
    %c0_9 = arith.constant 0 : index
    %11 = vector.load %arg0[%c4, %c0_9] : memref<24x16xbf16, #tpu.memory_space<vmem>>, vector<16x16xbf16>
    %c2_10 = arith.constant 2 : index
    %c0_11 = arith.constant 0 : index
    %c0_12 = arith.constant 0 : index
    %12 = vector.load %arg1[%c2_10, %c0_11, %c0_12] : memref<5x16x16xbf16, #tpu.memory_space<vmem>>, vector<1x16x16xbf16>
    %13 = vector.shape_cast %12 : vector<1x16x16xbf16> to vector<16x16xbf16>
    %cst_13 = arith.constant dense<0.000000e+00> : vector<16x16xf32>
    %14 = tpu.matmul %11, %13, %cst_13 {dimension_numbers = #tpu.dot_dimension_numbers<[1], [0], [0], [1], [0, 0, 1, 1], [], []>} : vector<16x16xbf16>, vector<16x16xbf16>, vector<16x16xf32> -> vector<16x16xf32>
    %15 = arith.addf %10, %14 : vector<16x16xf32>
    %c6 = arith.constant 6 : index
    %c0_14 = arith.constant 0 : index
    %16 = vector.load %arg0[%c6, %c0_14] : memref<24x16xbf16, #tpu.memory_space<vmem>>, vector<16x16xbf16>
    %c3 = arith.constant 3 : index
    %c0_15 = arith.constant 0 : index
    %c0_16 = arith.constant 0 : index
    %17 = vector.load %arg1[%c3, %c0_15, %c0_16] : memref<5x16x16xbf16, #tpu.memory_space<vmem>>, vector<1x16x16xbf16>
    %18 = vector.shape_cast %17 : vector<1x16x16xbf16> to vector<16x16xbf16>
    %cst_17 = arith.constant dense<0.000000e+00> : vector<16x16xf32>
    %19 = tpu.matmul %16, %18, %cst_17 {dimension_numbers = #tpu.dot_dimension_numbers<[1], [0], [0], [1], [0, 0, 1, 1], [], []>} : vector<16x16xbf16>, vector<16x16xbf16>, vector<16x16xf32> -> vector<16x16xf32>
    %20 = arith.addf %15, %19 : vector<16x16xf32>
    %c8 = arith.constant 8 : index
    %c0_18 = arith.constant 0 : index
    %21 = vector.load %arg0[%c8, %c0_18] : memref<24x16xbf16, #tpu.memory_space<vmem>>, vector<16x16xbf16>
    %c4_19 = arith.constant 4 : index
    %c0_20 = arith.constant 0 : index
    %c0_21 = arith.constant 0 : index
    %22 = vector.load %arg1[%c4_19, %c0_20, %c0_21] : memref<5x16x16xbf16, #tpu.memory_space<vmem>>, vector<1x16x16xbf16>
    %23 = vector.shape_cast %22 : vector<1x16x16xbf16> to vector<16x16xbf16>
    %cst_22 = arith.constant dense<0.000000e+00> : vector<16x16xf32>
    %24 = tpu.matmul %21, %23, %cst_22 {dimension_numbers = #tpu.dot_dimension_numbers<[1], [0], [0], [1], [0, 0, 1, 1], [], []>} : vector<16x16xbf16>, vector<16x16xbf16>, vector<16x16xf32> -> vector<16x16xf32>
    %25 = arith.addf %20, %24 : vector<16x16xf32>
    %c0_23 = arith.constant 0 : index
    %c0_24 = arith.constant 0 : index
    %26 = vector.load %arg2[%c0_23, %c0_24] : memref<1x16xf32, #tpu.memory_space<vmem>>, vector<1x16xf32>
    %27 = vector.broadcast %26 : vector<1x16xf32> to vector<16x16xf32>
    %28 = arith.addf %25, %27 : vector<16x16xf32>
    %cst_25 = arith.constant 0.000000e+00 : f32
    %29 = vector.broadcast %cst_25 : f32 to vector<16x16xf32>
    %30 = arith.maximumf %28, %29 : vector<16x16xf32>
    %31 = arith.truncf %30 : vector<16x16xf32> to vector<16x16xbf16>
    %c0_26 = arith.constant 0 : index
    %c0_27 = arith.constant 0 : index
    %32 = vector.load %arg3[%c0_26, %c0_27] : memref<16x16xbf16, #tpu.memory_space<vmem>>, vector<16x16xbf16>
    tpu.vector_store %arg3[%c0_26, %c0_27], %31 {strides = array<i32>} : memref<16x16xbf16, #tpu.memory_space<vmem>>, vector<16x16xbf16>,
    return
  }
}

module attributes {stable_mosaic.version = 11 : i64} {
  func.func @_dual_linear_kernel(%arg0: i32, %arg1: memref<16x16xbf16, #tpu.memory_space<vmem>>, %arg2: memref<16x64xbf16, #tpu.memory_space<vmem>>, %arg3: memref<16x64xbf16, #tpu.memory_space<vmem>>, %arg4: memref<1x64xf32, #tpu.memory_space<vmem>>, %arg5: memref<1x64xf32, #tpu.memory_space<vmem>>, %arg6: memref<16x64xf32, #tpu.memory_space<vmem>>, %arg7: memref<16x64xf32, #tpu.memory_space<vmem>>) attributes {dimension_semantics = [#tpu.dimension_semantics<parallel>], iteration_bounds = array<i64: 1>, scalar_prefetch = 0 : i64, scratch_operands = 0 : i64, tpu.core_type = #tpu.core_type<tc>, window_params = [{transform_indices = @transform_0, window_bounds = array<i64: 16, 16>}, {pipeline_mode = #tpu.pipeline_mode<synchronous>, transform_indices = @transform_1, window_bounds = array<i64: 16, 64>}, {pipeline_mode = #tpu.pipeline_mode<synchronous>, transform_indices = @transform_2, window_bounds = array<i64: 16, 64>}, {pipeline_mode = #tpu.pipeline_mode<synchronous>, transform_indices = @transform_3, window_bounds = array<i64: 1, 64>}, {pipeline_mode = #tpu.pipeline_mode<synchronous>, transform_indices = @transform_4, window_bounds = array<i64: 1, 64>}, {transform_indices = @transform_5, window_bounds = array<i64: 16, 64>}, {transform_indices = @transform_6, window_bounds = array<i64: 16, 64>}]} {
    %c0 = arith.constant 0 : index
    %c0_0 = arith.constant 0 : index
    %0 = vector.load %arg1[%c0, %c0_0] : memref<16x16xbf16, #tpu.memory_space<vmem>>, vector<16x16xbf16>
    %c0_1 = arith.constant 0 : index
    %c0_2 = arith.constant 0 : index
    %1 = vector.load %arg2[%c0_1, %c0_2] : memref<16x64xbf16, #tpu.memory_space<vmem>>, vector<16x64xbf16>
    %cst = arith.constant dense<0.000000e+00> : vector<16x64xf32>
    %2 = tpu.matmul %0, %1, %cst {dimension_numbers = #tpu.dot_dimension_numbers<[1], [0], [0], [1], [0, 0, 1, 1], [], []>} : vector<16x16xbf16>, vector<16x64xbf16>, vector<16x64xf32> -> vector<16x64xf32>
    %c0_3 = arith.constant 0 : index
    %c0_4 = arith.constant 0 : index
    %3 = vector.load %arg3[%c0_3, %c0_4] : memref<16x64xbf16, #tpu.memory_space<vmem>>, vector<16x64xbf16>
    %cst_5 = arith.constant dense<0.000000e+00> : vector<16x64xf32>
    %4 = tpu.matmul %0, %3, %cst_5 {dimension_numbers = #tpu.dot_dimension_numbers<[1], [0], [0], [1], [0, 0, 1, 1], [], []>} : vector<16x16xbf16>, vector<16x64xbf16>, vector<16x64xf32> -> vector<16x64xf32>
    %c0_6 = arith.constant 0 : index
    %c0_7 = arith.constant 0 : index
    %5 = vector.load %arg4[%c0_6, %c0_7] : memref<1x64xf32, #tpu.memory_space<vmem>>, vector<1x64xf32>
    %6 = vector.broadcast %5 : vector<1x64xf32> to vector<16x64xf32>
    %7 = arith.addf %2, %6 : vector<16x64xf32>
    %c0_8 = arith.constant 0 : index
    %c0_9 = arith.constant 0 : index
    %8 = vector.load %arg6[%c0_8, %c0_9] : memref<16x64xf32, #tpu.memory_space<vmem>>, vector<16x64xf32>
    tpu.vector_store %arg6[%c0_8, %c0_9], %7 {strides = array<i32>} : memref<16x64xf32, #tpu.memory_space<vmem>>, vector<16x64xf32>,
    %c0_10 = arith.constant 0 : index
    %c0_11 = arith.constant 0 : index
    %9 = vector.load %arg5[%c0_10, %c0_11] : memref<1x64xf32, #tpu.memory_space<vmem>>, vector<1x64xf32>
    %10 = vector.broadcast %9 : vector<1x64xf32> to vector<16x64xf32>
    %11 = arith.addf %4, %10 : vector<16x64xf32>
    %c0_12 = arith.constant 0 : index
    %c0_13 = arith.constant 0 : index
    %12 = vector.load %arg7[%c0_12, %c0_13] : memref<16x64xf32, #tpu.memory_space<vmem>>, vector<16x64xf32>
    tpu.vector_store %arg7[%c0_12, %c0_13], %11 {strides = array<i32>} : memref<16x64xf32, #tpu.memory_space<vmem>>, vector<16x64xf32>,
    return
  }
  func.func @transform_0(%arg0: i32) -> (i32, i32) {
    %c0_i32 = arith.constant 0 : i32
    %c0_i32_0 = arith.constant 0 : i32
    return %arg0, %c0_i32 : i32, i32
  }
  func.func @transform_1(%arg0: i32) -> (i32, i32) {
    %c0_i32 = arith.constant 0 : i32
    %c0_i32_0 = arith.constant 0 : i32
    %c0_i32_1 = arith.constant 0 : i32
    return %c0_i32, %c0_i32_0 : i32, i32
  }
  func.func @transform_2(%arg0: i32) -> (i32, i32) {
    %c0_i32 = arith.constant 0 : i32
    %c0_i32_0 = arith.constant 0 : i32
    %c0_i32_1 = arith.constant 0 : i32
    return %c0_i32, %c0_i32_0 : i32, i32
  }
  func.func @transform_3(%arg0: i32) -> (i32, i32) {
    %c0_i32 = arith.constant 0 : i32
    %c0_i32_0 = arith.constant 0 : i32
    %c0_i32_1 = arith.constant 0 : i32
    return %c0_i32, %c0_i32_0 : i32, i32
  }
  func.func @transform_4(%arg0: i32) -> (i32, i32) {
    %c0_i32 = arith.constant 0 : i32
    %c0_i32_0 = arith.constant 0 : i32
    %c0_i32_1 = arith.constant 0 : i32
    return %c0_i32, %c0_i32_0 : i32, i32
  }
  func.func @transform_5(%arg0: i32) -> (i32, i32) {
    %c0_i32 = arith.constant 0 : i32
    %c0_i32_0 = arith.constant 0 : i32
    return %arg0, %c0_i32 : i32, i32
  }
  func.func @transform_6(%arg0: i32) -> (i32, i32) {
    %c0_i32 = arith.constant 0 : i32
    %c0_i32_0 = arith.constant 0 : i32
    return %arg0, %c0_i32 : i32, i32
  }
}

module attributes {stable_mosaic.version = 11 : i64} {
  func.func @_dual_linear_kernel(%arg0: i32, %arg1: memref<16x16xbf16, #tpu.memory_space<vmem>>, %arg2: memref<16x16xbf16, #tpu.memory_space<vmem>>, %arg3: memref<16x64xbf16, #tpu.memory_space<vmem>>, %arg4: memref<16x64xbf16, #tpu.memory_space<vmem>>, %arg5: memref<16x64xbf16, #tpu.memory_space<vmem>>, %arg6: memref<16x64xbf16, #tpu.memory_space<vmem>>, %arg7: memref<1x64xf32, #tpu.memory_space<vmem>>, %arg8: memref<1x64xf32, #tpu.memory_space<vmem>>, %arg9: memref<16x64xf32, #tpu.memory_space<vmem>>, %arg10: memref<16x64xf32, #tpu.memory_space<vmem>>) attributes {dimension_semantics = [#tpu.dimension_semantics<parallel>], iteration_bounds = array<i64: 1>, scalar_prefetch = 0 : i64, scratch_operands = 0 : i64, tpu.core_type = #tpu.core_type<tc>, window_params = [{transform_indices = @transform_0, window_bounds = array<i64: 16, 16>}, {transform_indices = @transform_1, window_bounds = array<i64: 16, 16>}, {pipeline_mode = #tpu.pipeline_mode<synchronous>, transform_indices = @transform_2, window_bounds = array<i64: 16, 64>}, {pipeline_mode = #tpu.pipeline_mode<synchronous>, transform_indices = @transform_3, window_bounds = array<i64: 16, 64>}, {pipeline_mode = #tpu.pipeline_mode<synchronous>, transform_indices = @transform_4, window_bounds = array<i64: 16, 64>}, {pipeline_mode = #tpu.pipeline_mode<synchronous>, transform_indices = @transform_5, window_bounds = array<i64: 16, 64>}, {pipeline_mode = #tpu.pipeline_mode<synchronous>, transform_indices = @transform_6, window_bounds = array<i64: 1, 64>}, {pipeline_mode = #tpu.pipeline_mode<synchronous>, transform_indices = @transform_7, window_bounds = array<i64: 1, 64>}, {transform_indices = @transform_8, window_bounds = array<i64: 16, 64>}, {transform_indices = @transform_9, window_bounds = array<i64: 16, 64>}]} {
    %c0 = arith.constant 0 : index
    %c0_0 = arith.constant 0 : index
    %0 = vector.load %arg1[%c0, %c0_0] : memref<16x16xbf16, #tpu.memory_space<vmem>>, vector<16x16xbf16>
    %c0_1 = arith.constant 0 : index
    %c0_2 = arith.constant 0 : index
    %1 = vector.load %arg2[%c0_1, %c0_2] : memref<16x16xbf16, #tpu.memory_space<vmem>>, vector<16x16xbf16>
    %c0_3 = arith.constant 0 : index
    %c0_4 = arith.constant 0 : index
    %2 = vector.load %arg3[%c0_3, %c0_4] : memref<16x64xbf16, #tpu.memory_space<vmem>>, vector<16x64xbf16>
    %cst = arith.constant dense<0.000000e+00> : vector<16x64xf32>
    %3 = tpu.matmul %0, %2, %cst {dimension_numbers = #tpu.dot_dimension_numbers<[1], [0], [0], [1], [0, 0, 1, 1], [], []>} : vector<16x16xbf16>, vector<16x64xbf16>, vector<16x64xf32> -> vector<16x64xf32>
    %c0_5 = arith.constant 0 : index
    %c0_6 = arith.constant 0 : index
    %4 = vector.load %arg5[%c0_5, %c0_6] : memref<16x64xbf16, #tpu.memory_space<vmem>>, vector<16x64xbf16>
    %cst_7 = arith.constant dense<0.000000e+00> : vector<16x64xf32>
    %5 = tpu.matmul %0, %4, %cst_7 {dimension_numbers = #tpu.dot_dimension_numbers<[1], [0], [0], [1], [0, 0, 1, 1], [], []>} : vector<16x16xbf16>, vector<16x64xbf16>, vector<16x64xf32> -> vector<16x64xf32>
    %c0_8 = arith.constant 0 : index
    %c0_9 = arith.constant 0 : index
    %6 = vector.load %arg4[%c0_8, %c0_9] : memref<16x64xbf16, #tpu.memory_space<vmem>>, vector<16x64xbf16>
    %cst_10 = arith.constant dense<0.000000e+00> : vector<16x64xf32>
    %7 = tpu.matmul %1, %6, %cst_10 {dimension_numbers = #tpu.dot_dimension_numbers<[1], [0], [0], [1], [0, 0, 1, 1], [], []>} : vector<16x16xbf16>, vector<16x64xbf16>, vector<16x64xf32> -> vector<16x64xf32>
    %8 = arith.addf %3, %7 : vector<16x64xf32>
    %c0_11 = arith.constant 0 : index
    %c0_12 = arith.constant 0 : index
    %9 = vector.load %arg6[%c0_11, %c0_12] : memref<16x64xbf16, #tpu.memory_space<vmem>>, vector<16x64xbf16>
    %cst_13 = arith.constant dense<0.000000e+00> : vector<16x64xf32>
    %10 = tpu.matmul %1, %9, %cst_13 {dimension_numbers = #tpu.dot_dimension_numbers<[1], [0], [0], [1], [0, 0, 1, 1], [], []>} : vector<16x16xbf16>, vector<16x64xbf16>, vector<16x64xf32> -> vector<16x64xf32>
    %11 = arith.addf %5, %10 : vector<16x64xf32>
    %c0_14 = arith.constant 0 : index
    %c0_15 = arith.constant 0 : index
    %12 = vector.load %arg7[%c0_14, %c0_15] : memref<1x64xf32, #tpu.memory_space<vmem>>, vector<1x64xf32>
    %13 = vector.broadcast %12 : vector<1x64xf32> to vector<16x64xf32>
    %14 = arith.addf %8, %13 : vector<16x64xf32>
    %c0_16 = arith.constant 0 : index
    %c0_17 = arith.constant 0 : index
    %15 = vector.load %arg9[%c0_16, %c0_17] : memref<16x64xf32, #tpu.memory_space<vmem>>, vector<16x64xf32>
    tpu.vector_store %arg9[%c0_16, %c0_17], %14 {strides = array<i32>} : memref<16x64xf32, #tpu.memory_space<vmem>>, vector<16x64xf32>,
    %c0_18 = arith.constant 0 : index
    %c0_19 = arith.constant 0 : index
    %16 = vector.load %arg8[%c0_18, %c0_19] : memref<1x64xf32, #tpu.memory_space<vmem>>, vector<1x64xf32>
    %17 = vector.broadcast %16 : vector<1x64xf32> to vector<16x64xf32>
    %18 = arith.addf %11, %17 : vector<16x64xf32>
    %c0_20 = arith.constant 0 : index
    %c0_21 = arith.constant 0 : index
    %19 = vector.load %arg10[%c0_20, %c0_21] : memref<16x64xf32, #tpu.memory_space<vmem>>, vector<16x64xf32>
    tpu.vector_store %arg10[%c0_20, %c0_21], %18 {strides = array<i32>} : memref<16x64xf32, #tpu.memory_space<vmem>>, vector<16x64xf32>,
    return
  }
  func.func @transform_0(%arg0: i32) -> (i32, i32) {
    %c0_i32 = arith.constant 0 : i32
    %c0_i32_0 = arith.constant 0 : i32
    return %arg0, %c0_i32 : i32, i32
  }
  func.func @transform_1(%arg0: i32) -> (i32, i32) {
    %c0_i32 = arith.constant 0 : i32
    %c0_i32_0 = arith.constant 0 : i32
    return %arg0, %c0_i32 : i32, i32
  }
  func.func @transform_2(%arg0: i32) -> (i32, i32) {
    %c0_i32 = arith.constant 0 : i32
    %c0_i32_0 = arith.constant 0 : i32
    %c0_i32_1 = arith.constant 0 : i32
    return %c0_i32, %c0_i32_0 : i32, i32
  }
  func.func @transform_3(%arg0: i32) -> (i32, i32) {
    %c0_i32 = arith.constant 0 : i32
    %c0_i32_0 = arith.constant 0 : i32
    %c0_i32_1 = arith.constant 0 : i32
    return %c0_i32, %c0_i32_0 : i32, i32
  }
  func.func @transform_4(%arg0: i32) -> (i32, i32) {
    %c0_i32 = arith.constant 0 : i32
    %c0_i32_0 = arith.constant 0 : i32
    %c0_i32_1 = arith.constant 0 : i32
    return %c0_i32, %c0_i32_0 : i32, i32
  }
  func.func @transform_5(%arg0: i32) -> (i32, i32) {
    %c0_i32 = arith.constant 0 : i32
    %c0_i32_0 = arith.constant 0 : i32
    %c0_i32_1 = arith.constant 0 : i32
    return %c0_i32, %c0_i32_0 : i32, i32
  }
  func.func @transform_6(%arg0: i32) -> (i32, i32) {
    %c0_i32 = arith.constant 0 : i32
    %c0_i32_0 = arith.constant 0 : i32
    %c0_i32_1 = arith.constant 0 : i32
    return %c0_i32, %c0_i32_0 : i32, i32
  }
  func.func @transform_7(%arg0: i32) -> (i32, i32) {
    %c0_i32 = arith.constant 0 : i32
    %c0_i32_0 = arith.constant 0 : i32
    %c0_i32_1 = arith.constant 0 : i32
    return %c0_i32, %c0_i32_0 : i32, i32
  }
  func.func @transform_8(%arg0: i32) -> (i32, i32) {
    %c0_i32 = arith.constant 0 : i32
    %c0_i32_0 = arith.constant 0 : i32
    return %arg0, %c0_i32 : i32, i32
  }
  func.func @transform_9(%arg0: i32) -> (i32, i32) {
    %c0_i32 = arith.constant 0 : i32
    %c0_i32_0 = arith.constant 0 : i32
    return %arg0, %c0_i32 : i32, i32
  }
}

module attributes {stable_mosaic.version = 11 : i64} {
  func.func @_linear_kernel(%arg0: i32, %arg1: memref<16x16xbf16, #tpu.memory_space<vmem>>, %arg2: memref<16x16xbf16, #tpu.memory_space<vmem>>, %arg3: memref<16x7xbf16, #tpu.memory_space<vmem>>, %arg4: memref<16x7xbf16, #tpu.memory_space<vmem>>, %arg5: memref<1x7xf32, #tpu.memory_space<vmem>>, %arg6: memref<16x7xf32, #tpu.memory_space<vmem>>) attributes {dimension_semantics = [#tpu.dimension_semantics<parallel>], iteration_bounds = array<i64: 1>, scalar_prefetch = 0 : i64, scratch_operands = 0 : i64, tpu.core_type = #tpu.core_type<tc>, window_params = [{transform_indices = @transform_0, window_bounds = array<i64: 16, 16>}, {transform_indices = @transform_1, window_bounds = array<i64: 16, 16>}, {pipeline_mode = #tpu.pipeline_mode<synchronous>, transform_indices = @transform_2, window_bounds = array<i64: 16, 7>}, {pipeline_mode = #tpu.pipeline_mode<synchronous>, transform_indices = @transform_3, window_bounds = array<i64: 16, 7>}, {pipeline_mode = #tpu.pipeline_mode<synchronous>, transform_indices = @transform_4, window_bounds = array<i64: 1, 7>}, {transform_indices = @transform_5, window_bounds = array<i64: 16, 7>}]} {
    %c0 = arith.constant 0 : index
    %c0_0 = arith.constant 0 : index
    %0 = vector.load %arg1[%c0, %c0_0] : memref<16x16xbf16, #tpu.memory_space<vmem>>, vector<16x16xbf16>
    %c0_1 = arith.constant 0 : index
    %c0_2 = arith.constant 0 : index
    %1 = vector.load %arg3[%c0_1, %c0_2] : memref<16x7xbf16, #tpu.memory_space<vmem>>, vector<16x7xbf16>
    %cst = arith.constant dense<0.000000e+00> : vector<16x7xf32>
    %2 = tpu.matmul %0, %1, %cst {dimension_numbers = #tpu.dot_dimension_numbers<[1], [0], [0], [1], [0, 0, 1, 1], [], []>} : vector<16x16xbf16>, vector<16x7xbf16>, vector<16x7xf32> -> vector<16x7xf32>
    %c0_3 = arith.constant 0 : index
    %c0_4 = arith.constant 0 : index
    %3 = vector.load %arg2[%c0_3, %c0_4] : memref<16x16xbf16, #tpu.memory_space<vmem>>, vector<16x16xbf16>
    %c0_5 = arith.constant 0 : index
    %c0_6 = arith.constant 0 : index
    %4 = vector.load %arg4[%c0_5, %c0_6] : memref<16x7xbf16, #tpu.memory_space<vmem>>, vector<16x7xbf16>
    %cst_7 = arith.constant dense<0.000000e+00> : vector<16x7xf32>
    %5 = tpu.matmul %3, %4, %cst_7 {dimension_numbers = #tpu.dot_dimension_numbers<[1], [0], [0], [1], [0, 0, 1, 1], [], []>} : vector<16x16xbf16>, vector<16x7xbf16>, vector<16x7xf32> -> vector<16x7xf32>
    %6 = arith.addf %2, %5 : vector<16x7xf32>
    %c0_8 = arith.constant 0 : index
    %c0_9 = arith.constant 0 : index
    %7 = vector.load %arg5[%c0_8, %c0_9] : memref<1x7xf32, #tpu.memory_space<vmem>>, vector<1x7xf32>
    %8 = vector.broadcast %7 : vector<1x7xf32> to vector<16x7xf32>
    %9 = arith.addf %6, %8 : vector<16x7xf32>
    %c0_10 = arith.constant 0 : index
    %c0_11 = arith.constant 0 : index
    %10 = vector.load %arg6[%c0_10, %c0_11] : memref<16x7xf32, #tpu.memory_space<vmem>>, vector<16x7xf32>
    tpu.vector_store %arg6[%c0_10, %c0_11], %9 {strides = array<i32>} : memref<16x7xf32, #tpu.memory_space<vmem>>, vector<16x7xf32>,
    return
  }
  func.func @transform_0(%arg0: i32) -> (i32, i32) {
    %c0_i32 = arith.constant 0 : i32
    %c0_i32_0 = arith.constant 0 : i32
    return %arg0, %c0_i32 : i32, i32
  }
  func.func @transform_1(%arg0: i32) -> (i32, i32) {
    %c0_i32 = arith.constant 0 : i32
    %c0_i32_0 = arith.constant 0 : i32
    return %arg0, %c0_i32 : i32, i32
  }
  func.func @transform_2(%arg0: i32) -> (i32, i32) {
    %c0_i32 = arith.constant 0 : i32
    %c0_i32_0 = arith.constant 0 : i32
    %c0_i32_1 = arith.constant 0 : i32
    return %c0_i32, %c0_i32_0 : i32, i32
  }
  func.func @transform_3(%arg0: i32) -> (i32, i32) {
    %c0_i32 = arith.constant 0 : i32
    %c0_i32_0 = arith.constant 0 : i32
    %c0_i32_1 = arith.constant 0 : i32
    return %c0_i32, %c0_i32_0 : i32, i32
  }
  func.func @transform_4(%arg0: i32) -> (i32, i32) {
    %c0_i32 = arith.constant 0 : i32
    %c0_i32_0 = arith.constant 0 : i32
    %c0_i32_1 = arith.constant 0 : i32
    return %c0_i32, %c0_i32_0 : i32, i32
  }
  func.func @transform_5(%arg0: i32) -> (i32, i32) {
    %c0_i32 = arith.constant 0 : i32
    %c0_i32_0 = arith.constant 0 : i32
    return %arg0, %c0_i32 : i32, i32
  }
}

module attributes {stable_mosaic.version = 11 : i64} {
  func.func @_crf_viterbi_kernel(%arg0: memref<8x2x7xf32, #tpu.memory_space<vmem>>, %arg1: memref<7x7xf32, #tpu.memory_space<vmem>>, %arg2: memref<8x2x1xf32, #tpu.memory_space<vmem>>, %arg3: memref<2x1xf32, #tpu.memory_space<vmem>>, %arg4: memref<8x2x7xi32, #tpu.memory_space<vmem>>, %arg5: memref<2x7xf32, #tpu.memory_space<vmem>>) attributes {dimension_semantics = [], scalar_prefetch = 0 : i64, scratch_operands = 0 : i64, tpu.core_type = #tpu.core_type<tc>} {
    %c0 = arith.constant 0 : index
    %c0_0 = arith.constant 0 : index
    %0 = vector.load %arg1[%c0, %c0_0] : memref<7x7xf32, #tpu.memory_space<vmem>>, vector<7x7xf32>
    %1 = tpu.iota {dimensions = array<i32: 1>} : vector<2x7xi32>
    %c5_i32 = arith.constant 5 : i32
    %2 = vector.broadcast %c5_i32 : i32 to vector<2x7xi32>
    %3 = arith.cmpi eq, %1, %2 : vector<2x7xi32>
    %cst = arith.constant 0.000000e+00 : f32
    %cst_1 = arith.constant -1.000000e+05 : f32
    %4 = vector.broadcast %cst : f32 to vector<2x7xf32>
    %5 = vector.broadcast %cst_1 : f32 to vector<2x7xf32>
    %6 = arith.select %3, %4, %5 : vector<2x7xi1>, vector<2x7xf32>
    %c0_i32 = arith.constant 0 : i32
    %7 = arith.index_cast %c0_i32 : i32 to index
    %c0_2 = arith.constant 0 : index
    %c0_3 = arith.constant 0 : index
    %8 = vector.load %arg0[%7, %c0_2, %c0_3] : memref<8x2x7xf32, #tpu.memory_space<vmem>>, vector<1x2x7xf32>
    %9 = vector.shape_cast %8 : vector<1x2x7xf32> to vector<2x7xf32>
    %10 = arith.index_cast %c0_i32 : i32 to index
    %c0_4 = arith.constant 0 : index
    %c0_5 = arith.constant 0 : index
    %11 = vector.load %arg2[%10, %c0_4, %c0_5] : memref<8x2x1xf32, #tpu.memory_space<vmem>>, vector<1x2x1xf32>
    %12 = vector.shape_cast %11 : vector<1x2x1xf32> to vector<2x1xf32>
    %13 = vector.shape_cast %6 : vector<2x7xf32> to vector<2x1x7xf32>
    %14 = vector.shape_cast %0 : vector<7x7xf32> to vector<1x7x7xf32>
    %15 = vector.broadcast %13 : vector<2x1x7xf32> to vector<2x7x7xf32>
    %16 = vector.broadcast %14 : vector<1x7x7xf32> to vector<2x7x7xf32>
    %17 = arith.addf %15, %16 : vector<2x7x7xf32>
    %18 = vector.shape_cast %9 : vector<2x7xf32> to vector<2x7x1xf32>
    %19 = vector.broadcast %18 : vector<2x7x1xf32> to vector<2x7x7xf32>
    %20 = arith.addf %17, %19 : vector<2x7x7xf32>
    %cst_6 = arith.constant dense<0xFF800000> : vector<2x7xf32>
    %21 = vector.multi_reduction <maximumf>, %20, %cst_6 [2] : vector<2x7x7xf32> to vector<2x7xf32>
    %22 = vector.shape_cast %21 : vector<2x7xf32> to vector<2x7x1xf32>
    %23 = vector.broadcast %22 : vector<2x7x1xf32> to vector<2x7x7xf32>
    %24 = arith.subf %20, %23 : vector<2x7x7xf32>
    %25 = math.exp %24 : vector<2x7x7xf32>
    %cst_7 = arith.constant dense<0.000000e+00> : vector<2x7xf32>
    %26 = vector.multi_reduction <add>, %25, %cst_7 [2] : vector<2x7x7xf32> to vector<2x7xf32>
    %27 = math.log %26 : vector<2x7xf32>
    %28 = arith.addf %21, %27 : vector<2x7xf32>
    %29 = vector.broadcast %12 : vector<2x1xf32> to vector<2x7xf32>
    %30 = arith.mulf %28, %29 : vector<2x7xf32>
    %cst_8 = arith.constant 1.000000e+00 : f32
    %31 = vector.broadcast %cst_8 : f32 to vector<2x1xf32>
    %32 = arith.subf %31, %12 : vector<2x1xf32>
    %33 = vector.broadcast %32 : vector<2x1xf32> to vector<2x7xf32>
    %34 = arith.mulf %6, %33 : vector<2x7xf32>
    %35 = arith.addf %30, %34 : vector<2x7xf32>
    %36 = vector.shape_cast %6 : vector<2x7xf32> to vector<2x1x7xf32>
    %37 = vector.shape_cast %0 : vector<7x7xf32> to vector<1x7x7xf32>
    %38 = vector.broadcast %36 : vector<2x1x7xf32> to vector<2x7x7xf32>
    %39 = vector.broadcast %37 : vector<1x7x7xf32> to vector<2x7x7xf32>
    %40 = arith.addf %38, %39 : vector<2x7x7xf32>
    %cst_9 = arith.constant dense<0xFF800000> : vector<2x7xf32>
    %41 = vector.multi_reduction <maximumf>, %40, %cst_9 [2] : vector<2x7x7xf32> to vector<2x7xf32>
    %42 = tpu.iota {dimensions = array<i32: 2>} : vector<2x7x7xi32>
    %43 = vector.shape_cast %41 : vector<2x7xf32> to vector<2x7x1xf32>
    %44 = vector.broadcast %43 : vector<2x7x1xf32> to vector<2x7x7xf32>
    %45 = arith.cmpf oeq, %40, %44 : vector<2x7x7xf32>
    %c7_i32 = arith.constant 7 : i32
    %46 = vector.broadcast %c7_i32 : i32 to vector<2x7x7xi32>
    %47 = arith.select %45, %42, %46 : vector<2x7x7xi1>, vector<2x7x7xi32>
    %cst_10 = arith.constant dense<2147483647> : vector<2x7xi32>
    %48 = vector.multi_reduction <minsi>, %47, %cst_10 [2] : vector<2x7x7xi32> to vector<2x7xi32>
    %49 = arith.index_cast %c0_i32 : i32 to index
    %c0_11 = arith.constant 0 : index
    %c0_12 = arith.constant 0 : index
    %50 = vector.load %arg4[%49, %c0_11, %c0_12] : memref<8x2x7xi32, #tpu.memory_space<vmem>>, vector<1x2x7xi32>
    %51 = vector.shape_cast %50 : vector<1x2x7xi32> to vector<2x7xi32>
    %52 = vector.shape_cast %48 : vector<2x7xi32> to vector<1x2x7xi32>
    tpu.vector_store %arg4[%49, %c0_11, %c0_12], %52 {strides = array<i32>} : memref<8x2x7xi32, #tpu.memory_space<vmem>>, vector<1x2x7xi32>,
    %53 = arith.addf %41, %9 : vector<2x7xf32>
    %54 = vector.broadcast %12 : vector<2x1xf32> to vector<2x7xf32>
    %55 = arith.mulf %53, %54 : vector<2x7xf32>
    %cst_13 = arith.constant 1.000000e+00 : f32
    %56 = vector.broadcast %cst_13 : f32 to vector<2x1xf32>
    %57 = arith.subf %56, %12 : vector<2x1xf32>
    %58 = vector.broadcast %57 : vector<2x1xf32> to vector<2x7xf32>
    %59 = arith.mulf %6, %58 : vector<2x7xf32>
    %60 = arith.addf %55, %59 : vector<2x7xf32>
    %c1_i32 = arith.constant 1 : i32
    %61 = arith.index_cast %c1_i32 : i32 to index
    %c0_14 = arith.constant 0 : index
    %c0_15 = arith.constant 0 : index
    %62 = vector.load %arg0[%61, %c0_14, %c0_15] : memref<8x2x7xf32, #tpu.memory_space<vmem>>, vector<1x2x7xf32>
    %63 = vector.shape_cast %62 : vector<1x2x7xf32> to vector<2x7xf32>
    %64 = arith.index_cast %c1_i32 : i32 to index
    %c0_16 = arith.constant 0 : index
    %c0_17 = arith.constant 0 : index
    %65 = vector.load %arg2[%64, %c0_16, %c0_17] : memref<8x2x1xf32, #tpu.memory_space<vmem>>, vector<1x2x1xf32>
    %66 = vector.shape_cast %65 : vector<1x2x1xf32> to vector<2x1xf32>
    %67 = vector.shape_cast %35 : vector<2x7xf32> to vector<2x1x7xf32>
    %68 = vector.shape_cast %0 : vector<7x7xf32> to vector<1x7x7xf32>
    %69 = vector.broadcast %67 : vector<2x1x7xf32> to vector<2x7x7xf32>
    %70 = vector.broadcast %68 : vector<1x7x7xf32> to vector<2x7x7xf32>
    %71 = arith.addf %69, %70 : vector<2x7x7xf32>
    %72 = vector.shape_cast %63 : vector<2x7xf32> to vector<2x7x1xf32>
    %73 = vector.broadcast %72 : vector<2x7x1xf32> to vector<2x7x7xf32>
    %74 = arith.addf %71, %73 : vector<2x7x7xf32>
    %cst_18 = arith.constant dense<0xFF800000> : vector<2x7xf32>
    %75 = vector.multi_reduction <maximumf>, %74, %cst_18 [2] : vector<2x7x7xf32> to vector<2x7xf32>
    %76 = vector.shape_cast %75 : vector<2x7xf32> to vector<2x7x1xf32>
    %77 = vector.broadcast %76 : vector<2x7x1xf32> to vector<2x7x7xf32>
    %78 = arith.subf %74, %77 : vector<2x7x7xf32>
    %79 = math.exp %78 : vector<2x7x7xf32>
    %cst_19 = arith.constant dense<0.000000e+00> : vector<2x7xf32>
    %80 = vector.multi_reduction <add>, %79, %cst_19 [2] : vector<2x7x7xf32> to vector<2x7xf32>
    %81 = math.log %80 : vector<2x7xf32>
    %82 = arith.addf %75, %81 : vector<2x7xf32>
    %83 = vector.broadcast %66 : vector<2x1xf32> to vector<2x7xf32>
    %84 = arith.mulf %82, %83 : vector<2x7xf32>
    %cst_20 = arith.constant 1.000000e+00 : f32
    %85 = vector.broadcast %cst_20 : f32 to vector<2x1xf32>
    %86 = arith.subf %85, %66 : vector<2x1xf32>
    %87 = vector.broadcast %86 : vector<2x1xf32> to vector<2x7xf32>
    %88 = arith.mulf %35, %87 : vector<2x7xf32>
    %89 = arith.addf %84, %88 : vector<2x7xf32>
    %90 = vector.shape_cast %60 : vector<2x7xf32> to vector<2x1x7xf32>
    %91 = vector.shape_cast %0 : vector<7x7xf32> to vector<1x7x7xf32>
    %92 = vector.broadcast %90 : vector<2x1x7xf32> to vector<2x7x7xf32>
    %93 = vector.broadcast %91 : vector<1x7x7xf32> to vector<2x7x7xf32>
    %94 = arith.addf %92, %93 : vector<2x7x7xf32>
    %cst_21 = arith.constant dense<0xFF800000> : vector<2x7xf32>
    %95 = vector.multi_reduction <maximumf>, %94, %cst_21 [2] : vector<2x7x7xf32> to vector<2x7xf32>
    %96 = tpu.iota {dimensions = array<i32: 2>} : vector<2x7x7xi32>
    %97 = vector.shape_cast %95 : vector<2x7xf32> to vector<2x7x1xf32>
    %98 = vector.broadcast %97 : vector<2x7x1xf32> to vector<2x7x7xf32>
    %99 = arith.cmpf oeq, %94, %98 : vector<2x7x7xf32>
    %c7_i32_22 = arith.constant 7 : i32
    %100 = vector.broadcast %c7_i32_22 : i32 to vector<2x7x7xi32>
    %101 = arith.select %99, %96, %100 : vector<2x7x7xi1>, vector<2x7x7xi32>
    %cst_23 = arith.constant dense<2147483647> : vector<2x7xi32>
    %102 = vector.multi_reduction <minsi>, %101, %cst_23 [2] : vector<2x7x7xi32> to vector<2x7xi32>
    %103 = arith.index_cast %c1_i32 : i32 to index
    %c0_24 = arith.constant 0 : index
    %c0_25 = arith.constant 0 : index
    %104 = vector.load %arg4[%103, %c0_24, %c0_25] : memref<8x2x7xi32, #tpu.memory_space<vmem>>, vector<1x2x7xi32>
    %105 = vector.shape_cast %104 : vector<1x2x7xi32> to vector<2x7xi32>
    %106 = vector.shape_cast %102 : vector<2x7xi32> to vector<1x2x7xi32>
    tpu.vector_store %arg4[%103, %c0_24, %c0_25], %106 {strides = array<i32>} : memref<8x2x7xi32, #tpu.memory_space<vmem>>, vector<1x2x7xi32>,
    %107 = arith.addf %95, %63 : vector<2x7xf32>
    %108 = vector.broadcast %66 : vector<2x1xf32> to vector<2x7xf32>
    %109 = arith.mulf %107, %108 : vector<2x7xf32>
    %cst_26 = arith.constant 1.000000e+00 : f32
    %110 = vector.broadcast %cst_26 : f32 to vector<2x1xf32>
    %111 = arith.subf %110, %66 : vector<2x1xf32>
    %112 = vector.broadcast %111 : vector<2x1xf32> to vector<2x7xf32>
    %113 = arith.mulf %60, %112 : vector<2x7xf32>
    %114 = arith.addf %109, %113 : vector<2x7xf32>
    %c2_i32 = arith.constant 2 : i32
    %115 = arith.index_cast %c2_i32 : i32 to index
    %c0_27 = arith.constant 0 : index
    %c0_28 = arith.constant 0 : index
    %116 = vector.load %arg0[%115, %c0_27, %c0_28] : memref<8x2x7xf32, #tpu.memory_space<vmem>>, vector<1x2x7xf32>
    %117 = vector.shape_cast %116 : vector<1x2x7xf32> to vector<2x7xf32>
    %118 = arith.index_cast %c2_i32 : i32 to index
    %c0_29 = arith.constant 0 : index
    %c0_30 = arith.constant 0 : index
    %119 = vector.load %arg2[%118, %c0_29, %c0_30] : memref<8x2x1xf32, #tpu.memory_space<vmem>>, vector<1x2x1xf32>
    %120 = vector.shape_cast %119 : vector<1x2x1xf32> to vector<2x1xf32>
    %121 = vector.shape_cast %89 : vector<2x7xf32> to vector<2x1x7xf32>
    %122 = vector.shape_cast %0 : vector<7x7xf32> to vector<1x7x7xf32>
    %123 = vector.broadcast %121 : vector<2x1x7xf32> to vector<2x7x7xf32>
    %124 = vector.broadcast %122 : vector<1x7x7xf32> to vector<2x7x7xf32>
    %125 = arith.addf %123, %124 : vector<2x7x7xf32>
    %126 = vector.shape_cast %117 : vector<2x7xf32> to vector<2x7x1xf32>
    %127 = vector.broadcast %126 : vector<2x7x1xf32> to vector<2x7x7xf32>
    %128 = arith.addf %125, %127 : vector<2x7x7xf32>
    %cst_31 = arith.constant dense<0xFF800000> : vector<2x7xf32>
    %129 = vector.multi_reduction <maximumf>, %128, %cst_31 [2] : vector<2x7x7xf32> to vector<2x7xf32>
    %130 = vector.shape_cast %129 : vector<2x7xf32> to vector<2x7x1xf32>
    %131 = vector.broadcast %130 : vector<2x7x1xf32> to vector<2x7x7xf32>
    %132 = arith.subf %128, %131 : vector<2x7x7xf32>
    %133 = math.exp %132 : vector<2x7x7xf32>
    %cst_32 = arith.constant dense<0.000000e+00> : vector<2x7xf32>
    %134 = vector.multi_reduction <add>, %133, %cst_32 [2] : vector<2x7x7xf32> to vector<2x7xf32>
    %135 = math.log %134 : vector<2x7xf32>
    %136 = arith.addf %129, %135 : vector<2x7xf32>
    %137 = vector.broadcast %120 : vector<2x1xf32> to vector<2x7xf32>
    %138 = arith.mulf %136, %137 : vector<2x7xf32>
    %cst_33 = arith.constant 1.000000e+00 : f32
    %139 = vector.broadcast %cst_33 : f32 to vector<2x1xf32>
    %140 = arith.subf %139, %120 : vector<2x1xf32>
    %141 = vector.broadcast %140 : vector<2x1xf32> to vector<2x7xf32>
    %142 = arith.mulf %89, %141 : vector<2x7xf32>
    %143 = arith.addf %138, %142 : vector<2x7xf32>
    %144 = vector.shape_cast %114 : vector<2x7xf32> to vector<2x1x7xf32>
    %145 = vector.shape_cast %0 : vector<7x7xf32> to vector<1x7x7xf32>
    %146 = vector.broadcast %144 : vector<2x1x7xf32> to vector<2x7x7xf32>
    %147 = vector.broadcast %145 : vector<1x7x7xf32> to vector<2x7x7xf32>
    %148 = arith.addf %146, %147 : vector<2x7x7xf32>
    %cst_34 = arith.constant dense<0xFF800000> : vector<2x7xf32>
    %149 = vector.multi_reduction <maximumf>, %148, %cst_34 [2] : vector<2x7x7xf32> to vector<2x7xf32>
    %150 = tpu.iota {dimensions = array<i32: 2>} : vector<2x7x7xi32>
    %151 = vector.shape_cast %149 : vector<2x7xf32> to vector<2x7x1xf32>
    %152 = vector.broadcast %151 : vector<2x7x1xf32> to vector<2x7x7xf32>
    %153 = arith.cmpf oeq, %148, %152 : vector<2x7x7xf32>
    %c7_i32_35 = arith.constant 7 : i32
    %154 = vector.broadcast %c7_i32_35 : i32 to vector<2x7x7xi32>
    %155 = arith.select %153, %150, %154 : vector<2x7x7xi1>, vector<2x7x7xi32>
    %cst_36 = arith.constant dense<2147483647> : vector<2x7xi32>
    %156 = vector.multi_reduction <minsi>, %155, %cst_36 [2] : vector<2x7x7xi32> to vector<2x7xi32>
    %157 = arith.index_cast %c2_i32 : i32 to index
    %c0_37 = arith.constant 0 : index
    %c0_38 = arith.constant 0 : index
    %158 = vector.load %arg4[%157, %c0_37, %c0_38] : memref<8x2x7xi32, #tpu.memory_space<vmem>>, vector<1x2x7xi32>
    %159 = vector.shape_cast %158 : vector<1x2x7xi32> to vector<2x7xi32>
    %160 = vector.shape_cast %156 : vector<2x7xi32> to vector<1x2x7xi32>
    tpu.vector_store %arg4[%157, %c0_37, %c0_38], %160 {strides = array<i32>} : memref<8x2x7xi32, #tpu.memory_space<vmem>>, vector<1x2x7xi32>,
    %161 = arith.addf %149, %117 : vector<2x7xf32>
    %162 = vector.broadcast %120 : vector<2x1xf32> to vector<2x7xf32>
    %163 = arith.mulf %161, %162 : vector<2x7xf32>
    %cst_39 = arith.constant 1.000000e+00 : f32
    %164 = vector.broadcast %cst_39 : f32 to vector<2x1xf32>
    %165 = arith.subf %164, %120 : vector<2x1xf32>
    %166 = vector.broadcast %165 : vector<2x1xf32> to vector<2x7xf32>
    %167 = arith.mulf %114, %166 : vector<2x7xf32>
    %168 = arith.addf %163, %167 : vector<2x7xf32>
    %c3_i32 = arith.constant 3 : i32
    %169 = arith.index_cast %c3_i32 : i32 to index
    %c0_40 = arith.constant 0 : index
    %c0_41 = arith.constant 0 : index
    %170 = vector.load %arg0[%169, %c0_40, %c0_41] : memref<8x2x7xf32, #tpu.memory_space<vmem>>, vector<1x2x7xf32>
    %171 = vector.shape_cast %170 : vector<1x2x7xf32> to vector<2x7xf32>
    %172 = arith.index_cast %c3_i32 : i32 to index
    %c0_42 = arith.constant 0 : index
    %c0_43 = arith.constant 0 : index
    %173 = vector.load %arg2[%172, %c0_42, %c0_43] : memref<8x2x1xf32, #tpu.memory_space<vmem>>, vector<1x2x1xf32>
    %174 = vector.shape_cast %173 : vector<1x2x1xf32> to vector<2x1xf32>
    %175 = vector.shape_cast %143 : vector<2x7xf32> to vector<2x1x7xf32>
    %176 = vector.shape_cast %0 : vector<7x7xf32> to vector<1x7x7xf32>
    %177 = vector.broadcast %175 : vector<2x1x7xf32> to vector<2x7x7xf32>
    %178 = vector.broadcast %176 : vector<1x7x7xf32> to vector<2x7x7xf32>
    %179 = arith.addf %177, %178 : vector<2x7x7xf32>
    %180 = vector.shape_cast %171 : vector<2x7xf32> to vector<2x7x1xf32>
    %181 = vector.broadcast %180 : vector<2x7x1xf32> to vector<2x7x7xf32>
    %182 = arith.addf %179, %181 : vector<2x7x7xf32>
    %cst_44 = arith.constant dense<0xFF800000> : vector<2x7xf32>
    %183 = vector.multi_reduction <maximumf>, %182, %cst_44 [2] : vector<2x7x7xf32> to vector<2x7xf32>
    %184 = vector.shape_cast %183 : vector<2x7xf32> to vector<2x7x1xf32>
    %185 = vector.broadcast %184 : vector<2x7x1xf32> to vector<2x7x7xf32>
    %186 = arith.subf %182, %185 : vector<2x7x7xf32>
    %187 = math.exp %186 : vector<2x7x7xf32>
    %cst_45 = arith.constant dense<0.000000e+00> : vector<2x7xf32>
    %188 = vector.multi_reduction <add>, %187, %cst_45 [2] : vector<2x7x7xf32> to vector<2x7xf32>
    %189 = math.log %188 : vector<2x7xf32>
    %190 = arith.addf %183, %189 : vector<2x7xf32>
    %191 = vector.broadcast %174 : vector<2x1xf32> to vector<2x7xf32>
    %192 = arith.mulf %190, %191 : vector<2x7xf32>
    %cst_46 = arith.constant 1.000000e+00 : f32
    %193 = vector.broadcast %cst_46 : f32 to vector<2x1xf32>
    %194 = arith.subf %193, %174 : vector<2x1xf32>
    %195 = vector.broadcast %194 : vector<2x1xf32> to vector<2x7xf32>
    %196 = arith.mulf %143, %195 : vector<2x7xf32>
    %197 = arith.addf %192, %196 : vector<2x7xf32>
    %198 = vector.shape_cast %168 : vector<2x7xf32> to vector<2x1x7xf32>
    %199 = vector.shape_cast %0 : vector<7x7xf32> to vector<1x7x7xf32>
    %200 = vector.broadcast %198 : vector<2x1x7xf32> to vector<2x7x7xf32>
    %201 = vector.broadcast %199 : vector<1x7x7xf32> to vector<2x7x7xf32>
    %202 = arith.addf %200, %201 : vector<2x7x7xf32>
    %cst_47 = arith.constant dense<0xFF800000> : vector<2x7xf32>
    %203 = vector.multi_reduction <maximumf>, %202, %cst_47 [2] : vector<2x7x7xf32> to vector<2x7xf32>
    %204 = tpu.iota {dimensions = array<i32: 2>} : vector<2x7x7xi32>
    %205 = vector.shape_cast %203 : vector<2x7xf32> to vector<2x7x1xf32>
    %206 = vector.broadcast %205 : vector<2x7x1xf32> to vector<2x7x7xf32>
    %207 = arith.cmpf oeq, %202, %206 : vector<2x7x7xf32>
    %c7_i32_48 = arith.constant 7 : i32
    %208 = vector.broadcast %c7_i32_48 : i32 to vector<2x7x7xi32>
    %209 = arith.select %207, %204, %208 : vector<2x7x7xi1>, vector<2x7x7xi32>
    %cst_49 = arith.constant dense<2147483647> : vector<2x7xi32>
    %210 = vector.multi_reduction <minsi>, %209, %cst_49 [2] : vector<2x7x7xi32> to vector<2x7xi32>
    %211 = arith.index_cast %c3_i32 : i32 to index
    %c0_50 = arith.constant 0 : index
    %c0_51 = arith.constant 0 : index
    %212 = vector.load %arg4[%211, %c0_50, %c0_51] : memref<8x2x7xi32, #tpu.memory_space<vmem>>, vector<1x2x7xi32>
    %213 = vector.shape_cast %212 : vector<1x2x7xi32> to vector<2x7xi32>
    %214 = vector.shape_cast %210 : vector<2x7xi32> to vector<1x2x7xi32>
    tpu.vector_store %arg4[%211, %c0_50, %c0_51], %214 {strides = array<i32>} : memref<8x2x7xi32, #tpu.memory_space<vmem>>, vector<1x2x7xi32>,
    %215 = arith.addf %203, %171 : vector<2x7xf32>
    %216 = vector.broadcast %174 : vector<2x1xf32> to vector<2x7xf32>
    %217 = arith.mulf %215, %216 : vector<2x7xf32>
    %cst_52 = arith.constant 1.000000e+00 : f32
    %218 = vector.broadcast %cst_52 : f32 to vector<2x1xf32>
    %219 = arith.subf %218, %174 : vector<2x1xf32>
    %220 = vector.broadcast %219 : vector<2x1xf32> to vector<2x7xf32>
    %221 = arith.mulf %168, %220 : vector<2x7xf32>
    %222 = arith.addf %217, %221 : vector<2x7xf32>
    %c4_i32 = arith.constant 4 : i32
    %223 = arith.index_cast %c4_i32 : i32 to index
    %c0_53 = arith.constant 0 : index
    %c0_54 = arith.constant 0 : index
    %224 = vector.load %arg0[%223, %c0_53, %c0_54] : memref<8x2x7xf32, #tpu.memory_space<vmem>>, vector<1x2x7xf32>
    %225 = vector.shape_cast %224 : vector<1x2x7xf32> to vector<2x7xf32>
    %226 = arith.index_cast %c4_i32 : i32 to index
    %c0_55 = arith.constant 0 : index
    %c0_56 = arith.constant 0 : index
    %227 = vector.load %arg2[%226, %c0_55, %c0_56] : memref<8x2x1xf32, #tpu.memory_space<vmem>>, vector<1x2x1xf32>
    %228 = vector.shape_cast %227 : vector<1x2x1xf32> to vector<2x1xf32>
    %229 = vector.shape_cast %197 : vector<2x7xf32> to vector<2x1x7xf32>
    %230 = vector.shape_cast %0 : vector<7x7xf32> to vector<1x7x7xf32>
    %231 = vector.broadcast %229 : vector<2x1x7xf32> to vector<2x7x7xf32>
    %232 = vector.broadcast %230 : vector<1x7x7xf32> to vector<2x7x7xf32>
    %233 = arith.addf %231, %232 : vector<2x7x7xf32>
    %234 = vector.shape_cast %225 : vector<2x7xf32> to vector<2x7x1xf32>
    %235 = vector.broadcast %234 : vector<2x7x1xf32> to vector<2x7x7xf32>
    %236 = arith.addf %233, %235 : vector<2x7x7xf32>
    %cst_57 = arith.constant dense<0xFF800000> : vector<2x7xf32>
    %237 = vector.multi_reduction <maximumf>, %236, %cst_57 [2] : vector<2x7x7xf32> to vector<2x7xf32>
    %238 = vector.shape_cast %237 : vector<2x7xf32> to vector<2x7x1xf32>
    %239 = vector.broadcast %238 : vector<2x7x1xf32> to vector<2x7x7xf32>
    %240 = arith.subf %236, %239 : vector<2x7x7xf32>
    %241 = math.exp %240 : vector<2x7x7xf32>
    %cst_58 = arith.constant dense<0.000000e+00> : vector<2x7xf32>
    %242 = vector.multi_reduction <add>, %241, %cst_58 [2] : vector<2x7x7xf32> to vector<2x7xf32>
    %243 = math.log %242 : vector<2x7xf32>
    %244 = arith.addf %237, %243 : vector<2x7xf32>
    %245 = vector.broadcast %228 : vector<2x1xf32> to vector<2x7xf32>
    %246 = arith.mulf %244, %245 : vector<2x7xf32>
    %cst_59 = arith.constant 1.000000e+00 : f32
    %247 = vector.broadcast %cst_59 : f32 to vector<2x1xf32>
    %248 = arith.subf %247, %228 : vector<2x1xf32>
    %249 = vector.broadcast %248 : vector<2x1xf32> to vector<2x7xf32>
    %250 = arith.mulf %197, %249 : vector<2x7xf32>
    %251 = arith.addf %246, %250 : vector<2x7xf32>
    %252 = vector.shape_cast %222 : vector<2x7xf32> to vector<2x1x7xf32>
    %253 = vector.shape_cast %0 : vector<7x7xf32> to vector<1x7x7xf32>
    %254 = vector.broadcast %252 : vector<2x1x7xf32> to vector<2x7x7xf32>
    %255 = vector.broadcast %253 : vector<1x7x7xf32> to vector<2x7x7xf32>
    %256 = arith.addf %254, %255 : vector<2x7x7xf32>
    %cst_60 = arith.constant dense<0xFF800000> : vector<2x7xf32>
    %257 = vector.multi_reduction <maximumf>, %256, %cst_60 [2] : vector<2x7x7xf32> to vector<2x7xf32>
    %258 = tpu.iota {dimensions = array<i32: 2>} : vector<2x7x7xi32>
    %259 = vector.shape_cast %257 : vector<2x7xf32> to vector<2x7x1xf32>
    %260 = vector.broadcast %259 : vector<2x7x1xf32> to vector<2x7x7xf32>
    %261 = arith.cmpf oeq, %256, %260 : vector<2x7x7xf32>
    %c7_i32_61 = arith.constant 7 : i32
    %262 = vector.broadcast %c7_i32_61 : i32 to vector<2x7x7xi32>
    %263 = arith.select %261, %258, %262 : vector<2x7x7xi1>, vector<2x7x7xi32>
    %cst_62 = arith.constant dense<2147483647> : vector<2x7xi32>
    %264 = vector.multi_reduction <minsi>, %263, %cst_62 [2] : vector<2x7x7xi32> to vector<2x7xi32>
    %265 = arith.index_cast %c4_i32 : i32 to index
    %c0_63 = arith.constant 0 : index
    %c0_64 = arith.constant 0 : index
    %266 = vector.load %arg4[%265, %c0_63, %c0_64] : memref<8x2x7xi32, #tpu.memory_space<vmem>>, vector<1x2x7xi32>
    %267 = vector.shape_cast %266 : vector<1x2x7xi32> to vector<2x7xi32>
    %268 = vector.shape_cast %264 : vector<2x7xi32> to vector<1x2x7xi32>
    tpu.vector_store %arg4[%265, %c0_63, %c0_64], %268 {strides = array<i32>} : memref<8x2x7xi32, #tpu.memory_space<vmem>>, vector<1x2x7xi32>,
    %269 = arith.addf %257, %225 : vector<2x7xf32>
    %270 = vector.broadcast %228 : vector<2x1xf32> to vector<2x7xf32>
    %271 = arith.mulf %269, %270 : vector<2x7xf32>
    %cst_65 = arith.constant 1.000000e+00 : f32
    %272 = vector.broadcast %cst_65 : f32 to vector<2x1xf32>
    %273 = arith.subf %272, %228 : vector<2x1xf32>
    %274 = vector.broadcast %273 : vector<2x1xf32> to vector<2x7xf32>
    %275 = arith.mulf %222, %274 : vector<2x7xf32>
    %276 = arith.addf %271, %275 : vector<2x7xf32>
    %c5_i32_66 = arith.constant 5 : i32
    %277 = arith.index_cast %c5_i32_66 : i32 to index
    %c0_67 = arith.constant 0 : index
    %c0_68 = arith.constant 0 : index
    %278 = vector.load %arg0[%277, %c0_67, %c0_68] : memref<8x2x7xf32, #tpu.memory_space<vmem>>, vector<1x2x7xf32>
    %279 = vector.shape_cast %278 : vector<1x2x7xf32> to vector<2x7xf32>
    %280 = arith.index_cast %c5_i32_66 : i32 to index
    %c0_69 = arith.constant 0 : index
    %c0_70 = arith.constant 0 : index
    %281 = vector.load %arg2[%280, %c0_69, %c0_70] : memref<8x2x1xf32, #tpu.memory_space<vmem>>, vector<1x2x1xf32>
    %282 = vector.shape_cast %281 : vector<1x2x1xf32> to vector<2x1xf32>
    %283 = vector.shape_cast %251 : vector<2x7xf32> to vector<2x1x7xf32>
    %284 = vector.shape_cast %0 : vector<7x7xf32> to vector<1x7x7xf32>
    %285 = vector.broadcast %283 : vector<2x1x7xf32> to vector<2x7x7xf32>
    %286 = vector.broadcast %284 : vector<1x7x7xf32> to vector<2x7x7xf32>
    %287 = arith.addf %285, %286 : vector<2x7x7xf32>
    %288 = vector.shape_cast %279 : vector<2x7xf32> to vector<2x7x1xf32>
    %289 = vector.broadcast %288 : vector<2x7x1xf32> to vector<2x7x7xf32>
    %290 = arith.addf %287, %289 : vector<2x7x7xf32>
    %cst_71 = arith.constant dense<0xFF800000> : vector<2x7xf32>
    %291 = vector.multi_reduction <maximumf>, %290, %cst_71 [2] : vector<2x7x7xf32> to vector<2x7xf32>
    %292 = vector.shape_cast %291 : vector<2x7xf32> to vector<2x7x1xf32>
    %293 = vector.broadcast %292 : vector<2x7x1xf32> to vector<2x7x7xf32>
    %294 = arith.subf %290, %293 : vector<2x7x7xf32>
    %295 = math.exp %294 : vector<2x7x7xf32>
    %cst_72 = arith.constant dense<0.000000e+00> : vector<2x7xf32>
    %296 = vector.multi_reduction <add>, %295, %cst_72 [2] : vector<2x7x7xf32> to vector<2x7xf32>
    %297 = math.log %296 : vector<2x7xf32>
    %298 = arith.addf %291, %297 : vector<2x7xf32>
    %299 = vector.broadcast %282 : vector<2x1xf32> to vector<2x7xf32>
    %300 = arith.mulf %298, %299 : vector<2x7xf32>
    %cst_73 = arith.constant 1.000000e+00 : f32
    %301 = vector.broadcast %cst_73 : f32 to vector<2x1xf32>
    %302 = arith.subf %301, %282 : vector<2x1xf32>
    %303 = vector.broadcast %302 : vector<2x1xf32> to vector<2x7xf32>
    %304 = arith.mulf %251, %303 : vector<2x7xf32>
    %305 = arith.addf %300, %304 : vector<2x7xf32>
    %306 = vector.shape_cast %276 : vector<2x7xf32> to vector<2x1x7xf32>
    %307 = vector.shape_cast %0 : vector<7x7xf32> to vector<1x7x7xf32>
    %308 = vector.broadcast %306 : vector<2x1x7xf32> to vector<2x7x7xf32>
    %309 = vector.broadcast %307 : vector<1x7x7xf32> to vector<2x7x7xf32>
    %310 = arith.addf %308, %309 : vector<2x7x7xf32>
    %cst_74 = arith.constant dense<0xFF800000> : vector<2x7xf32>
    %311 = vector.multi_reduction <maximumf>, %310, %cst_74 [2] : vector<2x7x7xf32> to vector<2x7xf32>
    %312 = tpu.iota {dimensions = array<i32: 2>} : vector<2x7x7xi32>
    %313 = vector.shape_cast %311 : vector<2x7xf32> to vector<2x7x1xf32>
    %314 = vector.broadcast %313 : vector<2x7x1xf32> to vector<2x7x7xf32>
    %315 = arith.cmpf oeq, %310, %314 : vector<2x7x7xf32>
    %c7_i32_75 = arith.constant 7 : i32
    %316 = vector.broadcast %c7_i32_75 : i32 to vector<2x7x7xi32>
    %317 = arith.select %315, %312, %316 : vector<2x7x7xi1>, vector<2x7x7xi32>
    %cst_76 = arith.constant dense<2147483647> : vector<2x7xi32>
    %318 = vector.multi_reduction <minsi>, %317, %cst_76 [2] : vector<2x7x7xi32> to vector<2x7xi32>
    %319 = arith.index_cast %c5_i32_66 : i32 to index
    %c0_77 = arith.constant 0 : index
    %c0_78 = arith.constant 0 : index
    %320 = vector.load %arg4[%319, %c0_77, %c0_78] : memref<8x2x7xi32, #tpu.memory_space<vmem>>, vector<1x2x7xi32>
    %321 = vector.shape_cast %320 : vector<1x2x7xi32> to vector<2x7xi32>
    %322 = vector.shape_cast %318 : vector<2x7xi32> to vector<1x2x7xi32>
    tpu.vector_store %arg4[%319, %c0_77, %c0_78], %322 {strides = array<i32>} : memref<8x2x7xi32, #tpu.memory_space<vmem>>, vector<1x2x7xi32>,
    %323 = arith.addf %311, %279 : vector<2x7xf32>
    %324 = vector.broadcast %282 : vector<2x1xf32> to vector<2x7xf32>
    %325 = arith.mulf %323, %324 : vector<2x7xf32>
    %cst_79 = arith.constant 1.000000e+00 : f32
    %326 = vector.broadcast %cst_79 : f32 to vector<2x1xf32>
    %327 = arith.subf %326, %282 : vector<2x1xf32>
    %328 = vector.broadcast %327 : vector<2x1xf32> to vector<2x7xf32>
    %329 = arith.mulf %276, %328 : vector<2x7xf32>
    %330 = arith.addf %325, %329 : vector<2x7xf32>
    %c6_i32 = arith.constant 6 : i32
    %331 = arith.index_cast %c6_i32 : i32 to index
    %c0_80 = arith.constant 0 : index
    %c0_81 = arith.constant 0 : index
    %332 = vector.load %arg0[%331, %c0_80, %c0_81] : memref<8x2x7xf32, #tpu.memory_space<vmem>>, vector<1x2x7xf32>
    %333 = vector.shape_cast %332 : vector<1x2x7xf32> to vector<2x7xf32>
    %334 = arith.index_cast %c6_i32 : i32 to index
    %c0_82 = arith.constant 0 : index
    %c0_83 = arith.constant 0 : index
    %335 = vector.load %arg2[%334, %c0_82, %c0_83] : memref<8x2x1xf32, #tpu.memory_space<vmem>>, vector<1x2x1xf32>
    %336 = vector.shape_cast %335 : vector<1x2x1xf32> to vector<2x1xf32>
    %337 = vector.shape_cast %305 : vector<2x7xf32> to vector<2x1x7xf32>
    %338 = vector.shape_cast %0 : vector<7x7xf32> to vector<1x7x7xf32>
    %339 = vector.broadcast %337 : vector<2x1x7xf32> to vector<2x7x7xf32>
    %340 = vector.broadcast %338 : vector<1x7x7xf32> to vector<2x7x7xf32>
    %341 = arith.addf %339, %340 : vector<2x7x7xf32>
    %342 = vector.shape_cast %333 : vector<2x7xf32> to vector<2x7x1xf32>
    %343 = vector.broadcast %342 : vector<2x7x1xf32> to vector<2x7x7xf32>
    %344 = arith.addf %341, %343 : vector<2x7x7xf32>
    %cst_84 = arith.constant dense<0xFF800000> : vector<2x7xf32>
    %345 = vector.multi_reduction <maximumf>, %344, %cst_84 [2] : vector<2x7x7xf32> to vector<2x7xf32>
    %346 = vector.shape_cast %345 : vector<2x7xf32> to vector<2x7x1xf32>
    %347 = vector.broadcast %346 : vector<2x7x1xf32> to vector<2x7x7xf32>
    %348 = arith.subf %344, %347 : vector<2x7x7xf32>
    %349 = math.exp %348 : vector<2x7x7xf32>
    %cst_85 = arith.constant dense<0.000000e+00> : vector<2x7xf32>
    %350 = vector.multi_reduction <add>, %349, %cst_85 [2] : vector<2x7x7xf32> to vector<2x7xf32>
    %351 = math.log %350 : vector<2x7xf32>
    %352 = arith.addf %345, %351 : vector<2x7xf32>
    %353 = vector.broadcast %336 : vector<2x1xf32> to vector<2x7xf32>
    %354 = arith.mulf %352, %353 : vector<2x7xf32>
    %cst_86 = arith.constant 1.000000e+00 : f32
    %355 = vector.broadcast %cst_86 : f32 to vector<2x1xf32>
    %356 = arith.subf %355, %336 : vector<2x1xf32>
    %357 = vector.broadcast %356 : vector<2x1xf32> to vector<2x7xf32>
    %358 = arith.mulf %305, %357 : vector<2x7xf32>
    %359 = arith.addf %354, %358 : vector<2x7xf32>
    %360 = vector.shape_cast %330 : vector<2x7xf32> to vector<2x1x7xf32>
    %361 = vector.shape_cast %0 : vector<7x7xf32> to vector<1x7x7xf32>
    %362 = vector.broadcast %360 : vector<2x1x7xf32> to vector<2x7x7xf32>
    %363 = vector.broadcast %361 : vector<1x7x7xf32> to vector<2x7x7xf32>
    %364 = arith.addf %362, %363 : vector<2x7x7xf32>
    %cst_87 = arith.constant dense<0xFF800000> : vector<2x7xf32>
    %365 = vector.multi_reduction <maximumf>, %364, %cst_87 [2] : vector<2x7x7xf32> to vector<2x7xf32>
    %366 = tpu.iota {dimensions = array<i32: 2>} : vector<2x7x7xi32>
    %367 = vector.shape_cast %365 : vector<2x7xf32> to vector<2x7x1xf32>
    %368 = vector.broadcast %367 : vector<2x7x1xf32> to vector<2x7x7xf32>
    %369 = arith.cmpf oeq, %364, %368 : vector<2x7x7xf32>
    %c7_i32_88 = arith.constant 7 : i32
    %370 = vector.broadcast %c7_i32_88 : i32 to vector<2x7x7xi32>
    %371 = arith.select %369, %366, %370 : vector<2x7x7xi1>, vector<2x7x7xi32>
    %cst_89 = arith.constant dense<2147483647> : vector<2x7xi32>
    %372 = vector.multi_reduction <minsi>, %371, %cst_89 [2] : vector<2x7x7xi32> to vector<2x7xi32>
    %373 = arith.index_cast %c6_i32 : i32 to index
    %c0_90 = arith.constant 0 : index
    %c0_91 = arith.constant 0 : index
    %374 = vector.load %arg4[%373, %c0_90, %c0_91] : memref<8x2x7xi32, #tpu.memory_space<vmem>>, vector<1x2x7xi32>
    %375 = vector.shape_cast %374 : vector<1x2x7xi32> to vector<2x7xi32>
    %376 = vector.shape_cast %372 : vector<2x7xi32> to vector<1x2x7xi32>
    tpu.vector_store %arg4[%373, %c0_90, %c0_91], %376 {strides = array<i32>} : memref<8x2x7xi32, #tpu.memory_space<vmem>>, vector<1x2x7xi32>,
    %377 = arith.addf %365, %333 : vector<2x7xf32>
    %378 = vector.broadcast %336 : vector<2x1xf32> to vector<2x7xf32>
    %379 = arith.mulf %377, %378 : vector<2x7xf32>
    %cst_92 = arith.constant 1.000000e+00 : f32
    %380 = vector.broadcast %cst_92 : f32 to vector<2x1xf32>
    %381 = arith.subf %380, %336 : vector<2x1xf32>
    %382 = vector.broadcast %381 : vector<2x1xf32> to vector<2x7xf32>
    %383 = arith.mulf %330, %382 : vector<2x7xf32>
    %384 = arith.addf %379, %383 : vector<2x7xf32>
    %c7_i32_93 = arith.constant 7 : i32
    %385 = arith.index_cast %c7_i32_93 : i32 to index
    %c0_94 = arith.constant 0 : index
    %c0_95 = arith.constant 0 : index
    %386 = vector.load %arg0[%385, %c0_94, %c0_95] : memref<8x2x7xf32, #tpu.memory_space<vmem>>, vector<1x2x7xf32>
    %387 = vector.shape_cast %386 : vector<1x2x7xf32> to vector<2x7xf32>
    %388 = arith.index_cast %c7_i32_93 : i32 to index
    %c0_96 = arith.constant 0 : index
    %c0_97 = arith.constant 0 : index
    %389 = vector.load %arg2[%388, %c0_96, %c0_97] : memref<8x2x1xf32, #tpu.memory_space<vmem>>, vector<1x2x1xf32>
    %390 = vector.shape_cast %389 : vector<1x2x1xf32> to vector<2x1xf32>
    %391 = vector.shape_cast %359 : vector<2x7xf32> to vector<2x1x7xf32>
    %392 = vector.shape_cast %0 : vector<7x7xf32> to vector<1x7x7xf32>
    %393 = vector.broadcast %391 : vector<2x1x7xf32> to vector<2x7x7xf32>
    %394 = vector.broadcast %392 : vector<1x7x7xf32> to vector<2x7x7xf32>
    %395 = arith.addf %393, %394 : vector<2x7x7xf32>
    %396 = vector.shape_cast %387 : vector<2x7xf32> to vector<2x7x1xf32>
    %397 = vector.broadcast %396 : vector<2x7x1xf32> to vector<2x7x7xf32>
    %398 = arith.addf %395, %397 : vector<2x7x7xf32>
    %cst_98 = arith.constant dense<0xFF800000> : vector<2x7xf32>
    %399 = vector.multi_reduction <maximumf>, %398, %cst_98 [2] : vector<2x7x7xf32> to vector<2x7xf32>
    %400 = vector.shape_cast %399 : vector<2x7xf32> to vector<2x7x1xf32>
    %401 = vector.broadcast %400 : vector<2x7x1xf32> to vector<2x7x7xf32>
    %402 = arith.subf %398, %401 : vector<2x7x7xf32>
    %403 = math.exp %402 : vector<2x7x7xf32>
    %cst_99 = arith.constant dense<0.000000e+00> : vector<2x7xf32>
    %404 = vector.multi_reduction <add>, %403, %cst_99 [2] : vector<2x7x7xf32> to vector<2x7xf32>
    %405 = math.log %404 : vector<2x7xf32>
    %406 = arith.addf %399, %405 : vector<2x7xf32>
    %407 = vector.broadcast %390 : vector<2x1xf32> to vector<2x7xf32>
    %408 = arith.mulf %406, %407 : vector<2x7xf32>
    %cst_100 = arith.constant 1.000000e+00 : f32
    %409 = vector.broadcast %cst_100 : f32 to vector<2x1xf32>
    %410 = arith.subf %409, %390 : vector<2x1xf32>
    %411 = vector.broadcast %410 : vector<2x1xf32> to vector<2x7xf32>
    %412 = arith.mulf %359, %411 : vector<2x7xf32>
    %413 = arith.addf %408, %412 : vector<2x7xf32>
    %414 = vector.shape_cast %384 : vector<2x7xf32> to vector<2x1x7xf32>
    %415 = vector.shape_cast %0 : vector<7x7xf32> to vector<1x7x7xf32>
    %416 = vector.broadcast %414 : vector<2x1x7xf32> to vector<2x7x7xf32>
    %417 = vector.broadcast %415 : vector<1x7x7xf32> to vector<2x7x7xf32>
    %418 = arith.addf %416, %417 : vector<2x7x7xf32>
    %cst_101 = arith.constant dense<0xFF800000> : vector<2x7xf32>
    %419 = vector.multi_reduction <maximumf>, %418, %cst_101 [2] : vector<2x7x7xf32> to vector<2x7xf32>
    %420 = tpu.iota {dimensions = array<i32: 2>} : vector<2x7x7xi32>
    %421 = vector.shape_cast %419 : vector<2x7xf32> to vector<2x7x1xf32>
    %422 = vector.broadcast %421 : vector<2x7x1xf32> to vector<2x7x7xf32>
    %423 = arith.cmpf oeq, %418, %422 : vector<2x7x7xf32>
    %c7_i32_102 = arith.constant 7 : i32
    %424 = vector.broadcast %c7_i32_102 : i32 to vector<2x7x7xi32>
    %425 = arith.select %423, %420, %424 : vector<2x7x7xi1>, vector<2x7x7xi32>
    %cst_103 = arith.constant dense<2147483647> : vector<2x7xi32>
    %426 = vector.multi_reduction <minsi>, %425, %cst_103 [2] : vector<2x7x7xi32> to vector<2x7xi32>
    %427 = arith.index_cast %c7_i32_93 : i32 to index
    %c0_104 = arith.constant 0 : index
    %c0_105 = arith.constant 0 : index
    %428 = vector.load %arg4[%427, %c0_104, %c0_105] : memref<8x2x7xi32, #tpu.memory_space<vmem>>, vector<1x2x7xi32>
    %429 = vector.shape_cast %428 : vector<1x2x7xi32> to vector<2x7xi32>
    %430 = vector.shape_cast %426 : vector<2x7xi32> to vector<1x2x7xi32>
    tpu.vector_store %arg4[%427, %c0_104, %c0_105], %430 {strides = array<i32>} : memref<8x2x7xi32, #tpu.memory_space<vmem>>, vector<1x2x7xi32>,
    %431 = arith.addf %419, %387 : vector<2x7xf32>
    %432 = vector.broadcast %390 : vector<2x1xf32> to vector<2x7xf32>
    %433 = arith.mulf %431, %432 : vector<2x7xf32>
    %cst_106 = arith.constant 1.000000e+00 : f32
    %434 = vector.broadcast %cst_106 : f32 to vector<2x1xf32>
    %435 = arith.subf %434, %390 : vector<2x1xf32>
    %436 = vector.broadcast %435 : vector<2x1xf32> to vector<2x7xf32>
    %437 = arith.mulf %384, %436 : vector<2x7xf32>
    %438 = arith.addf %433, %437 : vector<2x7xf32>
    %c8_i32 = arith.constant 8 : i32
    %439 = vector.extract_strided_slice %0 {offsets = [6, 0], sizes = [1, 7], strides = [1, 1]} : vector<7x7xf32> to vector<1x7xf32>
    %440 = vector.broadcast %439 : vector<1x7xf32> to vector<2x7xf32>
    %441 = arith.addf %413, %440 : vector<2x7xf32>
    %cst_107 = arith.constant dense<0xFF800000> : vector<2xf32>
    %442 = vector.multi_reduction <maximumf>, %441, %cst_107 [1] : vector<2x7xf32> to vector<2xf32>
    %443 = vector.shape_cast %442 : vector<2xf32> to vector<2x1xf32>
    %444 = vector.broadcast %443 : vector<2x1xf32> to vector<2x7xf32>
    %445 = arith.subf %441, %444 : vector<2x7xf32>
    %446 = math.exp %445 : vector<2x7xf32>
    %cst_108 = arith.constant dense<0.000000e+00> : vector<2xf32>
    %447 = vector.multi_reduction <add>, %446, %cst_108 [1] : vector<2x7xf32> to vector<2xf32>
    %448 = vector.shape_cast %447 : vector<2xf32> to vector<2x1xf32>
    %449 = math.log %448 : vector<2x1xf32>
    %450 = arith.addf %443, %449 : vector<2x1xf32>
    %c0_109 = arith.constant 0 : index
    %c0_110 = arith.constant 0 : index
    %451 = vector.load %arg3[%c0_109, %c0_110] : memref<2x1xf32, #tpu.memory_space<vmem>>, vector<2x1xf32>
    tpu.vector_store %arg3[%c0_109, %c0_110], %450 {strides = array<i32>} : memref<2x1xf32, #tpu.memory_space<vmem>>, vector<2x1xf32>,
    %452 = vector.extract_strided_slice %0 {offsets = [6, 0], sizes = [1, 7], strides = [1, 1]} : vector<7x7xf32> to vector<1x7xf32>
    %453 = vector.broadcast %452 : vector<1x7xf32> to vector<2x7xf32>
    %454 = arith.addf %438, %453 : vector<2x7xf32>
    %c0_111 = arith.constant 0 : index
    %c0_112 = arith.constant 0 : index
    %455 = vector.load %arg5[%c0_111, %c0_112] : memref<2x7xf32, #tpu.memory_space<vmem>>, vector<2x7xf32>
    tpu.vector_store %arg5[%c0_111, %c0_112], %454 {strides = array<i32>} : memref<2x7xf32, #tpu.memory_space<vmem>>, vector<2x7xf32>,
    return
  }
}

</mosaic_0001>

<llo_original>
// kernel: _lambda_.10
$region0: #{_lambda_.10}
  #allocation0 [shape = 'u32[]', space=smem, size = 0x4, offset = 0x4, fixed_abs, tag = 'smem constant byte address 0x4 - core index']
  #allocation1 [shape = 'u32[144,128]{1,0:T(1,128)}', space=vmem, size = 0x12000, scoped, tag = 'internal scratch']
  %s0 = inlined_call_operand.vmem [shape: bf16[16,16], index: 0, kind: input, shape index: {}]
  %s1 = inlined_call_operand.vmem [shape: bf16[16,64], index: 1, kind: input, shape index: {}]
  %s2 = inlined_call_operand.vmem [shape: bf16[16,64], index: 2, kind: input, shape index: {}]
  %s3 = inlined_call_operand.vmem [shape: f32[1,64], index: 3, kind: input, shape index: {}]
  %s4 = inlined_call_operand.vmem [shape: f32[1,64], index: 4, kind: input, shape index: {}]
  %s5 = inlined_call_operand.vmem [shape: f32[16,64], index: 5, kind: output, shape index: {0}]
  %s6 = inlined_call_operand.vmem [shape: f32[16,64], index: 6, kind: output, shape index: {1}]
  %7 = xla_tuple %s5, %s6
  %s8 = sld [smem:[#allocation0]]
  $region38: #{_lambda_.10} parent=0
    _
  %s10 = ssub.s32 1, %s8
  %s11 = scalar_select 0, %s10, %s8
  // Predicated region
  $region2: #{_lambda_.10} parent=0 // pred_check
    _
  $region3: #{_lambda_.10} parent=0 // pred_check_branch
    %13 = sbr.rel (0) target = $region5
  $region4: #{_lambda_.10} parent=0 // pred_region
    _
  $region5: #{_lambda_.10} parent=0 // pred_fallthru
    _
  // Predicated region
  $region6: #{_lambda_.10} parent=0 // pred_check
    _
  $region7: #{_lambda_.10} parent=0 // pred_check_branch
    %15 = sbr.rel (0) target = $region9
  $region8: #{_lambda_.10} parent=0 // pred_region
    _
  $region9: #{_lambda_.10} parent=0 // pred_fallthru
    _
  // Predicated region
  $region10: #{_lambda_.10} parent=0 // pred_check
    _
  $region11: #{_lambda_.10} parent=0 // pred_check_branch
    %17 = sbr.rel (0) target = $region13
  $region12: #{_lambda_.10} parent=0 // pred_region
    _
  $region13: #{_lambda_.10} parent=0 // pred_fallthru
    _
  // Predicated region
  $region14: #{_lambda_.10} parent=0 // pred_check
    _
  $region15: #{_lambda_.10} parent=0 // pred_check_branch
    %19 = sbr.rel (0) target = $region17
  $region16: #{_lambda_.10} parent=0 // pred_region
    _
  $region17: #{_lambda_.10} parent=0 // pred_fallthru
    _
  // Predicated region
  $region18: #{_lambda_.10} parent=0 // pred_check
    _
  $region19: #{_lambda_.10} parent=0 // pred_check_branch
    %21 = sbr.rel (0) target = $region21
  $region20: #{_lambda_.10} parent=0 // pred_region
    _
  $region21: #{_lambda_.10} parent=0 // pred_fallthru
    _
  %v23 = vld [vmem:[%s0] sm:$0xf]
  %v24 = vld [vmem:[%s0 + $0x4] sm:$0xf]
  %v25 = vld [vmem:[%s1] sm:$0xf]
  %v26 = vld [vmem:[%s1 + $0x4] sm:$0xf]
  %v27 = vld [vmem:[%s2] sm:$0xf]
  %v28 = vld [vmem:[%s2 + $0x4] sm:$0xf]
  %v29 = vld [vmem:[%s3] sm:$0x1]
  %v31 = vlaneseq
  %v32 = vshrl.u32 %v31, 7
  %v33 = vsub.s32 0, %v32
  %v34 = vrot.slane %v29, %v33
  %v38 = vunpack.c.l.b16 %v23
  %v39 = vunpack.c.l.b16 %v24
  %v40 = vpack.c.b16 %v39, %v38
  %v43 = vunpack.c.l.b16 %v25
  %v44 = vunpack.c.l.b16 %v26
  %v45 = vpack.c.b16 %v44, %v43
  %vm47 = vcmask 130048
  %v49 = vsel %vm47, %v40, 0
  %51 = vmatprep.subr.bf16.mxu0 0
  %52 = vmatpush1.bf16.msra.mxu0 0
  %53 = vmatprep.subr.bf16.mxu0 0
  %54 = vmatpush1.bf16.msra.mxu0 0
  %55 = vmatprep.subr.bf16.mxu0 0
  %56 = vmatpush1.bf16.msra.mxu0 0
  %57 = vmatprep.subr.bf16.mxu0 0
  %58 = vmatpush1.bf16.msra.mxu0 0
  %59 = vmatprep.subr.bf16.mxu0 0
  %60 = vmatpush1.bf16.msra.mxu0 0
  %61 = vmatprep.subr.bf16.mxu0 0
  %62 = vmatpush1.bf16.msra.mxu0 0
  %63 = vmatprep.subr.bf16.mxu0 0
  %64 = vmatpush1.bf16.msra.mxu0 0
  %65 = vmatprep.subr.bf16.mxu0 0
  %66 = vmatpush1.bf16.msra.mxu0 %v45
  %67 = vmatprep.subr.bf16.mxu0 0
  %68 = vmatpush2.bf16.msra.mxu0 0
  %69 = vmatprep.subr.bf16.mxu0 0
  %70 = vmatpush2.bf16.msra.mxu0 0
  %71 = vmatprep.subr.bf16.mxu0 0
  %72 = vmatpush2.bf16.msra.mxu0 0
  %73 = vmatprep.subr.bf16.mxu0 0
  %74 = vmatpush2.bf16.msra.mxu0 0
  %75 = vmatprep.subr.bf16.mxu0 0
  %76 = vmatpush2.bf16.msra.mxu0 0
  %77 = vmatprep.subr.bf16.mxu0 0
  %78 = vmatpush2.bf16.msra.mxu0 0
  %79 = vmatprep.subr.bf16.mxu0 0
  %80 = vmatpush2.bf16.msra.mxu0 0
  %81 = vmatprep.subr.bf16.mxu0 0
  %82 = vmatpush2.bf16.msra.mxu0 0
  %83 = vmatprep.mubr.bf16.mxu0 0
  %84 = vmatmul.mubr.bf16.gmra.mxu0 %v49
  %v85 = vpop.f32.mrf.mxu0
  %v86 = vadd.f32 %v34, %v85
  %v87 = vpop.f32.mrf.mxu0
  %v88 = vpop.f32.mrf.mxu0
  %v89 = vadd.f32 %v34, %v88
  %v90 = vpop.f32.mrf.mxu0
  %91 = vdwg.mxu0
  %vm92 = vcmask 523264
  %93 = vst.msk [vmem:[%s5] sm:$0xff] %vm92, %v86
  %94 = vst.msk [vmem:[%s5 + $0x8] sm:$0xff] %vm92, %v89
  %v95 = vld [vmem:[%s4] sm:$0x1]
  %v97 = vlaneseq
  %v98 = vshrl.u32 %v97, 7
  %v99 = vsub.s32 0, %v98
  %v100 = vrot.slane %v95, %v99
  %v104 = vunpack.c.l.b16 %v27
  %v105 = vunpack.c.l.b16 %v28
  %v106 = vpack.c.b16 %v105, %v104
  %108 = vmatprep.subr.bf16.mxu0 0
  %109 = vmatpush1.bf16.msra.mxu0 0
  %110 = vmatprep.subr.bf16.mxu0 0
  %111 = vmatpush1.bf16.msra.mxu0 0
  %112 = vmatprep.subr.bf16.mxu0 0
  %113 = vmatpush1.bf16.msra.mxu0 0
  %114 = vmatprep.subr.bf16.mxu0 0
  %115 = vmatpush1.bf16.msra.mxu0 0
  %116 = vmatprep.subr.bf16.mxu0 0
  %117 = vmatpush1.bf16.msra.mxu0 0
  %118 = vmatprep.subr.bf16.mxu0 0
  %119 = vmatpush1.bf16.msra.mxu0 0
  %120 = vmatprep.subr.bf16.mxu0 0
  %121 = vmatpush1.bf16.msra.mxu0 0
  %122 = vmatprep.subr.bf16.mxu0 0
  %123 = vmatpush1.bf16.msra.mxu0 %v106
  %124 = vmatprep.subr.bf16.mxu0 0
  %125 = vmatpush2.bf16.msra.mxu0 0
  %126 = vmatprep.subr.bf16.mxu0 0
  %127 = vmatpush2.bf16.msra.mxu0 0
  %128 = vmatprep.subr.bf16.mxu0 0
  %129 = vmatpush2.bf16.msra.mxu0 0
  %130 = vmatprep.subr.bf16.mxu0 0
  %131 = vmatpush2.bf16.msra.mxu0 0
  %132 = vmatprep.subr.bf16.mxu0 0
  %133 = vmatpush2.bf16.msra.mxu0 0
  %134 = vmatprep.subr.bf16.mxu0 0
  %135 = vmatpush2.bf16.msra.mxu0 0
  %136 = vmatprep.subr.bf16.mxu0 0
  %137 = vmatpush2.bf16.msra.mxu0 0
  %138 = vmatprep.subr.bf16.mxu0 0
  %139 = vmatpush2.bf16.msra.mxu0 0
  %140 = vmatprep.mubr.bf16.mxu0 0
  %141 = vmatmul.mubr.bf16.gmra.mxu0 %v49
  %v142 = vpop.f32.mrf.mxu0
  %v143 = vadd.f32 %v100, %v142
  %v144 = vpop.f32.mrf.mxu0
  %v145 = vpop.f32.mrf.mxu0
  %v146 = vadd.f32 %v100, %v145
  %v147 = vpop.f32.mrf.mxu0
  %148 = vdwg.mxu0
  %149 = vst.msk [vmem:[%s6] sm:$0xff] %vm92, %v143
  %150 = vst.msk [vmem:[%s6 + $0x8] sm:$0xff] %vm92, %v146
  // Predicated region
  $region22: #{_lambda_.10} parent=0 // pred_check
    _
  $region23: #{_lambda_.10} parent=0 // pred_check_branch
    %152 = sbr.rel (0) target = $region25
  $region24: #{_lambda_.10} parent=0 // pred_region
    _
  $region25: #{_lambda_.10} parent=0 // pred_fallthru
    _
  // Predicated region
  $region26: #{_lambda_.10} parent=0 // pred_check
    _
  $region27: #{_lambda_.10} parent=0 // pred_check_branch
    %154 = sbr.rel (0) target = $region29
  $region28: #{_lambda_.10} parent=0 // pred_region
    _
  $region29: #{_lambda_.10} parent=0 // pred_fallthru
    _
  // Predicated region
  $region30: #{_lambda_.10} parent=0 // pred_check
    _
  $region31: #{_lambda_.10} parent=0 // pred_check_branch
    %156 = sbr.rel (0) target = $region33
  $region32: #{_lambda_.10} parent=0 // pred_region
    _
  $region33: #{_lambda_.10} parent=0 // pred_fallthru
    _
  // Predicated region
  $region34: #{_lambda_.10} parent=0 // pred_check
    _
  $region35: #{_lambda_.10} parent=0 // pred_check_branch
    %158 = sbr.rel (0) target = $region37
  $region36: #{_lambda_.10} parent=0 // pred_region
    _
  $region37: #{_lambda_.10} parent=0 // pred_fallthru
    _

// kernel: _lambda_.8
$region0: #{_lambda_.8}
  #allocation0 [shape = 'u32[]', space=smem, size = 0x4, offset = 0x4, fixed_abs, tag = 'smem constant byte address 0x4 - core index']
  #allocation1 [shape = 'u32[144,128]{1,0:T(1,128)}', space=vmem, size = 0x12000, scoped, tag = 'internal scratch']
  %s0 = inlined_call_operand.vmem [shape: bf16[24,16], index: 0, kind: input, shape index: {}]
  %s1 = inlined_call_operand.vmem [shape: bf16[5,16,16], index: 1, kind: input, shape index: {}]
  %s2 = inlined_call_operand.vmem [shape: f32[1,16], index: 2, kind: input, shape index: {}]
  %s3 = inlined_call_operand.vmem [shape: bf16[16,16], index: 3, kind: output, shape index: {}]
  %s4 = sld [smem:[#allocation0]]
  $region22: #{_lambda_.8} parent=0
    _
  %s6 = ssub.s32 1, %s4
  %s7 = scalar_select 0, %s6, %s4
  // Predicated region
  $region2: #{_lambda_.8} parent=0 // pred_check
    _
  $region3: #{_lambda_.8} parent=0 // pred_check_branch
    %9 = sbr.rel (0) target = $region5
  $region4: #{_lambda_.8} parent=0 // pred_region
    _
  $region5: #{_lambda_.8} parent=0 // pred_fallthru
    _
  // Predicated region
  $region6: #{_lambda_.8} parent=0 // pred_check
    _
  $region7: #{_lambda_.8} parent=0 // pred_check_branch
    %11 = sbr.rel (0) target = $region9
  $region8: #{_lambda_.8} parent=0 // pred_region
    _
  $region9: #{_lambda_.8} parent=0 // pred_fallthru
    _
  // Predicated region
  $region10: #{_lambda_.8} parent=0 // pred_check
    _
  $region11: #{_lambda_.8} parent=0 // pred_check_branch
    %13 = sbr.rel (0) target = $region13
  $region12: #{_lambda_.8} parent=0 // pred_region
    _
  $region13: #{_lambda_.8} parent=0 // pred_fallthru
    _
  %v15 = vld [vmem:[%s0] sm:$0xf]
  %v16 = vld [vmem:[%s0 + $0x4] sm:$0xf]
  %v17 = vld [vmem:[%s1] sm:$0xf]
  %v18 = vld [vmem:[%s1 + $0x4] sm:$0xf]
  %v19 = vld [vmem:[%s0] sm:$0xe]
  %v20 = vld [vmem:[%s0 + $0x8] sm:$0x1]
  %s21 = scalar_lea.vmem %s1, 8
  %v22 = vld [vmem:[%s21] sm:$0xf]
  %v23 = vld [vmem:[%s21 + $0x4] sm:$0xf]
  %v27 = vunpack.c.l.b16 %v19
  %v28 = vunpack.c.l.b16 %v16
  %v29 = vunpack.c.l.b16 %v20
  %v30 = vpack.c.b16 %v28, %v27
  %v31 = vpack.c.b16 %v29, %v29
  %vm32 = vcmask 1046528
  %v33 = vrot.slane %v30, 1
  %v34 = vrot.slane %v31, 1
  %v35 = vsel %vm32, %v33, %v34
  %v38 = vunpack.c.l.b16 %v22
  %v39 = vunpack.c.l.b16 %v23
  %v40 = vpack.c.b16 %v39, %v38
  %vm42 = vcmask 130048
  %v44 = vsel %vm42, %v35, 0
  %46 = vmatprep.subr.bf16.mxu0 0
  %47 = vmatpush1.bf16.msra.mxu0 0
  %48 = vmatprep.subr.bf16.mxu0 0
  %49 = vmatpush1.bf16.msra.mxu0 0
  %50 = vmatprep.subr.bf16.mxu0 0
  %51 = vmatpush1.bf16.msra.mxu0 0
  %52 = vmatprep.subr.bf16.mxu0 0
  %53 = vmatpush1.bf16.msra.mxu0 0
  %54 = vmatprep.subr.bf16.mxu0 0
  %55 = vmatpush1.bf16.msra.mxu0 0
  %56 = vmatprep.subr.bf16.mxu0 0
  %57 = vmatpush1.bf16.msra.mxu0 0
  %58 = vmatprep.subr.bf16.mxu0 0
  %59 = vmatpush1.bf16.msra.mxu0 0
  %60 = vmatprep.subr.bf16.mxu0 0
  %61 = vmatpush1.bf16.msra.mxu0 %v40
  %62 = vmatprep.subr.bf16.mxu0 0
  %63 = vmatpush2.bf16.msra.mxu0 0
  %64 = vmatprep.subr.bf16.mxu0 0
  %65 = vmatpush2.bf16.msra.mxu0 0
  %66 = vmatprep.subr.bf16.mxu0 0
  %67 = vmatpush2.bf16.msra.mxu0 0
  %68 = vmatprep.subr.bf16.mxu0 0
  %69 = vmatpush2.bf16.msra.mxu0 0
  %70 = vmatprep.subr.bf16.mxu0 0
  %71 = vmatpush2.bf16.msra.mxu0 0
  %72 = vmatprep.subr.bf16.mxu0 0
  %73 = vmatpush2.bf16.msra.mxu0 0
  %74 = vmatprep.subr.bf16.mxu0 0
  %75 = vmatpush2.bf16.msra.mxu0 0
  %76 = vmatprep.subr.bf16.mxu0 0
  %77 = vmatpush2.bf16.msra.mxu0 0
  %78 = vmatprep.mubr.bf16.mxu0 0
  %79 = vmatmul.mubr.bf16.gmra.mxu0 %v44
  %v80 = vpop.f32.mrf.mxu0
  %v81 = vadd.f32 0.0, %v80
  %v82 = vpop.f32.mrf.mxu0
  %v83 = vpop.f32.mrf.mxu0
  %v84 = vadd.f32 0.0, %v83
  %v85 = vpop.f32.mrf.mxu0
  %86 = vdwg.mxu0
  %v88 = vunpack.c.l.b16 %v15
  %v89 = vpack.c.b16 %v28, %v88
  %v92 = vunpack.c.l.b16 %v17
  %v93 = vunpack.c.l.b16 %v18
  %v94 = vpack.c.b16 %v93, %v92
  %v97 = vsel %vm42, %v89, 0
  %99 = vmatprep.subr.bf16.mxu0 0
  %100 = vmatpush1.bf16.msra.mxu0 0
  %101 = vmatprep.subr.bf16.mxu0 0
  %102 = vmatpush1.bf16.msra.mxu0 0
  %103 = vmatprep.subr.bf16.mxu0 0
  %104 = vmatpush1.bf16.msra.mxu0 0
  %105 = vmatprep.subr.bf16.mxu0 0
  %106 = vmatpush1.bf16.msra.mxu0 0
  %107 = vmatprep.subr.bf16.mxu0 0
  %108 = vmatpush1.bf16.msra.mxu0 0
  %109 = vmatprep.subr.bf16.mxu0 0
  %110 = vmatpush1.bf16.msra.mxu0 0
  %111 = vmatprep.subr.bf16.mxu0 0
  %112 = vmatpush1.bf16.msra.mxu0 0
  %113 = vmatprep.subr.bf16.mxu0 0
  %114 = vmatpush1.bf16.msra.mxu0 %v94
  %115 = vmatprep.subr.bf16.mxu0 0
  %116 = vmatpush2.bf16.msra.mxu0 0
  %117 = vmatprep.subr.bf16.mxu0 0
  %118 = vmatpush2.bf16.msra.mxu0 0
  %119 = vmatprep.subr.bf16.mxu0 0
  %120 = vmatpush2.bf16.msra.mxu0 0
  %121 = vmatprep.subr.bf16.mxu0 0
  %122 = vmatpush2.bf16.msra.mxu0 0
  %123 = vmatprep.subr.bf16.mxu0 0
  %124 = vmatpush2.bf16.msra.mxu0 0
  %125 = vmatprep.subr.bf16.mxu0 0
  %126 = vmatpush2.bf16.msra.mxu0 0
  %127 = vmatprep.subr.bf16.mxu0 0
  %128 = vmatpush2.bf16.msra.mxu0 0
  %129 = vmatprep.subr.bf16.mxu0 0
  %130 = vmatpush2.bf16.msra.mxu0 0
  %131 = vmatprep.mubr.bf16.mxu0 0
  %132 = vmatmul.mubr.bf16.gmra.mxu0 %v97
  %v133 = vpop.f32.mrf.mxu0
  %v134 = vadd.f32 %v81, %v133
  %v135 = vpop.f32.mrf.mxu0
  %v136 = vpop.f32.mrf.mxu0
  %v137 = vadd.f32 %v84, %v136
  %v138 = vpop.f32.mrf.mxu0
  %139 = vdwg.mxu0
  %v140 = vld [vmem:[%s0] sm:$0xc]
  %v141 = vld [vmem:[%s0 + $0x8] sm:$0x3]
  %s142 = scalar_lea.vmem %s1, 16
  %v143 = vld [vmem:[%s142] sm:$0xf]
  %v144 = vld [vmem:[%s142 + $0x4] sm:$0xf]
  %v147 = vunpack.c.l.b16 %v140
  %v148 = vunpack.c.l.b16 %v141
  %v149 = vpack.c.b16 %v28, %v147
  %v150 = vpack.c.b16 %v148, %v148
  %vm151 = vcmask 1045504
  %v152 = vrot.slane %v149, 2
  %v153 = vrot.slane %v150, 2
  %v154 = vsel %vm151, %v152, %v153
  %v157 = vunpack.c.l.b16 %v143
  %v158 = vunpack.c.l.b16 %v144
  %v159 = vpack.c.b16 %v158, %v157
  %v162 = vsel %vm42, %v154, 0
  %164 = vmatprep.subr.bf16.mxu0 0
  %165 = vmatpush1.bf16.msra.mxu0 0
  %166 = vmatprep.subr.bf16.mxu0 0
  %167 = vmatpush1.bf16.msra.mxu0 0
  %168 = vmatprep.subr.bf16.mxu0 0
  %169 = vmatpush1.bf16.msra.mxu0 0
  %170 = vmatprep.subr.bf16.mxu0 0
  %171 = vmatpush1.bf16.msra.mxu0 0
  %172 = vmatprep.subr.bf16.mxu0 0
  %173 = vmatpush1.bf16.msra.mxu0 0
  %174 = vmatprep.subr.bf16.mxu0 0
  %175 = vmatpush1.bf16.msra.mxu0 0
  %176 = vmatprep.subr.bf16.mxu0 0
  %177 = vmatpush1.bf16.msra.mxu0 0
  %178 = vmatprep.subr.bf16.mxu0 0
  %179 = vmatpush1.bf16.msra.mxu0 %v159
  %180 = vmatprep.subr.bf16.mxu0 0
  %181 = vmatpush2.bf16.msra.mxu0 0
  %182 = vmatprep.subr.bf16.mxu0 0
  %183 = vmatpush2.bf16.msra.mxu0 0
  %184 = vmatprep.subr.bf16.mxu0 0
  %185 = vmatpush2.bf16.msra.mxu0 0
  %186 = vmatprep.subr.bf16.mxu0 0
  %187 = vmatpush2.bf16.msra.mxu0 0
  %188 = vmatprep.subr.bf16.mxu0 0
  %189 = vmatpush2.bf16.msra.mxu0 0
  %190 = vmatprep.subr.bf16.mxu0 0
  %191 = vmatpush2.bf16.msra.mxu0 0
  %192 = vmatprep.subr.bf16.mxu0 0
  %193 = vmatpush2.bf16.msra.mxu0 0
  %194 = vmatprep.subr.bf16.mxu0 0
  %195 = vmatpush2.bf16.msra.mxu0 0
  %196 = vmatprep.mubr.bf16.mxu0 0
  %197 = vmatmul.mubr.bf16.gmra.mxu0 %v162
  %v198 = vpop.f32.mrf.mxu0
  %v199 = vadd.f32 0.0, %v198
  %v200 = vpop.f32.mrf.mxu0
  %v201 = vpop.f32.mrf.mxu0
  %v202 = vadd.f32 0.0, %v201
  %v203 = vpop.f32.mrf.mxu0
  %204 = vdwg.mxu0
  %v205 = vadd.f32 %v134, %v199
  %v206 = vadd.f32 %v137, %v202
  %v207 = vld [vmem:[%s0] sm:$0x8]
  %v208 = vld [vmem:[%s0 + $0x8] sm:$0x7]
  %s209 = scalar_lea.vmem %s1, 24
  %v210 = vld [vmem:[%s209] sm:$0xf]
  %v211 = vld [vmem:[%s209 + $0x4] sm:$0xf]
  %v214 = vunpack.c.l.b16 %v207
  %v215 = vunpack.c.l.b16 %v208
  %v216 = vpack.c.b16 %v28, %v214
  %v217 = vpack.c.b16 %v215, %v215
  %vm218 = vcmask 1044480
  %v219 = vrot.slane %v216, 3
  %v220 = vrot.slane %v217, 3
  %v221 = vsel %vm218, %v219, %v220
  %v224 = vunpack.c.l.b16 %v210
  %v225 = vunpack.c.l.b16 %v211
  %v226 = vpack.c.b16 %v225, %v224
  %v229 = vsel %vm42, %v221, 0
  %231 = vmatprep.subr.bf16.mxu0 0
  %232 = vmatpush1.bf16.msra.mxu0 0
  %233 = vmatprep.subr.bf16.mxu0 0
  %234 = vmatpush1.bf16.msra.mxu0 0
  %235 = vmatprep.subr.bf16.mxu0 0
  %236 = vmatpush1.bf16.msra.mxu0 0
  %237 = vmatprep.subr.bf16.mxu0 0
  %238 = vmatpush1.bf16.msra.mxu0 0
  %239 = vmatprep.subr.bf16.mxu0 0
  %240 = vmatpush1.bf16.msra.mxu0 0
  %241 = vmatprep.subr.bf16.mxu0 0
  %242 = vmatpush1.bf16.msra.mxu0 0
  %243 = vmatprep.subr.bf16.mxu0 0
  %244 = vmatpush1.bf16.msra.mxu0 0
  %245 = vmatprep.subr.bf16.mxu0 0
  %246 = vmatpush1.bf16.msra.mxu0 %v226
  %247 = vmatprep.subr.bf16.mxu0 0
  %248 = vmatpush2.bf16.msra.mxu0 0
  %249 = vmatprep.subr.bf16.mxu0 0
  %250 = vmatpush2.bf16.msra.mxu0 0
  %251 = vmatprep.subr.bf16.mxu0 0
  %252 = vmatpush2.bf16.msra.mxu0 0
  %253 = vmatprep.subr.bf16.mxu0 0
  %254 = vmatpush2.bf16.msra.mxu0 0
  %255 = vmatprep.subr.bf16.mxu0 0
  %256 = vmatpush2.bf16.msra.mxu0 0
  %257 = vmatprep.subr.bf16.mxu0 0
  %258 = vmatpush2.bf16.msra.mxu0 0
  %259 = vmatprep.subr.bf16.mxu0 0
  %260 = vmatpush2.bf16.msra.mxu0 0
  %261 = vmatprep.subr.bf16.mxu0 0
  %262 = vmatpush2.bf16.msra.mxu0 0
  %263 = vmatprep.mubr.bf16.mxu0 0
  %264 = vmatmul.mubr.bf16.gmra.mxu0 %v229
  %v265 = vpop.f32.mrf.mxu0
  %v266 = vadd.f32 0.0, %v265
  %v267 = vpop.f32.mrf.mxu0
  %v268 = vpop.f32.mrf.mxu0
  %v269 = vadd.f32 0.0, %v268
  %v270 = vpop.f32.mrf.mxu0
  %271 = vdwg.mxu0
  %v272 = vadd.f32 %v205, %v266
  %v273 = vadd.f32 %v206, %v269
  %v274 = vld [vmem:[%s0 + $0x8] sm:$0xf]
  %s275 = scalar_lea.vmem %s1, 32
  %v276 = vld [vmem:[%s275] sm:$0xf]
  %v277 = vld [vmem:[%s275 + $0x4] sm:$0xf]
  %v279 = vunpack.c.l.b16 %v274
  %v280 = vpack.c.b16 %v279, %v28
  %v283 = vunpack.c.l.b16 %v276
  %v284 = vunpack.c.l.b16 %v277
  %v285 = vpack.c.b16 %v284, %v283
  %v288 = vsel %vm42, %v280, 0
  %290 = vmatprep.subr.bf16.mxu0 0
  %291 = vmatpush1.bf16.msra.mxu0 0
  %292 = vmatprep.subr.bf16.mxu0 0
  %293 = vmatpush1.bf16.msra.mxu0 0
  %294 = vmatprep.subr.bf16.mxu0 0
  %295 = vmatpush1.bf16.msra.mxu0 0
  %296 = vmatprep.subr.bf16.mxu0 0
  %297 = vmatpush1.bf16.msra.mxu0 0
  %298 = vmatprep.subr.bf16.mxu0 0
  %299 = vmatpush1.bf16.msra.mxu0 0
  %300 = vmatprep.subr.bf16.mxu0 0
  %301 = vmatpush1.bf16.msra.mxu0 0
  %302 = vmatprep.subr.bf16.mxu0 0
  %303 = vmatpush1.bf16.msra.mxu0 0
  %304 = vmatprep.subr.bf16.mxu0 0
  %305 = vmatpush1.bf16.msra.mxu0 %v285
  %306 = vmatprep.subr.bf16.mxu0 0
  %307 = vmatpush2.bf16.msra.mxu0 0
  %308 = vmatprep.subr.bf16.mxu0 0
  %309 = vmatpush2.bf16.msra.mxu0 0
  %310 = vmatprep.subr.bf16.mxu0 0
  %311 = vmatpush2.bf16.msra.mxu0 0
  %312 = vmatprep.subr.bf16.mxu0 0
  %313 = vmatpush2.bf16.msra.mxu0 0
  %314 = vmatprep.subr.bf16.mxu0 0
  %315 = vmatpush2.bf16.msra.mxu0 0
  %316 = vmatprep.subr.bf16.mxu0 0
  %317 = vmatpush2.bf16.msra.mxu0 0
  %318 = vmatprep.subr.bf16.mxu0 0
  %319 = vmatpush2.bf16.msra.mxu0 0
  %320 = vmatprep.subr.bf16.mxu0 0
  %321 = vmatpush2.bf16.msra.mxu0 0
  %322 = vmatprep.mubr.bf16.mxu0 0
  %323 = vmatmul.mubr.bf16.gmra.mxu0 %v288
  %v324 = vpop.f32.mrf.mxu0
  %v325 = vadd.f32 0.0, %v324
  %v326 = vpop.f32.mrf.mxu0
  %v327 = vpop.f32.mrf.mxu0
  %v328 = vadd.f32 0.0, %v327
  %v329 = vpop.f32.mrf.mxu0
  %330 = vdwg.mxu0
  %v331 = vadd.f32 %v272, %v325
  %v332 = vadd.f32 %v273, %v328
  %v333 = vld [vmem:[%s2] sm:$0x1]
  %v335 = vlaneseq
  %v336 = vshrl.u32 %v335, 7
  %v337 = vsub.s32 0, %v336
  %v338 = vrot.slane %v333, %v337
  %v340 = vadd.f32 %v331, %v338
  %v341 = vadd.f32 %v332, %v338
  %v342 = vmax.f32 %v340, 0.0
  %v343 = vmax.f32 %v341, 0.0
  %v344 = vpack.c.bf16 %v343, %v342
  %v346 = vunpack.c.l.b16 %v344
  %v347 = vunpack.c.h.b16 %v344
  %v348 = vpack.c.b16 %v346, %v346
  %v349 = vpack.c.b16 %v347, %v347
  %vm352 = vcmask 125952
  %353 = vst.msk [vmem:[%s3] sm:$0xf] %vm352, %v348
  %354 = vst.msk [vmem:[%s3 + $0x4] sm:$0xf] %vm352, %v349
  // Predicated region
  $region14: #{_lambda_.8} parent=0 // pred_check
    _
  $region15: #{_lambda_.8} parent=0 // pred_check_branch
    %356 = sbr.rel (0) target = $region17
  $region16: #{_lambda_.8} parent=0 // pred_region
    _
  $region17: #{_lambda_.8} parent=0 // pred_fallthru
    _
  // Predicated region
  $region18: #{_lambda_.8} parent=0 // pred_check
    _
  $region19: #{_lambda_.8} parent=0 // pred_check_branch
    %358 = sbr.rel (0) target = $region21
  $region20: #{_lambda_.8} parent=0 // pred_region
    _
  $region21: #{_lambda_.8} parent=0 // pred_fallthru
    _

// kernel: _lambda_.12
$region0: #{_lambda_.12}
  #allocation0 [shape = 'u32[]', space=smem, size = 0x4, offset = 0x4, fixed_abs, tag = 'smem constant byte address 0x4 - core index']
  #allocation1 [shape = 'u32[144,128]{1,0:T(1,128)}', space=vmem, size = 0x12000, scoped, tag = 'internal scratch']
  %s0 = inlined_call_operand.vmem [shape: bf16[16,16], index: 0, kind: input, shape index: {}]
  %s1 = inlined_call_operand.vmem [shape: bf16[16,16], index: 1, kind: input, shape index: {}]
  %s2 = inlined_call_operand.vmem [shape: bf16[16,64], index: 2, kind: input, shape index: {}]
  %s3 = inlined_call_operand.vmem [shape: bf16[16,64], index: 3, kind: input, shape index: {}]
  %s4 = inlined_call_operand.vmem [shape: bf16[16,64], index: 4, kind: input, shape index: {}]
  %s5 = inlined_call_operand.vmem [shape: bf16[16,64], index: 5, kind: input, shape index: {}]
  %s6 = inlined_call_operand.vmem [shape: f32[1,64], index: 6, kind: input, shape index: {}]
  %s7 = inlined_call_operand.vmem [shape: f32[1,64], index: 7, kind: input, shape index: {}]
  %s8 = inlined_call_operand.vmem [shape: f32[16,64], index: 8, kind: output, shape index: {0}]
  %s9 = inlined_call_operand.vmem [shape: f32[16,64], index: 9, kind: output, shape index: {1}]
  %10 = xla_tuple %s8, %s9
  %s11 = sld [smem:[#allocation0]]
  $region50: #{_lambda_.12} parent=0
    _
  %s13 = ssub.s32 1, %s11
  %s14 = scalar_select 0, %s13, %s11
  // Predicated region
  $region2: #{_lambda_.12} parent=0 // pred_check
    _
  $region3: #{_lambda_.12} parent=0 // pred_check_branch
    %16 = sbr.rel (0) target = $region5
  $region4: #{_lambda_.12} parent=0 // pred_region
    _
  $region5: #{_lambda_.12} parent=0 // pred_fallthru
    _
  // Predicated region
  $region6: #{_lambda_.12} parent=0 // pred_check
    _
  $region7: #{_lambda_.12} parent=0 // pred_check_branch
    %18 = sbr.rel (0) target = $region9
  $region8: #{_lambda_.12} parent=0 // pred_region
    _
  $region9: #{_lambda_.12} parent=0 // pred_fallthru
    _
  // Predicated region
  $region10: #{_lambda_.12} parent=0 // pred_check
    _
  $region11: #{_lambda_.12} parent=0 // pred_check_branch
    %20 = sbr.rel (0) target = $region13
  $region12: #{_lambda_.12} parent=0 // pred_region
    _
  $region13: #{_lambda_.12} parent=0 // pred_fallthru
    _
  // Predicated region
  $region14: #{_lambda_.12} parent=0 // pred_check
    _
  $region15: #{_lambda_.12} parent=0 // pred_check_branch
    %22 = sbr.rel (0) target = $region17
  $region16: #{_lambda_.12} parent=0 // pred_region
    _
  $region17: #{_lambda_.12} parent=0 // pred_fallthru
    _
  // Predicated region
  $region18: #{_lambda_.12} parent=0 // pred_check
    _
  $region19: #{_lambda_.12} parent=0 // pred_check_branch
    %24 = sbr.rel (0) target = $region21
  $region20: #{_lambda_.12} parent=0 // pred_region
    _
  $region21: #{_lambda_.12} parent=0 // pred_fallthru
    _
  // Predicated region
  $region22: #{_lambda_.12} parent=0 // pred_check
    _
  $region23: #{_lambda_.12} parent=0 // pred_check_branch
    %26 = sbr.rel (0) target = $region25
  $region24: #{_lambda_.12} parent=0 // pred_region
    _
  $region25: #{_lambda_.12} parent=0 // pred_fallthru
    _
  // Predicated region
  $region26: #{_lambda_.12} parent=0 // pred_check
    _
  $region27: #{_lambda_.12} parent=0 // pred_check_branch
    %28 = sbr.rel (0) target = $region29
  $region28: #{_lambda_.12} parent=0 // pred_region
    _
  $region29: #{_lambda_.12} parent=0 // pred_fallthru
    _
  // Predicated region
  $region30: #{_lambda_.12} parent=0 // pred_check
    _
  $region31: #{_lambda_.12} parent=0 // pred_check_branch
    %30 = sbr.rel (0) target = $region33
  $region32: #{_lambda_.12} parent=0 // pred_region
    _
  $region33: #{_lambda_.12} parent=0 // pred_fallthru
    _
  %v32 = vld [vmem:[%s0] sm:$0xf]
  %v33 = vld [vmem:[%s0 + $0x4] sm:$0xf]
  %v34 = vld [vmem:[%s1] sm:$0xf]
  %v35 = vld [vmem:[%s1 + $0x4] sm:$0xf]
  %v36 = vld [vmem:[%s2] sm:$0xf]
  %v37 = vld [vmem:[%s2 + $0x4] sm:$0xf]
  %v38 = vld [vmem:[%s4] sm:$0xf]
  %v39 = vld [vmem:[%s4 + $0x4] sm:$0xf]
  %v40 = vld [vmem:[%s3] sm:$0xf]
  %v41 = vld [vmem:[%s3 + $0x4] sm:$0xf]
  %v44 = vunpack.c.l.b16 %v34
  %v45 = vunpack.c.l.b16 %v35
  %v46 = vpack.c.b16 %v45, %v44
  %v49 = vunpack.c.l.b16 %v40
  %v50 = vunpack.c.l.b16 %v41
  %v51 = vpack.c.b16 %v50, %v49
  %vm53 = vcmask 130048
  %v55 = vsel %vm53, %v46, 0
  %57 = vmatprep.subr.bf16.mxu0 0
  %58 = vmatpush1.bf16.msra.mxu0 0
  %59 = vmatprep.subr.bf16.mxu0 0
  %60 = vmatpush1.bf16.msra.mxu0 0
  %61 = vmatprep.subr.bf16.mxu0 0
  %62 = vmatpush1.bf16.msra.mxu0 0
  %63 = vmatprep.subr.bf16.mxu0 0
  %64 = vmatpush1.bf16.msra.mxu0 0
  %65 = vmatprep.subr.bf16.mxu0 0
  %66 = vmatpush1.bf16.msra.mxu0 0
  %67 = vmatprep.subr.bf16.mxu0 0
  %68 = vmatpush1.bf16.msra.mxu0 0
  %69 = vmatprep.subr.bf16.mxu0 0
  %70 = vmatpush1.bf16.msra.mxu0 0
  %71 = vmatprep.subr.bf16.mxu0 0
  %72 = vmatpush1.bf16.msra.mxu0 %v51
  %73 = vmatprep.subr.bf16.mxu0 0
  %74 = vmatpush2.bf16.msra.mxu0 0
  %75 = vmatprep.subr.bf16.mxu0 0
  %76 = vmatpush2.bf16.msra.mxu0 0
  %77 = vmatprep.subr.bf16.mxu0 0
  %78 = vmatpush2.bf16.msra.mxu0 0
  %79 = vmatprep.subr.bf16.mxu0 0
  %80 = vmatpush2.bf16.msra.mxu0 0
  %81 = vmatprep.subr.bf16.mxu0 0
  %82 = vmatpush2.bf16.msra.mxu0 0
  %83 = vmatprep.subr.bf16.mxu0 0
  %84 = vmatpush2.bf16.msra.mxu0 0
  %85 = vmatprep.subr.bf16.mxu0 0
  %86 = vmatpush2.bf16.msra.mxu0 0
  %87 = vmatprep.subr.bf16.mxu0 0
  %88 = vmatpush2.bf16.msra.mxu0 0
  %89 = vmatprep.mubr.bf16.mxu0 0
  %90 = vmatmul.mubr.bf16.gmra.mxu0 %v55
  %v91 = vpop.f32.mrf.mxu0
  %v92 = vadd.f32 0.0, %v91
  %v93 = vpop.f32.mrf.mxu0
  %v94 = vpop.f32.mrf.mxu0
  %v95 = vadd.f32 0.0, %v94
  %v96 = vpop.f32.mrf.mxu0
  %97 = vdwg.mxu0
  %v100 = vunpack.c.l.b16 %v32
  %v101 = vunpack.c.l.b16 %v33
  %v102 = vpack.c.b16 %v101, %v100
  %v105 = vunpack.c.l.b16 %v36
  %v106 = vunpack.c.l.b16 %v37
  %v107 = vpack.c.b16 %v106, %v105
  %v110 = vsel %vm53, %v102, 0
  %112 = vmatprep.subr.bf16.mxu0 0
  %113 = vmatpush1.bf16.msra.mxu0 0
  %114 = vmatprep.subr.bf16.mxu0 0
  %115 = vmatpush1.bf16.msra.mxu0 0
  %116 = vmatprep.subr.bf16.mxu0 0
  %117 = vmatpush1.bf16.msra.mxu0 0
  %118 = vmatprep.subr.bf16.mxu0 0
  %119 = vmatpush1.bf16.msra.mxu0 0
  %120 = vmatprep.subr.bf16.mxu0 0
  %121 = vmatpush1.bf16.msra.mxu0 0
  %122 = vmatprep.subr.bf16.mxu0 0
  %123 = vmatpush1.bf16.msra.mxu0 0
  %124 = vmatprep.subr.bf16.mxu0 0
  %125 = vmatpush1.bf16.msra.mxu0 0
  %126 = vmatprep.subr.bf16.mxu0 0
  %127 = vmatpush1.bf16.msra.mxu0 %v107
  %128 = vmatprep.subr.bf16.mxu0 0
  %129 = vmatpush2.bf16.msra.mxu0 0
  %130 = vmatprep.subr.bf16.mxu0 0
  %131 = vmatpush2.bf16.msra.mxu0 0
  %132 = vmatprep.subr.bf16.mxu0 0
  %133 = vmatpush2.bf16.msra.mxu0 0
  %134 = vmatprep.subr.bf16.mxu0 0
  %135 = vmatpush2.bf16.msra.mxu0 0
  %136 = vmatprep.subr.bf16.mxu0 0
  %137 = vmatpush2.bf16.msra.mxu0 0
  %138 = vmatprep.subr.bf16.mxu0 0
  %139 = vmatpush2.bf16.msra.mxu0 0
  %140 = vmatprep.subr.bf16.mxu0 0
  %141 = vmatpush2.bf16.msra.mxu0 0
  %142 = vmatprep.subr.bf16.mxu0 0
  %143 = vmatpush2.bf16.msra.mxu0 0
  %144 = vmatprep.mubr.bf16.mxu0 0
  %145 = vmatmul.mubr.bf16.gmra.mxu0 %v110
  %v146 = vpop.f32.mrf.mxu0
  %v147 = vadd.f32 %v92, %v146
  %v148 = vpop.f32.mrf.mxu0
  %v149 = vpop.f32.mrf.mxu0
  %v150 = vadd.f32 %v95, %v149
  %v151 = vpop.f32.mrf.mxu0
  %152 = vdwg.mxu0
  %v153 = vld [vmem:[%s5] sm:$0xf]
  %v154 = vld [vmem:[%s5 + $0x4] sm:$0xf]
  %v157 = vunpack.c.l.b16 %v153
  %v158 = vunpack.c.l.b16 %v154
  %v159 = vpack.c.b16 %v158, %v157
  %161 = vmatprep.subr.bf16.mxu0 0
  %162 = vmatpush1.bf16.msra.mxu0 0
  %163 = vmatprep.subr.bf16.mxu0 0
  %164 = vmatpush1.bf16.msra.mxu0 0
  %165 = vmatprep.subr.bf16.mxu0 0
  %166 = vmatpush1.bf16.msra.mxu0 0
  %167 = vmatprep.subr.bf16.mxu0 0
  %168 = vmatpush1.bf16.msra.mxu0 0
  %169 = vmatprep.subr.bf16.mxu0 0
  %170 = vmatpush1.bf16.msra.mxu0 0
  %171 = vmatprep.subr.bf16.mxu0 0
  %172 = vmatpush1.bf16.msra.mxu0 0
  %173 = vmatprep.subr.bf16.mxu0 0
  %174 = vmatpush1.bf16.msra.mxu0 0
  %175 = vmatprep.subr.bf16.mxu0 0
  %176 = vmatpush1.bf16.msra.mxu0 %v159
  %177 = vmatprep.subr.bf16.mxu0 0
  %178 = vmatpush2.bf16.msra.mxu0 0
  %179 = vmatprep.subr.bf16.mxu0 0
  %180 = vmatpush2.bf16.msra.mxu0 0
  %181 = vmatprep.subr.bf16.mxu0 0
  %182 = vmatpush2.bf16.msra.mxu0 0
  %183 = vmatprep.subr.bf16.mxu0 0
  %184 = vmatpush2.bf16.msra.mxu0 0
  %185 = vmatprep.subr.bf16.mxu0 0
  %186 = vmatpush2.bf16.msra.mxu0 0
  %187 = vmatprep.subr.bf16.mxu0 0
  %188 = vmatpush2.bf16.msra.mxu0 0
  %189 = vmatprep.subr.bf16.mxu0 0
  %190 = vmatpush2.bf16.msra.mxu0 0
  %191 = vmatprep.subr.bf16.mxu0 0
  %192 = vmatpush2.bf16.msra.mxu0 0
  %193 = vmatprep.mubr.bf16.mxu0 0
  %194 = vmatmul.mubr.bf16.gmra.mxu0 %v55
  %v195 = vpop.f32.mrf.mxu0
  %v196 = vadd.f32 0.0, %v195
  %v197 = vpop.f32.mrf.mxu0
  %v198 = vpop.f32.mrf.mxu0
  %v199 = vadd.f32 0.0, %v198
  %v200 = vpop.f32.mrf.mxu0
  %201 = vdwg.mxu0
  %v204 = vunpack.c.l.b16 %v38
  %v205 = vunpack.c.l.b16 %v39
  %v206 = vpack.c.b16 %v205, %v204
  %208 = vmatprep.subr.bf16.mxu0 0
  %209 = vmatpush1.bf16.msra.mxu0 0
  %210 = vmatprep.subr.bf16.mxu0 0
  %211 = vmatpush1.bf16.msra.mxu0 0
  %212 = vmatprep.subr.bf16.mxu0 0
  %213 = vmatpush1.bf16.msra.mxu0 0
  %214 = vmatprep.subr.bf16.mxu0 0
  %215 = vmatpush1.bf16.msra.mxu0 0
  %216 = vmatprep.subr.bf16.mxu0 0
  %217 = vmatpush1.bf16.msra.mxu0 0
  %218 = vmatprep.subr.bf16.mxu0 0
  %219 = vmatpush1.bf16.msra.mxu0 0
  %220 = vmatprep.subr.bf16.mxu0 0
  %221 = vmatpush1.bf16.msra.mxu0 0
  %222 = vmatprep.subr.bf16.mxu0 0
  %223 = vmatpush1.bf16.msra.mxu0 %v206
  %224 = vmatprep.subr.bf16.mxu0 0
  %225 = vmatpush2.bf16.msra.mxu0 0
  %226 = vmatprep.subr.bf16.mxu0 0
  %227 = vmatpush2.bf16.msra.mxu0 0
  %228 = vmatprep.subr.bf16.mxu0 0
  %229 = vmatpush2.bf16.msra.mxu0 0
  %230 = vmatprep.subr.bf16.mxu0 0
  %231 = vmatpush2.bf16.msra.mxu0 0
  %232 = vmatprep.subr.bf16.mxu0 0
  %233 = vmatpush2.bf16.msra.mxu0 0
  %234 = vmatprep.subr.bf16.mxu0 0
  %235 = vmatpush2.bf16.msra.mxu0 0
  %236 = vmatprep.subr.bf16.mxu0 0
  %237 = vmatpush2.bf16.msra.mxu0 0
  %238 = vmatprep.subr.bf16.mxu0 0
  %239 = vmatpush2.bf16.msra.mxu0 0
  %240 = vmatprep.mubr.bf16.mxu0 0
  %241 = vmatmul.mubr.bf16.gmra.mxu0 %v110
  %v242 = vpop.f32.mrf.mxu0
  %v243 = vadd.f32 %v196, %v242
  %v244 = vpop.f32.mrf.mxu0
  %v245 = vpop.f32.mrf.mxu0
  %v246 = vadd.f32 %v199, %v245
  %v247 = vpop.f32.mrf.mxu0
  %248 = vdwg.mxu0
  %v249 = vld [vmem:[%s6] sm:$0x1]
  %v251 = vlaneseq
  %v252 = vshrl.u32 %v251, 7
  %v253 = vsub.s32 0, %v252
  %v254 = vrot.slane %v249, %v253
  %v256 = vadd.f32 %v147, %v254
  %v257 = vadd.f32 %v150, %v254
  %vm258 = vcmask 523264
  %259 = vst.msk [vmem:[%s8] sm:$0xff] %vm258, %v256
  %260 = vst.msk [vmem:[%s8 + $0x8] sm:$0xff] %vm258, %v257
  %v261 = vld [vmem:[%s7] sm:$0x1]
  %v263 = vlaneseq
  %v264 = vshrl.u32 %v263, 7
  %v265 = vsub.s32 0, %v264
  %v266 = vrot.slane %v261, %v265
  %v268 = vadd.f32 %v243, %v266
  %v269 = vadd.f32 %v246, %v266
  %270 = vst.msk [vmem:[%s9] sm:$0xff] %vm258, %v268
  %271 = vst.msk [vmem:[%s9 + $0x8] sm:$0xff] %vm258, %v269
  // Predicated region
  $region34: #{_lambda_.12} parent=0 // pred_check
    _
  $region35: #{_lambda_.12} parent=0 // pred_check_branch
    %273 = sbr.rel (0) target = $region37
  $region36: #{_lambda_.12} parent=0 // pred_region
    _
  $region37: #{_lambda_.12} parent=0 // pred_fallthru
    _
  // Predicated region
  $region38: #{_lambda_.12} parent=0 // pred_check
    _
  $region39: #{_lambda_.12} parent=0 // pred_check_branch
    %275 = sbr.rel (0) target = $region41
  $region40: #{_lambda_.12} parent=0 // pred_region
    _
  $region41: #{_lambda_.12} parent=0 // pred_fallthru
    _
  // Predicated region
  $region42: #{_lambda_.12} parent=0 // pred_check
    _
  $region43: #{_lambda_.12} parent=0 // pred_check_branch
    %277 = sbr.rel (0) target = $region45
  $region44: #{_lambda_.12} parent=0 // pred_region
    _
  $region45: #{_lambda_.12} parent=0 // pred_fallthru
    _
  // Predicated region
  $region46: #{_lambda_.12} parent=0 // pred_check
    _
  $region47: #{_lambda_.12} parent=0 // pred_check_branch
    %279 = sbr.rel (0) target = $region49
  $region48: #{_lambda_.12} parent=0 // pred_region
    _
  $region49: #{_lambda_.12} parent=0 // pred_fallthru
    _

// kernel: _lambda_.11
$region0: #{_lambda_.11}
  #allocation0 [shape = 'u32[]', space=smem, size = 0x4, offset = 0x4, fixed_abs, tag = 'smem constant byte address 0x4 - core index']
  #allocation1 [shape = 'u32[144,128]{1,0:T(1,128)}', space=vmem, size = 0x12000, scoped, tag = 'internal scratch']
  %s0 = inlined_call_operand.vmem [shape: f32[8,2,64], index: 0, kind: input, shape index: {}]
  %s1 = inlined_call_operand.vmem [shape: f32[8,2,64], index: 1, kind: input, shape index: {}]
  %s2 = inlined_call_operand.vmem [shape: bf16[16,64], index: 2, kind: input, shape index: {}]
  %s3 = inlined_call_operand.vmem [shape: bf16[16,64], index: 3, kind: input, shape index: {}]
  %s4 = inlined_call_operand.vmem [shape: f32[8,2,1], index: 4, kind: input, shape index: {}]
  %s5 = inlined_call_operand.vmem [shape: f32[8,2,16], index: 5, kind: output, shape index: {0}]
  %s6 = inlined_call_operand.vmem [shape: f32[8,2,16], index: 6, kind: output, shape index: {1}]
  %7 = xla_tuple %s5, %s6
  %s8 = sld [smem:[#allocation0]]
  $region38: #{_lambda_.11} parent=0
    _
  %s10 = ssub.s32 1, %s8
  %s11 = scalar_select 0, %s10, %s8
  // Predicated region
  $region2: #{_lambda_.11} parent=0 // pred_check
    _
  $region3: #{_lambda_.11} parent=0 // pred_check_branch
    %13 = sbr.rel (0) target = $region5
  $region4: #{_lambda_.11} parent=0 // pred_region
    _
  $region5: #{_lambda_.11} parent=0 // pred_fallthru
    _
  // Predicated region
  $region6: #{_lambda_.11} parent=0 // pred_check
    _
  $region7: #{_lambda_.11} parent=0 // pred_check_branch
    %15 = sbr.rel (0) target = $region9
  $region8: #{_lambda_.11} parent=0 // pred_region
    _
  $region9: #{_lambda_.11} parent=0 // pred_fallthru
    _
  // Predicated region
  $region10: #{_lambda_.11} parent=0 // pred_check
    _
  $region11: #{_lambda_.11} parent=0 // pred_check_branch
    %17 = sbr.rel (0) target = $region13
  $region12: #{_lambda_.11} parent=0 // pred_region
    _
  $region13: #{_lambda_.11} parent=0 // pred_fallthru
    _
  // Predicated region
  $region14: #{_lambda_.11} parent=0 // pred_check
    _
  $region15: #{_lambda_.11} parent=0 // pred_check_branch
    %19 = sbr.rel (0) target = $region17
  $region16: #{_lambda_.11} parent=0 // pred_region
    _
  $region17: #{_lambda_.11} parent=0 // pred_fallthru
    _
  // Predicated region
  $region18: #{_lambda_.11} parent=0 // pred_check
    _
  $region19: #{_lambda_.11} parent=0 // pred_check_branch
    %21 = sbr.rel (0) target = $region21
  $region20: #{_lambda_.11} parent=0 // pred_region
    _
  $region21: #{_lambda_.11} parent=0 // pred_fallthru
    _
  %v23 = vld [vmem:[%s2] sm:$0xf]
  %v24 = vld [vmem:[%s2 + $0x4] sm:$0xf]
  %v25 = vld [vmem:[%s3] sm:$0xf]
  %v26 = vld [vmem:[%s3 + $0x4] sm:$0xf]
  %v27 = vld [vmem:[%s0] sm:$0x3]
  %v30 = vunpack.c.l.b16 %v23
  %v31 = vunpack.c.l.b16 %v24
  %v32 = vpack.c.b16 %v31, %v30
  %vm34 = vcmask 130048
  %v36 = vsel %vm34, 0, 0
  %38 = vmatprep.subr.bf16.mxu0 0
  %39 = vmatpush1.bf16.msra.mxu0 0
  %40 = vmatprep.subr.bf16.mxu0 0
  %41 = vmatpush1.bf16.msra.mxu0 0
  %42 = vmatprep.subr.bf16.mxu0 0
  %43 = vmatpush1.bf16.msra.mxu0 0
  %44 = vmatprep.subr.bf16.mxu0 0
  %45 = vmatpush1.bf16.msra.mxu0 0
  %46 = vmatprep.subr.bf16.mxu0 0
  %47 = vmatpush1.bf16.msra.mxu0 0
  %48 = vmatprep.subr.bf16.mxu0 0
  %49 = vmatpush1.bf16.msra.mxu0 0
  %50 = vmatprep.subr.bf16.mxu0 0
  %51 = vmatpush1.bf16.msra.mxu0 0
  %52 = vmatprep.subr.bf16.mxu0 0
  %53 = vmatpush1.bf16.msra.mxu0 %v32
  %54 = vmatprep.subr.bf16.mxu0 0
  %55 = vmatpush2.bf16.msra.mxu0 0
  %56 = vmatprep.subr.bf16.mxu0 0
  %57 = vmatpush2.bf16.msra.mxu0 0
  %58 = vmatprep.subr.bf16.mxu0 0
  %59 = vmatpush2.bf16.msra.mxu0 0
  %60 = vmatprep.subr.bf16.mxu0 0
  %61 = vmatpush2.bf16.msra.mxu0 0
  %62 = vmatprep.subr.bf16.mxu0 0
  %63 = vmatpush2.bf16.msra.mxu0 0
  %64 = vmatprep.subr.bf16.mxu0 0
  %65 = vmatpush2.bf16.msra.mxu0 0
  %66 = vmatprep.subr.bf16.mxu0 0
  %67 = vmatpush2.bf16.msra.mxu0 0
  %68 = vmatprep.subr.bf16.mxu0 0
  %69 = vmatpush2.bf16.msra.mxu0 0
  %70 = vmatprep.mubr.bf16.mxu0 0
  %71 = vmatmul.mubr.bf16.gmra.mxu0 %v36
  %v72 = vpop.f32.mrf.mxu0
  %v73 = vadd.f32 0.0, %v72
  %v74 = vpop.f32.mrf.mxu0
  %v75 = vpop.f32.mrf.mxu0
  %v76 = vpop.f32.mrf.mxu0
  %77 = vdwg.mxu0
  %v78 = vadd.f32 %v27, %v73
  %s79 = scalar_lea.vmem %s1, 14
  %v80 = vld [vmem:[%s79] sm:$0x3]
  %v83 = vunpack.c.l.b16 %v25
  %v84 = vunpack.c.l.b16 %v26
  %v85 = vpack.c.b16 %v84, %v83
  %87 = vmatprep.subr.bf16.mxu0 0
  %88 = vmatpush1.bf16.msra.mxu0 0
  %89 = vmatprep.subr.bf16.mxu0 0
  %90 = vmatpush1.bf16.msra.mxu0 0
  %91 = vmatprep.subr.bf16.mxu0 0
  %92 = vmatpush1.bf16.msra.mxu0 0
  %93 = vmatprep.subr.bf16.mxu0 0
  %94 = vmatpush1.bf16.msra.mxu0 0
  %95 = vmatprep.subr.bf16.mxu0 0
  %96 = vmatpush1.bf16.msra.mxu0 0
  %97 = vmatprep.subr.bf16.mxu0 0
  %98 = vmatpush1.bf16.msra.mxu0 0
  %99 = vmatprep.subr.bf16.mxu0 0
  %100 = vmatpush1.bf16.msra.mxu0 0
  %101 = vmatprep.subr.bf16.mxu0 0
  %102 = vmatpush1.bf16.msra.mxu0 %v85
  %103 = vmatprep.subr.bf16.mxu0 0
  %104 = vmatpush2.bf16.msra.mxu0 0
  %105 = vmatprep.subr.bf16.mxu0 0
  %106 = vmatpush2.bf16.msra.mxu0 0
  %107 = vmatprep.subr.bf16.mxu0 0
  %108 = vmatpush2.bf16.msra.mxu0 0
  %109 = vmatprep.subr.bf16.mxu0 0
  %110 = vmatpush2.bf16.msra.mxu0 0
  %111 = vmatprep.subr.bf16.mxu0 0
  %112 = vmatpush2.bf16.msra.mxu0 0
  %113 = vmatprep.subr.bf16.mxu0 0
  %114 = vmatpush2.bf16.msra.mxu0 0
  %115 = vmatprep.subr.bf16.mxu0 0
  %116 = vmatpush2.bf16.msra.mxu0 0
  %117 = vmatprep.subr.bf16.mxu0 0
  %118 = vmatpush2.bf16.msra.mxu0 0
  %119 = vmatprep.mubr.bf16.mxu0 0
  %120 = vmatmul.mubr.bf16.gmra.mxu0 %v36
  %v121 = vpop.f32.mrf.mxu0
  %v122 = vadd.f32 0.0, %v121
  %v123 = vpop.f32.mrf.mxu0
  %v124 = vpop.f32.mrf.mxu0
  %v125 = vpop.f32.mrf.mxu0
  %126 = vdwg.mxu0
  %v127 = vadd.f32 %v80, %v122
  %v128 = vxor.u32 %v78, 2147483648
  %v129 = vmul.f32 %v128, 1.442695
  %v130 = vpow.pop %v129
  %v131 = vadd.f32 %v130, 1.0
  %v132 = vrcp.pop %v131
  %v133 = vmul.f32 1.0, %v132
  %v134 = vtanh.pop %v78
  %v135 = vmul.f32 %v133, 0.0
  %137 = vrot.lane.b32.xlu0 %v134, 96
  %v138 = vpop.permute.xlu0 %137
  %v140 = vmul.f32 %v133, %v138
  %142 = vrot.lane.b32.xlu0 %v140, 16
  %v143 = vpop.permute.xlu0 %142
  %v145 = vadd.f32 %v135, %v143
  %v146 = vtanh.pop %v145
  %148 = vrot.lane.b32.xlu0 %v146, 32
  %v149 = vpop.permute.xlu0 %148
  %v151 = vmul.f32 %v133, %v149
  %v152 = vxor.u32 %v127, 2147483648
  %v153 = vmul.f32 %v152, 1.442695
  %v154 = vpow.pop %v153
  %v155 = vadd.f32 %v154, 1.0
  %v156 = vrcp.pop %v155
  %v157 = vmul.f32 1.0, %v156
  %v158 = vtanh.pop %v127
  %v159 = vmul.f32 %v157, 0.0
  %161 = vrot.lane.b32.xlu0 %v158, 96
  %v162 = vpop.permute.xlu0 %161
  %v164 = vmul.f32 %v157, %v162
  %166 = vrot.lane.b32.xlu0 %v164, 16
  %v167 = vpop.permute.xlu0 %166
  %v169 = vadd.f32 %v159, %v167
  %v170 = vtanh.pop %v169
  %172 = vrot.lane.b32.xlu0 %v170, 32
  %v173 = vpop.permute.xlu0 %172
  %v175 = vmul.f32 %v157, %v173
  %v176 = vld [vmem:[%s4] sm:$0x3]
  %s177 = scalar_lea.vmem %s4, 14
  %v178 = vld [vmem:[%s177] sm:$0x3]
  %180 = vset.pattern.permute.xlu0 0
  %181 = vperm.xlu0 %180, %v176
  %v182 = vpop.permute.xlu0 %181
  %v184 = vmul.f32 %v182, %v151
  %186 = vrot.lane.b32.xlu0 %v184, 80
  %v187 = vpop.permute.xlu0 %186
  %vm189 = vcmask 123904
  %190 = vst.msk [vmem:[%s5] sm:$0x3] %vm189, %v187
  %192 = vset.pattern.permute.xlu0 0
  %193 = vperm.xlu0 %192, %v178
  %v194 = vpop.permute.xlu0 %193
  %v196 = vmul.f32 %v194, %v175
  %198 = vrot.lane.b32.xlu0 %v196, 80
  %v199 = vpop.permute.xlu0 %198
  %s201 = scalar_lea.vmem %s6, 14
  %202 = vst.msk [vmem:[%s201] sm:$0x3] %vm189, %v199
  %v203 = vsub.f32 1.0, %v176
  %205 = vset.pattern.permute.xlu0 0
  %206 = vperm.xlu0 %205, %v203
  %v207 = vpop.permute.xlu0 %206
  %v209 = vmul.f32 %v207, 0.0
  %v210 = vadd.f32 %v184, %v209
  %v211 = vmul.f32 %v182, %v145
  %v212 = vadd.f32 %v211, %v209
  %v213 = vsub.f32 1.0, %v178
  %215 = vset.pattern.permute.xlu0 0
  %216 = vperm.xlu0 %215, %v213
  %v217 = vpop.permute.xlu0 %216
  %v219 = vmul.f32 %v217, 0.0
  %v220 = vadd.f32 %v196, %v219
  %v221 = vmul.f32 %v194, %v169
  %v222 = vadd.f32 %v221, %v219
  %s223 = scalar_lea.vmem %s0, 2
  %v224 = vld [vmem:[%s223] sm:$0x3]
  %v225 = vpack.c.bf16 %v210, %v210
  %227 = vrot.lane.b32.xlu0 %v225, 80
  %v228 = vpop.permute.xlu0 %227
  %v230 = vsel %vm34, %v228, 0
  %232 = vmatprep.subr.bf16.mxu0 0
  %233 = vmatpush1.bf16.msra.mxu0 0
  %234 = vmatprep.subr.bf16.mxu0 0
  %235 = vmatpush1.bf16.msra.mxu0 0
  %236 = vmatprep.subr.bf16.mxu0 0
  %237 = vmatpush1.bf16.msra.mxu0 0
  %238 = vmatprep.subr.bf16.mxu0 0
  %239 = vmatpush1.bf16.msra.mxu0 0
  %240 = vmatprep.subr.bf16.mxu0 0
  %241 = vmatpush1.bf16.msra.mxu0 0
  %242 = vmatprep.subr.bf16.mxu0 0
  %243 = vmatpush1.bf16.msra.mxu0 0
  %244 = vmatprep.subr.bf16.mxu0 0
  %245 = vmatpush1.bf16.msra.mxu0 0
  %246 = vmatprep.subr.bf16.mxu0 0
  %247 = vmatpush1.bf16.msra.mxu0 %v32
  %248 = vmatprep.subr.bf16.mxu0 0
  %249 = vmatpush2.bf16.msra.mxu0 0
  %250 = vmatprep.subr.bf16.mxu0 0
  %251 = vmatpush2.bf16.msra.mxu0 0
  %252 = vmatprep.subr.bf16.mxu0 0
  %253 = vmatpush2.bf16.msra.mxu0 0
  %254 = vmatprep.subr.bf16.mxu0 0
  %255 = vmatpush2.bf16.msra.mxu0 0
  %256 = vmatprep.subr.bf16.mxu0 0
  %257 = vmatpush2.bf16.msra.mxu0 0
  %258 = vmatprep.subr.bf16.mxu0 0
  %259 = vmatpush2.bf16.msra.mxu0 0
  %260 = vmatprep.subr.bf16.mxu0 0
  %261 = vmatpush2.bf16.msra.mxu0 0
  %262 = vmatprep.subr.bf16.mxu0 0
  %263 = vmatpush2.bf16.msra.mxu0 0
  %264 = vmatprep.mubr.bf16.mxu0 0
  %265 = vmatmul.mubr.bf16.gmra.mxu0 %v230
  %v266 = vpop.f32.mrf.mxu0
  %v267 = vadd.f32 0.0, %v266
  %v268 = vpop.f32.mrf.mxu0
  %v269 = vpop.f32.mrf.mxu0
  %v270 = vpop.f32.mrf.mxu0
  %271 = vdwg.mxu0
  %v272 = vadd.f32 %v224, %v267
  %s273 = scalar_lea.vmem %s1, 12
  %v274 = vld [vmem:[%s273] sm:$0x3]
  %v275 = vpack.c.bf16 %v220, %v220
  %277 = vrot.lane.b32.xlu0 %v275, 80
  %v278 = vpop.permute.xlu0 %277
  %v280 = vsel %vm34, %v278, 0
  %282 = vmatprep.subr.bf16.mxu0 0
  %283 = vmatpush1.bf16.msra.mxu0 0
  %284 = vmatprep.subr.bf16.mxu0 0
  %285 = vmatpush1.bf16.msra.mxu0 0
  %286 = vmatprep.subr.bf16.mxu0 0
  %287 = vmatpush1.bf16.msra.mxu0 0
  %288 = vmatprep.subr.bf16.mxu0 0
  %289 = vmatpush1.bf16.msra.mxu0 0
  %290 = vmatprep.subr.bf16.mxu0 0
  %291 = vmatpush1.bf16.msra.mxu0 0
  %292 = vmatprep.subr.bf16.mxu0 0
  %293 = vmatpush1.bf16.msra.mxu0 0
  %294 = vmatprep.subr.bf16.mxu0 0
  %295 = vmatpush1.bf16.msra.mxu0 0
  %296 = vmatprep.subr.bf16.mxu0 0
  %297 = vmatpush1.bf16.msra.mxu0 %v85
  %298 = vmatprep.subr.bf16.mxu0 0
  %299 = vmatpush2.bf16.msra.mxu0 0
  %300 = vmatprep.subr.bf16.mxu0 0
  %301 = vmatpush2.bf16.msra.mxu0 0
  %302 = vmatprep.subr.bf16.mxu0 0
  %303 = vmatpush2.bf16.msra.mxu0 0
  %304 = vmatprep.subr.bf16.mxu0 0
  %305 = vmatpush2.bf16.msra.mxu0 0
  %306 = vmatprep.subr.bf16.mxu0 0
  %307 = vmatpush2.bf16.msra.mxu0 0
  %308 = vmatprep.subr.bf16.mxu0 0
  %309 = vmatpush2.bf16.msra.mxu0 0
  %310 = vmatprep.subr.bf16.mxu0 0
  %311 = vmatpush2.bf16.msra.mxu0 0
  %312 = vmatprep.subr.bf16.mxu0 0
  %313 = vmatpush2.bf16.msra.mxu0 0
  %314 = vmatprep.mubr.bf16.mxu0 0
  %315 = vmatmul.mubr.bf16.gmra.mxu0 %v280
  %v316 = vpop.f32.mrf.mxu0
  %v317 = vadd.f32 0.0, %v316
  %v318 = vpop.f32.mrf.mxu0
  %v319 = vpop.f32.mrf.mxu0
  %v320 = vpop.f32.mrf.mxu0
  %321 = vdwg.mxu0
  %v322 = vadd.f32 %v274, %v317
  %v323 = vxor.u32 %v272, 2147483648
  %v324 = vmul.f32 %v323, 1.442695
  %v325 = vpow.pop %v324
  %v326 = vadd.f32 %v325, 1.0
  %v327 = vrcp.pop %v326
  %v328 = vmul.f32 1.0, %v327
  %v329 = vtanh.pop %v272
  %v330 = vmul.f32 %v328, %v212
  %332 = vrot.lane.b32.xlu0 %v329, 96
  %v333 = vpop.permute.xlu0 %332
  %v335 = vmul.f32 %v328, %v333
  %337 = vrot.lane.b32.xlu0 %v335, 16
  %v338 = vpop.permute.xlu0 %337
  %v340 = vadd.f32 %v330, %v338
  %v341 = vtanh.pop %v340
  %343 = vrot.lane.b32.xlu0 %v341, 32
  %v344 = vpop.permute.xlu0 %343
  %v346 = vmul.f32 %v328, %v344
  %v347 = vxor.u32 %v322, 2147483648
  %v348 = vmul.f32 %v347, 1.442695
  %v349 = vpow.pop %v348
  %v350 = vadd.f32 %v349, 1.0
  %v351 = vrcp.pop %v350
  %v352 = vmul.f32 1.0, %v351
  %v353 = vtanh.pop %v322
  %v354 = vmul.f32 %v352, %v222
  %356 = vrot.lane.b32.xlu0 %v353, 96
  %v357 = vpop.permute.xlu0 %356
  %v359 = vmul.f32 %v352, %v357
  %361 = vrot.lane.b32.xlu0 %v359, 16
  %v362 = vpop.permute.xlu0 %361
  %v364 = vadd.f32 %v354, %v362
  %v365 = vtanh.pop %v364
  %367 = vrot.lane.b32.xlu0 %v365, 32
  %v368 = vpop.permute.xlu0 %367
  %v370 = vmul.f32 %v352, %v368
  %s371 = scalar_lea.vmem %s4, 2
  %v372 = vld [vmem:[%s371] sm:$0x3]
  %s373 = scalar_lea.vmem %s4, 12
  %v374 = vld [vmem:[%s373] sm:$0x3]
  %376 = vset.pattern.permute.xlu0 0
  %377 = vperm.xlu0 %376, %v372
  %v378 = vpop.permute.xlu0 %377
  %v380 = vmul.f32 %v378, %v346
  %382 = vrot.lane.b32.xlu0 %v380, 80
  %v383 = vpop.permute.xlu0 %382
  %s385 = scalar_lea.vmem %s5, 2
  %386 = vst.msk [vmem:[%s385] sm:$0x3] %vm189, %v383
  %388 = vset.pattern.permute.xlu0 0
  %389 = vperm.xlu0 %388, %v374
  %v390 = vpop.permute.xlu0 %389
  %v392 = vmul.f32 %v390, %v370
  %394 = vrot.lane.b32.xlu0 %v392, 80
  %v395 = vpop.permute.xlu0 %394
  %s397 = scalar_lea.vmem %s6, 12
  %398 = vst.msk [vmem:[%s397] sm:$0x3] %vm189, %v395
  %v399 = vsub.f32 1.0, %v372
  %401 = vset.pattern.permute.xlu0 0
  %402 = vperm.xlu0 %401, %v399
  %v403 = vpop.permute.xlu0 %402
  %v405 = vmul.f32 %v403, %v210
  %v406 = vadd.f32 %v380, %v405
  %v407 = vmul.f32 %v378, %v340
  %v408 = vmul.f32 %v403, %v212
  %v409 = vadd.f32 %v407, %v408
  %v410 = vsub.f32 1.0, %v374
  %412 = vset.pattern.permute.xlu0 0
  %413 = vperm.xlu0 %412, %v410
  %v414 = vpop.permute.xlu0 %413
  %v416 = vmul.f32 %v414, %v220
  %v417 = vadd.f32 %v392, %v416
  %v418 = vmul.f32 %v390, %v364
  %v419 = vmul.f32 %v414, %v222
  %v420 = vadd.f32 %v418, %v419
  %s421 = scalar_lea.vmem %s0, 4
  %v422 = vld [vmem:[%s421] sm:$0x3]
  %v423 = vpack.c.bf16 %v406, %v406
  %425 = vrot.lane.b32.xlu0 %v423, 80
  %v426 = vpop.permute.xlu0 %425
  %v428 = vsel %vm34, %v426, 0
  %430 = vmatprep.subr.bf16.mxu0 0
  %431 = vmatpush1.bf16.msra.mxu0 0
  %432 = vmatprep.subr.bf16.mxu0 0
  %433 = vmatpush1.bf16.msra.mxu0 0
  %434 = vmatprep.subr.bf16.mxu0 0
  %435 = vmatpush1.bf16.msra.mxu0 0
  %436 = vmatprep.subr.bf16.mxu0 0
  %437 = vmatpush1.bf16.msra.mxu0 0
  %438 = vmatprep.subr.bf16.mxu0 0
  %439 = vmatpush1.bf16.msra.mxu0 0
  %440 = vmatprep.subr.bf16.mxu0 0
  %441 = vmatpush1.bf16.msra.mxu0 0
  %442 = vmatprep.subr.bf16.mxu0 0
  %443 = vmatpush1.bf16.msra.mxu0 0
  %444 = vmatprep.subr.bf16.mxu0 0
  %445 = vmatpush1.bf16.msra.mxu0 %v32
  %446 = vmatprep.subr.bf16.mxu0 0
  %447 = vmatpush2.bf16.msra.mxu0 0
  %448 = vmatprep.subr.bf16.mxu0 0
  %449 = vmatpush2.bf16.msra.mxu0 0
  %450 = vmatprep.subr.bf16.mxu0 0
  %451 = vmatpush2.bf16.msra.mxu0 0
  %452 = vmatprep.subr.bf16.mxu0 0
  %453 = vmatpush2.bf16.msra.mxu0 0
  %454 = vmatprep.subr.bf16.mxu0 0
  %455 = vmatpush2.bf16.msra.mxu0 0
  %456 = vmatprep.subr.bf16.mxu0 0
  %457 = vmatpush2.bf16.msra.mxu0 0
  %458 = vmatprep.subr.bf16.mxu0 0
  %459 = vmatpush2.bf16.msra.mxu0 0
  %460 = vmatprep.subr.bf16.mxu0 0
  %461 = vmatpush2.bf16.msra.mxu0 0
  %462 = vmatprep.mubr.bf16.mxu0 0
  %463 = vmatmul.mubr.bf16.gmra.mxu0 %v428
  %v464 = vpop.f32.mrf.mxu0
  %v465 = vadd.f32 0.0, %v464
  %v466 = vpop.f32.mrf.mxu0
  %v467 = vpop.f32.mrf.mxu0
  %v468 = vpop.f32.mrf.mxu0
  %469 = vdwg.mxu0
  %v470 = vadd.f32 %v422, %v465
  %s471 = scalar_lea.vmem %s1, 10
  %v472 = vld [vmem:[%s471] sm:$0x3]
  %v473 = vpack.c.bf16 %v417, %v417
  %475 = vrot.lane.b32.xlu0 %v473, 80
  %v476 = vpop.permute.xlu0 %475
  %v478 = vsel %vm34, %v476, 0
  %480 = vmatprep.subr.bf16.mxu0 0
  %481 = vmatpush1.bf16.msra.mxu0 0
  %482 = vmatprep.subr.bf16.mxu0 0
  %483 = vmatpush1.bf16.msra.mxu0 0
  %484 = vmatprep.subr.bf16.mxu0 0
  %485 = vmatpush1.bf16.msra.mxu0 0
  %486 = vmatprep.subr.bf16.mxu0 0
  %487 = vmatpush1.bf16.msra.mxu0 0
  %488 = vmatprep.subr.bf16.mxu0 0
  %489 = vmatpush1.bf16.msra.mxu0 0
  %490 = vmatprep.subr.bf16.mxu0 0
  %491 = vmatpush1.bf16.msra.mxu0 0
  %492 = vmatprep.subr.bf16.mxu0 0
  %493 = vmatpush1.bf16.msra.mxu0 0
  %494 = vmatprep.subr.bf16.mxu0 0
  %495 = vmatpush1.bf16.msra.mxu0 %v85
  %496 = vmatprep.subr.bf16.mxu0 0
  %497 = vmatpush2.bf16.msra.mxu0 0
  %498 = vmatprep.subr.bf16.mxu0 0
  %499 = vmatpush2.bf16.msra.mxu0 0
  %500 = vmatprep.subr.bf16.mxu0 0
  %501 = vmatpush2.bf16.msra.mxu0 0
  %502 = vmatprep.subr.bf16.mxu0 0
  %503 = vmatpush2.bf16.msra.mxu0 0
  %504 = vmatprep.subr.bf16.mxu0 0
  %505 = vmatpush2.bf16.msra.mxu0 0
  %506 = vmatprep.subr.bf16.mxu0 0
  %507 = vmatpush2.bf16.msra.mxu0 0
  %508 = vmatprep.subr.bf16.mxu0 0
  %509 = vmatpush2.bf16.msra.mxu0 0
  %510 = vmatprep.subr.bf16.mxu0 0
  %511 = vmatpush2.bf16.msra.mxu0 0
  %512 = vmatprep.mubr.bf16.mxu0 0
  %513 = vmatmul.mubr.bf16.gmra.mxu0 %v478
  %v514 = vpop.f32.mrf.mxu0
  %v515 = vadd.f32 0.0, %v514
  %v516 = vpop.f32.mrf.mxu0
  %v517 = vpop.f32.mrf.mxu0
  %v518 = vpop.f32.mrf.mxu0
  %519 = vdwg.mxu0
  %v520 = vadd.f32 %v472, %v515
  %v521 = vxor.u32 %v470, 2147483648
  %v522 = vmul.f32 %v521, 1.442695
  %v523 = vpow.pop %v522
  %v524 = vadd.f32 %v523, 1.0
  %v525 = vrcp.pop %v524
  %v526 = vmul.f32 1.0, %v525
  %v527 = vtanh.pop %v470
  %v528 = vmul.f32 %v526, %v409
  %530 = vrot.lane.b32.xlu0 %v527, 96
  %v531 = vpop.permute.xlu0 %530
  %v533 = vmul.f32 %v526, %v531
  %535 = vrot.lane.b32.xlu0 %v533, 16
  %v536 = vpop.permute.xlu0 %535
  %v538 = vadd.f32 %v528, %v536
  %v539 = vtanh.pop %v538
  %541 = vrot.lane.b32.xlu0 %v539, 32
  %v542 = vpop.permute.xlu0 %541
  %v544 = vmul.f32 %v526, %v542
  %v545 = vxor.u32 %v520, 2147483648
  %v546 = vmul.f32 %v545, 1.442695
  %v547 = vpow.pop %v546
  %v548 = vadd.f32 %v547, 1.0
  %v549 = vrcp.pop %v548
  %v550 = vmul.f32 1.0, %v549
  %v551 = vtanh.pop %v520
  %v552 = vmul.f32 %v550, %v420
  %554 = vrot.lane.b32.xlu0 %v551, 96
  %v555 = vpop.permute.xlu0 %554
  %v557 = vmul.f32 %v550, %v555
  %559 = vrot.lane.b32.xlu0 %v557, 16
  %v560 = vpop.permute.xlu0 %559
  %v562 = vadd.f32 %v552, %v560
  %v563 = vtanh.pop %v562
  %565 = vrot.lane.b32.xlu0 %v563, 32
  %v566 = vpop.permute.xlu0 %565
  %v568 = vmul.f32 %v550, %v566
  %s569 = scalar_lea.vmem %s4, 4
  %v570 = vld [vmem:[%s569] sm:$0x3]
  %s571 = scalar_lea.vmem %s4, 10
  %v572 = vld [vmem:[%s571] sm:$0x3]
  %574 = vset.pattern.permute.xlu0 0
  %575 = vperm.xlu0 %574, %v570
  %v576 = vpop.permute.xlu0 %575
  %v578 = vmul.f32 %v576, %v544
  %580 = vrot.lane.b32.xlu0 %v578, 80
  %v581 = vpop.permute.xlu0 %580
  %s583 = scalar_lea.vmem %s5, 4
  %584 = vst.msk [vmem:[%s583] sm:$0x3] %vm189, %v581
  %586 = vset.pattern.permute.xlu0 0
  %587 = vperm.xlu0 %586, %v572
  %v588 = vpop.permute.xlu0 %587
  %v590 = vmul.f32 %v588, %v568
  %592 = vrot.lane.b32.xlu0 %v590, 80
  %v593 = vpop.permute.xlu0 %592
  %s595 = scalar_lea.vmem %s6, 10
  %596 = vst.msk [vmem:[%s595] sm:$0x3] %vm189, %v593
  %v597 = vsub.f32 1.0, %v570
  %599 = vset.pattern.permute.xlu0 0
  %600 = vperm.xlu0 %599, %v597
  %v601 = vpop.permute.xlu0 %600
  %v603 = vmul.f32 %v601, %v406
  %v604 = vadd.f32 %v578, %v603
  %v605 = vmul.f32 %v576, %v538
  %v606 = vmul.f32 %v601, %v409
  %v607 = vadd.f32 %v605, %v606
  %v608 = vsub.f32 1.0, %v572
  %610 = vset.pattern.permute.xlu0 0
  %611 = vperm.xlu0 %610, %v608
  %v612 = vpop.permute.xlu0 %611
  %v614 = vmul.f32 %v612, %v417
  %v615 = vadd.f32 %v590, %v614
  %v616 = vmul.f32 %v588, %v562
  %v617 = vmul.f32 %v612, %v420
  %v618 = vadd.f32 %v616, %v617
  %s619 = scalar_lea.vmem %s0, 6
  %v620 = vld [vmem:[%s619] sm:$0x3]
  %v621 = vpack.c.bf16 %v604, %v604
  %623 = vrot.lane.b32.xlu0 %v621, 80
  %v624 = vpop.permute.xlu0 %623
  %v626 = vsel %vm34, %v624, 0
  %628 = vmatprep.subr.bf16.mxu0 0
  %629 = vmatpush1.bf16.msra.mxu0 0
  %630 = vmatprep.subr.bf16.mxu0 0
  %631 = vmatpush1.bf16.msra.mxu0 0
  %632 = vmatprep.subr.bf16.mxu0 0
  %633 = vmatpush1.bf16.msra.mxu0 0
  %634 = vmatprep.subr.bf16.mxu0 0
  %635 = vmatpush1.bf16.msra.mxu0 0
  %636 = vmatprep.subr.bf16.mxu0 0
  %637 = vmatpush1.bf16.msra.mxu0 0
  %638 = vmatprep.subr.bf16.mxu0 0
  %639 = vmatpush1.bf16.msra.mxu0 0
  %640 = vmatprep.subr.bf16.mxu0 0
  %641 = vmatpush1.bf16.msra.mxu0 0
  %642 = vmatprep.subr.bf16.mxu0 0
  %643 = vmatpush1.bf16.msra.mxu0 %v32
  %644 = vmatprep.subr.bf16.mxu0 0
  %645 = vmatpush2.bf16.msra.mxu0 0
  %646 = vmatprep.subr.bf16.mxu0 0
  %647 = vmatpush2.bf16.msra.mxu0 0
  %648 = vmatprep.subr.bf16.mxu0 0
  %649 = vmatpush2.bf16.msra.mxu0 0
  %650 = vmatprep.subr.bf16.mxu0 0
  %651 = vmatpush2.bf16.msra.mxu0 0
  %652 = vmatprep.subr.bf16.mxu0 0
  %653 = vmatpush2.bf16.msra.mxu0 0
  %654 = vmatprep.subr.bf16.mxu0 0
  %655 = vmatpush2.bf16.msra.mxu0 0
  %656 = vmatprep.subr.bf16.mxu0 0
  %657 = vmatpush2.bf16.msra.mxu0 0
  %658 = vmatprep.subr.bf16.mxu0 0
  %659 = vmatpush2.bf16.msra.mxu0 0
  %660 = vmatprep.mubr.bf16.mxu0 0
  %661 = vmatmul.mubr.bf16.gmra.mxu0 %v626
  %v662 = vpop.f32.mrf.mxu0
  %v663 = vadd.f32 0.0, %v662
  %v664 = vpop.f32.mrf.mxu0
  %v665 = vpop.f32.mrf.mxu0
  %v666 = vpop.f32.mrf.mxu0
  %667 = vdwg.mxu0
  %v668 = vadd.f32 %v620, %v663
  %s669 = scalar_lea.vmem %s1, 8
  %v670 = vld [vmem:[%s669] sm:$0x3]
  %v671 = vpack.c.bf16 %v615, %v615
  %673 = vrot.lane.b32.xlu0 %v671, 80
  %v674 = vpop.permute.xlu0 %673
  %v676 = vsel %vm34, %v674, 0
  %678 = vmatprep.subr.bf16.mxu0 0
  %679 = vmatpush1.bf16.msra.mxu0 0
  %680 = vmatprep.subr.bf16.mxu0 0
  %681 = vmatpush1.bf16.msra.mxu0 0
  %682 = vmatprep.subr.bf16.mxu0 0
  %683 = vmatpush1.bf16.msra.mxu0 0
  %684 = vmatprep.subr.bf16.mxu0 0
  %685 = vmatpush1.bf16.msra.mxu0 0
  %686 = vmatprep.subr.bf16.mxu0 0
  %687 = vmatpush1.bf16.msra.mxu0 0
  %688 = vmatprep.subr.bf16.mxu0 0
  %689 = vmatpush1.bf16.msra.mxu0 0
  %690 = vmatprep.subr.bf16.mxu0 0
  %691 = vmatpush1.bf16.msra.mxu0 0
  %692 = vmatprep.subr.bf16.mxu0 0
  %693 = vmatpush1.bf16.msra.mxu0 %v85
  %694 = vmatprep.subr.bf16.mxu0 0
  %695 = vmatpush2.bf16.msra.mxu0 0
  %696 = vmatprep.subr.bf16.mxu0 0
  %697 = vmatpush2.bf16.msra.mxu0 0
  %698 = vmatprep.subr.bf16.mxu0 0
  %699 = vmatpush2.bf16.msra.mxu0 0
  %700 = vmatprep.subr.bf16.mxu0 0
  %701 = vmatpush2.bf16.msra.mxu0 0
  %702 = vmatprep.subr.bf16.mxu0 0
  %703 = vmatpush2.bf16.msra.mxu0 0
  %704 = vmatprep.subr.bf16.mxu0 0
  %705 = vmatpush2.bf16.msra.mxu0 0
  %706 = vmatprep.subr.bf16.mxu0 0
  %707 = vmatpush2.bf16.msra.mxu0 0
  %708 = vmatprep.subr.bf16.mxu0 0
  %709 = vmatpush2.bf16.msra.mxu0 0
  %710 = vmatprep.mubr.bf16.mxu0 0
  %711 = vmatmul.mubr.bf16.gmra.mxu0 %v676
  %v712 = vpop.f32.mrf.mxu0
  %v713 = vadd.f32 0.0, %v712
  %v714 = vpop.f32.mrf.mxu0
  %v715 = vpop.f32.mrf.mxu0
  %v716 = vpop.f32.mrf.mxu0
  %717 = vdwg.mxu0
  %v718 = vadd.f32 %v670, %v713
  %v719 = vxor.u32 %v668, 2147483648
  %v720 = vmul.f32 %v719, 1.442695
  %v721 = vpow.pop %v720
  %v722 = vadd.f32 %v721, 1.0
  %v723 = vrcp.pop %v722
  %v724 = vmul.f32 1.0, %v723
  %v725 = vtanh.pop %v668
  %v726 = vmul.f32 %v724, %v607
  %728 = vrot.lane.b32.xlu0 %v725, 96
  %v729 = vpop.permute.xlu0 %728
  %v731 = vmul.f32 %v724, %v729
  %733 = vrot.lane.b32.xlu0 %v731, 16
  %v734 = vpop.permute.xlu0 %733
  %v736 = vadd.f32 %v726, %v734
  %v737 = vtanh.pop %v736
  %739 = vrot.lane.b32.xlu0 %v737, 32
  %v740 = vpop.permute.xlu0 %739
  %v742 = vmul.f32 %v724, %v740
  %v743 = vxor.u32 %v718, 2147483648
  %v744 = vmul.f32 %v743, 1.442695
  %v745 = vpow.pop %v744
  %v746 = vadd.f32 %v745, 1.0
  %v747 = vrcp.pop %v746
  %v748 = vmul.f32 1.0, %v747
  %v749 = vtanh.pop %v718
  %v750 = vmul.f32 %v748, %v618
  %752 = vrot.lane.b32.xlu0 %v749, 96
  %v753 = vpop.permute.xlu0 %752
  %v755 = vmul.f32 %v748, %v753
  %757 = vrot.lane.b32.xlu0 %v755, 16
  %v758 = vpop.permute.xlu0 %757
  %v760 = vadd.f32 %v750, %v758
  %v761 = vtanh.pop %v760
  %763 = vrot.lane.b32.xlu0 %v761, 32
  %v764 = vpop.permute.xlu0 %763
  %v766 = vmul.f32 %v748, %v764
  %s767 = scalar_lea.vmem %s4, 6
  %v768 = vld [vmem:[%s767] sm:$0x3]
  %s769 = scalar_lea.vmem %s4, 8
  %v770 = vld [vmem:[%s769] sm:$0x3]
  %772 = vset.pattern.permute.xlu0 0
  %773 = vperm.xlu0 %772, %v768
  %v774 = vpop.permute.xlu0 %773
  %v776 = vmul.f32 %v774, %v742
  %778 = vrot.lane.b32.xlu0 %v776, 80
  %v779 = vpop.permute.xlu0 %778
  %s781 = scalar_lea.vmem %s5, 6
  %782 = vst.msk [vmem:[%s781] sm:$0x3] %vm189, %v779
  %784 = vset.pattern.permute.xlu0 0
  %785 = vperm.xlu0 %784, %v770
  %v786 = vpop.permute.xlu0 %785
  %v788 = vmul.f32 %v786, %v766
  %790 = vrot.lane.b32.xlu0 %v788, 80
  %v791 = vpop.permute.xlu0 %790
  %s793 = scalar_lea.vmem %s6, 8
  %794 = vst.msk [vmem:[%s793] sm:$0x3] %vm189, %v791
  %v795 = vsub.f32 1.0, %v768
  %797 = vset.pattern.permute.xlu0 0
  %798 = vperm.xlu0 %797, %v795
  %v799 = vpop.permute.xlu0 %798
  %v801 = vmul.f32 %v799, %v604
  %v802 = vadd.f32 %v776, %v801
  %v803 = vmul.f32 %v774, %v736
  %v804 = vmul.f32 %v799, %v607
  %v805 = vadd.f32 %v803, %v804
  %v806 = vsub.f32 1.0, %v770
  %808 = vset.pattern.permute.xlu0 0
  %809 = vperm.xlu0 %808, %v806
  %v810 = vpop.permute.xlu0 %809
  %v812 = vmul.f32 %v810, %v615
  %v813 = vadd.f32 %v788, %v812
  %v814 = vmul.f32 %v786, %v760
  %v815 = vmul.f32 %v810, %v618
  %v816 = vadd.f32 %v814, %v815
  %s817 = scalar_lea.vmem %s0, 8
  %v818 = vld [vmem:[%s817] sm:$0x3]
  %v819 = vpack.c.bf16 %v802, %v802
  %821 = vrot.lane.b32.xlu0 %v819, 80
  %v822 = vpop.permute.xlu0 %821
  %v824 = vsel %vm34, %v822, 0
  %826 = vmatprep.subr.bf16.mxu0 0
  %827 = vmatpush1.bf16.msra.mxu0 0
  %828 = vmatprep.subr.bf16.mxu0 0
  %829 = vmatpush1.bf16.msra.mxu0 0
  %830 = vmatprep.subr.bf16.mxu0 0
  %831 = vmatpush1.bf16.msra.mxu0 0
  %832 = vmatprep.subr.bf16.mxu0 0
  %833 = vmatpush1.bf16.msra.mxu0 0
  %834 = vmatprep.subr.bf16.mxu0 0
  %835 = vmatpush1.bf16.msra.mxu0 0
  %836 = vmatprep.subr.bf16.mxu0 0
  %837 = vmatpush1.bf16.msra.mxu0 0
  %838 = vmatprep.subr.bf16.mxu0 0
  %839 = vmatpush1.bf16.msra.mxu0 0
  %840 = vmatprep.subr.bf16.mxu0 0
  %841 = vmatpush1.bf16.msra.mxu0 %v32
  %842 = vmatprep.subr.bf16.mxu0 0
  %843 = vmatpush2.bf16.msra.mxu0 0
  %844 = vmatprep.subr.bf16.mxu0 0
  %845 = vmatpush2.bf16.msra.mxu0 0
  %846 = vmatprep.subr.bf16.mxu0 0
  %847 = vmatpush2.bf16.msra.mxu0 0
  %848 = vmatprep.subr.bf16.mxu0 0
  %849 = vmatpush2.bf16.msra.mxu0 0
  %850 = vmatprep.subr.bf16.mxu0 0
  %851 = vmatpush2.bf16.msra.mxu0 0
  %852 = vmatprep.subr.bf16.mxu0 0
  %853 = vmatpush2.bf16.msra.mxu0 0
  %854 = vmatprep.subr.bf16.mxu0 0
  %855 = vmatpush2.bf16.msra.mxu0 0
  %856 = vmatprep.subr.bf16.mxu0 0
  %857 = vmatpush2.bf16.msra.mxu0 0
  %858 = vmatprep.mubr.bf16.mxu0 0
  %859 = vmatmul.mubr.bf16.gmra.mxu0 %v824
  %v860 = vpop.f32.mrf.mxu0
  %v861 = vadd.f32 0.0, %v860
  %v862 = vpop.f32.mrf.mxu0
  %v863 = vpop.f32.mrf.mxu0
  %v864 = vpop.f32.mrf.mxu0
  %865 = vdwg.mxu0
  %v866 = vadd.f32 %v818, %v861
  %s867 = scalar_lea.vmem %s1, 6
  %v868 = vld [vmem:[%s867] sm:$0x3]
  %v869 = vpack.c.bf16 %v813, %v813
  %871 = vrot.lane.b32.xlu0 %v869, 80
  %v872 = vpop.permute.xlu0 %871
  %v874 = vsel %vm34, %v872, 0
  %876 = vmatprep.subr.bf16.mxu0 0
  %877 = vmatpush1.bf16.msra.mxu0 0
  %878 = vmatprep.subr.bf16.mxu0 0
  %879 = vmatpush1.bf16.msra.mxu0 0
  %880 = vmatprep.subr.bf16.mxu0 0
  %881 = vmatpush1.bf16.msra.mxu0 0
  %882 = vmatprep.subr.bf16.mxu0 0
  %883 = vmatpush1.bf16.msra.mxu0 0
  %884 = vmatprep.subr.bf16.mxu0 0
  %885 = vmatpush1.bf16.msra.mxu0 0
  %886 = vmatprep.subr.bf16.mxu0 0
  %887 = vmatpush1.bf16.msra.mxu0 0
  %888 = vmatprep.subr.bf16.mxu0 0
  %889 = vmatpush1.bf16.msra.mxu0 0
  %890 = vmatprep.subr.bf16.mxu0 0
  %891 = vmatpush1.bf16.msra.mxu0 %v85
  %892 = vmatprep.subr.bf16.mxu0 0
  %893 = vmatpush2.bf16.msra.mxu0 0
  %894 = vmatprep.subr.bf16.mxu0 0
  %895 = vmatpush2.bf16.msra.mxu0 0
  %896 = vmatprep.subr.bf16.mxu0 0
  %897 = vmatpush2.bf16.msra.mxu0 0
  %898 = vmatprep.subr.bf16.mxu0 0
  %899 = vmatpush2.bf16.msra.mxu0 0
  %900 = vmatprep.subr.bf16.mxu0 0
  %901 = vmatpush2.bf16.msra.mxu0 0
  %902 = vmatprep.subr.bf16.mxu0 0
  %903 = vmatpush2.bf16.msra.mxu0 0
  %904 = vmatprep.subr.bf16.mxu0 0
  %905 = vmatpush2.bf16.msra.mxu0 0
  %906 = vmatprep.subr.bf16.mxu0 0
  %907 = vmatpush2.bf16.msra.mxu0 0
  %908 = vmatprep.mubr.bf16.mxu0 0
  %909 = vmatmul.mubr.bf16.gmra.mxu0 %v874
  %v910 = vpop.f32.mrf.mxu0
  %v911 = vadd.f32 0.0, %v910
  %v912 = vpop.f32.mrf.mxu0
  %v913 = vpop.f32.mrf.mxu0
  %v914 = vpop.f32.mrf.mxu0
  %915 = vdwg.mxu0
  %v916 = vadd.f32 %v868, %v911
  %v917 = vxor.u32 %v866, 2147483648
  %v918 = vmul.f32 %v917, 1.442695
  %v919 = vpow.pop %v918
  %v920 = vadd.f32 %v919, 1.0
  %v921 = vrcp.pop %v920
  %v922 = vmul.f32 1.0, %v921
  %v923 = vtanh.pop %v866
  %v924 = vmul.f32 %v922, %v805
  %926 = vrot.lane.b32.xlu0 %v923, 96
  %v927 = vpop.permute.xlu0 %926
  %v929 = vmul.f32 %v922, %v927
  %931 = vrot.lane.b32.xlu0 %v929, 16
  %v932 = vpop.permute.xlu0 %931
  %v934 = vadd.f32 %v924, %v932
  %v935 = vtanh.pop %v934
  %937 = vrot.lane.b32.xlu0 %v935, 32
  %v938 = vpop.permute.xlu0 %937
  %v940 = vmul.f32 %v922, %v938
  %v941 = vxor.u32 %v916, 2147483648
  %v942 = vmul.f32 %v941, 1.442695
  %v943 = vpow.pop %v942
  %v944 = vadd.f32 %v943, 1.0
  %v945 = vrcp.pop %v944
  %v946 = vmul.f32 1.0, %v945
  %v947 = vtanh.pop %v916
  %v948 = vmul.f32 %v946, %v816
  %950 = vrot.lane.b32.xlu0 %v947, 96
  %v951 = vpop.permute.xlu0 %950
  %v953 = vmul.f32 %v946, %v951
  %955 = vrot.lane.b32.xlu0 %v953, 16
  %v956 = vpop.permute.xlu0 %955
  %v958 = vadd.f32 %v948, %v956
  %v959 = vtanh.pop %v958
  %961 = vrot.lane.b32.xlu0 %v959, 32
  %v962 = vpop.permute.xlu0 %961
  %v964 = vmul.f32 %v946, %v962
  %v965 = vld [vmem:[%s769] sm:$0x3]
  %v966 = vld [vmem:[%s767] sm:$0x3]
  %968 = vset.pattern.permute.xlu0 0
  %969 = vperm.xlu0 %968, %v965
  %v970 = vpop.permute.xlu0 %969
  %v972 = vmul.f32 %v970, %v940
  %974 = vrot.lane.b32.xlu0 %v972, 80
  %v975 = vpop.permute.xlu0 %974
  %s977 = scalar_lea.vmem %s5, 8
  %978 = vst.msk [vmem:[%s977] sm:$0x3] %vm189, %v975
  %980 = vset.pattern.permute.xlu0 0
  %981 = vperm.xlu0 %980, %v966
  %v982 = vpop.permute.xlu0 %981
  %v984 = vmul.f32 %v982, %v964
  %986 = vrot.lane.b32.xlu0 %v984, 80
  %v987 = vpop.permute.xlu0 %986
  %s989 = scalar_lea.vmem %s6, 6
  %990 = vst.msk [vmem:[%s989] sm:$0x3] %vm189, %v987
  %v991 = vsub.f32 1.0, %v965
  %993 = vset.pattern.permute.xlu0 0
  %994 = vperm.xlu0 %993, %v991
  %v995 = vpop.permute.xlu0 %994
  %v997 = vmul.f32 %v995, %v802
  %v998 = vadd.f32 %v972, %v997
  %v999 = vmul.f32 %v970, %v934
  %v1000 = vmul.f32 %v995, %v805
  %v1001 = vadd.f32 %v999, %v1000
  %v1002 = vsub.f32 1.0, %v966
  %1004 = vset.pattern.permute.xlu0 0
  %1005 = vperm.xlu0 %1004, %v1002
  %v1006 = vpop.permute.xlu0 %1005
  %v1008 = vmul.f32 %v1006, %v813
  %v1009 = vadd.f32 %v984, %v1008
  %v1010 = vmul.f32 %v982, %v958
  %v1011 = vmul.f32 %v1006, %v816
  %v1012 = vadd.f32 %v1010, %v1011
  %s1013 = scalar_lea.vmem %s0, 10
  %v1014 = vld [vmem:[%s1013] sm:$0x3]
  %v1015 = vpack.c.bf16 %v998, %v998
  %1017 = vrot.lane.b32.xlu0 %v1015, 80
  %v1018 = vpop.permute.xlu0 %1017
  %v1020 = vsel %vm34, %v1018, 0
  %1022 = vmatprep.subr.bf16.mxu0 0
  %1023 = vmatpush1.bf16.msra.mxu0 0
  %1024 = vmatprep.subr.bf16.mxu0 0
  %1025 = vmatpush1.bf16.msra.mxu0 0
  %1026 = vmatprep.subr.bf16.mxu0 0
  %1027 = vmatpush1.bf16.msra.mxu0 0
  %1028 = vmatprep.subr.bf16.mxu0 0
  %1029 = vmatpush1.bf16.msra.mxu0 0
  %1030 = vmatprep.subr.bf16.mxu0 0
  %1031 = vmatpush1.bf16.msra.mxu0 0
  %1032 = vmatprep.subr.bf16.mxu0 0
  %1033 = vmatpush1.bf16.msra.mxu0 0
  %1034 = vmatprep.subr.bf16.mxu0 0
  %1035 = vmatpush1.bf16.msra.mxu0 0
  %1036 = vmatprep.subr.bf16.mxu0 0
  %1037 = vmatpush1.bf16.msra.mxu0 %v32
  %1038 = vmatprep.subr.bf16.mxu0 0
  %1039 = vmatpush2.bf16.msra.mxu0 0
  %1040 = vmatprep.subr.bf16.mxu0 0
  %1041 = vmatpush2.bf16.msra.mxu0 0
  %1042 = vmatprep.subr.bf16.mxu0 0
  %1043 = vmatpush2.bf16.msra.mxu0 0
  %1044 = vmatprep.subr.bf16.mxu0 0
  %1045 = vmatpush2.bf16.msra.mxu0 0
  %1046 = vmatprep.subr.bf16.mxu0 0
  %1047 = vmatpush2.bf16.msra.mxu0 0
  %1048 = vmatprep.subr.bf16.mxu0 0
  %1049 = vmatpush2.bf16.msra.mxu0 0
  %1050 = vmatprep.subr.bf16.mxu0 0
  %1051 = vmatpush2.bf16.msra.mxu0 0
  %1052 = vmatprep.subr.bf16.mxu0 0
  %1053 = vmatpush2.bf16.msra.mxu0 0
  %1054 = vmatprep.mubr.bf16.mxu0 0
  %1055 = vmatmul.mubr.bf16.gmra.mxu0 %v1020
  %v1056 = vpop.f32.mrf.mxu0
  %v1057 = vadd.f32 0.0, %v1056
  %v1058 = vpop.f32.mrf.mxu0
  %v1059 = vpop.f32.mrf.mxu0
  %v1060 = vpop.f32.mrf.mxu0
  %1061 = vdwg.mxu0
  %v1062 = vadd.f32 %v1014, %v1057
  %s1063 = scalar_lea.vmem %s1, 4
  %v1064 = vld [vmem:[%s1063] sm:$0x3]
  %v1065 = vpack.c.bf16 %v1009, %v1009
  %1067 = vrot.lane.b32.xlu0 %v1065, 80
  %v1068 = vpop.permute.xlu0 %1067
  %v1070 = vsel %vm34, %v1068, 0
  %1072 = vmatprep.subr.bf16.mxu0 0
  %1073 = vmatpush1.bf16.msra.mxu0 0
  %1074 = vmatprep.subr.bf16.mxu0 0
  %1075 = vmatpush1.bf16.msra.mxu0 0
  %1076 = vmatprep.subr.bf16.mxu0 0
  %1077 = vmatpush1.bf16.msra.mxu0 0
  %1078 = vmatprep.subr.bf16.mxu0 0
  %1079 = vmatpush1.bf16.msra.mxu0 0
  %1080 = vmatprep.subr.bf16.mxu0 0
  %1081 = vmatpush1.bf16.msra.mxu0 0
  %1082 = vmatprep.subr.bf16.mxu0 0
  %1083 = vmatpush1.bf16.msra.mxu0 0
  %1084 = vmatprep.subr.bf16.mxu0 0
  %1085 = vmatpush1.bf16.msra.mxu0 0
  %1086 = vmatprep.subr.bf16.mxu0 0
  %1087 = vmatpush1.bf16.msra.mxu0 %v85
  %1088 = vmatprep.subr.bf16.mxu0 0
  %1089 = vmatpush2.bf16.msra.mxu0 0
  %1090 = vmatprep.subr.bf16.mxu0 0
  %1091 = vmatpush2.bf16.msra.mxu0 0
  %1092 = vmatprep.subr.bf16.mxu0 0
  %1093 = vmatpush2.bf16.msra.mxu0 0
  %1094 = vmatprep.subr.bf16.mxu0 0
  %1095 = vmatpush2.bf16.msra.mxu0 0
  %1096 = vmatprep.subr.bf16.mxu0 0
  %1097 = vmatpush2.bf16.msra.mxu0 0
  %1098 = vmatprep.subr.bf16.mxu0 0
  %1099 = vmatpush2.bf16.msra.mxu0 0
  %1100 = vmatprep.subr.bf16.mxu0 0
  %1101 = vmatpush2.bf16.msra.mxu0 0
  %1102 = vmatprep.subr.bf16.mxu0 0
  %1103 = vmatpush2.bf16.msra.mxu0 0
  %1104 = vmatprep.mubr.bf16.mxu0 0
  %1105 = vmatmul.mubr.bf16.gmra.mxu0 %v1070
  %v1106 = vpop.f32.mrf.mxu0
  %v1107 = vadd.f32 0.0, %v1106
  %v1108 = vpop.f32.mrf.mxu0
  %v1109 = vpop.f32.mrf.mxu0
  %v1110 = vpop.f32.mrf.mxu0
  %1111 = vdwg.mxu0
  %v1112 = vadd.f32 %v1064, %v1107
  %v1113 = vxor.u32 %v1062, 2147483648
  %v1114 = vmul.f32 %v1113, 1.442695
  %v1115 = vpow.pop %v1114
  %v1116 = vadd.f32 %v1115, 1.0
  %v1117 = vrcp.pop %v1116
  %v1118 = vmul.f32 1.0, %v1117
  %v1119 = vtanh.pop %v1062
  %v1120 = vmul.f32 %v1118, %v1001
  %1122 = vrot.lane.b32.xlu0 %v1119, 96
  %v1123 = vpop.permute.xlu0 %1122
  %v1125 = vmul.f32 %v1118, %v1123
  %1127 = vrot.lane.b32.xlu0 %v1125, 16
  %v1128 = vpop.permute.xlu0 %1127
  %v1130 = vadd.f32 %v1120, %v1128
  %v1131 = vtanh.pop %v1130
  %1133 = vrot.lane.b32.xlu0 %v1131, 32
  %v1134 = vpop.permute.xlu0 %1133
  %v1136 = vmul.f32 %v1118, %v1134
  %v1137 = vxor.u32 %v1112, 2147483648
  %v1138 = vmul.f32 %v1137, 1.442695
  %v1139 = vpow.pop %v1138
  %v1140 = vadd.f32 %v1139, 1.0
  %v1141 = vrcp.pop %v1140
  %v1142 = vmul.f32 1.0, %v1141
  %v1143 = vtanh.pop %v1112
  %v1144 = vmul.f32 %v1142, %v1012
  %1146 = vrot.lane.b32.xlu0 %v1143, 96
  %v1147 = vpop.permute.xlu0 %1146
  %v1149 = vmul.f32 %v1142, %v1147
  %1151 = vrot.lane.b32.xlu0 %v1149, 16
  %v1152 = vpop.permute.xlu0 %1151
  %v1154 = vadd.f32 %v1144, %v1152
  %v1155 = vtanh.pop %v1154
  %1157 = vrot.lane.b32.xlu0 %v1155, 32
  %v1158 = vpop.permute.xlu0 %1157
  %v1160 = vmul.f32 %v1142, %v1158
  %v1161 = vld [vmem:[%s571] sm:$0x3]
  %v1162 = vld [vmem:[%s569] sm:$0x3]
  %1164 = vset.pattern.permute.xlu0 0
  %1165 = vperm.xlu0 %1164, %v1161
  %v1166 = vpop.permute.xlu0 %1165
  %v1168 = vmul.f32 %v1166, %v1136
  %1170 = vrot.lane.b32.xlu0 %v1168, 80
  %v1171 = vpop.permute.xlu0 %1170
  %s1173 = scalar_lea.vmem %s5, 10
  %1174 = vst.msk [vmem:[%s1173] sm:$0x3] %vm189, %v1171
  %1176 = vset.pattern.permute.xlu0 0
  %1177 = vperm.xlu0 %1176, %v1162
  %v1178 = vpop.permute.xlu0 %1177
  %v1180 = vmul.f32 %v1178, %v1160
  %1182 = vrot.lane.b32.xlu0 %v1180, 80
  %v1183 = vpop.permute.xlu0 %1182
  %s1185 = scalar_lea.vmem %s6, 4
  %1186 = vst.msk [vmem:[%s1185] sm:$0x3] %vm189, %v1183
  %v1187 = vsub.f32 1.0, %v1161
  %1189 = vset.pattern.permute.xlu0 0
  %1190 = vperm.xlu0 %1189, %v1187
  %v1191 = vpop.permute.xlu0 %1190
  %v1193 = vmul.f32 %v1191, %v998
  %v1194 = vadd.f32 %v1168, %v1193
  %v1195 = vmul.f32 %v1166, %v1130
  %v1196 = vmul.f32 %v1191, %v1001
  %v1197 = vadd.f32 %v1195, %v1196
  %v1198 = vsub.f32 1.0, %v1162
  %1200 = vset.pattern.permute.xlu0 0
  %1201 = vperm.xlu0 %1200, %v1198
  %v1202 = vpop.permute.xlu0 %1201
  %v1204 = vmul.f32 %v1202, %v1009
  %v1205 = vadd.f32 %v1180, %v1204
  %v1206 = vmul.f32 %v1178, %v1154
  %v1207 = vmul.f32 %v1202, %v1012
  %v1208 = vadd.f32 %v1206, %v1207
  %s1209 = scalar_lea.vmem %s0, 12
  %v1210 = vld [vmem:[%s1209] sm:$0x3]
  %v1211 = vpack.c.bf16 %v1194, %v1194
  %1213 = vrot.lane.b32.xlu0 %v1211, 80
  %v1214 = vpop.permute.xlu0 %1213
  %v1216 = vsel %vm34, %v1214, 0
  %1218 = vmatprep.subr.bf16.mxu0 0
  %1219 = vmatpush1.bf16.msra.mxu0 0
  %1220 = vmatprep.subr.bf16.mxu0 0
  %1221 = vmatpush1.bf16.msra.mxu0 0
  %1222 = vmatprep.subr.bf16.mxu0 0
  %1223 = vmatpush1.bf16.msra.mxu0 0
  %1224 = vmatprep.subr.bf16.mxu0 0
  %1225 = vmatpush1.bf16.msra.mxu0 0
  %1226 = vmatprep.subr.bf16.mxu0 0
  %1227 = vmatpush1.bf16.msra.mxu0 0
  %1228 = vmatprep.subr.bf16.mxu0 0
  %1229 = vmatpush1.bf16.msra.mxu0 0
  %1230 = vmatprep.subr.bf16.mxu0 0
  %1231 = vmatpush1.bf16.msra.mxu0 0
  %1232 = vmatprep.subr.bf16.mxu0 0
  %1233 = vmatpush1.bf16.msra.mxu0 %v32
  %1234 = vmatprep.subr.bf16.mxu0 0
  %1235 = vmatpush2.bf16.msra.mxu0 0
  %1236 = vmatprep.subr.bf16.mxu0 0
  %1237 = vmatpush2.bf16.msra.mxu0 0
  %1238 = vmatprep.subr.bf16.mxu0 0
  %1239 = vmatpush2.bf16.msra.mxu0 0
  %1240 = vmatprep.subr.bf16.mxu0 0
  %1241 = vmatpush2.bf16.msra.mxu0 0
  %1242 = vmatprep.subr.bf16.mxu0 0
  %1243 = vmatpush2.bf16.msra.mxu0 0
  %1244 = vmatprep.subr.bf16.mxu0 0
  %1245 = vmatpush2.bf16.msra.mxu0 0
  %1246 = vmatprep.subr.bf16.mxu0 0
  %1247 = vmatpush2.bf16.msra.mxu0 0
  %1248 = vmatprep.subr.bf16.mxu0 0
  %1249 = vmatpush2.bf16.msra.mxu0 0
  %1250 = vmatprep.mubr.bf16.mxu0 0
  %1251 = vmatmul.mubr.bf16.gmra.mxu0 %v1216
  %v1252 = vpop.f32.mrf.mxu0
  %v1253 = vadd.f32 0.0, %v1252
  %v1254 = vpop.f32.mrf.mxu0
  %v1255 = vpop.f32.mrf.mxu0
  %v1256 = vpop.f32.mrf.mxu0
  %1257 = vdwg.mxu0
  %v1258 = vadd.f32 %v1210, %v1253
  %s1259 = scalar_lea.vmem %s1, 2
  %v1260 = vld [vmem:[%s1259] sm:$0x3]
  %v1261 = vpack.c.bf16 %v1205, %v1205
  %1263 = vrot.lane.b32.xlu0 %v1261, 80
  %v1264 = vpop.permute.xlu0 %1263
  %v1266 = vsel %vm34, %v1264, 0
  %1268 = vmatprep.subr.bf16.mxu0 0
  %1269 = vmatpush1.bf16.msra.mxu0 0
  %1270 = vmatprep.subr.bf16.mxu0 0
  %1271 = vmatpush1.bf16.msra.mxu0 0
  %1272 = vmatprep.subr.bf16.mxu0 0
  %1273 = vmatpush1.bf16.msra.mxu0 0
  %1274 = vmatprep.subr.bf16.mxu0 0
  %1275 = vmatpush1.bf16.msra.mxu0 0
  %1276 = vmatprep.subr.bf16.mxu0 0
  %1277 = vmatpush1.bf16.msra.mxu0 0
  %1278 = vmatprep.subr.bf16.mxu0 0
  %1279 = vmatpush1.bf16.msra.mxu0 0
  %1280 = vmatprep.subr.bf16.mxu0 0
  %1281 = vmatpush1.bf16.msra.mxu0 0
  %1282 = vmatprep.subr.bf16.mxu0 0
  %1283 = vmatpush1.bf16.msra.mxu0 %v85
  %1284 = vmatprep.subr.bf16.mxu0 0
  %1285 = vmatpush2.bf16.msra.mxu0 0
  %1286 = vmatprep.subr.bf16.mxu0 0
  %1287 = vmatpush2.bf16.msra.mxu0 0
  %1288 = vmatprep.subr.bf16.mxu0 0
  %1289 = vmatpush2.bf16.msra.mxu0 0
  %1290 = vmatprep.subr.bf16.mxu0 0
  %1291 = vmatpush2.bf16.msra.mxu0 0
  %1292 = vmatprep.subr.bf16.mxu0 0
  %1293 = vmatpush2.bf16.msra.mxu0 0
  %1294 = vmatprep.subr.bf16.mxu0 0
  %1295 = vmatpush2.bf16.msra.mxu0 0
  %1296 = vmatprep.subr.bf16.mxu0 0
  %1297 = vmatpush2.bf16.msra.mxu0 0
  %1298 = vmatprep.subr.bf16.mxu0 0
  %1299 = vmatpush2.bf16.msra.mxu0 0
  %1300 = vmatprep.mubr.bf16.mxu0 0
  %1301 = vmatmul.mubr.bf16.gmra.mxu0 %v1266
  %v1302 = vpop.f32.mrf.mxu0
  %v1303 = vadd.f32 0.0, %v1302
  %v1304 = vpop.f32.mrf.mxu0
  %v1305 = vpop.f32.mrf.mxu0
  %v1306 = vpop.f32.mrf.mxu0
  %1307 = vdwg.mxu0
  %v1308 = vadd.f32 %v1260, %v1303
  %v1309 = vxor.u32 %v1258, 2147483648
  %v1310 = vmul.f32 %v1309, 1.442695
  %v1311 = vpow.pop %v1310
  %v1312 = vadd.f32 %v1311, 1.0
  %v1313 = vrcp.pop %v1312
  %v1314 = vmul.f32 1.0, %v1313
  %v1315 = vtanh.pop %v1258
  %v1316 = vmul.f32 %v1314, %v1197
  %1318 = vrot.lane.b32.xlu0 %v1315, 96
  %v1319 = vpop.permute.xlu0 %1318
  %v1321 = vmul.f32 %v1314, %v1319
  %1323 = vrot.lane.b32.xlu0 %v1321, 16
  %v1324 = vpop.permute.xlu0 %1323
  %v1326 = vadd.f32 %v1316, %v1324
  %v1327 = vtanh.pop %v1326
  %1329 = vrot.lane.b32.xlu0 %v1327, 32
  %v1330 = vpop.permute.xlu0 %1329
  %v1332 = vmul.f32 %v1314, %v1330
  %v1333 = vxor.u32 %v1308, 2147483648
  %v1334 = vmul.f32 %v1333, 1.442695
  %v1335 = vpow.pop %v1334
  %v1336 = vadd.f32 %v1335, 1.0
  %v1337 = vrcp.pop %v1336
  %v1338 = vmul.f32 1.0, %v1337
  %v1339 = vtanh.pop %v1308
  %v1340 = vmul.f32 %v1338, %v1208
  %1342 = vrot.lane.b32.xlu0 %v1339, 96
  %v1343 = vpop.permute.xlu0 %1342
  %v1345 = vmul.f32 %v1338, %v1343
  %1347 = vrot.lane.b32.xlu0 %v1345, 16
  %v1348 = vpop.permute.xlu0 %1347
  %v1350 = vadd.f32 %v1340, %v1348
  %v1351 = vtanh.pop %v1350
  %1353 = vrot.lane.b32.xlu0 %v1351, 32
  %v1354 = vpop.permute.xlu0 %1353
  %v1356 = vmul.f32 %v1338, %v1354
  %v1357 = vld [vmem:[%s373] sm:$0x3]
  %v1358 = vld [vmem:[%s371] sm:$0x3]
  %1360 = vset.pattern.permute.xlu0 0
  %1361 = vperm.xlu0 %1360, %v1357
  %v1362 = vpop.permute.xlu0 %1361
  %v1364 = vmul.f32 %v1362, %v1332
  %1366 = vrot.lane.b32.xlu0 %v1364, 80
  %v1367 = vpop.permute.xlu0 %1366
  %s1369 = scalar_lea.vmem %s5, 12
  %1370 = vst.msk [vmem:[%s1369] sm:$0x3] %vm189, %v1367
  %1372 = vset.pattern.permute.xlu0 0
  %1373 = vperm.xlu0 %1372, %v1358
  %v1374 = vpop.permute.xlu0 %1373
  %v1376 = vmul.f32 %v1374, %v1356
  %1378 = vrot.lane.b32.xlu0 %v1376, 80
  %v1379 = vpop.permute.xlu0 %1378
  %s1381 = scalar_lea.vmem %s6, 2
  %1382 = vst.msk [vmem:[%s1381] sm:$0x3] %vm189, %v1379
  %v1383 = vsub.f32 1.0, %v1357
  %1385 = vset.pattern.permute.xlu0 0
  %1386 = vperm.xlu0 %1385, %v1383
  %v1387 = vpop.permute.xlu0 %1386
  %v1389 = vmul.f32 %v1387, %v1194
  %v1390 = vadd.f32 %v1364, %v1389
  %v1391 = vmul.f32 %v1362, %v1326
  %v1392 = vmul.f32 %v1387, %v1197
  %v1393 = vadd.f32 %v1391, %v1392
  %v1394 = vsub.f32 1.0, %v1358
  %1396 = vset.pattern.permute.xlu0 0
  %1397 = vperm.xlu0 %1396, %v1394
  %v1398 = vpop.permute.xlu0 %1397
  %v1400 = vmul.f32 %v1398, %v1205
  %v1401 = vadd.f32 %v1376, %v1400
  %v1402 = vmul.f32 %v1374, %v1350
  %v1403 = vmul.f32 %v1398, %v1208
  %v1404 = vadd.f32 %v1402, %v1403
  %s1405 = scalar_lea.vmem %s0, 14
  %v1406 = vld [vmem:[%s1405] sm:$0x3]
  %v1407 = vpack.c.bf16 %v1390, %v1390
  %1409 = vrot.lane.b32.xlu0 %v1407, 80
  %v1410 = vpop.permute.xlu0 %1409
  %v1412 = vsel %vm34, %v1410, 0
  %1414 = vmatprep.subr.bf16.mxu0 0
  %1415 = vmatpush1.bf16.msra.mxu0 0
  %1416 = vmatprep.subr.bf16.mxu0 0
  %1417 = vmatpush1.bf16.msra.mxu0 0
  %1418 = vmatprep.subr.bf16.mxu0 0
  %1419 = vmatpush1.bf16.msra.mxu0 0
  %1420 = vmatprep.subr.bf16.mxu0 0
  %1421 = vmatpush1.bf16.msra.mxu0 0
  %1422 = vmatprep.subr.bf16.mxu0 0
  %1423 = vmatpush1.bf16.msra.mxu0 0
  %1424 = vmatprep.subr.bf16.mxu0 0
  %1425 = vmatpush1.bf16.msra.mxu0 0
  %1426 = vmatprep.subr.bf16.mxu0 0
  %1427 = vmatpush1.bf16.msra.mxu0 0
  %1428 = vmatprep.subr.bf16.mxu0 0
  %1429 = vmatpush1.bf16.msra.mxu0 %v32
  %1430 = vmatprep.subr.bf16.mxu0 0
  %1431 = vmatpush2.bf16.msra.mxu0 0
  %1432 = vmatprep.subr.bf16.mxu0 0
  %1433 = vmatpush2.bf16.msra.mxu0 0
  %1434 = vmatprep.subr.bf16.mxu0 0
  %1435 = vmatpush2.bf16.msra.mxu0 0
  %1436 = vmatprep.subr.bf16.mxu0 0
  %1437 = vmatpush2.bf16.msra.mxu0 0
  %1438 = vmatprep.subr.bf16.mxu0 0
  %1439 = vmatpush2.bf16.msra.mxu0 0
  %1440 = vmatprep.subr.bf16.mxu0 0
  %1441 = vmatpush2.bf16.msra.mxu0 0
  %1442 = vmatprep.subr.bf16.mxu0 0
  %1443 = vmatpush2.bf16.msra.mxu0 0
  %1444 = vmatprep.subr.bf16.mxu0 0
  %1445 = vmatpush2.bf16.msra.mxu0 0
  %1446 = vmatprep.mubr.bf16.mxu0 0
  %1447 = vmatmul.mubr.bf16.gmra.mxu0 %v1412
  %v1448 = vpop.f32.mrf.mxu0
  %v1449 = vadd.f32 0.0, %v1448
  %v1450 = vpop.f32.mrf.mxu0
  %v1451 = vpop.f32.mrf.mxu0
  %v1452 = vpop.f32.mrf.mxu0
  %1453 = vdwg.mxu0
  %v1454 = vadd.f32 %v1406, %v1449
  %v1455 = vld [vmem:[%s1] sm:$0x3]
  %v1456 = vpack.c.bf16 %v1401, %v1401
  %1458 = vrot.lane.b32.xlu0 %v1456, 80
  %v1459 = vpop.permute.xlu0 %1458
  %v1461 = vsel %vm34, %v1459, 0
  %1463 = vmatprep.subr.bf16.mxu0 0
  %1464 = vmatpush1.bf16.msra.mxu0 0
  %1465 = vmatprep.subr.bf16.mxu0 0
  %1466 = vmatpush1.bf16.msra.mxu0 0
  %1467 = vmatprep.subr.bf16.mxu0 0
  %1468 = vmatpush1.bf16.msra.mxu0 0
  %1469 = vmatprep.subr.bf16.mxu0 0
  %1470 = vmatpush1.bf16.msra.mxu0 0
  %1471 = vmatprep.subr.bf16.mxu0 0
  %1472 = vmatpush1.bf16.msra.mxu0 0
  %1473 = vmatprep.subr.bf16.mxu0 0
  %1474 = vmatpush1.bf16.msra.mxu0 0
  %1475 = vmatprep.subr.bf16.mxu0 0
  %1476 = vmatpush1.bf16.msra.mxu0 0
  %1477 = vmatprep.subr.bf16.mxu0 0
  %1478 = vmatpush1.bf16.msra.mxu0 %v85
  %1479 = vmatprep.subr.bf16.mxu0 0
  %1480 = vmatpush2.bf16.msra.mxu0 0
  %1481 = vmatprep.subr.bf16.mxu0 0
  %1482 = vmatpush2.bf16.msra.mxu0 0
  %1483 = vmatprep.subr.bf16.mxu0 0
  %1484 = vmatpush2.bf16.msra.mxu0 0
  %1485 = vmatprep.subr.bf16.mxu0 0
  %1486 = vmatpush2.bf16.msra.mxu0 0
  %1487 = vmatprep.subr.bf16.mxu0 0
  %1488 = vmatpush2.bf16.msra.mxu0 0
  %1489 = vmatprep.subr.bf16.mxu0 0
  %1490 = vmatpush2.bf16.msra.mxu0 0
  %1491 = vmatprep.subr.bf16.mxu0 0
  %1492 = vmatpush2.bf16.msra.mxu0 0
  %1493 = vmatprep.subr.bf16.mxu0 0
  %1494 = vmatpush2.bf16.msra.mxu0 0
  %1495 = vmatprep.mubr.bf16.mxu0 0
  %1496 = vmatmul.mubr.bf16.gmra.mxu0 %v1461
  %v1497 = vpop.f32.mrf.mxu0
  %v1498 = vadd.f32 0.0, %v1497
  %v1499 = vpop.f32.mrf.mxu0
  %v1500 = vpop.f32.mrf.mxu0
  %v1501 = vpop.f32.mrf.mxu0
  %1502 = vdwg.mxu0
  %v1503 = vadd.f32 %v1455, %v1498
  %v1504 = vxor.u32 %v1454, 2147483648
  %v1505 = vmul.f32 %v1504, 1.442695
  %v1506 = vpow.pop %v1505
  %v1507 = vadd.f32 %v1506, 1.0
  %v1508 = vrcp.pop %v1507
  %v1509 = vmul.f32 1.0, %v1508
  %v1510 = vtanh.pop %v1454
  %v1511 = vmul.f32 %v1509, %v1393
  %1513 = vrot.lane.b32.xlu0 %v1510, 96
  %v1514 = vpop.permute.xlu0 %1513
  %v1516 = vmul.f32 %v1509, %v1514
  %1518 = vrot.lane.b32.xlu0 %v1516, 16
  %v1519 = vpop.permute.xlu0 %1518
  %v1521 = vadd.f32 %v1511, %v1519
  %v1522 = vtanh.pop %v1521
  %1524 = vrot.lane.b32.xlu0 %v1522, 32
  %v1525 = vpop.permute.xlu0 %1524
  %v1527 = vmul.f32 %v1509, %v1525
  %v1528 = vxor.u32 %v1503, 2147483648
  %v1529 = vmul.f32 %v1528, 1.442695
  %v1530 = vpow.pop %v1529
  %v1531 = vadd.f32 %v1530, 1.0
  %v1532 = vrcp.pop %v1531
  %v1533 = vmul.f32 1.0, %v1532
  %v1534 = vtanh.pop %v1503
  %v1535 = vmul.f32 %v1533, %v1404
  %1537 = vrot.lane.b32.xlu0 %v1534, 96
  %v1538 = vpop.permute.xlu0 %1537
  %v1540 = vmul.f32 %v1533, %v1538
  %1542 = vrot.lane.b32.xlu0 %v1540, 16
  %v1543 = vpop.permute.xlu0 %1542
  %v1545 = vadd.f32 %v1535, %v1543
  %v1546 = vtanh.pop %v1545
  %1548 = vrot.lane.b32.xlu0 %v1546, 32
  %v1549 = vpop.permute.xlu0 %1548
  %v1551 = vmul.f32 %v1533, %v1549
  %v1552 = vld [vmem:[%s177] sm:$0x3]
  %v1553 = vld [vmem:[%s4] sm:$0x3]
  %1555 = vset.pattern.permute.xlu0 0
  %1556 = vperm.xlu0 %1555, %v1552
  %v1557 = vpop.permute.xlu0 %1556
  %v1559 = vmul.f32 %v1557, %v1527
  %1561 = vrot.lane.b32.xlu0 %v1559, 80
  %v1562 = vpop.permute.xlu0 %1561
  %s1564 = scalar_lea.vmem %s5, 14
  %1565 = vst.msk [vmem:[%s1564] sm:$0x3] %vm189, %v1562
  %1567 = vset.pattern.permute.xlu0 0
  %1568 = vperm.xlu0 %1567, %v1553
  %v1569 = vpop.permute.xlu0 %1568
  %v1571 = vmul.f32 %v1569, %v1551
  %1573 = vrot.lane.b32.xlu0 %v1571, 80
  %v1574 = vpop.permute.xlu0 %1573
  %1576 = vst.msk [vmem:[%s6] sm:$0x3] %vm189, %v1574
  // Predicated region
  $region22: #{_lambda_.11} parent=0 // pred_check
    _
  $region23: #{_lambda_.11} parent=0 // pred_check_branch
    %1578 = sbr.rel (0) target = $region25
  $region24: #{_lambda_.11} parent=0 // pred_region
    _
  $region25: #{_lambda_.11} parent=0 // pred_fallthru
    _
  // Predicated region
  $region26: #{_lambda_.11} parent=0 // pred_check
    _
  $region27: #{_lambda_.11} parent=0 // pred_check_branch
    %1580 = sbr.rel (0) target = $region29
  $region28: #{_lambda_.11} parent=0 // pred_region
    _
  $region29: #{_lambda_.11} parent=0 // pred_fallthru
    _
  // Predicated region
  $region30: #{_lambda_.11} parent=0 // pred_check
    _
  $region31: #{_lambda_.11} parent=0 // pred_check_branch
    %1582 = sbr.rel (0) target = $region33
  $region32: #{_lambda_.11} parent=0 // pred_region
    _
  $region33: #{_lambda_.11} parent=0 // pred_fallthru
    _
  // Predicated region
  $region34: #{_lambda_.11} parent=0 // pred_check
    _
  $region35: #{_lambda_.11} parent=0 // pred_check_branch
    %1584 = sbr.rel (0) target = $region37
  $region36: #{_lambda_.11} parent=0 // pred_region
    _
  $region37: #{_lambda_.11} parent=0 // pred_fallthru
    _

// kernel: _lambda_.14
$region0: #{_lambda_.14}
  #allocation0 [shape = 'u32[]', space=smem, size = 0x4, offset = 0x4, fixed_abs, tag = 'smem constant byte address 0x4 - core index']
  #allocation1 [shape = 'u32[144,128]{1,0:T(1,128)}', space=vmem, size = 0x12000, scoped, tag = 'internal scratch']
  %s0 = inlined_call_operand.vmem [shape: bf16[16,16], index: 0, kind: input, shape index: {}]
  %s1 = inlined_call_operand.vmem [shape: bf16[16,16], index: 1, kind: input, shape index: {}]
  %s2 = inlined_call_operand.vmem [shape: bf16[16,7], index: 2, kind: input, shape index: {}]
  %s3 = inlined_call_operand.vmem [shape: bf16[16,7], index: 3, kind: input, shape index: {}]
  %s4 = inlined_call_operand.vmem [shape: f32[1,7], index: 4, kind: input, shape index: {}]
  %s5 = inlined_call_operand.vmem [shape: f32[16,7], index: 5, kind: output, shape index: {}]
  %s6 = sld [smem:[#allocation0]]
  $region30: #{_lambda_.14} parent=0
    _
  %s8 = ssub.s32 1, %s6
  %s9 = scalar_select 0, %s8, %s6
  // Predicated region
  $region2: #{_lambda_.14} parent=0 // pred_check
    _
  $region3: #{_lambda_.14} parent=0 // pred_check_branch
    %11 = sbr.rel (0) target = $region5
  $region4: #{_lambda_.14} parent=0 // pred_region
    _
  $region5: #{_lambda_.14} parent=0 // pred_fallthru
    _
  // Predicated region
  $region6: #{_lambda_.14} parent=0 // pred_check
    _
  $region7: #{_lambda_.14} parent=0 // pred_check_branch
    %13 = sbr.rel (0) target = $region9
  $region8: #{_lambda_.14} parent=0 // pred_region
    _
  $region9: #{_lambda_.14} parent=0 // pred_fallthru
    _
  // Predicated region
  $region10: #{_lambda_.14} parent=0 // pred_check
    _
  $region11: #{_lambda_.14} parent=0 // pred_check_branch
    %15 = sbr.rel (0) target = $region13
  $region12: #{_lambda_.14} parent=0 // pred_region
    _
  $region13: #{_lambda_.14} parent=0 // pred_fallthru
    _
  // Predicated region
  $region14: #{_lambda_.14} parent=0 // pred_check
    _
  $region15: #{_lambda_.14} parent=0 // pred_check_branch
    %17 = sbr.rel (0) target = $region17
  $region16: #{_lambda_.14} parent=0 // pred_region
    _
  $region17: #{_lambda_.14} parent=0 // pred_fallthru
    _
  // Predicated region
  $region18: #{_lambda_.14} parent=0 // pred_check
    _
  $region19: #{_lambda_.14} parent=0 // pred_check_branch
    %19 = sbr.rel (0) target = $region21
  $region20: #{_lambda_.14} parent=0 // pred_region
    _
  $region21: #{_lambda_.14} parent=0 // pred_fallthru
    _
  %v21 = vld [vmem:[%s0] sm:$0xf]
  %v22 = vld [vmem:[%s0 + $0x4] sm:$0xf]
  %v23 = vld [vmem:[%s2] sm:$0xf]
  %v24 = vld [vmem:[%s2 + $0x4] sm:$0xf]
  %v25 = vld [vmem:[%s1] sm:$0xf]
  %v26 = vld [vmem:[%s1 + $0x4] sm:$0xf]
  %v27 = vld [vmem:[%s3] sm:$0xf]
  %v28 = vld [vmem:[%s3 + $0x4] sm:$0xf]
  %v31 = vunpack.c.l.b16 %v25
  %v32 = vunpack.c.l.b16 %v26
  %v33 = vpack.c.b16 %v32, %v31
  %v36 = vunpack.c.l.b16 %v27
  %v37 = vunpack.c.l.b16 %v28
  %v38 = vpack.c.b16 %v37, %v36
  %vm40 = vcmask 130048
  %v42 = vsel %vm40, %v33, 0
  %44 = vmatprep.subr.bf16.mxu0 0
  %45 = vmatpush1.bf16.msra.mxu0 0
  %46 = vmatprep.subr.bf16.mxu0 0
  %47 = vmatpush1.bf16.msra.mxu0 0
  %48 = vmatprep.subr.bf16.mxu0 0
  %49 = vmatpush1.bf16.msra.mxu0 0
  %50 = vmatprep.subr.bf16.mxu0 0
  %51 = vmatpush1.bf16.msra.mxu0 0
  %52 = vmatprep.subr.bf16.mxu0 0
  %53 = vmatpush1.bf16.msra.mxu0 0
  %54 = vmatprep.subr.bf16.mxu0 0
  %55 = vmatpush1.bf16.msra.mxu0 0
  %56 = vmatprep.subr.bf16.mxu0 0
  %57 = vmatpush1.bf16.msra.mxu0 0
  %58 = vmatprep.subr.bf16.mxu0 0
  %59 = vmatpush1.bf16.msra.mxu0 %v38
  %60 = vmatprep.subr.bf16.mxu0 0
  %61 = vmatpush2.bf16.msra.mxu0 0
  %62 = vmatprep.subr.bf16.mxu0 0
  %63 = vmatpush2.bf16.msra.mxu0 0
  %64 = vmatprep.subr.bf16.mxu0 0
  %65 = vmatpush2.bf16.msra.mxu0 0
  %66 = vmatprep.subr.bf16.mxu0 0
  %67 = vmatpush2.bf16.msra.mxu0 0
  %68 = vmatprep.subr.bf16.mxu0 0
  %69 = vmatpush2.bf16.msra.mxu0 0
  %70 = vmatprep.subr.bf16.mxu0 0
  %71 = vmatpush2.bf16.msra.mxu0 0
  %72 = vmatprep.subr.bf16.mxu0 0
  %73 = vmatpush2.bf16.msra.mxu0 0
  %74 = vmatprep.subr.bf16.mxu0 0
  %75 = vmatpush2.bf16.msra.mxu0 0
  %76 = vmatprep.mubr.bf16.mxu0 0
  %77 = vmatmul.mubr.bf16.gmra.mxu0 %v42
  %v78 = vpop.f32.mrf.mxu0
  %v79 = vadd.f32 0.0, %v78
  %v80 = vpop.f32.mrf.mxu0
  %v81 = vpop.f32.mrf.mxu0
  %v82 = vadd.f32 0.0, %v81
  %v83 = vpop.f32.mrf.mxu0
  %84 = vdwg.mxu0
  %v87 = vunpack.c.l.b16 %v21
  %v88 = vunpack.c.l.b16 %v22
  %v89 = vpack.c.b16 %v88, %v87
  %v92 = vunpack.c.l.b16 %v23
  %v93 = vunpack.c.l.b16 %v24
  %v94 = vpack.c.b16 %v93, %v92
  %v97 = vsel %vm40, %v89, 0
  %99 = vmatprep.subr.bf16.mxu0 0
  %100 = vmatpush1.bf16.msra.mxu0 0
  %101 = vmatprep.subr.bf16.mxu0 0
  %102 = vmatpush1.bf16.msra.mxu0 0
  %103 = vmatprep.subr.bf16.mxu0 0
  %104 = vmatpush1.bf16.msra.mxu0 0
  %105 = vmatprep.subr.bf16.mxu0 0
  %106 = vmatpush1.bf16.msra.mxu0 0
  %107 = vmatprep.subr.bf16.mxu0 0
  %108 = vmatpush1.bf16.msra.mxu0 0
  %109 = vmatprep.subr.bf16.mxu0 0
  %110 = vmatpush1.bf16.msra.mxu0 0
  %111 = vmatprep.subr.bf16.mxu0 0
  %112 = vmatpush1.bf16.msra.mxu0 0
  %113 = vmatprep.subr.bf16.mxu0 0
  %114 = vmatpush1.bf16.msra.mxu0 %v94
  %115 = vmatprep.subr.bf16.mxu0 0
  %116 = vmatpush2.bf16.msra.mxu0 0
  %117 = vmatprep.subr.bf16.mxu0 0
  %118 = vmatpush2.bf16.msra.mxu0 0
  %119 = vmatprep.subr.bf16.mxu0 0
  %120 = vmatpush2.bf16.msra.mxu0 0
  %121 = vmatprep.subr.bf16.mxu0 0
  %122 = vmatpush2.bf16.msra.mxu0 0
  %123 = vmatprep.subr.bf16.mxu0 0
  %124 = vmatpush2.bf16.msra.mxu0 0
  %125 = vmatprep.subr.bf16.mxu0 0
  %126 = vmatpush2.bf16.msra.mxu0 0
  %127 = vmatprep.subr.bf16.mxu0 0
  %128 = vmatpush2.bf16.msra.mxu0 0
  %129 = vmatprep.subr.bf16.mxu0 0
  %130 = vmatpush2.bf16.msra.mxu0 0
  %131 = vmatprep.mubr.bf16.mxu0 0
  %132 = vmatmul.mubr.bf16.gmra.mxu0 %v97
  %v133 = vpop.f32.mrf.mxu0
  %v134 = vadd.f32 %v79, %v133
  %v135 = vpop.f32.mrf.mxu0
  %v136 = vpop.f32.mrf.mxu0
  %v137 = vadd.f32 %v82, %v136
  %v138 = vpop.f32.mrf.mxu0
  %139 = vdwg.mxu0
  %v140 = vld [vmem:[%s4] sm:$0x1]
  %v142 = vlaneseq
  %v143 = vshrl.u32 %v142, 7
  %v144 = vsub.s32 0, %v143
  %v145 = vrot.slane %v140, %v144
  %v147 = vadd.f32 %v134, %v145
  %v148 = vadd.f32 %v137, %v145
  %vm149 = vcmask 56320
  %150 = vst.msk [vmem:[%s5] sm:$0xff] %vm149, %v147
  %151 = vst.msk [vmem:[%s5 + $0x8] sm:$0xff] %vm149, %v148
  // Predicated region
  $region22: #{_lambda_.14} parent=0 // pred_check
    _
  $region23: #{_lambda_.14} parent=0 // pred_check_branch
    %153 = sbr.rel (0) target = $region25
  $region24: #{_lambda_.14} parent=0 // pred_region
    _
  $region25: #{_lambda_.14} parent=0 // pred_fallthru
    _
  // Predicated region
  $region26: #{_lambda_.14} parent=0 // pred_check
    _
  $region27: #{_lambda_.14} parent=0 // pred_check_branch
    %155 = sbr.rel (0) target = $region29
  $region28: #{_lambda_.14} parent=0 // pred_region
    _
  $region29: #{_lambda_.14} parent=0 // pred_fallthru
    _

// kernel: custom-call.14
$region0: #{custom-call.14}
  %s0 = inlined_call_operand.vmem [shape: s32[8,2], index: 0, kind: output, shape index: {}]

// kernel: _lambda_.15
$region0: #{_lambda_.15}
  #allocation0 [shape = 'u32[]', space=smem, size = 0x4, offset = 0x4, fixed_abs, tag = 'smem constant byte address 0x4 - core index']
  #allocation1 [shape = 'u32[144,128]{1,0:T(1,128)}', space=vmem, size = 0x12000, scoped, tag = 'internal scratch']
  %s0 = inlined_call_operand.vmem [shape: f32[8,2,7], index: 0, kind: input, shape index: {}]
  %s1 = inlined_call_operand.vmem [shape: f32[7,7], index: 1, kind: input, shape index: {}]
  %s2 = inlined_call_operand.vmem [shape: f32[8,2,1], index: 2, kind: input, shape index: {}]
  %s3 = inlined_call_operand.vmem [shape: f32[2,1], index: 3, kind: output, shape index: {0}]
  %s4 = inlined_call_operand.vmem [shape: s32[8,2,7], index: 4, kind: output, shape index: {1}]
  %s5 = inlined_call_operand.vmem [shape: f32[2,7], index: 5, kind: output, shape index: {2}]
  %6 = xla_tuple %s3, %s4, %s5
  %s7 = sld [smem:[#allocation0]]
  $region38: #{_lambda_.15} parent=0
    _
  %s9 = ssub.s32 1, %s7
  %s10 = scalar_select 0, %s9, %s7
  // Predicated region
  $region2: #{_lambda_.15} parent=0 // pred_check
    _
  $region3: #{_lambda_.15} parent=0 // pred_check_branch
    %12 = sbr.rel (0) target = $region5
  $region4: #{_lambda_.15} parent=0 // pred_region
    _
  $region5: #{_lambda_.15} parent=0 // pred_fallthru
    _
  // Predicated region
  $region6: #{_lambda_.15} parent=0 // pred_check
    _
  $region7: #{_lambda_.15} parent=0 // pred_check_branch
    %14 = sbr.rel (0) target = $region9
  $region8: #{_lambda_.15} parent=0 // pred_region
    _
  $region9: #{_lambda_.15} parent=0 // pred_fallthru
    _
  // Predicated region
  $region10: #{_lambda_.15} parent=0 // pred_check
    _
  $region11: #{_lambda_.15} parent=0 // pred_check_branch
    %16 = sbr.rel (0) target = $region13
  $region12: #{_lambda_.15} parent=0 // pred_region
    _
  $region13: #{_lambda_.15} parent=0 // pred_fallthru
    _
  %v17 = vld [vmem:[%s1] sm:$0x7f]
  %v18 = vlaneseq
  %v19 = vand.u32 %v18, 127
  %vm20 = vcmp.eq.s32.totalorder %v19, 5
  %v21 = vsel %vm20, 0.0, -100000.0
  %v22 = vld [vmem:[%s0] sm:$0x3]
  %v23 = vld [vmem:[%s2] sm:$0x3]
  %v26 = vunpack.c.l.s4 1966171168
  %v27 = vunpack.c.0.s8 %v26
  %v28 = vlaneseq
  %v29 = vshrl.u32 %v28, 7
  %v30 = vsub.s32 %v27, %v29
  %v31 = vrot.slane %v21, %v30
  %v32 = vcombine.high %v31, %v31
  %v34 = vunpack.c.l.s4 1966171168
  %v35 = vunpack.c.0.s8 %v34
  %v36 = vlaneseq
  %v37 = vshrl.u32 %v36, 7
  %v38 = vsub.s32 %v35, %v37
  %v39 = vrot.slane %v31, %v38
  %v41 = vunpack.c.l.s4 1966171168
  %v42 = vunpack.c.0.s8 %v41
  %v43 = vlaneseq
  %v44 = vshrl.u32 %v43, 7
  %v45 = vsub.s32 %v42, %v44
  %v46 = vrot.slane %v32, %v45
  %v47 = vlaneseq
  %v48 = vshrl.u32 %v47, 7
  %v49 = vsub.s32 0, %v48
  %v50 = vrot.slane %v39, %v49
  %v51 = vlaneseq
  %v52 = vshrl.u32 %v51, 7
  %v53 = vsub.s32 0, %v52
  %v54 = vrot.slane %v46, %v53
  %v57 = vadd.f32 %v50, %v17
  %v58 = vadd.f32 %v54, %v17
  %v59 = vlaneseq
  %v60 = vshrl.u32 %v59, 7
  %v61 = vsub.s32 0, %v60
  %v62 = vrot.slane %v22, %v61
  %64 = vbcast.lane.b32.xlu0 %v62, 256
  %v65 = vpop.permute.xlu0 %64
  %v66 = vlaneseq
  %v67 = vshrl.u32 %v66, 7
  %v68 = vsub.s32 1, %v67
  %v69 = vrot.slane %v22, %v68
  %71 = vbcast.lane.b32.xlu0 %v69, 256
  %v72 = vpop.permute.xlu0 %71
  %v73 = vadd.f32 %v57, %v65
  %v74 = vadd.f32 %v58, %v72
  %vm75 = vcmask 55296
  %v76 = vsel %vm75, %v73, -inf
  %77 = vmax.xlane.f32.xlu0 %v76
  %v78 = vpop.xlane.xlu0 %77
  %v79 = vsel %vm75, %v74, -inf
  %80 = vmax.xlane.f32.xlu0 %v79
  %v81 = vpop.xlane.xlu0 %80
  %v82 = vsub.f32 %v73, %v78
  %v83 = vsub.f32 %v74, %v81
  %v84 = vmul.f32 %v82, 1.442695
  %v85 = vpow.pop %v84
  %v86 = vmul.f32 %v83, 1.442695
  %v87 = vpow.pop %v86
  %v88 = vsel %vm75, %v85, 0.0
  %89 = vadd.xlane.f32.xlu0 %v88
  %v90 = vpop.xlane.xlu0 %89
  %v91 = vsel %vm75, %v87, 0.0
  %92 = vadd.xlane.f32.xlu0 %v91
  %v93 = vpop.xlane.xlu0 %92
  %v94 = vlog2.pop %v90
  %v95 = vmul.f32 %v94, 0.6931472
  %v96 = vlog2.pop %v93
  %v97 = vmul.f32 %v96, 0.6931472
  %v98 = vadd.f32 %v78, %v95
  %v99 = vadd.f32 %v81, %v97
  %101 = vset.pattern.permute.xlu0 0
  %102 = vperm.xlu0 %101, %v23
  %v103 = vpop.permute.xlu0 %102
  %v104 = vlaneseq
  %v105 = vshrl.u32 %v104, 7
  %v106 = vsub.s32 0, %v105
  %v107 = vrot.slane %v103, %v106
  %v108 = vlaneseq
  %v109 = vshrl.u32 %v108, 7
  %v110 = vsub.s32 1, %v109
  %v111 = vrot.slane %v103, %v110
  %v114 = vmul.f32 %v98, %v107
  %v115 = vmul.f32 %v99, %v111
  %v116 = vsub.f32 1.0, %v23
  %118 = vset.pattern.permute.xlu0 0
  %119 = vperm.xlu0 %118, %v116
  %v120 = vpop.permute.xlu0 %119
  %v122 = vmul.f32 %v21, %v120
  %v124 = vlaneseq
  %v125 = vshrl.u32 %v124, 7
  %v126 = vsub.s32 0, %v125
  %v127 = vrot.slane %v122, %v126
  %129 = vbcast.lane.b32.xlu0 %v127, 256
  %v130 = vpop.permute.xlu0 %129
  %v131 = vlaneseq
  %v132 = vshrl.u32 %v131, 7
  %v133 = vsub.s32 1, %v132
  %v134 = vrot.slane %v122, %v133
  %136 = vbcast.lane.b32.xlu0 %v134, 256
  %v137 = vpop.permute.xlu0 %136
  %v140 = vadd.f32 %v114, %v130
  %v141 = vadd.f32 %v115, %v137
  %v142 = vsel %vm75, %v57, -inf
  %143 = vmax.xlane.f32.xlu0 %v142
  %v144 = vpop.xlane.xlu0 %143
  %v145 = vsel %vm75, %v58, -inf
  %146 = vmax.xlane.f32.xlu0 %v145
  %v147 = vpop.xlane.xlu0 %146
  %vm148 = vcmp.eq.f32.partialorder %v57, %v144
  %vm149 = vcmp.eq.f32.partialorder %v58, %v147
  %v150 = vsel %vm148, %v19, 7
  %v151 = vsel %vm149, %v19, 7
  %v152 = vsel %vm75, %v150, 2147483647
  %v153 = vand.u32 %v152, 65535
  %v154 = vshra.s32 %v152, 16
  %v155 = vcvt.s32.f32 %v153
  %v156 = vcvt.s32.f32 %v154
  %157 = vmin.xlane.f32.xlu0 %v156
  %v158 = vpop.xlane.xlu0 %157
  %vm159 = vcmp.eq.f32.partialorder %v156, %v158
  %v160 = vsel %vm159, %v155, inf
  %161 = vmin.xlane.f32.xlu0 %v160
  %v162 = vpop.xlane.xlu0 %161
  %v163 = vcvt.f32.s32 %v162
  %v164 = vcvt.f32.s32 %v158
  %v165 = vshll.u32 %v164, 16
  %v166 = vadd.s32 %v165, %v163
  %v167 = vsel %vm75, %v151, 2147483647
  %v168 = vand.u32 %v167, 65535
  %v169 = vshra.s32 %v167, 16
  %v170 = vcvt.s32.f32 %v168
  %v171 = vcvt.s32.f32 %v169
  %172 = vmin.xlane.f32.xlu0 %v171
  %v173 = vpop.xlane.xlu0 %172
  %vm174 = vcmp.eq.f32.partialorder %v171, %v173
  %v175 = vsel %vm174, %v170, inf
  %176 = vmin.xlane.f32.xlu0 %v175
  %v177 = vpop.xlane.xlu0 %176
  %v178 = vcvt.f32.s32 %v177
  %v179 = vcvt.f32.s32 %v173
  %v180 = vshll.u32 %v179, 16
  %v181 = vadd.s32 %v180, %v178
  %v182 = vlaneseq
  %v183 = vshrl.u32 %v182, 7
  %v184 = vsub.s32 %v19, %v183
  %v185 = vrot.slane %v166, %v184
  %v186 = vlaneseq
  %v187 = vshrl.u32 %v186, 7
  %v188 = vsub.s32 %v19, %v187
  %v189 = vrot.slane %v181, %v188
  %vm190 = vcmask 1041409
  %v191 = vsel %vm190, %v189, %v185
  %vm192 = vcmask 50176
  %193 = vst.msk [vmem:[%s4] sm:$0x3] %vm192, %v191
  %v195 = vlaneseq
  %v196 = vshrl.u32 %v195, 7
  %v197 = vsub.s32 0, %v196
  %v198 = vrot.slane %v22, %v197
  %200 = vbcast.lane.b32.xlu0 %v198, 256
  %v201 = vpop.permute.xlu0 %200
  %v202 = vlaneseq
  %v203 = vshrl.u32 %v202, 7
  %v204 = vsub.s32 1, %v203
  %v205 = vrot.slane %v22, %v204
  %207 = vbcast.lane.b32.xlu0 %v205, 256
  %v208 = vpop.permute.xlu0 %207
  %v211 = vadd.f32 %v144, %v201
  %v212 = vadd.f32 %v147, %v208
  %v213 = vmul.f32 %v211, %v107
  %v214 = vmul.f32 %v212, %v111
  %v215 = vadd.f32 %v213, %v130
  %v216 = vadd.f32 %v214, %v137
  %s217 = scalar_lea.vmem %s0, 2
  %v218 = vld [vmem:[%s217] sm:$0x3]
  %s219 = scalar_lea.vmem %s2, 2
  %v220 = vld [vmem:[%s219] sm:$0x3]
  %v222 = vlaneseq
  %v223 = vshrl.u32 %v222, 7
  %v224 = vsub.s32 0, %v223
  %v225 = vrot.slane %v17, %v224
  %227 = vbcast.lane.b32.xlu0 %v225, 256
  %v228 = vpop.permute.xlu0 %227
  %v229 = vlaneseq
  %v230 = vshrl.u32 %v229, 7
  %v231 = vsub.s32 1, %v230
  %v232 = vrot.slane %v17, %v231
  %234 = vbcast.lane.b32.xlu0 %v232, 256
  %v235 = vpop.permute.xlu0 %234
  %v236 = vlaneseq
  %v237 = vshrl.u32 %v236, 7
  %v238 = vsub.s32 2, %v237
  %v239 = vrot.slane %v17, %v238
  %241 = vbcast.lane.b32.xlu0 %v239, 256
  %v242 = vpop.permute.xlu0 %241
  %v243 = vlaneseq
  %v244 = vshrl.u32 %v243, 7
  %v245 = vsub.s32 3, %v244
  %v246 = vrot.slane %v17, %v245
  %248 = vbcast.lane.b32.xlu0 %v246, 256
  %v249 = vpop.permute.xlu0 %248
  %v250 = vlaneseq
  %v251 = vshrl.u32 %v250, 7
  %v252 = vsub.s32 4, %v251
  %v253 = vrot.slane %v17, %v252
  %255 = vbcast.lane.b32.xlu0 %v253, 256
  %v256 = vpop.permute.xlu0 %255
  %v257 = vlaneseq
  %v258 = vshrl.u32 %v257, 7
  %v259 = vsub.s32 5, %v258
  %v260 = vrot.slane %v17, %v259
  %262 = vbcast.lane.b32.xlu0 %v260, 256
  %v263 = vpop.permute.xlu0 %262
  %v264 = vlaneseq
  %v265 = vshrl.u32 %v264, 7
  %v266 = vsub.s32 6, %v265
  %v267 = vrot.slane %v17, %v266
  %269 = vbcast.lane.b32.xlu0 %v267, 256
  %v270 = vpop.permute.xlu0 %269
  %v278 = vadd.f32 %v140, %v228
  %v279 = vadd.f32 %v140, %v235
  %v280 = vadd.f32 %v140, %v242
  %v281 = vadd.f32 %v140, %v249
  %v282 = vadd.f32 %v140, %v256
  %v283 = vadd.f32 %v140, %v263
  %v284 = vadd.f32 %v140, %v270
  %v285 = vadd.f32 %v141, %v228
  %v286 = vadd.f32 %v141, %v235
  %v287 = vadd.f32 %v141, %v242
  %v288 = vadd.f32 %v141, %v249
  %v289 = vadd.f32 %v141, %v256
  %v290 = vadd.f32 %v141, %v263
  %v291 = vadd.f32 %v141, %v270
  %v292 = vlaneseq
  %v293 = vshrl.u32 %v292, 7
  %v294 = vsub.s32 0, %v293
  %v295 = vrot.slane %v218, %v294
  %297 = vbcast.lane.b32.xlu0 %v295, 256
  %v298 = vpop.permute.xlu0 %297
  %v299 = vlaneseq
  %v300 = vshrl.u32 %v299, 7
  %v301 = vsub.s32 1, %v300
  %v302 = vrot.slane %v218, %v301
  %304 = vbcast.lane.b32.xlu0 %v302, 256
  %v305 = vpop.permute.xlu0 %304
  %v308 = vlaneseq
  %v309 = vshrl.u32 %v308, 7
  %v310 = vsub.s32 0, %v309
  %v311 = vrot.slane %v298, %v310
  %v312 = vlaneseq
  %v313 = vshrl.u32 %v312, 7
  %v314 = vsub.s32 1, %v313
  %v315 = vrot.slane %v298, %v314
  %v316 = vlaneseq
  %v317 = vshrl.u32 %v316, 7
  %v318 = vsub.s32 2, %v317
  %v319 = vrot.slane %v298, %v318
  %v320 = vlaneseq
  %v321 = vshrl.u32 %v320, 7
  %v322 = vsub.s32 3, %v321
  %v323 = vrot.slane %v298, %v322
  %v324 = vlaneseq
  %v325 = vshrl.u32 %v324, 7
  %v326 = vsub.s32 4, %v325
  %v327 = vrot.slane %v298, %v326
  %v328 = vlaneseq
  %v329 = vshrl.u32 %v328, 7
  %v330 = vsub.s32 5, %v329
  %v331 = vrot.slane %v298, %v330
  %v332 = vlaneseq
  %v333 = vshrl.u32 %v332, 7
  %v334 = vsub.s32 6, %v333
  %v335 = vrot.slane %v298, %v334
  %v336 = vlaneseq
  %v337 = vshrl.u32 %v336, 7
  %v338 = vsub.s32 0, %v337
  %v339 = vrot.slane %v305, %v338
  %v340 = vlaneseq
  %v341 = vshrl.u32 %v340, 7
  %v342 = vsub.s32 1, %v341
  %v343 = vrot.slane %v305, %v342
  %v344 = vlaneseq
  %v345 = vshrl.u32 %v344, 7
  %v346 = vsub.s32 2, %v345
  %v347 = vrot.slane %v305, %v346
  %v348 = vlaneseq
  %v349 = vshrl.u32 %v348, 7
  %v350 = vsub.s32 3, %v349
  %v351 = vrot.slane %v305, %v350
  %v352 = vlaneseq
  %v353 = vshrl.u32 %v352, 7
  %v354 = vsub.s32 4, %v353
  %v355 = vrot.slane %v305, %v354
  %v356 = vlaneseq
  %v357 = vshrl.u32 %v356, 7
  %v358 = vsub.s32 5, %v357
  %v359 = vrot.slane %v305, %v358
  %v360 = vlaneseq
  %v361 = vshrl.u32 %v360, 7
  %v362 = vsub.s32 6, %v361
  %v363 = vrot.slane %v305, %v362
  %v378 = vadd.f32 %v278, %v311
  %v379 = vadd.f32 %v279, %v315
  %v380 = vadd.f32 %v280, %v319
  %v381 = vadd.f32 %v281, %v323
  %v382 = vadd.f32 %v282, %v327
  %v383 = vadd.f32 %v283, %v331
  %v384 = vadd.f32 %v284, %v335
  %v385 = vadd.f32 %v285, %v339
  %v386 = vadd.f32 %v286, %v343
  %v387 = vadd.f32 %v287, %v347
  %v388 = vadd.f32 %v288, %v351
  %v389 = vadd.f32 %v289, %v355
  %v390 = vadd.f32 %v290, %v359
  %v391 = vadd.f32 %v291, %v363
  %406 = vset.pattern.permute.xlu0 0
  %407 = vperm.xlu0 %406, %v378
  %v408 = vpop.permute.xlu0 %407
  %409 = vset.pattern.permute.xlu0 0
  %410 = vperm.xlu0 %409, %v379
  %v411 = vpop.permute.xlu0 %410
  %412 = vset.pattern.permute.xlu0 0
  %413 = vperm.xlu0 %412, %v380
  %v414 = vpop.permute.xlu0 %413
  %415 = vset.pattern.permute.xlu0 0
  %416 = vperm.xlu0 %415, %v381
  %v417 = vpop.permute.xlu0 %416
  %418 = vset.pattern.permute.xlu0 0
  %419 = vperm.xlu0 %418, %v382
  %v420 = vpop.permute.xlu0 %419
  %421 = vset.pattern.permute.xlu0 0
  %422 = vperm.xlu0 %421, %v383
  %v423 = vpop.permute.xlu0 %422
  %424 = vset.pattern.permute.xlu0 0
  %425 = vperm.xlu0 %424, %v384
  %v426 = vpop.permute.xlu0 %425
  %427 = vset.pattern.permute.xlu0 0
  %428 = vperm.xlu0 %427, %v385
  %v429 = vpop.permute.xlu0 %428
  %430 = vset.pattern.permute.xlu0 0
  %431 = vperm.xlu0 %430, %v386
  %v432 = vpop.permute.xlu0 %431
  %433 = vset.pattern.permute.xlu0 0
  %434 = vperm.xlu0 %433, %v387
  %v435 = vpop.permute.xlu0 %434
  %436 = vset.pattern.permute.xlu0 0
  %437 = vperm.xlu0 %436, %v388
  %v438 = vpop.permute.xlu0 %437
  %439 = vset.pattern.permute.xlu0 0
  %440 = vperm.xlu0 %439, %v389
  %v441 = vpop.permute.xlu0 %440
  %442 = vset.pattern.permute.xlu0 0
  %443 = vperm.xlu0 %442, %v390
  %v444 = vpop.permute.xlu0 %443
  %445 = vset.pattern.permute.xlu0 0
  %446 = vperm.xlu0 %445, %v391
  %v447 = vpop.permute.xlu0 %446
  %v448 = vlaneseq
  %v449 = vshrl.u32 %v448, 7
  %v450 = vsub.s32 %v19, %v449
  %v451 = vrot.slane %v408, %v450
  %v452 = vlaneseq
  %v453 = vshrl.u32 %v452, 7
  %v454 = vsub.s32 %v19, %v453
  %v455 = vrot.slane %v411, %v454
  %v456 = vlaneseq
  %v457 = vshrl.u32 %v456, 7
  %v458 = vsub.s32 %v19, %v457
  %v459 = vrot.slane %v414, %v458
  %v460 = vlaneseq
  %v461 = vshrl.u32 %v460, 7
  %v462 = vsub.s32 %v19, %v461
  %v463 = vrot.slane %v417, %v462
  %v464 = vlaneseq
  %v465 = vshrl.u32 %v464, 7
  %v466 = vsub.s32 %v19, %v465
  %v467 = vrot.slane %v420, %v466
  %v468 = vlaneseq
  %v469 = vshrl.u32 %v468, 7
  %v470 = vsub.s32 %v19, %v469
  %v471 = vrot.slane %v423, %v470
  %v472 = vlaneseq
  %v473 = vshrl.u32 %v472, 7
  %v474 = vsub.s32 %v19, %v473
  %v475 = vrot.slane %v426, %v474
  %v476 = vlaneseq
  %v477 = vshrl.u32 %v476, 7
  %v478 = vsub.s32 %v19, %v477
  %v479 = vrot.slane %v429, %v478
  %v480 = vlaneseq
  %v481 = vshrl.u32 %v480, 7
  %v482 = vsub.s32 %v19, %v481
  %v483 = vrot.slane %v432, %v482
  %v484 = vlaneseq
  %v485 = vshrl.u32 %v484, 7
  %v486 = vsub.s32 %v19, %v485
  %v487 = vrot.slane %v435, %v486
  %v488 = vlaneseq
  %v489 = vshrl.u32 %v488, 7
  %v490 = vsub.s32 %v19, %v489
  %v491 = vrot.slane %v438, %v490
  %v492 = vlaneseq
  %v493 = vshrl.u32 %v492, 7
  %v494 = vsub.s32 %v19, %v493
  %v495 = vrot.slane %v441, %v494
  %v496 = vlaneseq
  %v497 = vshrl.u32 %v496, 7
  %v498 = vsub.s32 %v19, %v497
  %v499 = vrot.slane %v444, %v498
  %v500 = vlaneseq
  %v501 = vshrl.u32 %v500, 7
  %v502 = vsub.s32 %v19, %v501
  %v503 = vrot.slane %v447, %v502
  %v504 = vsel %vm190, %v455, %v451
  %vm505 = vcmask 1042434
  %v506 = vsel %vm505, %v459, %v504
  %vm507 = vcmask 1043459
  %v508 = vsel %vm507, %v463, %v506
  %vm509 = vcmask 1044484
  %v510 = vsel %vm509, %v467, %v508
  %vm511 = vcmask 1045509
  %v512 = vsel %vm511, %v471, %v510
  %vm513 = vcmask 1046534
  %v514 = vsel %vm513, %v475, %v512
  %v515 = vsel %vm190, %v483, %v479
  %v516 = vsel %vm505, %v487, %v515
  %v517 = vsel %vm507, %v491, %v516
  %v518 = vsel %vm509, %v495, %v517
  %v519 = vsel %vm511, %v499, %v518
  %v520 = vsel %vm513, %v503, %v519
  %v523 = vsel %vm75, %v514, -inf
  %524 = vmax.xlane.f32.xlu0 %v523
  %v525 = vpop.xlane.xlu0 %524
  %v526 = vsel %vm75, %v520, -inf
  %527 = vmax.xlane.f32.xlu0 %v526
  %v528 = vpop.xlane.xlu0 %527
  %v531 = vlaneseq
  %v532 = vshrl.u32 %v531, 7
  %v533 = vsub.s32 0, %v532
  %v534 = vrot.slane %v525, %v533
  %v535 = vlaneseq
  %v536 = vshrl.u32 %v535, 7
  %v537 = vsub.s32 1, %v536
  %v538 = vrot.slane %v525, %v537
  %v539 = vlaneseq
  %v540 = vshrl.u32 %v539, 7
  %v541 = vsub.s32 2, %v540
  %v542 = vrot.slane %v525, %v541
  %v543 = vlaneseq
  %v544 = vshrl.u32 %v543, 7
  %v545 = vsub.s32 3, %v544
  %v546 = vrot.slane %v525, %v545
  %v547 = vlaneseq
  %v548 = vshrl.u32 %v547, 7
  %v549 = vsub.s32 4, %v548
  %v550 = vrot.slane %v525, %v549
  %v551 = vlaneseq
  %v552 = vshrl.u32 %v551, 7
  %v553 = vsub.s32 5, %v552
  %v554 = vrot.slane %v525, %v553
  %v555 = vlaneseq
  %v556 = vshrl.u32 %v555, 7
  %v557 = vsub.s32 6, %v556
  %v558 = vrot.slane %v525, %v557
  %v559 = vlaneseq
  %v560 = vshrl.u32 %v559, 7
  %v561 = vsub.s32 0, %v560
  %v562 = vrot.slane %v528, %v561
  %v563 = vlaneseq
  %v564 = vshrl.u32 %v563, 7
  %v565 = vsub.s32 1, %v564
  %v566 = vrot.slane %v528, %v565
  %v567 = vlaneseq
  %v568 = vshrl.u32 %v567, 7
  %v569 = vsub.s32 2, %v568
  %v570 = vrot.slane %v528, %v569
  %v571 = vlaneseq
  %v572 = vshrl.u32 %v571, 7
  %v573 = vsub.s32 3, %v572
  %v574 = vrot.slane %v528, %v573
  %v575 = vlaneseq
  %v576 = vshrl.u32 %v575, 7
  %v577 = vsub.s32 4, %v576
  %v578 = vrot.slane %v528, %v577
  %v579 = vlaneseq
  %v580 = vshrl.u32 %v579, 7
  %v581 = vsub.s32 5, %v580
  %v582 = vrot.slane %v528, %v581
  %v583 = vlaneseq
  %v584 = vshrl.u32 %v583, 7
  %v585 = vsub.s32 6, %v584
  %v586 = vrot.slane %v528, %v585
  %v601 = vsub.f32 %v378, %v534
  %v602 = vsub.f32 %v379, %v538
  %v603 = vsub.f32 %v380, %v542
  %v604 = vsub.f32 %v381, %v546
  %v605 = vsub.f32 %v382, %v550
  %v606 = vsub.f32 %v383, %v554
  %v607 = vsub.f32 %v384, %v558
  %v608 = vsub.f32 %v385, %v562
  %v609 = vsub.f32 %v386, %v566
  %v610 = vsub.f32 %v387, %v570
  %v611 = vsub.f32 %v388, %v574
  %v612 = vsub.f32 %v389, %v578
  %v613 = vsub.f32 %v390, %v582
  %v614 = vsub.f32 %v391, %v586
  %v615 = vmul.f32 %v601, 1.442695
  %v616 = vpow.pop %v615
  %v617 = vmul.f32 %v602, 1.442695
  %v618 = vpow.pop %v617
  %v619 = vmul.f32 %v603, 1.442695
  %v620 = vpow.pop %v619
  %v621 = vmul.f32 %v604, 1.442695
  %v622 = vpow.pop %v621
  %v623 = vmul.f32 %v605, 1.442695
  %v624 = vpow.pop %v623
  %v625 = vmul.f32 %v606, 1.442695
  %v626 = vpow.pop %v625
  %v627 = vmul.f32 %v607, 1.442695
  %v628 = vpow.pop %v627
  %v629 = vmul.f32 %v608, 1.442695
  %v630 = vpow.pop %v629
  %v631 = vmul.f32 %v609, 1.442695
  %v632 = vpow.pop %v631
  %v633 = vmul.f32 %v610, 1.442695
  %v634 = vpow.pop %v633
  %v635 = vmul.f32 %v611, 1.442695
  %v636 = vpow.pop %v635
  %v637 = vmul.f32 %v612, 1.442695
  %v638 = vpow.pop %v637
  %v639 = vmul.f32 %v613, 1.442695
  %v640 = vpow.pop %v639
  %v641 = vmul.f32 %v614, 1.442695
  %v642 = vpow.pop %v641
  %657 = vset.pattern.permute.xlu0 0
  %658 = vperm.xlu0 %657, %v616
  %v659 = vpop.permute.xlu0 %658
  %660 = vset.pattern.permute.xlu0 0
  %661 = vperm.xlu0 %660, %v618
  %v662 = vpop.permute.xlu0 %661
  %663 = vset.pattern.permute.xlu0 0
  %664 = vperm.xlu0 %663, %v620
  %v665 = vpop.permute.xlu0 %664
  %666 = vset.pattern.permute.xlu0 0
  %667 = vperm.xlu0 %666, %v622
  %v668 = vpop.permute.xlu0 %667
  %669 = vset.pattern.permute.xlu0 0
  %670 = vperm.xlu0 %669, %v624
  %v671 = vpop.permute.xlu0 %670
  %672 = vset.pattern.permute.xlu0 0
  %673 = vperm.xlu0 %672, %v626
  %v674 = vpop.permute.xlu0 %673
  %675 = vset.pattern.permute.xlu0 0
  %676 = vperm.xlu0 %675, %v628
  %v677 = vpop.permute.xlu0 %676
  %678 = vset.pattern.permute.xlu0 0
  %679 = vperm.xlu0 %678, %v630
  %v680 = vpop.permute.xlu0 %679
  %681 = vset.pattern.permute.xlu0 0
  %682 = vperm.xlu0 %681, %v632
  %v683 = vpop.permute.xlu0 %682
  %684 = vset.pattern.permute.xlu0 0
  %685 = vperm.xlu0 %684, %v634
  %v686 = vpop.permute.xlu0 %685
  %687 = vset.pattern.permute.xlu0 0
  %688 = vperm.xlu0 %687, %v636
  %v689 = vpop.permute.xlu0 %688
  %690 = vset.pattern.permute.xlu0 0
  %691 = vperm.xlu0 %690, %v638
  %v692 = vpop.permute.xlu0 %691
  %693 = vset.pattern.permute.xlu0 0
  %694 = vperm.xlu0 %693, %v640
  %v695 = vpop.permute.xlu0 %694
  %696 = vset.pattern.permute.xlu0 0
  %697 = vperm.xlu0 %696, %v642
  %v698 = vpop.permute.xlu0 %697
  %v699 = vlaneseq
  %v700 = vshrl.u32 %v699, 7
  %v701 = vsub.s32 %v19, %v700
  %v702 = vrot.slane %v659, %v701
  %v703 = vlaneseq
  %v704 = vshrl.u32 %v703, 7
  %v705 = vsub.s32 %v19, %v704
  %v706 = vrot.slane %v662, %v705
  %v707 = vlaneseq
  %v708 = vshrl.u32 %v707, 7
  %v709 = vsub.s32 %v19, %v708
  %v710 = vrot.slane %v665, %v709
  %v711 = vlaneseq
  %v712 = vshrl.u32 %v711, 7
  %v713 = vsub.s32 %v19, %v712
  %v714 = vrot.slane %v668, %v713
  %v715 = vlaneseq
  %v716 = vshrl.u32 %v715, 7
  %v717 = vsub.s32 %v19, %v716
  %v718 = vrot.slane %v671, %v717
  %v719 = vlaneseq
  %v720 = vshrl.u32 %v719, 7
  %v721 = vsub.s32 %v19, %v720
  %v722 = vrot.slane %v674, %v721
  %v723 = vlaneseq
  %v724 = vshrl.u32 %v723, 7
  %v725 = vsub.s32 %v19, %v724
  %v726 = vrot.slane %v677, %v725
  %v727 = vlaneseq
  %v728 = vshrl.u32 %v727, 7
  %v729 = vsub.s32 %v19, %v728
  %v730 = vrot.slane %v680, %v729
  %v731 = vlaneseq
  %v732 = vshrl.u32 %v731, 7
  %v733 = vsub.s32 %v19, %v732
  %v734 = vrot.slane %v683, %v733
  %v735 = vlaneseq
  %v736 = vshrl.u32 %v735, 7
  %v737 = vsub.s32 %v19, %v736
  %v738 = vrot.slane %v686, %v737
  %v739 = vlaneseq
  %v740 = vshrl.u32 %v739, 7
  %v741 = vsub.s32 %v19, %v740
  %v742 = vrot.slane %v689, %v741
  %v743 = vlaneseq
  %v744 = vshrl.u32 %v743, 7
  %v745 = vsub.s32 %v19, %v744
  %v746 = vrot.slane %v692, %v745
  %v747 = vlaneseq
  %v748 = vshrl.u32 %v747, 7
  %v749 = vsub.s32 %v19, %v748
  %v750 = vrot.slane %v695, %v749
  %v751 = vlaneseq
  %v752 = vshrl.u32 %v751, 7
  %v753 = vsub.s32 %v19, %v752
  %v754 = vrot.slane %v698, %v753
  %v755 = vsel %vm190, %v706, %v702
  %v756 = vsel %vm505, %v710, %v755
  %v757 = vsel %vm507, %v714, %v756
  %v758 = vsel %vm509, %v718, %v757
  %v759 = vsel %vm511, %v722, %v758
  %v760 = vsel %vm513, %v726, %v759
  %v761 = vsel %vm190, %v734, %v730
  %v762 = vsel %vm505, %v738, %v761
  %v763 = vsel %vm507, %v742, %v762
  %v764 = vsel %vm509, %v746, %v763
  %v765 = vsel %vm511, %v750, %v764
  %v766 = vsel %vm513, %v754, %v765
  %v769 = vsel %vm75, %v760, 0.0
  %770 = vadd.xlane.f32.xlu0 %v769
  %v771 = vpop.xlane.xlu0 %770
  %v772 = vsel %vm75, %v766, 0.0
  %773 = vadd.xlane.f32.xlu0 %v772
  %v774 = vpop.xlane.xlu0 %773
  %v775 = vlog2.pop %v771
  %v776 = vmul.f32 %v775, 0.6931472
  %v777 = vlog2.pop %v774
  %v778 = vmul.f32 %v777, 0.6931472
  %v779 = vadd.f32 %v525, %v776
  %v780 = vadd.f32 %v528, %v778
  %782 = vset.pattern.permute.xlu0 0
  %783 = vperm.xlu0 %782, %v220
  %v784 = vpop.permute.xlu0 %783
  %v785 = vlaneseq
  %v786 = vshrl.u32 %v785, 7
  %v787 = vsub.s32 0, %v786
  %v788 = vrot.slane %v784, %v787
  %v789 = vlaneseq
  %v790 = vshrl.u32 %v789, 7
  %v791 = vsub.s32 1, %v790
  %v792 = vrot.slane %v784, %v791
  %v795 = vmul.f32 %v779, %v788
  %v796 = vmul.f32 %v780, %v792
  %v797 = vsub.f32 1.0, %v220
  %799 = vset.pattern.permute.xlu0 0
  %800 = vperm.xlu0 %799, %v797
  %v801 = vpop.permute.xlu0 %800
  %v802 = vlaneseq
  %v803 = vshrl.u32 %v802, 7
  %v804 = vsub.s32 0, %v803
  %v805 = vrot.slane %v801, %v804
  %v806 = vlaneseq
  %v807 = vshrl.u32 %v806, 7
  %v808 = vsub.s32 1, %v807
  %v809 = vrot.slane %v801, %v808
  %v812 = vmul.f32 %v140, %v805
  %v813 = vmul.f32 %v141, %v809
  %v814 = vadd.f32 %v795, %v812
  %v815 = vadd.f32 %v796, %v813
  %v816 = vadd.f32 %v215, %v228
  %v817 = vadd.f32 %v215, %v235
  %v818 = vadd.f32 %v215, %v242
  %v819 = vadd.f32 %v215, %v249
  %v820 = vadd.f32 %v215, %v256
  %v821 = vadd.f32 %v215, %v263
  %v822 = vadd.f32 %v215, %v270
  %v823 = vadd.f32 %v216, %v228
  %v824 = vadd.f32 %v216, %v235
  %v825 = vadd.f32 %v216, %v242
  %v826 = vadd.f32 %v216, %v249
  %v827 = vadd.f32 %v216, %v256
  %v828 = vadd.f32 %v216, %v263
  %v829 = vadd.f32 %v216, %v270
  %844 = vset.pattern.permute.xlu0 0
  %845 = vperm.xlu0 %844, %v816
  %v846 = vpop.permute.xlu0 %845
  %847 = vset.pattern.permute.xlu0 0
  %848 = vperm.xlu0 %847, %v817
  %v849 = vpop.permute.xlu0 %848
  %850 = vset.pattern.permute.xlu0 0
  %851 = vperm.xlu0 %850, %v818
  %v852 = vpop.permute.xlu0 %851
  %853 = vset.pattern.permute.xlu0 0
  %854 = vperm.xlu0 %853, %v819
  %v855 = vpop.permute.xlu0 %854
  %856 = vset.pattern.permute.xlu0 0
  %857 = vperm.xlu0 %856, %v820
  %v858 = vpop.permute.xlu0 %857
  %859 = vset.pattern.permute.xlu0 0
  %860 = vperm.xlu0 %859, %v821
  %v861 = vpop.permute.xlu0 %860
  %862 = vset.pattern.permute.xlu0 0
  %863 = vperm.xlu0 %862, %v822
  %v864 = vpop.permute.xlu0 %863
  %865 = vset.pattern.permute.xlu0 0
  %866 = vperm.xlu0 %865, %v823
  %v867 = vpop.permute.xlu0 %866
  %868 = vset.pattern.permute.xlu0 0
  %869 = vperm.xlu0 %868, %v824
  %v870 = vpop.permute.xlu0 %869
  %871 = vset.pattern.permute.xlu0 0
  %872 = vperm.xlu0 %871, %v825
  %v873 = vpop.permute.xlu0 %872
  %874 = vset.pattern.permute.xlu0 0
  %875 = vperm.xlu0 %874, %v826
  %v876 = vpop.permute.xlu0 %875
  %877 = vset.pattern.permute.xlu0 0
  %878 = vperm.xlu0 %877, %v827
  %v879 = vpop.permute.xlu0 %878
  %880 = vset.pattern.permute.xlu0 0
  %881 = vperm.xlu0 %880, %v828
  %v882 = vpop.permute.xlu0 %881
  %883 = vset.pattern.permute.xlu0 0
  %884 = vperm.xlu0 %883, %v829
  %v885 = vpop.permute.xlu0 %884
  %v886 = vlaneseq
  %v887 = vshrl.u32 %v886, 7
  %v888 = vsub.s32 %v19, %v887
  %v889 = vrot.slane %v846, %v888
  %v890 = vlaneseq
  %v891 = vshrl.u32 %v890, 7
  %v892 = vsub.s32 %v19, %v891
  %v893 = vrot.slane %v849, %v892
  %v894 = vlaneseq
  %v895 = vshrl.u32 %v894, 7
  %v896 = vsub.s32 %v19, %v895
  %v897 = vrot.slane %v852, %v896
  %v898 = vlaneseq
  %v899 = vshrl.u32 %v898, 7
  %v900 = vsub.s32 %v19, %v899
  %v901 = vrot.slane %v855, %v900
  %v902 = vlaneseq
  %v903 = vshrl.u32 %v902, 7
  %v904 = vsub.s32 %v19, %v903
  %v905 = vrot.slane %v858, %v904
  %v906 = vlaneseq
  %v907 = vshrl.u32 %v906, 7
  %v908 = vsub.s32 %v19, %v907
  %v909 = vrot.slane %v861, %v908
  %v910 = vlaneseq
  %v911 = vshrl.u32 %v910, 7
  %v912 = vsub.s32 %v19, %v911
  %v913 = vrot.slane %v864, %v912
  %v914 = vlaneseq
  %v915 = vshrl.u32 %v914, 7
  %v916 = vsub.s32 %v19, %v915
  %v917 = vrot.slane %v867, %v916
  %v918 = vlaneseq
  %v919 = vshrl.u32 %v918, 7
  %v920 = vsub.s32 %v19, %v919
  %v921 = vrot.slane %v870, %v920
  %v922 = vlaneseq
  %v923 = vshrl.u32 %v922, 7
  %v924 = vsub.s32 %v19, %v923
  %v925 = vrot.slane %v873, %v924
  %v926 = vlaneseq
  %v927 = vshrl.u32 %v926, 7
  %v928 = vsub.s32 %v19, %v927
  %v929 = vrot.slane %v876, %v928
  %v930 = vlaneseq
  %v931 = vshrl.u32 %v930, 7
  %v932 = vsub.s32 %v19, %v931
  %v933 = vrot.slane %v879, %v932
  %v934 = vlaneseq
  %v935 = vshrl.u32 %v934, 7
  %v936 = vsub.s32 %v19, %v935
  %v937 = vrot.slane %v882, %v936
  %v938 = vlaneseq
  %v939 = vshrl.u32 %v938, 7
  %v940 = vsub.s32 %v19, %v939
  %v941 = vrot.slane %v885, %v940
  %v942 = vsel %vm190, %v893, %v889
  %v943 = vsel %vm505, %v897, %v942
  %v944 = vsel %vm507, %v901, %v943
  %v945 = vsel %vm509, %v905, %v944
  %v946 = vsel %vm511, %v909, %v945
  %v947 = vsel %vm513, %v913, %v946
  %v948 = vsel %vm190, %v921, %v917
  %v949 = vsel %vm505, %v925, %v948
  %v950 = vsel %vm507, %v929, %v949
  %v951 = vsel %vm509, %v933, %v950
  %v952 = vsel %vm511, %v937, %v951
  %v953 = vsel %vm513, %v941, %v952
  %v956 = vsel %vm75, %v947, -inf
  %957 = vmax.xlane.f32.xlu0 %v956
  %v958 = vpop.xlane.xlu0 %957
  %v959 = vsel %vm75, %v953, -inf
  %960 = vmax.xlane.f32.xlu0 %v959
  %v961 = vpop.xlane.xlu0 %960
  %v964 = vlaneseq
  %v965 = vshrl.u32 %v964, 7
  %v966 = vsub.s32 0, %v965
  %v967 = vrot.slane %v958, %v966
  %v968 = vlaneseq
  %v969 = vshrl.u32 %v968, 7
  %v970 = vsub.s32 1, %v969
  %v971 = vrot.slane %v958, %v970
  %v972 = vlaneseq
  %v973 = vshrl.u32 %v972, 7
  %v974 = vsub.s32 2, %v973
  %v975 = vrot.slane %v958, %v974
  %v976 = vlaneseq
  %v977 = vshrl.u32 %v976, 7
  %v978 = vsub.s32 3, %v977
  %v979 = vrot.slane %v958, %v978
  %v980 = vlaneseq
  %v981 = vshrl.u32 %v980, 7
  %v982 = vsub.s32 4, %v981
  %v983 = vrot.slane %v958, %v982
  %v984 = vlaneseq
  %v985 = vshrl.u32 %v984, 7
  %v986 = vsub.s32 5, %v985
  %v987 = vrot.slane %v958, %v986
  %v988 = vlaneseq
  %v989 = vshrl.u32 %v988, 7
  %v990 = vsub.s32 6, %v989
  %v991 = vrot.slane %v958, %v990
  %v992 = vlaneseq
  %v993 = vshrl.u32 %v992, 7
  %v994 = vsub.s32 0, %v993
  %v995 = vrot.slane %v961, %v994
  %v996 = vlaneseq
  %v997 = vshrl.u32 %v996, 7
  %v998 = vsub.s32 1, %v997
  %v999 = vrot.slane %v961, %v998
  %v1000 = vlaneseq
  %v1001 = vshrl.u32 %v1000, 7
  %v1002 = vsub.s32 2, %v1001
  %v1003 = vrot.slane %v961, %v1002
  %v1004 = vlaneseq
  %v1005 = vshrl.u32 %v1004, 7
  %v1006 = vsub.s32 3, %v1005
  %v1007 = vrot.slane %v961, %v1006
  %v1008 = vlaneseq
  %v1009 = vshrl.u32 %v1008, 7
  %v1010 = vsub.s32 4, %v1009
  %v1011 = vrot.slane %v961, %v1010
  %v1012 = vlaneseq
  %v1013 = vshrl.u32 %v1012, 7
  %v1014 = vsub.s32 5, %v1013
  %v1015 = vrot.slane %v961, %v1014
  %v1016 = vlaneseq
  %v1017 = vshrl.u32 %v1016, 7
  %v1018 = vsub.s32 6, %v1017
  %v1019 = vrot.slane %v961, %v1018
  %vm1034 = vcmp.eq.f32.partialorder %v816, %v967
  %vm1035 = vcmp.eq.f32.partialorder %v817, %v971
  %vm1036 = vcmp.eq.f32.partialorder %v818, %v975
  %vm1037 = vcmp.eq.f32.partialorder %v819, %v979
  %vm1038 = vcmp.eq.f32.partialorder %v820, %v983
  %vm1039 = vcmp.eq.f32.partialorder %v821, %v987
  %vm1040 = vcmp.eq.f32.partialorder %v822, %v991
  %vm1041 = vcmp.eq.f32.partialorder %v823, %v995
  %vm1042 = vcmp.eq.f32.partialorder %v824, %v999
  %vm1043 = vcmp.eq.f32.partialorder %v825, %v1003
  %vm1044 = vcmp.eq.f32.partialorder %v826, %v1007
  %vm1045 = vcmp.eq.f32.partialorder %v827, %v1011
  %vm1046 = vcmp.eq.f32.partialorder %v828, %v1015
  %vm1047 = vcmp.eq.f32.partialorder %v829, %v1019
  %1049 = vbcast.lane.b32.xlu0 %v19, 256
  %v1050 = vpop.permute.xlu0 %1049
  %v1051 = vsel %vm1034, %v1050, 7
  %v1052 = vsel %vm1035, %v1050, 7
  %v1053 = vsel %vm1036, %v1050, 7
  %v1054 = vsel %vm1037, %v1050, 7
  %v1055 = vsel %vm1038, %v1050, 7
  %v1056 = vsel %vm1039, %v1050, 7
  %v1057 = vsel %vm1040, %v1050, 7
  %v1058 = vsel %vm1041, %v1050, 7
  %v1059 = vsel %vm1042, %v1050, 7
  %v1060 = vsel %vm1043, %v1050, 7
  %v1061 = vsel %vm1044, %v1050, 7
  %v1062 = vsel %vm1045, %v1050, 7
  %v1063 = vsel %vm1046, %v1050, 7
  %v1064 = vsel %vm1047, %v1050, 7
  %1065 = vset.pattern.permute.xlu0 0
  %1066 = vperm.xlu0 %1065, %v1051
  %v1067 = vpop.permute.xlu0 %1066
  %1068 = vset.pattern.permute.xlu0 0
  %1069 = vperm.xlu0 %1068, %v1052
  %v1070 = vpop.permute.xlu0 %1069
  %1071 = vset.pattern.permute.xlu0 0
  %1072 = vperm.xlu0 %1071, %v1053
  %v1073 = vpop.permute.xlu0 %1072
  %1074 = vset.pattern.permute.xlu0 0
  %1075 = vperm.xlu0 %1074, %v1054
  %v1076 = vpop.permute.xlu0 %1075
  %1077 = vset.pattern.permute.xlu0 0
  %1078 = vperm.xlu0 %1077, %v1055
  %v1079 = vpop.permute.xlu0 %1078
  %1080 = vset.pattern.permute.xlu0 0
  %1081 = vperm.xlu0 %1080, %v1056
  %v1082 = vpop.permute.xlu0 %1081
  %1083 = vset.pattern.permute.xlu0 0
  %1084 = vperm.xlu0 %1083, %v1057
  %v1085 = vpop.permute.xlu0 %1084
  %1086 = vset.pattern.permute.xlu0 0
  %1087 = vperm.xlu0 %1086, %v1058
  %v1088 = vpop.permute.xlu0 %1087
  %1089 = vset.pattern.permute.xlu0 0
  %1090 = vperm.xlu0 %1089, %v1059
  %v1091 = vpop.permute.xlu0 %1090
  %1092 = vset.pattern.permute.xlu0 0
  %1093 = vperm.xlu0 %1092, %v1060
  %v1094 = vpop.permute.xlu0 %1093
  %1095 = vset.pattern.permute.xlu0 0
  %1096 = vperm.xlu0 %1095, %v1061
  %v1097 = vpop.permute.xlu0 %1096
  %1098 = vset.pattern.permute.xlu0 0
  %1099 = vperm.xlu0 %1098, %v1062
  %v1100 = vpop.permute.xlu0 %1099
  %1101 = vset.pattern.permute.xlu0 0
  %1102 = vperm.xlu0 %1101, %v1063
  %v1103 = vpop.permute.xlu0 %1102
  %1104 = vset.pattern.permute.xlu0 0
  %1105 = vperm.xlu0 %1104, %v1064
  %v1106 = vpop.permute.xlu0 %1105
  %v1107 = vlaneseq
  %v1108 = vshrl.u32 %v1107, 7
  %v1109 = vsub.s32 %v19, %v1108
  %v1110 = vrot.slane %v1067, %v1109
  %v1111 = vlaneseq
  %v1112 = vshrl.u32 %v1111, 7
  %v1113 = vsub.s32 %v19, %v1112
  %v1114 = vrot.slane %v1070, %v1113
  %v1115 = vlaneseq
  %v1116 = vshrl.u32 %v1115, 7
  %v1117 = vsub.s32 %v19, %v1116
  %v1118 = vrot.slane %v1073, %v1117
  %v1119 = vlaneseq
  %v1120 = vshrl.u32 %v1119, 7
  %v1121 = vsub.s32 %v19, %v1120
  %v1122 = vrot.slane %v1076, %v1121
  %v1123 = vlaneseq
  %v1124 = vshrl.u32 %v1123, 7
  %v1125 = vsub.s32 %v19, %v1124
  %v1126 = vrot.slane %v1079, %v1125
  %v1127 = vlaneseq
  %v1128 = vshrl.u32 %v1127, 7
  %v1129 = vsub.s32 %v19, %v1128
  %v1130 = vrot.slane %v1082, %v1129
  %v1131 = vlaneseq
  %v1132 = vshrl.u32 %v1131, 7
  %v1133 = vsub.s32 %v19, %v1132
  %v1134 = vrot.slane %v1085, %v1133
  %v1135 = vlaneseq
  %v1136 = vshrl.u32 %v1135, 7
  %v1137 = vsub.s32 %v19, %v1136
  %v1138 = vrot.slane %v1088, %v1137
  %v1139 = vlaneseq
  %v1140 = vshrl.u32 %v1139, 7
  %v1141 = vsub.s32 %v19, %v1140
  %v1142 = vrot.slane %v1091, %v1141
  %v1143 = vlaneseq
  %v1144 = vshrl.u32 %v1143, 7
  %v1145 = vsub.s32 %v19, %v1144
  %v1146 = vrot.slane %v1094, %v1145
  %v1147 = vlaneseq
  %v1148 = vshrl.u32 %v1147, 7
  %v1149 = vsub.s32 %v19, %v1148
  %v1150 = vrot.slane %v1097, %v1149
  %v1151 = vlaneseq
  %v1152 = vshrl.u32 %v1151, 7
  %v1153 = vsub.s32 %v19, %v1152
  %v1154 = vrot.slane %v1100, %v1153
  %v1155 = vlaneseq
  %v1156 = vshrl.u32 %v1155, 7
  %v1157 = vsub.s32 %v19, %v1156
  %v1158 = vrot.slane %v1103, %v1157
  %v1159 = vlaneseq
  %v1160 = vshrl.u32 %v1159, 7
  %v1161 = vsub.s32 %v19, %v1160
  %v1162 = vrot.slane %v1106, %v1161
  %v1163 = vsel %vm190, %v1114, %v1110
  %v1164 = vsel %vm505, %v1118, %v1163
  %v1165 = vsel %vm507, %v1122, %v1164
  %v1166 = vsel %vm509, %v1126, %v1165
  %v1167 = vsel %vm511, %v1130, %v1166
  %v1168 = vsel %vm513, %v1134, %v1167
  %v1169 = vsel %vm190, %v1142, %v1138
  %v1170 = vsel %vm505, %v1146, %v1169
  %v1171 = vsel %vm507, %v1150, %v1170
  %v1172 = vsel %vm509, %v1154, %v1171
  %v1173 = vsel %vm511, %v1158, %v1172
  %v1174 = vsel %vm513, %v1162, %v1173
  %v1175 = vsel %vm75, %v1168, 2147483647
  %v1176 = vand.u32 %v1175, 65535
  %v1177 = vshra.s32 %v1175, 16
  %v1178 = vcvt.s32.f32 %v1176
  %v1179 = vcvt.s32.f32 %v1177
  %1180 = vmin.xlane.f32.xlu0 %v1179
  %v1181 = vpop.xlane.xlu0 %1180
  %vm1182 = vcmp.eq.f32.partialorder %v1179, %v1181
  %v1183 = vsel %vm1182, %v1178, inf
  %1184 = vmin.xlane.f32.xlu0 %v1183
  %v1185 = vpop.xlane.xlu0 %1184
  %v1186 = vcvt.f32.s32 %v1185
  %v1187 = vcvt.f32.s32 %v1181
  %v1188 = vshll.u32 %v1187, 16
  %v1189 = vadd.s32 %v1188, %v1186
  %v1190 = vsel %vm75, %v1174, 2147483647
  %v1191 = vand.u32 %v1190, 65535
  %v1192 = vshra.s32 %v1190, 16
  %v1193 = vcvt.s32.f32 %v1191
  %v1194 = vcvt.s32.f32 %v1192
  %1195 = vmin.xlane.f32.xlu0 %v1194
  %v1196 = vpop.xlane.xlu0 %1195
  %vm1197 = vcmp.eq.f32.partialorder %v1194, %v1196
  %v1198 = vsel %vm1197, %v1193, inf
  %1199 = vmin.xlane.f32.xlu0 %v1198
  %v1200 = vpop.xlane.xlu0 %1199
  %v1201 = vcvt.f32.s32 %v1200
  %v1202 = vcvt.f32.s32 %v1196
  %v1203 = vshll.u32 %v1202, 16
  %v1204 = vadd.s32 %v1203, %v1201
  %v1205 = vlaneseq
  %v1206 = vshrl.u32 %v1205, 7
  %v1207 = vsub.s32 %v19, %v1206
  %v1208 = vrot.slane %v1189, %v1207
  %v1209 = vlaneseq
  %v1210 = vshrl.u32 %v1209, 7
  %v1211 = vsub.s32 %v19, %v1210
  %v1212 = vrot.slane %v1204, %v1211
  %v1213 = vsel %vm190, %v1212, %v1208
  %s1214 = scalar_lea.vmem %s4, 2
  %1215 = vst.msk [vmem:[%s1214] sm:$0x3] %vm192, %v1213
  %v1217 = vlaneseq
  %v1218 = vshrl.u32 %v1217, 7
  %v1219 = vsub.s32 0, %v1218
  %v1220 = vrot.slane %v218, %v1219
  %1222 = vbcast.lane.b32.xlu0 %v1220, 256
  %v1223 = vpop.permute.xlu0 %1222
  %v1224 = vlaneseq
  %v1225 = vshrl.u32 %v1224, 7
  %v1226 = vsub.s32 1, %v1225
  %v1227 = vrot.slane %v218, %v1226
  %1229 = vbcast.lane.b32.xlu0 %v1227, 256
  %v1230 = vpop.permute.xlu0 %1229
  %v1233 = vadd.f32 %v958, %v1223
  %v1234 = vadd.f32 %v961, %v1230
  %v1235 = vmul.f32 %v1233, %v788
  %v1236 = vmul.f32 %v1234, %v792
  %v1237 = vmul.f32 %v215, %v805
  %v1238 = vmul.f32 %v216, %v809
  %v1239 = vadd.f32 %v1235, %v1237
  %v1240 = vadd.f32 %v1236, %v1238
  %s1241 = scalar_lea.vmem %s0, 4
  %v1242 = vld [vmem:[%s1241] sm:$0x3]
  %s1243 = scalar_lea.vmem %s2, 4
  %v1244 = vld [vmem:[%s1243] sm:$0x3]
  %v1245 = vadd.f32 %v814, %v228
  %v1246 = vadd.f32 %v814, %v235
  %v1247 = vadd.f32 %v814, %v242
  %v1248 = vadd.f32 %v814, %v249
  %v1249 = vadd.f32 %v814, %v256
  %v1250 = vadd.f32 %v814, %v263
  %v1251 = vadd.f32 %v814, %v270
  %v1252 = vadd.f32 %v815, %v228
  %v1253 = vadd.f32 %v815, %v235
  %v1254 = vadd.f32 %v815, %v242
  %v1255 = vadd.f32 %v815, %v249
  %v1256 = vadd.f32 %v815, %v256
  %v1257 = vadd.f32 %v815, %v263
  %v1258 = vadd.f32 %v815, %v270
  %v1259 = vlaneseq
  %v1260 = vshrl.u32 %v1259, 7
  %v1261 = vsub.s32 0, %v1260
  %v1262 = vrot.slane %v1242, %v1261
  %1264 = vbcast.lane.b32.xlu0 %v1262, 256
  %v1265 = vpop.permute.xlu0 %1264
  %v1266 = vlaneseq
  %v1267 = vshrl.u32 %v1266, 7
  %v1268 = vsub.s32 1, %v1267
  %v1269 = vrot.slane %v1242, %v1268
  %1271 = vbcast.lane.b32.xlu0 %v1269, 256
  %v1272 = vpop.permute.xlu0 %1271
  %v1275 = vlaneseq
  %v1276 = vshrl.u32 %v1275, 7
  %v1277 = vsub.s32 0, %v1276
  %v1278 = vrot.slane %v1265, %v1277
  %v1279 = vlaneseq
  %v1280 = vshrl.u32 %v1279, 7
  %v1281 = vsub.s32 1, %v1280
  %v1282 = vrot.slane %v1265, %v1281
  %v1283 = vlaneseq
  %v1284 = vshrl.u32 %v1283, 7
  %v1285 = vsub.s32 2, %v1284
  %v1286 = vrot.slane %v1265, %v1285
  %v1287 = vlaneseq
  %v1288 = vshrl.u32 %v1287, 7
  %v1289 = vsub.s32 3, %v1288
  %v1290 = vrot.slane %v1265, %v1289
  %v1291 = vlaneseq
  %v1292 = vshrl.u32 %v1291, 7
  %v1293 = vsub.s32 4, %v1292
  %v1294 = vrot.slane %v1265, %v1293
  %v1295 = vlaneseq
  %v1296 = vshrl.u32 %v1295, 7
  %v1297 = vsub.s32 5, %v1296
  %v1298 = vrot.slane %v1265, %v1297
  %v1299 = vlaneseq
  %v1300 = vshrl.u32 %v1299, 7
  %v1301 = vsub.s32 6, %v1300
  %v1302 = vrot.slane %v1265, %v1301
  %v1303 = vlaneseq
  %v1304 = vshrl.u32 %v1303, 7
  %v1305 = vsub.s32 0, %v1304
  %v1306 = vrot.slane %v1272, %v1305
  %v1307 = vlaneseq
  %v1308 = vshrl.u32 %v1307, 7
  %v1309 = vsub.s32 1, %v1308
  %v1310 = vrot.slane %v1272, %v1309
  %v1311 = vlaneseq
  %v1312 = vshrl.u32 %v1311, 7
  %v1313 = vsub.s32 2, %v1312
  %v1314 = vrot.slane %v1272, %v1313
  %v1315 = vlaneseq
  %v1316 = vshrl.u32 %v1315, 7
  %v1317 = vsub.s32 3, %v1316
  %v1318 = vrot.slane %v1272, %v1317
  %v1319 = vlaneseq
  %v1320 = vshrl.u32 %v1319, 7
  %v1321 = vsub.s32 4, %v1320
  %v1322 = vrot.slane %v1272, %v1321
  %v1323 = vlaneseq
  %v1324 = vshrl.u32 %v1323, 7
  %v1325 = vsub.s32 5, %v1324
  %v1326 = vrot.slane %v1272, %v1325
  %v1327 = vlaneseq
  %v1328 = vshrl.u32 %v1327, 7
  %v1329 = vsub.s32 6, %v1328
  %v1330 = vrot.slane %v1272, %v1329
  %v1345 = vadd.f32 %v1245, %v1278
  %v1346 = vadd.f32 %v1246, %v1282
  %v1347 = vadd.f32 %v1247, %v1286
  %v1348 = vadd.f32 %v1248, %v1290
  %v1349 = vadd.f32 %v1249, %v1294
  %v1350 = vadd.f32 %v1250, %v1298
  %v1351 = vadd.f32 %v1251, %v1302
  %v1352 = vadd.f32 %v1252, %v1306
  %v1353 = vadd.f32 %v1253, %v1310
  %v1354 = vadd.f32 %v1254, %v1314
  %v1355 = vadd.f32 %v1255, %v1318
  %v1356 = vadd.f32 %v1256, %v1322
  %v1357 = vadd.f32 %v1257, %v1326
  %v1358 = vadd.f32 %v1258, %v1330
  %1373 = vset.pattern.permute.xlu0 0
  %1374 = vperm.xlu0 %1373, %v1345
  %v1375 = vpop.permute.xlu0 %1374
  %1376 = vset.pattern.permute.xlu0 0
  %1377 = vperm.xlu0 %1376, %v1346
  %v1378 = vpop.permute.xlu0 %1377
  %1379 = vset.pattern.permute.xlu0 0
  %1380 = vperm.xlu0 %1379, %v1347
  %v1381 = vpop.permute.xlu0 %1380
  %1382 = vset.pattern.permute.xlu0 0
  %1383 = vperm.xlu0 %1382, %v1348
  %v1384 = vpop.permute.xlu0 %1383
  %1385 = vset.pattern.permute.xlu0 0
  %1386 = vperm.xlu0 %1385, %v1349
  %v1387 = vpop.permute.xlu0 %1386
  %1388 = vset.pattern.permute.xlu0 0
  %1389 = vperm.xlu0 %1388, %v1350
  %v1390 = vpop.permute.xlu0 %1389
  %1391 = vset.pattern.permute.xlu0 0
  %1392 = vperm.xlu0 %1391, %v1351
  %v1393 = vpop.permute.xlu0 %1392
  %1394 = vset.pattern.permute.xlu0 0
  %1395 = vperm.xlu0 %1394, %v1352
  %v1396 = vpop.permute.xlu0 %1395
  %1397 = vset.pattern.permute.xlu0 0
  %1398 = vperm.xlu0 %1397, %v1353
  %v1399 = vpop.permute.xlu0 %1398
  %1400 = vset.pattern.permute.xlu0 0
  %1401 = vperm.xlu0 %1400, %v1354
  %v1402 = vpop.permute.xlu0 %1401
  %1403 = vset.pattern.permute.xlu0 0
  %1404 = vperm.xlu0 %1403, %v1355
  %v1405 = vpop.permute.xlu0 %1404
  %1406 = vset.pattern.permute.xlu0 0
  %1407 = vperm.xlu0 %1406, %v1356
  %v1408 = vpop.permute.xlu0 %1407
  %1409 = vset.pattern.permute.xlu0 0
  %1410 = vperm.xlu0 %1409, %v1357
  %v1411 = vpop.permute.xlu0 %1410
  %1412 = vset.pattern.permute.xlu0 0
  %1413 = vperm.xlu0 %1412, %v1358
  %v1414 = vpop.permute.xlu0 %1413
  %v1415 = vlaneseq
  %v1416 = vshrl.u32 %v1415, 7
  %v1417 = vsub.s32 %v19, %v1416
  %v1418 = vrot.slane %v1375, %v1417
  %v1419 = vlaneseq
  %v1420 = vshrl.u32 %v1419, 7
  %v1421 = vsub.s32 %v19, %v1420
  %v1422 = vrot.slane %v1378, %v1421
  %v1423 = vlaneseq
  %v1424 = vshrl.u32 %v1423, 7
  %v1425 = vsub.s32 %v19, %v1424
  %v1426 = vrot.slane %v1381, %v1425
  %v1427 = vlaneseq
  %v1428 = vshrl.u32 %v1427, 7
  %v1429 = vsub.s32 %v19, %v1428
  %v1430 = vrot.slane %v1384, %v1429
  %v1431 = vlaneseq
  %v1432 = vshrl.u32 %v1431, 7
  %v1433 = vsub.s32 %v19, %v1432
  %v1434 = vrot.slane %v1387, %v1433
  %v1435 = vlaneseq
  %v1436 = vshrl.u32 %v1435, 7
  %v1437 = vsub.s32 %v19, %v1436
  %v1438 = vrot.slane %v1390, %v1437
  %v1439 = vlaneseq
  %v1440 = vshrl.u32 %v1439, 7
  %v1441 = vsub.s32 %v19, %v1440
  %v1442 = vrot.slane %v1393, %v1441
  %v1443 = vlaneseq
  %v1444 = vshrl.u32 %v1443, 7
  %v1445 = vsub.s32 %v19, %v1444
  %v1446 = vrot.slane %v1396, %v1445
  %v1447 = vlaneseq
  %v1448 = vshrl.u32 %v1447, 7
  %v1449 = vsub.s32 %v19, %v1448
  %v1450 = vrot.slane %v1399, %v1449
  %v1451 = vlaneseq
  %v1452 = vshrl.u32 %v1451, 7
  %v1453 = vsub.s32 %v19, %v1452
  %v1454 = vrot.slane %v1402, %v1453
  %v1455 = vlaneseq
  %v1456 = vshrl.u32 %v1455, 7
  %v1457 = vsub.s32 %v19, %v1456
  %v1458 = vrot.slane %v1405, %v1457
  %v1459 = vlaneseq
  %v1460 = vshrl.u32 %v1459, 7
  %v1461 = vsub.s32 %v19, %v1460
  %v1462 = vrot.slane %v1408, %v1461
  %v1463 = vlaneseq
  %v1464 = vshrl.u32 %v1463, 7
  %v1465 = vsub.s32 %v19, %v1464
  %v1466 = vrot.slane %v1411, %v1465
  %v1467 = vlaneseq
  %v1468 = vshrl.u32 %v1467, 7
  %v1469 = vsub.s32 %v19, %v1468
  %v1470 = vrot.slane %v1414, %v1469
  %v1471 = vsel %vm190, %v1422, %v1418
  %v1472 = vsel %vm505, %v1426, %v1471
  %v1473 = vsel %vm507, %v1430, %v1472
  %v1474 = vsel %vm509, %v1434, %v1473
  %v1475 = vsel %vm511, %v1438, %v1474
  %v1476 = vsel %vm513, %v1442, %v1475
  %v1477 = vsel %vm190, %v1450, %v1446
  %v1478 = vsel %vm505, %v1454, %v1477
  %v1479 = vsel %vm507, %v1458, %v1478
  %v1480 = vsel %vm509, %v1462, %v1479
  %v1481 = vsel %vm511, %v1466, %v1480
  %v1482 = vsel %vm513, %v1470, %v1481
  %v1485 = vsel %vm75, %v1476, -inf
  %1486 = vmax.xlane.f32.xlu0 %v1485
  %v1487 = vpop.xlane.xlu0 %1486
  %v1488 = vsel %vm75, %v1482, -inf
  %1489 = vmax.xlane.f32.xlu0 %v1488
  %v1490 = vpop.xlane.xlu0 %1489
  %v1493 = vlaneseq
  %v1494 = vshrl.u32 %v1493, 7
  %v1495 = vsub.s32 0, %v1494
  %v1496 = vrot.slane %v1487, %v1495
  %v1497 = vlaneseq
  %v1498 = vshrl.u32 %v1497, 7
  %v1499 = vsub.s32 1, %v1498
  %v1500 = vrot.slane %v1487, %v1499
  %v1501 = vlaneseq
  %v1502 = vshrl.u32 %v1501, 7
  %v1503 = vsub.s32 2, %v1502
  %v1504 = vrot.slane %v1487, %v1503
  %v1505 = vlaneseq
  %v1506 = vshrl.u32 %v1505, 7
  %v1507 = vsub.s32 3, %v1506
  %v1508 = vrot.slane %v1487, %v1507
  %v1509 = vlaneseq
  %v1510 = vshrl.u32 %v1509, 7
  %v1511 = vsub.s32 4, %v1510
  %v1512 = vrot.slane %v1487, %v1511
  %v1513 = vlaneseq
  %v1514 = vshrl.u32 %v1513, 7
  %v1515 = vsub.s32 5, %v1514
  %v1516 = vrot.slane %v1487, %v1515
  %v1517 = vlaneseq
  %v1518 = vshrl.u32 %v1517, 7
  %v1519 = vsub.s32 6, %v1518
  %v1520 = vrot.slane %v1487, %v1519
  %v1521 = vlaneseq
  %v1522 = vshrl.u32 %v1521, 7
  %v1523 = vsub.s32 0, %v1522
  %v1524 = vrot.slane %v1490, %v1523
  %v1525 = vlaneseq
  %v1526 = vshrl.u32 %v1525, 7
  %v1527 = vsub.s32 1, %v1526
  %v1528 = vrot.slane %v1490, %v1527
  %v1529 = vlaneseq
  %v1530 = vshrl.u32 %v1529, 7
  %v1531 = vsub.s32 2, %v1530
  %v1532 = vrot.slane %v1490, %v1531
  %v1533 = vlaneseq
  %v1534 = vshrl.u32 %v1533, 7
  %v1535 = vsub.s32 3, %v1534
  %v1536 = vrot.slane %v1490, %v1535
  %v1537 = vlaneseq
  %v1538 = vshrl.u32 %v1537, 7
  %v1539 = vsub.s32 4, %v1538
  %v1540 = vrot.slane %v1490, %v1539
  %v1541 = vlaneseq
  %v1542 = vshrl.u32 %v1541, 7
  %v1543 = vsub.s32 5, %v1542
  %v1544 = vrot.slane %v1490, %v1543
  %v1545 = vlaneseq
  %v1546 = vshrl.u32 %v1545, 7
  %v1547 = vsub.s32 6, %v1546
  %v1548 = vrot.slane %v1490, %v1547
  %v1563 = vsub.f32 %v1345, %v1496
  %v1564 = vsub.f32 %v1346, %v1500
  %v1565 = vsub.f32 %v1347, %v1504
  %v1566 = vsub.f32 %v1348, %v1508
  %v1567 = vsub.f32 %v1349, %v1512
  %v1568 = vsub.f32 %v1350, %v1516
  %v1569 = vsub.f32 %v1351, %v1520
  %v1570 = vsub.f32 %v1352, %v1524
  %v1571 = vsub.f32 %v1353, %v1528
  %v1572 = vsub.f32 %v1354, %v1532
  %v1573 = vsub.f32 %v1355, %v1536
  %v1574 = vsub.f32 %v1356, %v1540
  %v1575 = vsub.f32 %v1357, %v1544
  %v1576 = vsub.f32 %v1358, %v1548
  %v1577 = vmul.f32 %v1563, 1.442695
  %v1578 = vpow.pop %v1577
  %v1579 = vmul.f32 %v1564, 1.442695
  %v1580 = vpow.pop %v1579
  %v1581 = vmul.f32 %v1565, 1.442695
  %v1582 = vpow.pop %v1581
  %v1583 = vmul.f32 %v1566, 1.442695
  %v1584 = vpow.pop %v1583
  %v1585 = vmul.f32 %v1567, 1.442695
  %v1586 = vpow.pop %v1585
  %v1587 = vmul.f32 %v1568, 1.442695
  %v1588 = vpow.pop %v1587
  %v1589 = vmul.f32 %v1569, 1.442695
  %v1590 = vpow.pop %v1589
  %v1591 = vmul.f32 %v1570, 1.442695
  %v1592 = vpow.pop %v1591
  %v1593 = vmul.f32 %v1571, 1.442695
  %v1594 = vpow.pop %v1593
  %v1595 = vmul.f32 %v1572, 1.442695
  %v1596 = vpow.pop %v1595
  %v1597 = vmul.f32 %v1573, 1.442695
  %v1598 = vpow.pop %v1597
  %v1599 = vmul.f32 %v1574, 1.442695
  %v1600 = vpow.pop %v1599
  %v1601 = vmul.f32 %v1575, 1.442695
  %v1602 = vpow.pop %v1601
  %v1603 = vmul.f32 %v1576, 1.442695
  %v1604 = vpow.pop %v1603
  %1619 = vset.pattern.permute.xlu0 0
  %1620 = vperm.xlu0 %1619, %v1578
  %v1621 = vpop.permute.xlu0 %1620
  %1622 = vset.pattern.permute.xlu0 0
  %1623 = vperm.xlu0 %1622, %v1580
  %v1624 = vpop.permute.xlu0 %1623
  %1625 = vset.pattern.permute.xlu0 0
  %1626 = vperm.xlu0 %1625, %v1582
  %v1627 = vpop.permute.xlu0 %1626
  %1628 = vset.pattern.permute.xlu0 0
  %1629 = vperm.xlu0 %1628, %v1584
  %v1630 = vpop.permute.xlu0 %1629
  %1631 = vset.pattern.permute.xlu0 0
  %1632 = vperm.xlu0 %1631, %v1586
  %v1633 = vpop.permute.xlu0 %1632
  %1634 = vset.pattern.permute.xlu0 0
  %1635 = vperm.xlu0 %1634, %v1588
  %v1636 = vpop.permute.xlu0 %1635
  %1637 = vset.pattern.permute.xlu0 0
  %1638 = vperm.xlu0 %1637, %v1590
  %v1639 = vpop.permute.xlu0 %1638
  %1640 = vset.pattern.permute.xlu0 0
  %1641 = vperm.xlu0 %1640, %v1592
  %v1642 = vpop.permute.xlu0 %1641
  %1643 = vset.pattern.permute.xlu0 0
  %1644 = vperm.xlu0 %1643, %v1594
  %v1645 = vpop.permute.xlu0 %1644
  %1646 = vset.pattern.permute.xlu0 0
  %1647 = vperm.xlu0 %1646, %v1596
  %v1648 = vpop.permute.xlu0 %1647
  %1649 = vset.pattern.permute.xlu0 0
  %1650 = vperm.xlu0 %1649, %v1598
  %v1651 = vpop.permute.xlu0 %1650
  %1652 = vset.pattern.permute.xlu0 0
  %1653 = vperm.xlu0 %1652, %v1600
  %v1654 = vpop.permute.xlu0 %1653
  %1655 = vset.pattern.permute.xlu0 0
  %1656 = vperm.xlu0 %1655, %v1602
  %v1657 = vpop.permute.xlu0 %1656
  %1658 = vset.pattern.permute.xlu0 0
  %1659 = vperm.xlu0 %1658, %v1604
  %v1660 = vpop.permute.xlu0 %1659
  %v1661 = vlaneseq
  %v1662 = vshrl.u32 %v1661, 7
  %v1663 = vsub.s32 %v19, %v1662
  %v1664 = vrot.slane %v1621, %v1663
  %v1665 = vlaneseq
  %v1666 = vshrl.u32 %v1665, 7
  %v1667 = vsub.s32 %v19, %v1666
  %v1668 = vrot.slane %v1624, %v1667
  %v1669 = vlaneseq
  %v1670 = vshrl.u32 %v1669, 7
  %v1671 = vsub.s32 %v19, %v1670
  %v1672 = vrot.slane %v1627, %v1671
  %v1673 = vlaneseq
  %v1674 = vshrl.u32 %v1673, 7
  %v1675 = vsub.s32 %v19, %v1674
  %v1676 = vrot.slane %v1630, %v1675
  %v1677 = vlaneseq
  %v1678 = vshrl.u32 %v1677, 7
  %v1679 = vsub.s32 %v19, %v1678
  %v1680 = vrot.slane %v1633, %v1679
  %v1681 = vlaneseq
  %v1682 = vshrl.u32 %v1681, 7
  %v1683 = vsub.s32 %v19, %v1682
  %v1684 = vrot.slane %v1636, %v1683
  %v1685 = vlaneseq
  %v1686 = vshrl.u32 %v1685, 7
  %v1687 = vsub.s32 %v19, %v1686
  %v1688 = vrot.slane %v1639, %v1687
  %v1689 = vlaneseq
  %v1690 = vshrl.u32 %v1689, 7
  %v1691 = vsub.s32 %v19, %v1690
  %v1692 = vrot.slane %v1642, %v1691
  %v1693 = vlaneseq
  %v1694 = vshrl.u32 %v1693, 7
  %v1695 = vsub.s32 %v19, %v1694
  %v1696 = vrot.slane %v1645, %v1695
  %v1697 = vlaneseq
  %v1698 = vshrl.u32 %v1697, 7
  %v1699 = vsub.s32 %v19, %v1698
  %v1700 = vrot.slane %v1648, %v1699
  %v1701 = vlaneseq
  %v1702 = vshrl.u32 %v1701, 7
  %v1703 = vsub.s32 %v19, %v1702
  %v1704 = vrot.slane %v1651, %v1703
  %v1705 = vlaneseq
  %v1706 = vshrl.u32 %v1705, 7
  %v1707 = vsub.s32 %v19, %v1706
  %v1708 = vrot.slane %v1654, %v1707
  %v1709 = vlaneseq
  %v1710 = vshrl.u32 %v1709, 7
  %v1711 = vsub.s32 %v19, %v1710
  %v1712 = vrot.slane %v1657, %v1711
  %v1713 = vlaneseq
  %v1714 = vshrl.u32 %v1713, 7
  %v1715 = vsub.s32 %v19, %v1714
  %v1716 = vrot.slane %v1660, %v1715
  %v1717 = vsel %vm190, %v1668, %v1664
  %v1718 = vsel %vm505, %v1672, %v1717
  %v1719 = vsel %vm507, %v1676, %v1718
  %v1720 = vsel %vm509, %v1680, %v1719
  %v1721 = vsel %vm511, %v1684, %v1720
  %v1722 = vsel %vm513, %v1688, %v1721
  %v1723 = vsel %vm190, %v1696, %v1692
  %v1724 = vsel %vm505, %v1700, %v1723
  %v1725 = vsel %vm507, %v1704, %v1724
  %v1726 = vsel %vm509, %v1708, %v1725
  %v1727 = vsel %vm511, %v1712, %v1726
  %v1728 = vsel %vm513, %v1716, %v1727
  %v1731 = vsel %vm75, %v1722, 0.0
  %1732 = vadd.xlane.f32.xlu0 %v1731
  %v1733 = vpop.xlane.xlu0 %1732
  %v1734 = vsel %vm75, %v1728, 0.0
  %1735 = vadd.xlane.f32.xlu0 %v1734
  %v1736 = vpop.xlane.xlu0 %1735
  %v1737 = vlog2.pop %v1733
  %v1738 = vmul.f32 %v1737, 0.6931472
  %v1739 = vlog2.pop %v1736
  %v1740 = vmul.f32 %v1739, 0.6931472
  %v1741 = vadd.f32 %v1487, %v1738
  %v1742 = vadd.f32 %v1490, %v1740
  %1744 = vset.pattern.permute.xlu0 0
  %1745 = vperm.xlu0 %1744, %v1244
  %v1746 = vpop.permute.xlu0 %1745
  %v1747 = vlaneseq
  %v1748 = vshrl.u32 %v1747, 7
  %v1749 = vsub.s32 0, %v1748
  %v1750 = vrot.slane %v1746, %v1749
  %v1751 = vlaneseq
  %v1752 = vshrl.u32 %v1751, 7
  %v1753 = vsub.s32 1, %v1752
  %v1754 = vrot.slane %v1746, %v1753
  %v1757 = vmul.f32 %v1741, %v1750
  %v1758 = vmul.f32 %v1742, %v1754
  %v1759 = vsub.f32 1.0, %v1244
  %1761 = vset.pattern.permute.xlu0 0
  %1762 = vperm.xlu0 %1761, %v1759
  %v1763 = vpop.permute.xlu0 %1762
  %v1764 = vlaneseq
  %v1765 = vshrl.u32 %v1764, 7
  %v1766 = vsub.s32 0, %v1765
  %v1767 = vrot.slane %v1763, %v1766
  %v1768 = vlaneseq
  %v1769 = vshrl.u32 %v1768, 7
  %v1770 = vsub.s32 1, %v1769
  %v1771 = vrot.slane %v1763, %v1770
  %v1774 = vmul.f32 %v814, %v1767
  %v1775 = vmul.f32 %v815, %v1771
  %v1776 = vadd.f32 %v1757, %v1774
  %v1777 = vadd.f32 %v1758, %v1775
  %v1778 = vadd.f32 %v1239, %v228
  %v1779 = vadd.f32 %v1239, %v235
  %v1780 = vadd.f32 %v1239, %v242
  %v1781 = vadd.f32 %v1239, %v249
  %v1782 = vadd.f32 %v1239, %v256
  %v1783 = vadd.f32 %v1239, %v263
  %v1784 = vadd.f32 %v1239, %v270
  %v1785 = vadd.f32 %v1240, %v228
  %v1786 = vadd.f32 %v1240, %v235
  %v1787 = vadd.f32 %v1240, %v242
  %v1788 = vadd.f32 %v1240, %v249
  %v1789 = vadd.f32 %v1240, %v256
  %v1790 = vadd.f32 %v1240, %v263
  %v1791 = vadd.f32 %v1240, %v270
  %1806 = vset.pattern.permute.xlu0 0
  %1807 = vperm.xlu0 %1806, %v1778
  %v1808 = vpop.permute.xlu0 %1807
  %1809 = vset.pattern.permute.xlu0 0
  %1810 = vperm.xlu0 %1809, %v1779
  %v1811 = vpop.permute.xlu0 %1810
  %1812 = vset.pattern.permute.xlu0 0
  %1813 = vperm.xlu0 %1812, %v1780
  %v1814 = vpop.permute.xlu0 %1813
  %1815 = vset.pattern.permute.xlu0 0
  %1816 = vperm.xlu0 %1815, %v1781
  %v1817 = vpop.permute.xlu0 %1816
  %1818 = vset.pattern.permute.xlu0 0
  %1819 = vperm.xlu0 %1818, %v1782
  %v1820 = vpop.permute.xlu0 %1819
  %1821 = vset.pattern.permute.xlu0 0
  %1822 = vperm.xlu0 %1821, %v1783
  %v1823 = vpop.permute.xlu0 %1822
  %1824 = vset.pattern.permute.xlu0 0
  %1825 = vperm.xlu0 %1824, %v1784
  %v1826 = vpop.permute.xlu0 %1825
  %1827 = vset.pattern.permute.xlu0 0
  %1828 = vperm.xlu0 %1827, %v1785
  %v1829 = vpop.permute.xlu0 %1828
  %1830 = vset.pattern.permute.xlu0 0
  %1831 = vperm.xlu0 %1830, %v1786
  %v1832 = vpop.permute.xlu0 %1831
  %1833 = vset.pattern.permute.xlu0 0
  %1834 = vperm.xlu0 %1833, %v1787
  %v1835 = vpop.permute.xlu0 %1834
  %1836 = vset.pattern.permute.xlu0 0
  %1837 = vperm.xlu0 %1836, %v1788
  %v1838 = vpop.permute.xlu0 %1837
  %1839 = vset.pattern.permute.xlu0 0
  %1840 = vperm.xlu0 %1839, %v1789
  %v1841 = vpop.permute.xlu0 %1840
  %1842 = vset.pattern.permute.xlu0 0
  %1843 = vperm.xlu0 %1842, %v1790
  %v1844 = vpop.permute.xlu0 %1843
  %1845 = vset.pattern.permute.xlu0 0
  %1846 = vperm.xlu0 %1845, %v1791
  %v1847 = vpop.permute.xlu0 %1846
  %v1848 = vlaneseq
  %v1849 = vshrl.u32 %v1848, 7
  %v1850 = vsub.s32 %v19, %v1849
  %v1851 = vrot.slane %v1808, %v1850
  %v1852 = vlaneseq
  %v1853 = vshrl.u32 %v1852, 7
  %v1854 = vsub.s32 %v19, %v1853
  %v1855 = vrot.slane %v1811, %v1854
  %v1856 = vlaneseq
  %v1857 = vshrl.u32 %v1856, 7
  %v1858 = vsub.s32 %v19, %v1857
  %v1859 = vrot.slane %v1814, %v1858
  %v1860 = vlaneseq
  %v1861 = vshrl.u32 %v1860, 7
  %v1862 = vsub.s32 %v19, %v1861
  %v1863 = vrot.slane %v1817, %v1862
  %v1864 = vlaneseq
  %v1865 = vshrl.u32 %v1864, 7
  %v1866 = vsub.s32 %v19, %v1865
  %v1867 = vrot.slane %v1820, %v1866
  %v1868 = vlaneseq
  %v1869 = vshrl.u32 %v1868, 7
  %v1870 = vsub.s32 %v19, %v1869
  %v1871 = vrot.slane %v1823, %v1870
  %v1872 = vlaneseq
  %v1873 = vshrl.u32 %v1872, 7
  %v1874 = vsub.s32 %v19, %v1873
  %v1875 = vrot.slane %v1826, %v1874
  %v1876 = vlaneseq
  %v1877 = vshrl.u32 %v1876, 7
  %v1878 = vsub.s32 %v19, %v1877
  %v1879 = vrot.slane %v1829, %v1878
  %v1880 = vlaneseq
  %v1881 = vshrl.u32 %v1880, 7
  %v1882 = vsub.s32 %v19, %v1881
  %v1883 = vrot.slane %v1832, %v1882
  %v1884 = vlaneseq
  %v1885 = vshrl.u32 %v1884, 7
  %v1886 = vsub.s32 %v19, %v1885
  %v1887 = vrot.slane %v1835, %v1886
  %v1888 = vlaneseq
  %v1889 = vshrl.u32 %v1888, 7
  %v1890 = vsub.s32 %v19, %v1889
  %v1891 = vrot.slane %v1838, %v1890
  %v1892 = vlaneseq
  %v1893 = vshrl.u32 %v1892, 7
  %v1894 = vsub.s32 %v19, %v1893
  %v1895 = vrot.slane %v1841, %v1894
  %v1896 = vlaneseq
  %v1897 = vshrl.u32 %v1896, 7
  %v1898 = vsub.s32 %v19, %v1897
  %v1899 = vrot.slane %v1844, %v1898
  %v1900 = vlaneseq
  %v1901 = vshrl.u32 %v1900, 7
  %v1902 = vsub.s32 %v19, %v1901
  %v1903 = vrot.slane %v1847, %v1902
  %v1904 = vsel %vm190, %v1855, %v1851
  %v1905 = vsel %vm505, %v1859, %v1904
  %v1906 = vsel %vm507, %v1863, %v1905
  %v1907 = vsel %vm509, %v1867, %v1906
  %v1908 = vsel %vm511, %v1871, %v1907
  %v1909 = vsel %vm513, %v1875, %v1908
  %v1910 = vsel %vm190, %v1883, %v1879
  %v1911 = vsel %vm505, %v1887, %v1910
  %v1912 = vsel %vm507, %v1891, %v1911
  %v1913 = vsel %vm509, %v1895, %v1912
  %v1914 = vsel %vm511, %v1899, %v1913
  %v1915 = vsel %vm513, %v1903, %v1914
  %v1918 = vsel %vm75, %v1909, -inf
  %1919 = vmax.xlane.f32.xlu0 %v1918
  %v1920 = vpop.xlane.xlu0 %1919
  %v1921 = vsel %vm75, %v1915, -inf
  %1922 = vmax.xlane.f32.xlu0 %v1921
  %v1923 = vpop.xlane.xlu0 %1922
  %v1926 = vlaneseq
  %v1927 = vshrl.u32 %v1926, 7
  %v1928 = vsub.s32 0, %v1927
  %v1929 = vrot.slane %v1920, %v1928
  %v1930 = vlaneseq
  %v1931 = vshrl.u32 %v1930, 7
  %v1932 = vsub.s32 1, %v1931
  %v1933 = vrot.slane %v1920, %v1932
  %v1934 = vlaneseq
  %v1935 = vshrl.u32 %v1934, 7
  %v1936 = vsub.s32 2, %v1935
  %v1937 = vrot.slane %v1920, %v1936
  %v1938 = vlaneseq
  %v1939 = vshrl.u32 %v1938, 7
  %v1940 = vsub.s32 3, %v1939
  %v1941 = vrot.slane %v1920, %v1940
  %v1942 = vlaneseq
  %v1943 = vshrl.u32 %v1942, 7
  %v1944 = vsub.s32 4, %v1943
  %v1945 = vrot.slane %v1920, %v1944
  %v1946 = vlaneseq
  %v1947 = vshrl.u32 %v1946, 7
  %v1948 = vsub.s32 5, %v1947
  %v1949 = vrot.slane %v1920, %v1948
  %v1950 = vlaneseq
  %v1951 = vshrl.u32 %v1950, 7
  %v1952 = vsub.s32 6, %v1951
  %v1953 = vrot.slane %v1920, %v1952
  %v1954 = vlaneseq
  %v1955 = vshrl.u32 %v1954, 7
  %v1956 = vsub.s32 0, %v1955
  %v1957 = vrot.slane %v1923, %v1956
  %v1958 = vlaneseq
  %v1959 = vshrl.u32 %v1958, 7
  %v1960 = vsub.s32 1, %v1959
  %v1961 = vrot.slane %v1923, %v1960
  %v1962 = vlaneseq
  %v1963 = vshrl.u32 %v1962, 7
  %v1964 = vsub.s32 2, %v1963
  %v1965 = vrot.slane %v1923, %v1964
  %v1966 = vlaneseq
  %v1967 = vshrl.u32 %v1966, 7
  %v1968 = vsub.s32 3, %v1967
  %v1969 = vrot.slane %v1923, %v1968
  %v1970 = vlaneseq
  %v1971 = vshrl.u32 %v1970, 7
  %v1972 = vsub.s32 4, %v1971
  %v1973 = vrot.slane %v1923, %v1972
  %v1974 = vlaneseq
  %v1975 = vshrl.u32 %v1974, 7
  %v1976 = vsub.s32 5, %v1975
  %v1977 = vrot.slane %v1923, %v1976
  %v1978 = vlaneseq
  %v1979 = vshrl.u32 %v1978, 7
  %v1980 = vsub.s32 6, %v1979
  %v1981 = vrot.slane %v1923, %v1980
  %vm1996 = vcmp.eq.f32.partialorder %v1778, %v1929
  %vm1997 = vcmp.eq.f32.partialorder %v1779, %v1933
  %vm1998 = vcmp.eq.f32.partialorder %v1780, %v1937
  %vm1999 = vcmp.eq.f32.partialorder %v1781, %v1941
  %vm2000 = vcmp.eq.f32.partialorder %v1782, %v1945
  %vm2001 = vcmp.eq.f32.partialorder %v1783, %v1949
  %vm2002 = vcmp.eq.f32.partialorder %v1784, %v1953
  %vm2003 = vcmp.eq.f32.partialorder %v1785, %v1957
  %vm2004 = vcmp.eq.f32.partialorder %v1786, %v1961
  %vm2005 = vcmp.eq.f32.partialorder %v1787, %v1965
  %vm2006 = vcmp.eq.f32.partialorder %v1788, %v1969
  %vm2007 = vcmp.eq.f32.partialorder %v1789, %v1973
  %vm2008 = vcmp.eq.f32.partialorder %v1790, %v1977
  %vm2009 = vcmp.eq.f32.partialorder %v1791, %v1981
  %v2010 = vsel %vm1996, %v1050, 7
  %v2011 = vsel %vm1997, %v1050, 7
  %v2012 = vsel %vm1998, %v1050, 7
  %v2013 = vsel %vm1999, %v1050, 7
  %v2014 = vsel %vm2000, %v1050, 7
  %v2015 = vsel %vm2001, %v1050, 7
  %v2016 = vsel %vm2002, %v1050, 7
  %v2017 = vsel %vm2003, %v1050, 7
  %v2018 = vsel %vm2004, %v1050, 7
  %v2019 = vsel %vm2005, %v1050, 7
  %v2020 = vsel %vm2006, %v1050, 7
  %v2021 = vsel %vm2007, %v1050, 7
  %v2022 = vsel %vm2008, %v1050, 7
  %v2023 = vsel %vm2009, %v1050, 7
  %2024 = vset.pattern.permute.xlu0 0
  %2025 = vperm.xlu0 %2024, %v2010
  %v2026 = vpop.permute.xlu0 %2025
  %2027 = vset.pattern.permute.xlu0 0
  %2028 = vperm.xlu0 %2027, %v2011
  %v2029 = vpop.permute.xlu0 %2028
  %2030 = vset.pattern.permute.xlu0 0
  %2031 = vperm.xlu0 %2030, %v2012
  %v2032 = vpop.permute.xlu0 %2031
  %2033 = vset.pattern.permute.xlu0 0
  %2034 = vperm.xlu0 %2033, %v2013
  %v2035 = vpop.permute.xlu0 %2034
  %2036 = vset.pattern.permute.xlu0 0
  %2037 = vperm.xlu0 %2036, %v2014
  %v2038 = vpop.permute.xlu0 %2037
  %2039 = vset.pattern.permute.xlu0 0
  %2040 = vperm.xlu0 %2039, %v2015
  %v2041 = vpop.permute.xlu0 %2040
  %2042 = vset.pattern.permute.xlu0 0
  %2043 = vperm.xlu0 %2042, %v2016
  %v2044 = vpop.permute.xlu0 %2043
  %2045 = vset.pattern.permute.xlu0 0
  %2046 = vperm.xlu0 %2045, %v2017
  %v2047 = vpop.permute.xlu0 %2046
  %2048 = vset.pattern.permute.xlu0 0
  %2049 = vperm.xlu0 %2048, %v2018
  %v2050 = vpop.permute.xlu0 %2049
  %2051 = vset.pattern.permute.xlu0 0
  %2052 = vperm.xlu0 %2051, %v2019
  %v2053 = vpop.permute.xlu0 %2052
  %2054 = vset.pattern.permute.xlu0 0
  %2055 = vperm.xlu0 %2054, %v2020
  %v2056 = vpop.permute.xlu0 %2055
  %2057 = vset.pattern.permute.xlu0 0
  %2058 = vperm.xlu0 %2057, %v2021
  %v2059 = vpop.permute.xlu0 %2058
  %2060 = vset.pattern.permute.xlu0 0
  %2061 = vperm.xlu0 %2060, %v2022
  %v2062 = vpop.permute.xlu0 %2061
  %2063 = vset.pattern.permute.xlu0 0
  %2064 = vperm.xlu0 %2063, %v2023
  %v2065 = vpop.permute.xlu0 %2064
  %v2066 = vlaneseq
  %v2067 = vshrl.u32 %v2066, 7
  %v2068 = vsub.s32 %v19, %v2067
  %v2069 = vrot.slane %v2026, %v2068
  %v2070 = vlaneseq
  %v2071 = vshrl.u32 %v2070, 7
  %v2072 = vsub.s32 %v19, %v2071
  %v2073 = vrot.slane %v2029, %v2072
  %v2074 = vlaneseq
  %v2075 = vshrl.u32 %v2074, 7
  %v2076 = vsub.s32 %v19, %v2075
  %v2077 = vrot.slane %v2032, %v2076
  %v2078 = vlaneseq
  %v2079 = vshrl.u32 %v2078, 7
  %v2080 = vsub.s32 %v19, %v2079
  %v2081 = vrot.slane %v2035, %v2080
  %v2082 = vlaneseq
  %v2083 = vshrl.u32 %v2082, 7
  %v2084 = vsub.s32 %v19, %v2083
  %v2085 = vrot.slane %v2038, %v2084
  %v2086 = vlaneseq
  %v2087 = vshrl.u32 %v2086, 7
  %v2088 = vsub.s32 %v19, %v2087
  %v2089 = vrot.slane %v2041, %v2088
  %v2090 = vlaneseq
  %v2091 = vshrl.u32 %v2090, 7
  %v2092 = vsub.s32 %v19, %v2091
  %v2093 = vrot.slane %v2044, %v2092
  %v2094 = vlaneseq
  %v2095 = vshrl.u32 %v2094, 7
  %v2096 = vsub.s32 %v19, %v2095
  %v2097 = vrot.slane %v2047, %v2096
  %v2098 = vlaneseq
  %v2099 = vshrl.u32 %v2098, 7
  %v2100 = vsub.s32 %v19, %v2099
  %v2101 = vrot.slane %v2050, %v2100
  %v2102 = vlaneseq
  %v2103 = vshrl.u32 %v2102, 7
  %v2104 = vsub.s32 %v19, %v2103
  %v2105 = vrot.slane %v2053, %v2104
  %v2106 = vlaneseq
  %v2107 = vshrl.u32 %v2106, 7
  %v2108 = vsub.s32 %v19, %v2107
  %v2109 = vrot.slane %v2056, %v2108
  %v2110 = vlaneseq
  %v2111 = vshrl.u32 %v2110, 7
  %v2112 = vsub.s32 %v19, %v2111
  %v2113 = vrot.slane %v2059, %v2112
  %v2114 = vlaneseq
  %v2115 = vshrl.u32 %v2114, 7
  %v2116 = vsub.s32 %v19, %v2115
  %v2117 = vrot.slane %v2062, %v2116
  %v2118 = vlaneseq
  %v2119 = vshrl.u32 %v2118, 7
  %v2120 = vsub.s32 %v19, %v2119
  %v2121 = vrot.slane %v2065, %v2120
  %v2122 = vsel %vm190, %v2073, %v2069
  %v2123 = vsel %vm505, %v2077, %v2122
  %v2124 = vsel %vm507, %v2081, %v2123
  %v2125 = vsel %vm509, %v2085, %v2124
  %v2126 = vsel %vm511, %v2089, %v2125
  %v2127 = vsel %vm513, %v2093, %v2126
  %v2128 = vsel %vm190, %v2101, %v2097
  %v2129 = vsel %vm505, %v2105, %v2128
  %v2130 = vsel %vm507, %v2109, %v2129
  %v2131 = vsel %vm509, %v2113, %v2130
  %v2132 = vsel %vm511, %v2117, %v2131
  %v2133 = vsel %vm513, %v2121, %v2132
  %v2134 = vsel %vm75, %v2127, 2147483647
  %v2135 = vand.u32 %v2134, 65535
  %v2136 = vshra.s32 %v2134, 16
  %v2137 = vcvt.s32.f32 %v2135
  %v2138 = vcvt.s32.f32 %v2136
  %2139 = vmin.xlane.f32.xlu0 %v2138
  %v2140 = vpop.xlane.xlu0 %2139
  %vm2141 = vcmp.eq.f32.partialorder %v2138, %v2140
  %v2142 = vsel %vm2141, %v2137, inf
  %2143 = vmin.xlane.f32.xlu0 %v2142
  %v2144 = vpop.xlane.xlu0 %2143
  %v2145 = vcvt.f32.s32 %v2144
  %v2146 = vcvt.f32.s32 %v2140
  %v2147 = vshll.u32 %v2146, 16
  %v2148 = vadd.s32 %v2147, %v2145
  %v2149 = vsel %vm75, %v2133, 2147483647
  %v2150 = vand.u32 %v2149, 65535
  %v2151 = vshra.s32 %v2149, 16
  %v2152 = vcvt.s32.f32 %v2150
  %v2153 = vcvt.s32.f32 %v2151
  %2154 = vmin.xlane.f32.xlu0 %v2153
  %v2155 = vpop.xlane.xlu0 %2154
  %vm2156 = vcmp.eq.f32.partialorder %v2153, %v2155
  %v2157 = vsel %vm2156, %v2152, inf
  %2158 = vmin.xlane.f32.xlu0 %v2157
  %v2159 = vpop.xlane.xlu0 %2158
  %v2160 = vcvt.f32.s32 %v2159
  %v2161 = vcvt.f32.s32 %v2155
  %v2162 = vshll.u32 %v2161, 16
  %v2163 = vadd.s32 %v2162, %v2160
  %v2164 = vlaneseq
  %v2165 = vshrl.u32 %v2164, 7
  %v2166 = vsub.s32 %v19, %v2165
  %v2167 = vrot.slane %v2148, %v2166
  %v2168 = vlaneseq
  %v2169 = vshrl.u32 %v2168, 7
  %v2170 = vsub.s32 %v19, %v2169
  %v2171 = vrot.slane %v2163, %v2170
  %v2172 = vsel %vm190, %v2171, %v2167
  %s2173 = scalar_lea.vmem %s4, 4
  %2174 = vst.msk [vmem:[%s2173] sm:$0x3] %vm192, %v2172
  %v2176 = vlaneseq
  %v2177 = vshrl.u32 %v2176, 7
  %v2178 = vsub.s32 0, %v2177
  %v2179 = vrot.slane %v1242, %v2178
  %2181 = vbcast.lane.b32.xlu0 %v2179, 256
  %v2182 = vpop.permute.xlu0 %2181
  %v2183 = vlaneseq
  %v2184 = vshrl.u32 %v2183, 7
  %v2185 = vsub.s32 1, %v2184
  %v2186 = vrot.slane %v1242, %v2185
  %2188 = vbcast.lane.b32.xlu0 %v2186, 256
  %v2189 = vpop.permute.xlu0 %2188
  %v2192 = vadd.f32 %v1920, %v2182
  %v2193 = vadd.f32 %v1923, %v2189
  %v2194 = vmul.f32 %v2192, %v1750
  %v2195 = vmul.f32 %v2193, %v1754
  %v2196 = vmul.f32 %v1239, %v1767
  %v2197 = vmul.f32 %v1240, %v1771
  %v2198 = vadd.f32 %v2194, %v2196
  %v2199 = vadd.f32 %v2195, %v2197
  %s2200 = scalar_lea.vmem %s0, 6
  %v2201 = vld [vmem:[%s2200] sm:$0x3]
  %s2202 = scalar_lea.vmem %s2, 6
  %v2203 = vld [vmem:[%s2202] sm:$0x3]
  %v2204 = vadd.f32 %v1776, %v228
  %v2205 = vadd.f32 %v1776, %v235
  %v2206 = vadd.f32 %v1776, %v242
  %v2207 = vadd.f32 %v1776, %v249
  %v2208 = vadd.f32 %v1776, %v256
  %v2209 = vadd.f32 %v1776, %v263
  %v2210 = vadd.f32 %v1776, %v270
  %v2211 = vadd.f32 %v1777, %v228
  %v2212 = vadd.f32 %v1777, %v235
  %v2213 = vadd.f32 %v1777, %v242
  %v2214 = vadd.f32 %v1777, %v249
  %v2215 = vadd.f32 %v1777, %v256
  %v2216 = vadd.f32 %v1777, %v263
  %v2217 = vadd.f32 %v1777, %v270
  %v2218 = vlaneseq
  %v2219 = vshrl.u32 %v2218, 7
  %v2220 = vsub.s32 0, %v2219
  %v2221 = vrot.slane %v2201, %v2220
  %2223 = vbcast.lane.b32.xlu0 %v2221, 256
  %v2224 = vpop.permute.xlu0 %2223
  %v2225 = vlaneseq
  %v2226 = vshrl.u32 %v2225, 7
  %v2227 = vsub.s32 1, %v2226
  %v2228 = vrot.slane %v2201, %v2227
  %2230 = vbcast.lane.b32.xlu0 %v2228, 256
  %v2231 = vpop.permute.xlu0 %2230
  %v2234 = vlaneseq
  %v2235 = vshrl.u32 %v2234, 7
  %v2236 = vsub.s32 0, %v2235
  %v2237 = vrot.slane %v2224, %v2236
  %v2238 = vlaneseq
  %v2239 = vshrl.u32 %v2238, 7
  %v2240 = vsub.s32 1, %v2239
  %v2241 = vrot.slane %v2224, %v2240
  %v2242 = vlaneseq
  %v2243 = vshrl.u32 %v2242, 7
  %v2244 = vsub.s32 2, %v2243
  %v2245 = vrot.slane %v2224, %v2244
  %v2246 = vlaneseq
  %v2247 = vshrl.u32 %v2246, 7
  %v2248 = vsub.s32 3, %v2247
  %v2249 = vrot.slane %v2224, %v2248
  %v2250 = vlaneseq
  %v2251 = vshrl.u32 %v2250, 7
  %v2252 = vsub.s32 4, %v2251
  %v2253 = vrot.slane %v2224, %v2252
  %v2254 = vlaneseq
  %v2255 = vshrl.u32 %v2254, 7
  %v2256 = vsub.s32 5, %v2255
  %v2257 = vrot.slane %v2224, %v2256
  %v2258 = vlaneseq
  %v2259 = vshrl.u32 %v2258, 7
  %v2260 = vsub.s32 6, %v2259
  %v2261 = vrot.slane %v2224, %v2260
  %v2262 = vlaneseq
  %v2263 = vshrl.u32 %v2262, 7
  %v2264 = vsub.s32 0, %v2263
  %v2265 = vrot.slane %v2231, %v2264
  %v2266 = vlaneseq
  %v2267 = vshrl.u32 %v2266, 7
  %v2268 = vsub.s32 1, %v2267
  %v2269 = vrot.slane %v2231, %v2268
  %v2270 = vlaneseq
  %v2271 = vshrl.u32 %v2270, 7
  %v2272 = vsub.s32 2, %v2271
  %v2273 = vrot.slane %v2231, %v2272
  %v2274 = vlaneseq
  %v2275 = vshrl.u32 %v2274, 7
  %v2276 = vsub.s32 3, %v2275
  %v2277 = vrot.slane %v2231, %v2276
  %v2278 = vlaneseq
  %v2279 = vshrl.u32 %v2278, 7
  %v2280 = vsub.s32 4, %v2279
  %v2281 = vrot.slane %v2231, %v2280
  %v2282 = vlaneseq
  %v2283 = vshrl.u32 %v2282, 7
  %v2284 = vsub.s32 5, %v2283
  %v2285 = vrot.slane %v2231, %v2284
  %v2286 = vlaneseq
  %v2287 = vshrl.u32 %v2286, 7
  %v2288 = vsub.s32 6, %v2287
  %v2289 = vrot.slane %v2231, %v2288
  %v2304 = vadd.f32 %v2204, %v2237
  %v2305 = vadd.f32 %v2205, %v2241
  %v2306 = vadd.f32 %v2206, %v2245
  %v2307 = vadd.f32 %v2207, %v2249
  %v2308 = vadd.f32 %v2208, %v2253
  %v2309 = vadd.f32 %v2209, %v2257
  %v2310 = vadd.f32 %v2210, %v2261
  %v2311 = vadd.f32 %v2211, %v2265
  %v2312 = vadd.f32 %v2212, %v2269
  %v2313 = vadd.f32 %v2213, %v2273
  %v2314 = vadd.f32 %v2214, %v2277
  %v2315 = vadd.f32 %v2215, %v2281
  %v2316 = vadd.f32 %v2216, %v2285
  %v2317 = vadd.f32 %v2217, %v2289
  %2332 = vset.pattern.permute.xlu0 0
  %2333 = vperm.xlu0 %2332, %v2304
  %v2334 = vpop.permute.xlu0 %2333
  %2335 = vset.pattern.permute.xlu0 0
  %2336 = vperm.xlu0 %2335, %v2305
  %v2337 = vpop.permute.xlu0 %2336
  %2338 = vset.pattern.permute.xlu0 0
  %2339 = vperm.xlu0 %2338, %v2306
  %v2340 = vpop.permute.xlu0 %2339
  %2341 = vset.pattern.permute.xlu0 0
  %2342 = vperm.xlu0 %2341, %v2307
  %v2343 = vpop.permute.xlu0 %2342
  %2344 = vset.pattern.permute.xlu0 0
  %2345 = vperm.xlu0 %2344, %v2308
  %v2346 = vpop.permute.xlu0 %2345
  %2347 = vset.pattern.permute.xlu0 0
  %2348 = vperm.xlu0 %2347, %v2309
  %v2349 = vpop.permute.xlu0 %2348
  %2350 = vset.pattern.permute.xlu0 0
  %2351 = vperm.xlu0 %2350, %v2310
  %v2352 = vpop.permute.xlu0 %2351
  %2353 = vset.pattern.permute.xlu0 0
  %2354 = vperm.xlu0 %2353, %v2311
  %v2355 = vpop.permute.xlu0 %2354
  %2356 = vset.pattern.permute.xlu0 0
  %2357 = vperm.xlu0 %2356, %v2312
  %v2358 = vpop.permute.xlu0 %2357
  %2359 = vset.pattern.permute.xlu0 0
  %2360 = vperm.xlu0 %2359, %v2313
  %v2361 = vpop.permute.xlu0 %2360
  %2362 = vset.pattern.permute.xlu0 0
  %2363 = vperm.xlu0 %2362, %v2314
  %v2364 = vpop.permute.xlu0 %2363
  %2365 = vset.pattern.permute.xlu0 0
  %2366 = vperm.xlu0 %2365, %v2315
  %v2367 = vpop.permute.xlu0 %2366
  %2368 = vset.pattern.permute.xlu0 0
  %2369 = vperm.xlu0 %2368, %v2316
  %v2370 = vpop.permute.xlu0 %2369
  %2371 = vset.pattern.permute.xlu0 0
  %2372 = vperm.xlu0 %2371, %v2317
  %v2373 = vpop.permute.xlu0 %2372
  %v2374 = vlaneseq
  %v2375 = vshrl.u32 %v2374, 7
  %v2376 = vsub.s32 %v19, %v2375
  %v2377 = vrot.slane %v2334, %v2376
  %v2378 = vlaneseq
  %v2379 = vshrl.u32 %v2378, 7
  %v2380 = vsub.s32 %v19, %v2379
  %v2381 = vrot.slane %v2337, %v2380
  %v2382 = vlaneseq
  %v2383 = vshrl.u32 %v2382, 7
  %v2384 = vsub.s32 %v19, %v2383
  %v2385 = vrot.slane %v2340, %v2384
  %v2386 = vlaneseq
  %v2387 = vshrl.u32 %v2386, 7
  %v2388 = vsub.s32 %v19, %v2387
  %v2389 = vrot.slane %v2343, %v2388
  %v2390 = vlaneseq
  %v2391 = vshrl.u32 %v2390, 7
  %v2392 = vsub.s32 %v19, %v2391
  %v2393 = vrot.slane %v2346, %v2392
  %v2394 = vlaneseq
  %v2395 = vshrl.u32 %v2394, 7
  %v2396 = vsub.s32 %v19, %v2395
  %v2397 = vrot.slane %v2349, %v2396
  %v2398 = vlaneseq
  %v2399 = vshrl.u32 %v2398, 7
  %v2400 = vsub.s32 %v19, %v2399
  %v2401 = vrot.slane %v2352, %v2400
  %v2402 = vlaneseq
  %v2403 = vshrl.u32 %v2402, 7
  %v2404 = vsub.s32 %v19, %v2403
  %v2405 = vrot.slane %v2355, %v2404
  %v2406 = vlaneseq
  %v2407 = vshrl.u32 %v2406, 7
  %v2408 = vsub.s32 %v19, %v2407
  %v2409 = vrot.slane %v2358, %v2408
  %v2410 = vlaneseq
  %v2411 = vshrl.u32 %v2410, 7
  %v2412 = vsub.s32 %v19, %v2411
  %v2413 = vrot.slane %v2361, %v2412
  %v2414 = vlaneseq
  %v2415 = vshrl.u32 %v2414, 7
  %v2416 = vsub.s32 %v19, %v2415
  %v2417 = vrot.slane %v2364, %v2416
  %v2418 = vlaneseq
  %v2419 = vshrl.u32 %v2418, 7
  %v2420 = vsub.s32 %v19, %v2419
  %v2421 = vrot.slane %v2367, %v2420
  %v2422 = vlaneseq
  %v2423 = vshrl.u32 %v2422, 7
  %v2424 = vsub.s32 %v19, %v2423
  %v2425 = vrot.slane %v2370, %v2424
  %v2426 = vlaneseq
  %v2427 = vshrl.u32 %v2426, 7
  %v2428 = vsub.s32 %v19, %v2427
  %v2429 = vrot.slane %v2373, %v2428
  %v2430 = vsel %vm190, %v2381, %v2377
  %v2431 = vsel %vm505, %v2385, %v2430
  %v2432 = vsel %vm507, %v2389, %v2431
  %v2433 = vsel %vm509, %v2393, %v2432
  %v2434 = vsel %vm511, %v2397, %v2433
  %v2435 = vsel %vm513, %v2401, %v2434
  %v2436 = vsel %vm190, %v2409, %v2405
  %v2437 = vsel %vm505, %v2413, %v2436
  %v2438 = vsel %vm507, %v2417, %v2437
  %v2439 = vsel %vm509, %v2421, %v2438
  %v2440 = vsel %vm511, %v2425, %v2439
  %v2441 = vsel %vm513, %v2429, %v2440
  %v2444 = vsel %vm75, %v2435, -inf
  %2445 = vmax.xlane.f32.xlu0 %v2444
  %v2446 = vpop.xlane.xlu0 %2445
  %v2447 = vsel %vm75, %v2441, -inf
  %2448 = vmax.xlane.f32.xlu0 %v2447
  %v2449 = vpop.xlane.xlu0 %2448
  %v2452 = vlaneseq
  %v2453 = vshrl.u32 %v2452, 7
  %v2454 = vsub.s32 0, %v2453
  %v2455 = vrot.slane %v2446, %v2454
  %v2456 = vlaneseq
  %v2457 = vshrl.u32 %v2456, 7
  %v2458 = vsub.s32 1, %v2457
  %v2459 = vrot.slane %v2446, %v2458
  %v2460 = vlaneseq
  %v2461 = vshrl.u32 %v2460, 7
  %v2462 = vsub.s32 2, %v2461
  %v2463 = vrot.slane %v2446, %v2462
  %v2464 = vlaneseq
  %v2465 = vshrl.u32 %v2464, 7
  %v2466 = vsub.s32 3, %v2465
  %v2467 = vrot.slane %v2446, %v2466
  %v2468 = vlaneseq
  %v2469 = vshrl.u32 %v2468, 7
  %v2470 = vsub.s32 4, %v2469
  %v2471 = vrot.slane %v2446, %v2470
  %v2472 = vlaneseq
  %v2473 = vshrl.u32 %v2472, 7
  %v2474 = vsub.s32 5, %v2473
  %v2475 = vrot.slane %v2446, %v2474
  %v2476 = vlaneseq
  %v2477 = vshrl.u32 %v2476, 7
  %v2478 = vsub.s32 6, %v2477
  %v2479 = vrot.slane %v2446, %v2478
  %v2480 = vlaneseq
  %v2481 = vshrl.u32 %v2480, 7
  %v2482 = vsub.s32 0, %v2481
  %v2483 = vrot.slane %v2449, %v2482
  %v2484 = vlaneseq
  %v2485 = vshrl.u32 %v2484, 7
  %v2486 = vsub.s32 1, %v2485
  %v2487 = vrot.slane %v2449, %v2486
  %v2488 = vlaneseq
  %v2489 = vshrl.u32 %v2488, 7
  %v2490 = vsub.s32 2, %v2489
  %v2491 = vrot.slane %v2449, %v2490
  %v2492 = vlaneseq
  %v2493 = vshrl.u32 %v2492, 7
  %v2494 = vsub.s32 3, %v2493
  %v2495 = vrot.slane %v2449, %v2494
  %v2496 = vlaneseq
  %v2497 = vshrl.u32 %v2496, 7
  %v2498 = vsub.s32 4, %v2497
  %v2499 = vrot.slane %v2449, %v2498
  %v2500 = vlaneseq
  %v2501 = vshrl.u32 %v2500, 7
  %v2502 = vsub.s32 5, %v2501
  %v2503 = vrot.slane %v2449, %v2502
  %v2504 = vlaneseq
  %v2505 = vshrl.u32 %v2504, 7
  %v2506 = vsub.s32 6, %v2505
  %v2507 = vrot.slane %v2449, %v2506
  %v2522 = vsub.f32 %v2304, %v2455
  %v2523 = vsub.f32 %v2305, %v2459
  %v2524 = vsub.f32 %v2306, %v2463
  %v2525 = vsub.f32 %v2307, %v2467
  %v2526 = vsub.f32 %v2308, %v2471
  %v2527 = vsub.f32 %v2309, %v2475
  %v2528 = vsub.f32 %v2310, %v2479
  %v2529 = vsub.f32 %v2311, %v2483
  %v2530 = vsub.f32 %v2312, %v2487
  %v2531 = vsub.f32 %v2313, %v2491
  %v2532 = vsub.f32 %v2314, %v2495
  %v2533 = vsub.f32 %v2315, %v2499
  %v2534 = vsub.f32 %v2316, %v2503
  %v2535 = vsub.f32 %v2317, %v2507
  %v2536 = vmul.f32 %v2522, 1.442695
  %v2537 = vpow.pop %v2536
  %v2538 = vmul.f32 %v2523, 1.442695
  %v2539 = vpow.pop %v2538
  %v2540 = vmul.f32 %v2524, 1.442695
  %v2541 = vpow.pop %v2540
  %v2542 = vmul.f32 %v2525, 1.442695
  %v2543 = vpow.pop %v2542
  %v2544 = vmul.f32 %v2526, 1.442695
  %v2545 = vpow.pop %v2544
  %v2546 = vmul.f32 %v2527, 1.442695
  %v2547 = vpow.pop %v2546
  %v2548 = vmul.f32 %v2528, 1.442695
  %v2549 = vpow.pop %v2548
  %v2550 = vmul.f32 %v2529, 1.442695
  %v2551 = vpow.pop %v2550
  %v2552 = vmul.f32 %v2530, 1.442695
  %v2553 = vpow.pop %v2552
  %v2554 = vmul.f32 %v2531, 1.442695
  %v2555 = vpow.pop %v2554
  %v2556 = vmul.f32 %v2532, 1.442695
  %v2557 = vpow.pop %v2556
  %v2558 = vmul.f32 %v2533, 1.442695
  %v2559 = vpow.pop %v2558
  %v2560 = vmul.f32 %v2534, 1.442695
  %v2561 = vpow.pop %v2560
  %v2562 = vmul.f32 %v2535, 1.442695
  %v2563 = vpow.pop %v2562
  %2578 = vset.pattern.permute.xlu0 0
  %2579 = vperm.xlu0 %2578, %v2537
  %v2580 = vpop.permute.xlu0 %2579
  %2581 = vset.pattern.permute.xlu0 0
  %2582 = vperm.xlu0 %2581, %v2539
  %v2583 = vpop.permute.xlu0 %2582
  %2584 = vset.pattern.permute.xlu0 0
  %2585 = vperm.xlu0 %2584, %v2541
  %v2586 = vpop.permute.xlu0 %2585
  %2587 = vset.pattern.permute.xlu0 0
  %2588 = vperm.xlu0 %2587, %v2543
  %v2589 = vpop.permute.xlu0 %2588
  %2590 = vset.pattern.permute.xlu0 0
  %2591 = vperm.xlu0 %2590, %v2545
  %v2592 = vpop.permute.xlu0 %2591
  %2593 = vset.pattern.permute.xlu0 0
  %2594 = vperm.xlu0 %2593, %v2547
  %v2595 = vpop.permute.xlu0 %2594
  %2596 = vset.pattern.permute.xlu0 0
  %2597 = vperm.xlu0 %2596, %v2549
  %v2598 = vpop.permute.xlu0 %2597
  %2599 = vset.pattern.permute.xlu0 0
  %2600 = vperm.xlu0 %2599, %v2551
  %v2601 = vpop.permute.xlu0 %2600
  %2602 = vset.pattern.permute.xlu0 0
  %2603 = vperm.xlu0 %2602, %v2553
  %v2604 = vpop.permute.xlu0 %2603
  %2605 = vset.pattern.permute.xlu0 0
  %2606 = vperm.xlu0 %2605, %v2555
  %v2607 = vpop.permute.xlu0 %2606
  %2608 = vset.pattern.permute.xlu0 0
  %2609 = vperm.xlu0 %2608, %v2557
  %v2610 = vpop.permute.xlu0 %2609
  %2611 = vset.pattern.permute.xlu0 0
  %2612 = vperm.xlu0 %2611, %v2559
  %v2613 = vpop.permute.xlu0 %2612
  %2614 = vset.pattern.permute.xlu0 0
  %2615 = vperm.xlu0 %2614, %v2561
  %v2616 = vpop.permute.xlu0 %2615
  %2617 = vset.pattern.permute.xlu0 0
  %2618 = vperm.xlu0 %2617, %v2563
  %v2619 = vpop.permute.xlu0 %2618
  %v2620 = vlaneseq
  %v2621 = vshrl.u32 %v2620, 7
  %v2622 = vsub.s32 %v19, %v2621
  %v2623 = vrot.slane %v2580, %v2622
  %v2624 = vlaneseq
  %v2625 = vshrl.u32 %v2624, 7
  %v2626 = vsub.s32 %v19, %v2625
  %v2627 = vrot.slane %v2583, %v2626
  %v2628 = vlaneseq
  %v2629 = vshrl.u32 %v2628, 7
  %v2630 = vsub.s32 %v19, %v2629
  %v2631 = vrot.slane %v2586, %v2630
  %v2632 = vlaneseq
  %v2633 = vshrl.u32 %v2632, 7
  %v2634 = vsub.s32 %v19, %v2633
  %v2635 = vrot.slane %v2589, %v2634
  %v2636 = vlaneseq
  %v2637 = vshrl.u32 %v2636, 7
  %v2638 = vsub.s32 %v19, %v2637
  %v2639 = vrot.slane %v2592, %v2638
  %v2640 = vlaneseq
  %v2641 = vshrl.u32 %v2640, 7
  %v2642 = vsub.s32 %v19, %v2641
  %v2643 = vrot.slane %v2595, %v2642
  %v2644 = vlaneseq
  %v2645 = vshrl.u32 %v2644, 7
  %v2646 = vsub.s32 %v19, %v2645
  %v2647 = vrot.slane %v2598, %v2646
  %v2648 = vlaneseq
  %v2649 = vshrl.u32 %v2648, 7
  %v2650 = vsub.s32 %v19, %v2649
  %v2651 = vrot.slane %v2601, %v2650
  %v2652 = vlaneseq
  %v2653 = vshrl.u32 %v2652, 7
  %v2654 = vsub.s32 %v19, %v2653
  %v2655 = vrot.slane %v2604, %v2654
  %v2656 = vlaneseq
  %v2657 = vshrl.u32 %v2656, 7
  %v2658 = vsub.s32 %v19, %v2657
  %v2659 = vrot.slane %v2607, %v2658
  %v2660 = vlaneseq
  %v2661 = vshrl.u32 %v2660, 7
  %v2662 = vsub.s32 %v19, %v2661
  %v2663 = vrot.slane %v2610, %v2662
  %v2664 = vlaneseq
  %v2665 = vshrl.u32 %v2664, 7
  %v2666 = vsub.s32 %v19, %v2665
  %v2667 = vrot.slane %v2613, %v2666
  %v2668 = vlaneseq
  %v2669 = vshrl.u32 %v2668, 7
  %v2670 = vsub.s32 %v19, %v2669
  %v2671 = vrot.slane %v2616, %v2670
  %v2672 = vlaneseq
  %v2673 = vshrl.u32 %v2672, 7
  %v2674 = vsub.s32 %v19, %v2673
  %v2675 = vrot.slane %v2619, %v2674
  %v2676 = vsel %vm190, %v2627, %v2623
  %v2677 = vsel %vm505, %v2631, %v2676
  %v2678 = vsel %vm507, %v2635, %v2677
  %v2679 = vsel %vm509, %v2639, %v2678
  %v2680 = vsel %vm511, %v2643, %v2679
  %v2681 = vsel %vm513, %v2647, %v2680
  %v2682 = vsel %vm190, %v2655, %v2651
  %v2683 = vsel %vm505, %v2659, %v2682
  %v2684 = vsel %vm507, %v2663, %v2683
  %v2685 = vsel %vm509, %v2667, %v2684
  %v2686 = vsel %vm511, %v2671, %v2685
  %v2687 = vsel %vm513, %v2675, %v2686
  %v2690 = vsel %vm75, %v2681, 0.0
  %2691 = vadd.xlane.f32.xlu0 %v2690
  %v2692 = vpop.xlane.xlu0 %2691
  %v2693 = vsel %vm75, %v2687, 0.0
  %2694 = vadd.xlane.f32.xlu0 %v2693
  %v2695 = vpop.xlane.xlu0 %2694
  %v2696 = vlog2.pop %v2692
  %v2697 = vmul.f32 %v2696, 0.6931472
  %v2698 = vlog2.pop %v2695
  %v2699 = vmul.f32 %v2698, 0.6931472
  %v2700 = vadd.f32 %v2446, %v2697
  %v2701 = vadd.f32 %v2449, %v2699
  %2703 = vset.pattern.permute.xlu0 0
  %2704 = vperm.xlu0 %2703, %v2203
  %v2705 = vpop.permute.xlu0 %2704
  %v2706 = vlaneseq
  %v2707 = vshrl.u32 %v2706, 7
  %v2708 = vsub.s32 0, %v2707
  %v2709 = vrot.slane %v2705, %v2708
  %v2710 = vlaneseq
  %v2711 = vshrl.u32 %v2710, 7
  %v2712 = vsub.s32 1, %v2711
  %v2713 = vrot.slane %v2705, %v2712
  %v2716 = vmul.f32 %v2700, %v2709
  %v2717 = vmul.f32 %v2701, %v2713
  %v2718 = vsub.f32 1.0, %v2203
  %2720 = vset.pattern.permute.xlu0 0
  %2721 = vperm.xlu0 %2720, %v2718
  %v2722 = vpop.permute.xlu0 %2721
  %v2723 = vlaneseq
  %v2724 = vshrl.u32 %v2723, 7
  %v2725 = vsub.s32 0, %v2724
  %v2726 = vrot.slane %v2722, %v2725
  %v2727 = vlaneseq
  %v2728 = vshrl.u32 %v2727, 7
  %v2729 = vsub.s32 1, %v2728
  %v2730 = vrot.slane %v2722, %v2729
  %v2733 = vmul.f32 %v1776, %v2726
  %v2734 = vmul.f32 %v1777, %v2730
  %v2735 = vadd.f32 %v2716, %v2733
  %v2736 = vadd.f32 %v2717, %v2734
  %v2737 = vadd.f32 %v2198, %v228
  %v2738 = vadd.f32 %v2198, %v235
  %v2739 = vadd.f32 %v2198, %v242
  %v2740 = vadd.f32 %v2198, %v249
  %v2741 = vadd.f32 %v2198, %v256
  %v2742 = vadd.f32 %v2198, %v263
  %v2743 = vadd.f32 %v2198, %v270
  %v2744 = vadd.f32 %v2199, %v228
  %v2745 = vadd.f32 %v2199, %v235
  %v2746 = vadd.f32 %v2199, %v242
  %v2747 = vadd.f32 %v2199, %v249
  %v2748 = vadd.f32 %v2199, %v256
  %v2749 = vadd.f32 %v2199, %v263
  %v2750 = vadd.f32 %v2199, %v270
  %2765 = vset.pattern.permute.xlu0 0
  %2766 = vperm.xlu0 %2765, %v2737
  %v2767 = vpop.permute.xlu0 %2766
  %2768 = vset.pattern.permute.xlu0 0
  %2769 = vperm.xlu0 %2768, %v2738
  %v2770 = vpop.permute.xlu0 %2769
  %2771 = vset.pattern.permute.xlu0 0
  %2772 = vperm.xlu0 %2771, %v2739
  %v2773 = vpop.permute.xlu0 %2772
  %2774 = vset.pattern.permute.xlu0 0
  %2775 = vperm.xlu0 %2774, %v2740
  %v2776 = vpop.permute.xlu0 %2775
  %2777 = vset.pattern.permute.xlu0 0
  %2778 = vperm.xlu0 %2777, %v2741
  %v2779 = vpop.permute.xlu0 %2778
  %2780 = vset.pattern.permute.xlu0 0
  %2781 = vperm.xlu0 %2780, %v2742
  %v2782 = vpop.permute.xlu0 %2781
  %2783 = vset.pattern.permute.xlu0 0
  %2784 = vperm.xlu0 %2783, %v2743
  %v2785 = vpop.permute.xlu0 %2784
  %2786 = vset.pattern.permute.xlu0 0
  %2787 = vperm.xlu0 %2786, %v2744
  %v2788 = vpop.permute.xlu0 %2787
  %2789 = vset.pattern.permute.xlu0 0
  %2790 = vperm.xlu0 %2789, %v2745
  %v2791 = vpop.permute.xlu0 %2790
  %2792 = vset.pattern.permute.xlu0 0
  %2793 = vperm.xlu0 %2792, %v2746
  %v2794 = vpop.permute.xlu0 %2793
  %2795 = vset.pattern.permute.xlu0 0
  %2796 = vperm.xlu0 %2795, %v2747
  %v2797 = vpop.permute.xlu0 %2796
  %2798 = vset.pattern.permute.xlu0 0
  %2799 = vperm.xlu0 %2798, %v2748
  %v2800 = vpop.permute.xlu0 %2799
  %2801 = vset.pattern.permute.xlu0 0
  %2802 = vperm.xlu0 %2801, %v2749
  %v2803 = vpop.permute.xlu0 %2802
  %2804 = vset.pattern.permute.xlu0 0
  %2805 = vperm.xlu0 %2804, %v2750
  %v2806 = vpop.permute.xlu0 %2805
  %v2807 = vlaneseq
  %v2808 = vshrl.u32 %v2807, 7
  %v2809 = vsub.s32 %v19, %v2808
  %v2810 = vrot.slane %v2767, %v2809
  %v2811 = vlaneseq
  %v2812 = vshrl.u32 %v2811, 7
  %v2813 = vsub.s32 %v19, %v2812
  %v2814 = vrot.slane %v2770, %v2813
  %v2815 = vlaneseq
  %v2816 = vshrl.u32 %v2815, 7
  %v2817 = vsub.s32 %v19, %v2816
  %v2818 = vrot.slane %v2773, %v2817
  %v2819 = vlaneseq
  %v2820 = vshrl.u32 %v2819, 7
  %v2821 = vsub.s32 %v19, %v2820
  %v2822 = vrot.slane %v2776, %v2821
  %v2823 = vlaneseq
  %v2824 = vshrl.u32 %v2823, 7
  %v2825 = vsub.s32 %v19, %v2824
  %v2826 = vrot.slane %v2779, %v2825
  %v2827 = vlaneseq
  %v2828 = vshrl.u32 %v2827, 7
  %v2829 = vsub.s32 %v19, %v2828
  %v2830 = vrot.slane %v2782, %v2829
  %v2831 = vlaneseq
  %v2832 = vshrl.u32 %v2831, 7
  %v2833 = vsub.s32 %v19, %v2832
  %v2834 = vrot.slane %v2785, %v2833
  %v2835 = vlaneseq
  %v2836 = vshrl.u32 %v2835, 7
  %v2837 = vsub.s32 %v19, %v2836
  %v2838 = vrot.slane %v2788, %v2837
  %v2839 = vlaneseq
  %v2840 = vshrl.u32 %v2839, 7
  %v2841 = vsub.s32 %v19, %v2840
  %v2842 = vrot.slane %v2791, %v2841
  %v2843 = vlaneseq
  %v2844 = vshrl.u32 %v2843, 7
  %v2845 = vsub.s32 %v19, %v2844
  %v2846 = vrot.slane %v2794, %v2845
  %v2847 = vlaneseq
  %v2848 = vshrl.u32 %v2847, 7
  %v2849 = vsub.s32 %v19, %v2848
  %v2850 = vrot.slane %v2797, %v2849
  %v2851 = vlaneseq
  %v2852 = vshrl.u32 %v2851, 7
  %v2853 = vsub.s32 %v19, %v2852
  %v2854 = vrot.slane %v2800, %v2853
  %v2855 = vlaneseq
  %v2856 = vshrl.u32 %v2855, 7
  %v2857 = vsub.s32 %v19, %v2856
  %v2858 = vrot.slane %v2803, %v2857
  %v2859 = vlaneseq
  %v2860 = vshrl.u32 %v2859, 7
  %v2861 = vsub.s32 %v19, %v2860
  %v2862 = vrot.slane %v2806, %v2861
  %v2863 = vsel %vm190, %v2814, %v2810
  %v2864 = vsel %vm505, %v2818, %v2863
  %v2865 = vsel %vm507, %v2822, %v2864
  %v2866 = vsel %vm509, %v2826, %v2865
  %v2867 = vsel %vm511, %v2830, %v2866
  %v2868 = vsel %vm513, %v2834, %v2867
  %v2869 = vsel %vm190, %v2842, %v2838
  %v2870 = vsel %vm505, %v2846, %v2869
  %v2871 = vsel %vm507, %v2850, %v2870
  %v2872 = vsel %vm509, %v2854, %v2871
  %v2873 = vsel %vm511, %v2858, %v2872
  %v2874 = vsel %vm513, %v2862, %v2873
  %v2877 = vsel %vm75, %v2868, -inf
  %2878 = vmax.xlane.f32.xlu0 %v2877
  %v2879 = vpop.xlane.xlu0 %2878
  %v2880 = vsel %vm75, %v2874, -inf
  %2881 = vmax.xlane.f32.xlu0 %v2880
  %v2882 = vpop.xlane.xlu0 %2881
  %v2885 = vlaneseq
  %v2886 = vshrl.u32 %v2885, 7
  %v2887 = vsub.s32 0, %v2886
  %v2888 = vrot.slane %v2879, %v2887
  %v2889 = vlaneseq
  %v2890 = vshrl.u32 %v2889, 7
  %v2891 = vsub.s32 1, %v2890
  %v2892 = vrot.slane %v2879, %v2891
  %v2893 = vlaneseq
  %v2894 = vshrl.u32 %v2893, 7
  %v2895 = vsub.s32 2, %v2894
  %v2896 = vrot.slane %v2879, %v2895
  %v2897 = vlaneseq
  %v2898 = vshrl.u32 %v2897, 7
  %v2899 = vsub.s32 3, %v2898
  %v2900 = vrot.slane %v2879, %v2899
  %v2901 = vlaneseq
  %v2902 = vshrl.u32 %v2901, 7
  %v2903 = vsub.s32 4, %v2902
  %v2904 = vrot.slane %v2879, %v2903
  %v2905 = vlaneseq
  %v2906 = vshrl.u32 %v2905, 7
  %v2907 = vsub.s32 5, %v2906
  %v2908 = vrot.slane %v2879, %v2907
  %v2909 = vlaneseq
  %v2910 = vshrl.u32 %v2909, 7
  %v2911 = vsub.s32 6, %v2910
  %v2912 = vrot.slane %v2879, %v2911
  %v2913 = vlaneseq
  %v2914 = vshrl.u32 %v2913, 7
  %v2915 = vsub.s32 0, %v2914
  %v2916 = vrot.slane %v2882, %v2915
  %v2917 = vlaneseq
  %v2918 = vshrl.u32 %v2917, 7
  %v2919 = vsub.s32 1, %v2918
  %v2920 = vrot.slane %v2882, %v2919
  %v2921 = vlaneseq
  %v2922 = vshrl.u32 %v2921, 7
  %v2923 = vsub.s32 2, %v2922
  %v2924 = vrot.slane %v2882, %v2923
  %v2925 = vlaneseq
  %v2926 = vshrl.u32 %v2925, 7
  %v2927 = vsub.s32 3, %v2926
  %v2928 = vrot.slane %v2882, %v2927
  %v2929 = vlaneseq
  %v2930 = vshrl.u32 %v2929, 7
  %v2931 = vsub.s32 4, %v2930
  %v2932 = vrot.slane %v2882, %v2931
  %v2933 = vlaneseq
  %v2934 = vshrl.u32 %v2933, 7
  %v2935 = vsub.s32 5, %v2934
  %v2936 = vrot.slane %v2882, %v2935
  %v2937 = vlaneseq
  %v2938 = vshrl.u32 %v2937, 7
  %v2939 = vsub.s32 6, %v2938
  %v2940 = vrot.slane %v2882, %v2939
  %vm2955 = vcmp.eq.f32.partialorder %v2737, %v2888
  %vm2956 = vcmp.eq.f32.partialorder %v2738, %v2892
  %vm2957 = vcmp.eq.f32.partialorder %v2739, %v2896
  %vm2958 = vcmp.eq.f32.partialorder %v2740, %v2900
  %vm2959 = vcmp.eq.f32.partialorder %v2741, %v2904
  %vm2960 = vcmp.eq.f32.partialorder %v2742, %v2908
  %vm2961 = vcmp.eq.f32.partialorder %v2743, %v2912
  %vm2962 = vcmp.eq.f32.partialorder %v2744, %v2916
  %vm2963 = vcmp.eq.f32.partialorder %v2745, %v2920
  %vm2964 = vcmp.eq.f32.partialorder %v2746, %v2924
  %vm2965 = vcmp.eq.f32.partialorder %v2747, %v2928
  %vm2966 = vcmp.eq.f32.partialorder %v2748, %v2932
  %vm2967 = vcmp.eq.f32.partialorder %v2749, %v2936
  %vm2968 = vcmp.eq.f32.partialorder %v2750, %v2940
  %v2969 = vsel %vm2955, %v1050, 7
  %v2970 = vsel %vm2956, %v1050, 7
  %v2971 = vsel %vm2957, %v1050, 7
  %v2972 = vsel %vm2958, %v1050, 7
  %v2973 = vsel %vm2959, %v1050, 7
  %v2974 = vsel %vm2960, %v1050, 7
  %v2975 = vsel %vm2961, %v1050, 7
  %v2976 = vsel %vm2962, %v1050, 7
  %v2977 = vsel %vm2963, %v1050, 7
  %v2978 = vsel %vm2964, %v1050, 7
  %v2979 = vsel %vm2965, %v1050, 7
  %v2980 = vsel %vm2966, %v1050, 7
  %v2981 = vsel %vm2967, %v1050, 7
  %v2982 = vsel %vm2968, %v1050, 7
  %2983 = vset.pattern.permute.xlu0 0
  %2984 = vperm.xlu0 %2983, %v2969
  %v2985 = vpop.permute.xlu0 %2984
  %2986 = vset.pattern.permute.xlu0 0
  %2987 = vperm.xlu0 %2986, %v2970
  %v2988 = vpop.permute.xlu0 %2987
  %2989 = vset.pattern.permute.xlu0 0
  %2990 = vperm.xlu0 %2989, %v2971
  %v2991 = vpop.permute.xlu0 %2990
  %2992 = vset.pattern.permute.xlu0 0
  %2993 = vperm.xlu0 %2992, %v2972
  %v2994 = vpop.permute.xlu0 %2993
  %2995 = vset.pattern.permute.xlu0 0
  %2996 = vperm.xlu0 %2995, %v2973
  %v2997 = vpop.permute.xlu0 %2996
  %2998 = vset.pattern.permute.xlu0 0
  %2999 = vperm.xlu0 %2998, %v2974
  %v3000 = vpop.permute.xlu0 %2999
  %3001 = vset.pattern.permute.xlu0 0
  %3002 = vperm.xlu0 %3001, %v2975
  %v3003 = vpop.permute.xlu0 %3002
  %3004 = vset.pattern.permute.xlu0 0
  %3005 = vperm.xlu0 %3004, %v2976
  %v3006 = vpop.permute.xlu0 %3005
  %3007 = vset.pattern.permute.xlu0 0
  %3008 = vperm.xlu0 %3007, %v2977
  %v3009 = vpop.permute.xlu0 %3008
  %3010 = vset.pattern.permute.xlu0 0
  %3011 = vperm.xlu0 %3010, %v2978
  %v3012 = vpop.permute.xlu0 %3011
  %3013 = vset.pattern.permute.xlu0 0
  %3014 = vperm.xlu0 %3013, %v2979
  %v3015 = vpop.permute.xlu0 %3014
  %3016 = vset.pattern.permute.xlu0 0
  %3017 = vperm.xlu0 %3016, %v2980
  %v3018 = vpop.permute.xlu0 %3017
  %3019 = vset.pattern.permute.xlu0 0
  %3020 = vperm.xlu0 %3019, %v2981
  %v3021 = vpop.permute.xlu0 %3020
  %3022 = vset.pattern.permute.xlu0 0
  %3023 = vperm.xlu0 %3022, %v2982
  %v3024 = vpop.permute.xlu0 %3023
  %v3025 = vlaneseq
  %v3026 = vshrl.u32 %v3025, 7
  %v3027 = vsub.s32 %v19, %v3026
  %v3028 = vrot.slane %v2985, %v3027
  %v3029 = vlaneseq
  %v3030 = vshrl.u32 %v3029, 7
  %v3031 = vsub.s32 %v19, %v3030
  %v3032 = vrot.slane %v2988, %v3031
  %v3033 = vlaneseq
  %v3034 = vshrl.u32 %v3033, 7
  %v3035 = vsub.s32 %v19, %v3034
  %v3036 = vrot.slane %v2991, %v3035
  %v3037 = vlaneseq
  %v3038 = vshrl.u32 %v3037, 7
  %v3039 = vsub.s32 %v19, %v3038
  %v3040 = vrot.slane %v2994, %v3039
  %v3041 = vlaneseq
  %v3042 = vshrl.u32 %v3041, 7
  %v3043 = vsub.s32 %v19, %v3042
  %v3044 = vrot.slane %v2997, %v3043
  %v3045 = vlaneseq
  %v3046 = vshrl.u32 %v3045, 7
  %v3047 = vsub.s32 %v19, %v3046
  %v3048 = vrot.slane %v3000, %v3047
  %v3049 = vlaneseq
  %v3050 = vshrl.u32 %v3049, 7
  %v3051 = vsub.s32 %v19, %v3050
  %v3052 = vrot.slane %v3003, %v3051
  %v3053 = vlaneseq
  %v3054 = vshrl.u32 %v3053, 7
  %v3055 = vsub.s32 %v19, %v3054
  %v3056 = vrot.slane %v3006, %v3055
  %v3057 = vlaneseq
  %v3058 = vshrl.u32 %v3057, 7
  %v3059 = vsub.s32 %v19, %v3058
  %v3060 = vrot.slane %v3009, %v3059
  %v3061 = vlaneseq
  %v3062 = vshrl.u32 %v3061, 7
  %v3063 = vsub.s32 %v19, %v3062
  %v3064 = vrot.slane %v3012, %v3063
  %v3065 = vlaneseq
  %v3066 = vshrl.u32 %v3065, 7
  %v3067 = vsub.s32 %v19, %v3066
  %v3068 = vrot.slane %v3015, %v3067
  %v3069 = vlaneseq
  %v3070 = vshrl.u32 %v3069, 7
  %v3071 = vsub.s32 %v19, %v3070
  %v3072 = vrot.slane %v3018, %v3071
  %v3073 = vlaneseq
  %v3074 = vshrl.u32 %v3073, 7
  %v3075 = vsub.s32 %v19, %v3074
  %v3076 = vrot.slane %v3021, %v3075
  %v3077 = vlaneseq
  %v3078 = vshrl.u32 %v3077, 7
  %v3079 = vsub.s32 %v19, %v3078
  %v3080 = vrot.slane %v3024, %v3079
  %v3081 = vsel %vm190, %v3032, %v3028
  %v3082 = vsel %vm505, %v3036, %v3081
  %v3083 = vsel %vm507, %v3040, %v3082
  %v3084 = vsel %vm509, %v3044, %v3083
  %v3085 = vsel %vm511, %v3048, %v3084
  %v3086 = vsel %vm513, %v3052, %v3085
  %v3087 = vsel %vm190, %v3060, %v3056
  %v3088 = vsel %vm505, %v3064, %v3087
  %v3089 = vsel %vm507, %v3068, %v3088
  %v3090 = vsel %vm509, %v3072, %v3089
  %v3091 = vsel %vm511, %v3076, %v3090
  %v3092 = vsel %vm513, %v3080, %v3091
  %v3093 = vsel %vm75, %v3086, 2147483647
  %v3094 = vand.u32 %v3093, 65535
  %v3095 = vshra.s32 %v3093, 16
  %v3096 = vcvt.s32.f32 %v3094
  %v3097 = vcvt.s32.f32 %v3095
  %3098 = vmin.xlane.f32.xlu0 %v3097
  %v3099 = vpop.xlane.xlu0 %3098
  %vm3100 = vcmp.eq.f32.partialorder %v3097, %v3099
  %v3101 = vsel %vm3100, %v3096, inf
  %3102 = vmin.xlane.f32.xlu0 %v3101
  %v3103 = vpop.xlane.xlu0 %3102
  %v3104 = vcvt.f32.s32 %v3103
  %v3105 = vcvt.f32.s32 %v3099
  %v3106 = vshll.u32 %v3105, 16
  %v3107 = vadd.s32 %v3106, %v3104
  %v3108 = vsel %vm75, %v3092, 2147483647
  %v3109 = vand.u32 %v3108, 65535
  %v3110 = vshra.s32 %v3108, 16
  %v3111 = vcvt.s32.f32 %v3109
  %v3112 = vcvt.s32.f32 %v3110
  %3113 = vmin.xlane.f32.xlu0 %v3112
  %v3114 = vpop.xlane.xlu0 %3113
  %vm3115 = vcmp.eq.f32.partialorder %v3112, %v3114
  %v3116 = vsel %vm3115, %v3111, inf
  %3117 = vmin.xlane.f32.xlu0 %v3116
  %v3118 = vpop.xlane.xlu0 %3117
  %v3119 = vcvt.f32.s32 %v3118
  %v3120 = vcvt.f32.s32 %v3114
  %v3121 = vshll.u32 %v3120, 16
  %v3122 = vadd.s32 %v3121, %v3119
  %v3123 = vlaneseq
  %v3124 = vshrl.u32 %v3123, 7
  %v3125 = vsub.s32 %v19, %v3124
  %v3126 = vrot.slane %v3107, %v3125
  %v3127 = vlaneseq
  %v3128 = vshrl.u32 %v3127, 7
  %v3129 = vsub.s32 %v19, %v3128
  %v3130 = vrot.slane %v3122, %v3129
  %v3131 = vsel %vm190, %v3130, %v3126
  %s3132 = scalar_lea.vmem %s4, 6
  %3133 = vst.msk [vmem:[%s3132] sm:$0x3] %vm192, %v3131
  %v3135 = vlaneseq
  %v3136 = vshrl.u32 %v3135, 7
  %v3137 = vsub.s32 0, %v3136
  %v3138 = vrot.slane %v2201, %v3137
  %3140 = vbcast.lane.b32.xlu0 %v3138, 256
  %v3141 = vpop.permute.xlu0 %3140
  %v3142 = vlaneseq
  %v3143 = vshrl.u32 %v3142, 7
  %v3144 = vsub.s32 1, %v3143
  %v3145 = vrot.slane %v2201, %v3144
  %3147 = vbcast.lane.b32.xlu0 %v3145, 256
  %v3148 = vpop.permute.xlu0 %3147
  %v3151 = vadd.f32 %v2879, %v3141
  %v3152 = vadd.f32 %v2882, %v3148
  %v3153 = vmul.f32 %v3151, %v2709
  %v3154 = vmul.f32 %v3152, %v2713
  %v3155 = vmul.f32 %v2198, %v2726
  %v3156 = vmul.f32 %v2199, %v2730
  %v3157 = vadd.f32 %v3153, %v3155
  %v3158 = vadd.f32 %v3154, %v3156
  %s3159 = scalar_lea.vmem %s0, 8
  %v3160 = vld [vmem:[%s3159] sm:$0x3]
  %s3161 = scalar_lea.vmem %s2, 8
  %v3162 = vld [vmem:[%s3161] sm:$0x3]
  %v3163 = vadd.f32 %v2735, %v228
  %v3164 = vadd.f32 %v2735, %v235
  %v3165 = vadd.f32 %v2735, %v242
  %v3166 = vadd.f32 %v2735, %v249
  %v3167 = vadd.f32 %v2735, %v256
  %v3168 = vadd.f32 %v2735, %v263
  %v3169 = vadd.f32 %v2735, %v270
  %v3170 = vadd.f32 %v2736, %v228
  %v3171 = vadd.f32 %v2736, %v235
  %v3172 = vadd.f32 %v2736, %v242
  %v3173 = vadd.f32 %v2736, %v249
  %v3174 = vadd.f32 %v2736, %v256
  %v3175 = vadd.f32 %v2736, %v263
  %v3176 = vadd.f32 %v2736, %v270
  %v3177 = vlaneseq
  %v3178 = vshrl.u32 %v3177, 7
  %v3179 = vsub.s32 0, %v3178
  %v3180 = vrot.slane %v3160, %v3179
  %3182 = vbcast.lane.b32.xlu0 %v3180, 256
  %v3183 = vpop.permute.xlu0 %3182
  %v3184 = vlaneseq
  %v3185 = vshrl.u32 %v3184, 7
  %v3186 = vsub.s32 1, %v3185
  %v3187 = vrot.slane %v3160, %v3186
  %3189 = vbcast.lane.b32.xlu0 %v3187, 256
  %v3190 = vpop.permute.xlu0 %3189
  %v3193 = vlaneseq
  %v3194 = vshrl.u32 %v3193, 7
  %v3195 = vsub.s32 0, %v3194
  %v3196 = vrot.slane %v3183, %v3195
  %v3197 = vlaneseq
  %v3198 = vshrl.u32 %v3197, 7
  %v3199 = vsub.s32 1, %v3198
  %v3200 = vrot.slane %v3183, %v3199
  %v3201 = vlaneseq
  %v3202 = vshrl.u32 %v3201, 7
  %v3203 = vsub.s32 2, %v3202
  %v3204 = vrot.slane %v3183, %v3203
  %v3205 = vlaneseq
  %v3206 = vshrl.u32 %v3205, 7
  %v3207 = vsub.s32 3, %v3206
  %v3208 = vrot.slane %v3183, %v3207
  %v3209 = vlaneseq
  %v3210 = vshrl.u32 %v3209, 7
  %v3211 = vsub.s32 4, %v3210
  %v3212 = vrot.slane %v3183, %v3211
  %v3213 = vlaneseq
  %v3214 = vshrl.u32 %v3213, 7
  %v3215 = vsub.s32 5, %v3214
  %v3216 = vrot.slane %v3183, %v3215
  %v3217 = vlaneseq
  %v3218 = vshrl.u32 %v3217, 7
  %v3219 = vsub.s32 6, %v3218
  %v3220 = vrot.slane %v3183, %v3219
  %v3221 = vlaneseq
  %v3222 = vshrl.u32 %v3221, 7
  %v3223 = vsub.s32 0, %v3222
  %v3224 = vrot.slane %v3190, %v3223
  %v3225 = vlaneseq
  %v3226 = vshrl.u32 %v3225, 7
  %v3227 = vsub.s32 1, %v3226
  %v3228 = vrot.slane %v3190, %v3227
  %v3229 = vlaneseq
  %v3230 = vshrl.u32 %v3229, 7
  %v3231 = vsub.s32 2, %v3230
  %v3232 = vrot.slane %v3190, %v3231
  %v3233 = vlaneseq
  %v3234 = vshrl.u32 %v3233, 7
  %v3235 = vsub.s32 3, %v3234
  %v3236 = vrot.slane %v3190, %v3235
  %v3237 = vlaneseq
  %v3238 = vshrl.u32 %v3237, 7
  %v3239 = vsub.s32 4, %v3238
  %v3240 = vrot.slane %v3190, %v3239
  %v3241 = vlaneseq
  %v3242 = vshrl.u32 %v3241, 7
  %v3243 = vsub.s32 5, %v3242
  %v3244 = vrot.slane %v3190, %v3243
  %v3245 = vlaneseq
  %v3246 = vshrl.u32 %v3245, 7
  %v3247 = vsub.s32 6, %v3246
  %v3248 = vrot.slane %v3190, %v3247
  %v3263 = vadd.f32 %v3163, %v3196
  %v3264 = vadd.f32 %v3164, %v3200
  %v3265 = vadd.f32 %v3165, %v3204
  %v3266 = vadd.f32 %v3166, %v3208
  %v3267 = vadd.f32 %v3167, %v3212
  %v3268 = vadd.f32 %v3168, %v3216
  %v3269 = vadd.f32 %v3169, %v3220
  %v3270 = vadd.f32 %v3170, %v3224
  %v3271 = vadd.f32 %v3171, %v3228
  %v3272 = vadd.f32 %v3172, %v3232
  %v3273 = vadd.f32 %v3173, %v3236
  %v3274 = vadd.f32 %v3174, %v3240
  %v3275 = vadd.f32 %v3175, %v3244
  %v3276 = vadd.f32 %v3176, %v3248
  %3291 = vset.pattern.permute.xlu0 0
  %3292 = vperm.xlu0 %3291, %v3263
  %v3293 = vpop.permute.xlu0 %3292
  %3294 = vset.pattern.permute.xlu0 0
  %3295 = vperm.xlu0 %3294, %v3264
  %v3296 = vpop.permute.xlu0 %3295
  %3297 = vset.pattern.permute.xlu0 0
  %3298 = vperm.xlu0 %3297, %v3265
  %v3299 = vpop.permute.xlu0 %3298
  %3300 = vset.pattern.permute.xlu0 0
  %3301 = vperm.xlu0 %3300, %v3266
  %v3302 = vpop.permute.xlu0 %3301
  %3303 = vset.pattern.permute.xlu0 0
  %3304 = vperm.xlu0 %3303, %v3267
  %v3305 = vpop.permute.xlu0 %3304
  %3306 = vset.pattern.permute.xlu0 0
  %3307 = vperm.xlu0 %3306, %v3268
  %v3308 = vpop.permute.xlu0 %3307
  %3309 = vset.pattern.permute.xlu0 0
  %3310 = vperm.xlu0 %3309, %v3269
  %v3311 = vpop.permute.xlu0 %3310
  %3312 = vset.pattern.permute.xlu0 0
  %3313 = vperm.xlu0 %3312, %v3270
  %v3314 = vpop.permute.xlu0 %3313
  %3315 = vset.pattern.permute.xlu0 0
  %3316 = vperm.xlu0 %3315, %v3271
  %v3317 = vpop.permute.xlu0 %3316
  %3318 = vset.pattern.permute.xlu0 0
  %3319 = vperm.xlu0 %3318, %v3272
  %v3320 = vpop.permute.xlu0 %3319
  %3321 = vset.pattern.permute.xlu0 0
  %3322 = vperm.xlu0 %3321, %v3273
  %v3323 = vpop.permute.xlu0 %3322
  %3324 = vset.pattern.permute.xlu0 0
  %3325 = vperm.xlu0 %3324, %v3274
  %v3326 = vpop.permute.xlu0 %3325
  %3327 = vset.pattern.permute.xlu0 0
  %3328 = vperm.xlu0 %3327, %v3275
  %v3329 = vpop.permute.xlu0 %3328
  %3330 = vset.pattern.permute.xlu0 0
  %3331 = vperm.xlu0 %3330, %v3276
  %v3332 = vpop.permute.xlu0 %3331
  %v3333 = vlaneseq
  %v3334 = vshrl.u32 %v3333, 7
  %v3335 = vsub.s32 %v19, %v3334
  %v3336 = vrot.slane %v3293, %v3335
  %v3337 = vlaneseq
  %v3338 = vshrl.u32 %v3337, 7
  %v3339 = vsub.s32 %v19, %v3338
  %v3340 = vrot.slane %v3296, %v3339
  %v3341 = vlaneseq
  %v3342 = vshrl.u32 %v3341, 7
  %v3343 = vsub.s32 %v19, %v3342
  %v3344 = vrot.slane %v3299, %v3343
  %v3345 = vlaneseq
  %v3346 = vshrl.u32 %v3345, 7
  %v3347 = vsub.s32 %v19, %v3346
  %v3348 = vrot.slane %v3302, %v3347
  %v3349 = vlaneseq
  %v3350 = vshrl.u32 %v3349, 7
  %v3351 = vsub.s32 %v19, %v3350
  %v3352 = vrot.slane %v3305, %v3351
  %v3353 = vlaneseq
  %v3354 = vshrl.u32 %v3353, 7
  %v3355 = vsub.s32 %v19, %v3354
  %v3356 = vrot.slane %v3308, %v3355
  %v3357 = vlaneseq
  %v3358 = vshrl.u32 %v3357, 7
  %v3359 = vsub.s32 %v19, %v3358
  %v3360 = vrot.slane %v3311, %v3359
  %v3361 = vlaneseq
  %v3362 = vshrl.u32 %v3361, 7
  %v3363 = vsub.s32 %v19, %v3362
  %v3364 = vrot.slane %v3314, %v3363
  %v3365 = vlaneseq
  %v3366 = vshrl.u32 %v3365, 7
  %v3367 = vsub.s32 %v19, %v3366
  %v3368 = vrot.slane %v3317, %v3367
  %v3369 = vlaneseq
  %v3370 = vshrl.u32 %v3369, 7
  %v3371 = vsub.s32 %v19, %v3370
  %v3372 = vrot.slane %v3320, %v3371
  %v3373 = vlaneseq
  %v3374 = vshrl.u32 %v3373, 7
  %v3375 = vsub.s32 %v19, %v3374
  %v3376 = vrot.slane %v3323, %v3375
  %v3377 = vlaneseq
  %v3378 = vshrl.u32 %v3377, 7
  %v3379 = vsub.s32 %v19, %v3378
  %v3380 = vrot.slane %v3326, %v3379
  %v3381 = vlaneseq
  %v3382 = vshrl.u32 %v3381, 7
  %v3383 = vsub.s32 %v19, %v3382
  %v3384 = vrot.slane %v3329, %v3383
  %v3385 = vlaneseq
  %v3386 = vshrl.u32 %v3385, 7
  %v3387 = vsub.s32 %v19, %v3386
  %v3388 = vrot.slane %v3332, %v3387
  %v3389 = vsel %vm190, %v3340, %v3336
  %v3390 = vsel %vm505, %v3344, %v3389
  %v3391 = vsel %vm507, %v3348, %v3390
  %v3392 = vsel %vm509, %v3352, %v3391
  %v3393 = vsel %vm511, %v3356, %v3392
  %v3394 = vsel %vm513, %v3360, %v3393
  %v3395 = vsel %vm190, %v3368, %v3364
  %v3396 = vsel %vm505, %v3372, %v3395
  %v3397 = vsel %vm507, %v3376, %v3396
  %v3398 = vsel %vm509, %v3380, %v3397
  %v3399 = vsel %vm511, %v3384, %v3398
  %v3400 = vsel %vm513, %v3388, %v3399
  %v3403 = vsel %vm75, %v3394, -inf
  %3404 = vmax.xlane.f32.xlu0 %v3403
  %v3405 = vpop.xlane.xlu0 %3404
  %v3406 = vsel %vm75, %v3400, -inf
  %3407 = vmax.xlane.f32.xlu0 %v3406
  %v3408 = vpop.xlane.xlu0 %3407
  %v3411 = vlaneseq
  %v3412 = vshrl.u32 %v3411, 7
  %v3413 = vsub.s32 0, %v3412
  %v3414 = vrot.slane %v3405, %v3413
  %v3415 = vlaneseq
  %v3416 = vshrl.u32 %v3415, 7
  %v3417 = vsub.s32 1, %v3416
  %v3418 = vrot.slane %v3405, %v3417
  %v3419 = vlaneseq
  %v3420 = vshrl.u32 %v3419, 7
  %v3421 = vsub.s32 2, %v3420
  %v3422 = vrot.slane %v3405, %v3421
  %v3423 = vlaneseq
  %v3424 = vshrl.u32 %v3423, 7
  %v3425 = vsub.s32 3, %v3424
  %v3426 = vrot.slane %v3405, %v3425
  %v3427 = vlaneseq
  %v3428 = vshrl.u32 %v3427, 7
  %v3429 = vsub.s32 4, %v3428
  %v3430 = vrot.slane %v3405, %v3429
  %v3431 = vlaneseq
  %v3432 = vshrl.u32 %v3431, 7
  %v3433 = vsub.s32 5, %v3432
  %v3434 = vrot.slane %v3405, %v3433
  %v3435 = vlaneseq
  %v3436 = vshrl.u32 %v3435, 7
  %v3437 = vsub.s32 6, %v3436
  %v3438 = vrot.slane %v3405, %v3437
  %v3439 = vlaneseq
  %v3440 = vshrl.u32 %v3439, 7
  %v3441 = vsub.s32 0, %v3440
  %v3442 = vrot.slane %v3408, %v3441
  %v3443 = vlaneseq
  %v3444 = vshrl.u32 %v3443, 7
  %v3445 = vsub.s32 1, %v3444
  %v3446 = vrot.slane %v3408, %v3445
  %v3447 = vlaneseq
  %v3448 = vshrl.u32 %v3447, 7
  %v3449 = vsub.s32 2, %v3448
  %v3450 = vrot.slane %v3408, %v3449
  %v3451 = vlaneseq
  %v3452 = vshrl.u32 %v3451, 7
  %v3453 = vsub.s32 3, %v3452
  %v3454 = vrot.slane %v3408, %v3453
  %v3455 = vlaneseq
  %v3456 = vshrl.u32 %v3455, 7
  %v3457 = vsub.s32 4, %v3456
  %v3458 = vrot.slane %v3408, %v3457
  %v3459 = vlaneseq
  %v3460 = vshrl.u32 %v3459, 7
  %v3461 = vsub.s32 5, %v3460
  %v3462 = vrot.slane %v3408, %v3461
  %v3463 = vlaneseq
  %v3464 = vshrl.u32 %v3463, 7
  %v3465 = vsub.s32 6, %v3464
  %v3466 = vrot.slane %v3408, %v3465
  %v3481 = vsub.f32 %v3263, %v3414
  %v3482 = vsub.f32 %v3264, %v3418
  %v3483 = vsub.f32 %v3265, %v3422
  %v3484 = vsub.f32 %v3266, %v3426
  %v3485 = vsub.f32 %v3267, %v3430
  %v3486 = vsub.f32 %v3268, %v3434
  %v3487 = vsub.f32 %v3269, %v3438
  %v3488 = vsub.f32 %v3270, %v3442
  %v3489 = vsub.f32 %v3271, %v3446
  %v3490 = vsub.f32 %v3272, %v3450
  %v3491 = vsub.f32 %v3273, %v3454
  %v3492 = vsub.f32 %v3274, %v3458
  %v3493 = vsub.f32 %v3275, %v3462
  %v3494 = vsub.f32 %v3276, %v3466
  %v3495 = vmul.f32 %v3481, 1.442695
  %v3496 = vpow.pop %v3495
  %v3497 = vmul.f32 %v3482, 1.442695
  %v3498 = vpow.pop %v3497
  %v3499 = vmul.f32 %v3483, 1.442695
  %v3500 = vpow.pop %v3499
  %v3501 = vmul.f32 %v3484, 1.442695
  %v3502 = vpow.pop %v3501
  %v3503 = vmul.f32 %v3485, 1.442695
  %v3504 = vpow.pop %v3503
  %v3505 = vmul.f32 %v3486, 1.442695
  %v3506 = vpow.pop %v3505
  %v3507 = vmul.f32 %v3487, 1.442695
  %v3508 = vpow.pop %v3507
  %v3509 = vmul.f32 %v3488, 1.442695
  %v3510 = vpow.pop %v3509
  %v3511 = vmul.f32 %v3489, 1.442695
  %v3512 = vpow.pop %v3511
  %v3513 = vmul.f32 %v3490, 1.442695
  %v3514 = vpow.pop %v3513
  %v3515 = vmul.f32 %v3491, 1.442695
  %v3516 = vpow.pop %v3515
  %v3517 = vmul.f32 %v3492, 1.442695
  %v3518 = vpow.pop %v3517
  %v3519 = vmul.f32 %v3493, 1.442695
  %v3520 = vpow.pop %v3519
  %v3521 = vmul.f32 %v3494, 1.442695
  %v3522 = vpow.pop %v3521
  %3537 = vset.pattern.permute.xlu0 0
  %3538 = vperm.xlu0 %3537, %v3496
  %v3539 = vpop.permute.xlu0 %3538
  %3540 = vset.pattern.permute.xlu0 0
  %3541 = vperm.xlu0 %3540, %v3498
  %v3542 = vpop.permute.xlu0 %3541
  %3543 = vset.pattern.permute.xlu0 0
  %3544 = vperm.xlu0 %3543, %v3500
  %v3545 = vpop.permute.xlu0 %3544
  %3546 = vset.pattern.permute.xlu0 0
  %3547 = vperm.xlu0 %3546, %v3502
  %v3548 = vpop.permute.xlu0 %3547
  %3549 = vset.pattern.permute.xlu0 0
  %3550 = vperm.xlu0 %3549, %v3504
  %v3551 = vpop.permute.xlu0 %3550
  %3552 = vset.pattern.permute.xlu0 0
  %3553 = vperm.xlu0 %3552, %v3506
  %v3554 = vpop.permute.xlu0 %3553
  %3555 = vset.pattern.permute.xlu0 0
  %3556 = vperm.xlu0 %3555, %v3508
  %v3557 = vpop.permute.xlu0 %3556
  %3558 = vset.pattern.permute.xlu0 0
  %3559 = vperm.xlu0 %3558, %v3510
  %v3560 = vpop.permute.xlu0 %3559
  %3561 = vset.pattern.permute.xlu0 0
  %3562 = vperm.xlu0 %3561, %v3512
  %v3563 = vpop.permute.xlu0 %3562
  %3564 = vset.pattern.permute.xlu0 0
  %3565 = vperm.xlu0 %3564, %v3514
  %v3566 = vpop.permute.xlu0 %3565
  %3567 = vset.pattern.permute.xlu0 0
  %3568 = vperm.xlu0 %3567, %v3516
  %v3569 = vpop.permute.xlu0 %3568
  %3570 = vset.pattern.permute.xlu0 0
  %3571 = vperm.xlu0 %3570, %v3518
  %v3572 = vpop.permute.xlu0 %3571
  %3573 = vset.pattern.permute.xlu0 0
  %3574 = vperm.xlu0 %3573, %v3520
  %v3575 = vpop.permute.xlu0 %3574
  %3576 = vset.pattern.permute.xlu0 0
  %3577 = vperm.xlu0 %3576, %v3522
  %v3578 = vpop.permute.xlu0 %3577
  %v3579 = vlaneseq
  %v3580 = vshrl.u32 %v3579, 7
  %v3581 = vsub.s32 %v19, %v3580
  %v3582 = vrot.slane %v3539, %v3581
  %v3583 = vlaneseq
  %v3584 = vshrl.u32 %v3583, 7
  %v3585 = vsub.s32 %v19, %v3584
  %v3586 = vrot.slane %v3542, %v3585
  %v3587 = vlaneseq
  %v3588 = vshrl.u32 %v3587, 7
  %v3589 = vsub.s32 %v19, %v3588
  %v3590 = vrot.slane %v3545, %v3589
  %v3591 = vlaneseq
  %v3592 = vshrl.u32 %v3591, 7
  %v3593 = vsub.s32 %v19, %v3592
  %v3594 = vrot.slane %v3548, %v3593
  %v3595 = vlaneseq
  %v3596 = vshrl.u32 %v3595, 7
  %v3597 = vsub.s32 %v19, %v3596
  %v3598 = vrot.slane %v3551, %v3597
  %v3599 = vlaneseq
  %v3600 = vshrl.u32 %v3599, 7
  %v3601 = vsub.s32 %v19, %v3600
  %v3602 = vrot.slane %v3554, %v3601
  %v3603 = vlaneseq
  %v3604 = vshrl.u32 %v3603, 7
  %v3605 = vsub.s32 %v19, %v3604
  %v3606 = vrot.slane %v3557, %v3605
  %v3607 = vlaneseq
  %v3608 = vshrl.u32 %v3607, 7
  %v3609 = vsub.s32 %v19, %v3608
  %v3610 = vrot.slane %v3560, %v3609
  %v3611 = vlaneseq
  %v3612 = vshrl.u32 %v3611, 7
  %v3613 = vsub.s32 %v19, %v3612
  %v3614 = vrot.slane %v3563, %v3613
  %v3615 = vlaneseq
  %v3616 = vshrl.u32 %v3615, 7
  %v3617 = vsub.s32 %v19, %v3616
  %v3618 = vrot.slane %v3566, %v3617
  %v3619 = vlaneseq
  %v3620 = vshrl.u32 %v3619, 7
  %v3621 = vsub.s32 %v19, %v3620
  %v3622 = vrot.slane %v3569, %v3621
  %v3623 = vlaneseq
  %v3624 = vshrl.u32 %v3623, 7
  %v3625 = vsub.s32 %v19, %v3624
  %v3626 = vrot.slane %v3572, %v3625
  %v3627 = vlaneseq
  %v3628 = vshrl.u32 %v3627, 7
  %v3629 = vsub.s32 %v19, %v3628
  %v3630 = vrot.slane %v3575, %v3629
  %v3631 = vlaneseq
  %v3632 = vshrl.u32 %v3631, 7
  %v3633 = vsub.s32 %v19, %v3632
  %v3634 = vrot.slane %v3578, %v3633
  %v3635 = vsel %vm190, %v3586, %v3582
  %v3636 = vsel %vm505, %v3590, %v3635
  %v3637 = vsel %vm507, %v3594, %v3636
  %v3638 = vsel %vm509, %v3598, %v3637
  %v3639 = vsel %vm511, %v3602, %v3638
  %v3640 = vsel %vm513, %v3606, %v3639
  %v3641 = vsel %vm190, %v3614, %v3610
  %v3642 = vsel %vm505, %v3618, %v3641
  %v3643 = vsel %vm507, %v3622, %v3642
  %v3644 = vsel %vm509, %v3626, %v3643
  %v3645 = vsel %vm511, %v3630, %v3644
  %v3646 = vsel %vm513, %v3634, %v3645
  %v3649 = vsel %vm75, %v3640, 0.0
  %3650 = vadd.xlane.f32.xlu0 %v3649
  %v3651 = vpop.xlane.xlu0 %3650
  %v3652 = vsel %vm75, %v3646, 0.0
  %3653 = vadd.xlane.f32.xlu0 %v3652
  %v3654 = vpop.xlane.xlu0 %3653
  %v3655 = vlog2.pop %v3651
  %v3656 = vmul.f32 %v3655, 0.6931472
  %v3657 = vlog2.pop %v3654
  %v3658 = vmul.f32 %v3657, 0.6931472
  %v3659 = vadd.f32 %v3405, %v3656
  %v3660 = vadd.f32 %v3408, %v3658
  %3662 = vset.pattern.permute.xlu0 0
  %3663 = vperm.xlu0 %3662, %v3162
  %v3664 = vpop.permute.xlu0 %3663
  %v3665 = vlaneseq
  %v3666 = vshrl.u32 %v3665, 7
  %v3667 = vsub.s32 0, %v3666
  %v3668 = vrot.slane %v3664, %v3667
  %v3669 = vlaneseq
  %v3670 = vshrl.u32 %v3669, 7
  %v3671 = vsub.s32 1, %v3670
  %v3672 = vrot.slane %v3664, %v3671
  %v3675 = vmul.f32 %v3659, %v3668
  %v3676 = vmul.f32 %v3660, %v3672
  %v3677 = vsub.f32 1.0, %v3162
  %3679 = vset.pattern.permute.xlu0 0
  %3680 = vperm.xlu0 %3679, %v3677
  %v3681 = vpop.permute.xlu0 %3680
  %v3682 = vlaneseq
  %v3683 = vshrl.u32 %v3682, 7
  %v3684 = vsub.s32 0, %v3683
  %v3685 = vrot.slane %v3681, %v3684
  %v3686 = vlaneseq
  %v3687 = vshrl.u32 %v3686, 7
  %v3688 = vsub.s32 1, %v3687
  %v3689 = vrot.slane %v3681, %v3688
  %v3692 = vmul.f32 %v2735, %v3685
  %v3693 = vmul.f32 %v2736, %v3689
  %v3694 = vadd.f32 %v3675, %v3692
  %v3695 = vadd.f32 %v3676, %v3693
  %v3696 = vadd.f32 %v3157, %v228
  %v3697 = vadd.f32 %v3157, %v235
  %v3698 = vadd.f32 %v3157, %v242
  %v3699 = vadd.f32 %v3157, %v249
  %v3700 = vadd.f32 %v3157, %v256
  %v3701 = vadd.f32 %v3157, %v263
  %v3702 = vadd.f32 %v3157, %v270
  %v3703 = vadd.f32 %v3158, %v228
  %v3704 = vadd.f32 %v3158, %v235
  %v3705 = vadd.f32 %v3158, %v242
  %v3706 = vadd.f32 %v3158, %v249
  %v3707 = vadd.f32 %v3158, %v256
  %v3708 = vadd.f32 %v3158, %v263
  %v3709 = vadd.f32 %v3158, %v270
  %3724 = vset.pattern.permute.xlu0 0
  %3725 = vperm.xlu0 %3724, %v3696
  %v3726 = vpop.permute.xlu0 %3725
  %3727 = vset.pattern.permute.xlu0 0
  %3728 = vperm.xlu0 %3727, %v3697
  %v3729 = vpop.permute.xlu0 %3728
  %3730 = vset.pattern.permute.xlu0 0
  %3731 = vperm.xlu0 %3730, %v3698
  %v3732 = vpop.permute.xlu0 %3731
  %3733 = vset.pattern.permute.xlu0 0
  %3734 = vperm.xlu0 %3733, %v3699
  %v3735 = vpop.permute.xlu0 %3734
  %3736 = vset.pattern.permute.xlu0 0
  %3737 = vperm.xlu0 %3736, %v3700
  %v3738 = vpop.permute.xlu0 %3737
  %3739 = vset.pattern.permute.xlu0 0
  %3740 = vperm.xlu0 %3739, %v3701
  %v3741 = vpop.permute.xlu0 %3740
  %3742 = vset.pattern.permute.xlu0 0
  %3743 = vperm.xlu0 %3742, %v3702
  %v3744 = vpop.permute.xlu0 %3743
  %3745 = vset.pattern.permute.xlu0 0
  %3746 = vperm.xlu0 %3745, %v3703
  %v3747 = vpop.permute.xlu0 %3746
  %3748 = vset.pattern.permute.xlu0 0
  %3749 = vperm.xlu0 %3748, %v3704
  %v3750 = vpop.permute.xlu0 %3749
  %3751 = vset.pattern.permute.xlu0 0
  %3752 = vperm.xlu0 %3751, %v3705
  %v3753 = vpop.permute.xlu0 %3752
  %3754 = vset.pattern.permute.xlu0 0
  %3755 = vperm.xlu0 %3754, %v3706
  %v3756 = vpop.permute.xlu0 %3755
  %3757 = vset.pattern.permute.xlu0 0
  %3758 = vperm.xlu0 %3757, %v3707
  %v3759 = vpop.permute.xlu0 %3758
  %3760 = vset.pattern.permute.xlu0 0
  %3761 = vperm.xlu0 %3760, %v3708
  %v3762 = vpop.permute.xlu0 %3761
  %3763 = vset.pattern.permute.xlu0 0
  %3764 = vperm.xlu0 %3763, %v3709
  %v3765 = vpop.permute.xlu0 %3764
  %v3766 = vlaneseq
  %v3767 = vshrl.u32 %v3766, 7
  %v3768 = vsub.s32 %v19, %v3767
  %v3769 = vrot.slane %v3726, %v3768
  %v3770 = vlaneseq
  %v3771 = vshrl.u32 %v3770, 7
  %v3772 = vsub.s32 %v19, %v3771
  %v3773 = vrot.slane %v3729, %v3772
  %v3774 = vlaneseq
  %v3775 = vshrl.u32 %v3774, 7
  %v3776 = vsub.s32 %v19, %v3775
  %v3777 = vrot.slane %v3732, %v3776
  %v3778 = vlaneseq
  %v3779 = vshrl.u32 %v3778, 7
  %v3780 = vsub.s32 %v19, %v3779
  %v3781 = vrot.slane %v3735, %v3780
  %v3782 = vlaneseq
  %v3783 = vshrl.u32 %v3782, 7
  %v3784 = vsub.s32 %v19, %v3783
  %v3785 = vrot.slane %v3738, %v3784
  %v3786 = vlaneseq
  %v3787 = vshrl.u32 %v3786, 7
  %v3788 = vsub.s32 %v19, %v3787
  %v3789 = vrot.slane %v3741, %v3788
  %v3790 = vlaneseq
  %v3791 = vshrl.u32 %v3790, 7
  %v3792 = vsub.s32 %v19, %v3791
  %v3793 = vrot.slane %v3744, %v3792
  %v3794 = vlaneseq
  %v3795 = vshrl.u32 %v3794, 7
  %v3796 = vsub.s32 %v19, %v3795
  %v3797 = vrot.slane %v3747, %v3796
  %v3798 = vlaneseq
  %v3799 = vshrl.u32 %v3798, 7
  %v3800 = vsub.s32 %v19, %v3799
  %v3801 = vrot.slane %v3750, %v3800
  %v3802 = vlaneseq
  %v3803 = vshrl.u32 %v3802, 7
  %v3804 = vsub.s32 %v19, %v3803
  %v3805 = vrot.slane %v3753, %v3804
  %v3806 = vlaneseq
  %v3807 = vshrl.u32 %v3806, 7
  %v3808 = vsub.s32 %v19, %v3807
  %v3809 = vrot.slane %v3756, %v3808
  %v3810 = vlaneseq
  %v3811 = vshrl.u32 %v3810, 7
  %v3812 = vsub.s32 %v19, %v3811
  %v3813 = vrot.slane %v3759, %v3812
  %v3814 = vlaneseq
  %v3815 = vshrl.u32 %v3814, 7
  %v3816 = vsub.s32 %v19, %v3815
  %v3817 = vrot.slane %v3762, %v3816
  %v3818 = vlaneseq
  %v3819 = vshrl.u32 %v3818, 7
  %v3820 = vsub.s32 %v19, %v3819
  %v3821 = vrot.slane %v3765, %v3820
  %v3822 = vsel %vm190, %v3773, %v3769
  %v3823 = vsel %vm505, %v3777, %v3822
  %v3824 = vsel %vm507, %v3781, %v3823
  %v3825 = vsel %vm509, %v3785, %v3824
  %v3826 = vsel %vm511, %v3789, %v3825
  %v3827 = vsel %vm513, %v3793, %v3826
  %v3828 = vsel %vm190, %v3801, %v3797
  %v3829 = vsel %vm505, %v3805, %v3828
  %v3830 = vsel %vm507, %v3809, %v3829
  %v3831 = vsel %vm509, %v3813, %v3830
  %v3832 = vsel %vm511, %v3817, %v3831
  %v3833 = vsel %vm513, %v3821, %v3832
  %v3836 = vsel %vm75, %v3827, -inf
  %3837 = vmax.xlane.f32.xlu0 %v3836
  %v3838 = vpop.xlane.xlu0 %3837
  %v3839 = vsel %vm75, %v3833, -inf
  %3840 = vmax.xlane.f32.xlu0 %v3839
  %v3841 = vpop.xlane.xlu0 %3840
  %v3844 = vlaneseq
  %v3845 = vshrl.u32 %v3844, 7
  %v3846 = vsub.s32 0, %v3845
  %v3847 = vrot.slane %v3838, %v3846
  %v3848 = vlaneseq
  %v3849 = vshrl.u32 %v3848, 7
  %v3850 = vsub.s32 1, %v3849
  %v3851 = vrot.slane %v3838, %v3850
  %v3852 = vlaneseq
  %v3853 = vshrl.u32 %v3852, 7
  %v3854 = vsub.s32 2, %v3853
  %v3855 = vrot.slane %v3838, %v3854
  %v3856 = vlaneseq
  %v3857 = vshrl.u32 %v3856, 7
  %v3858 = vsub.s32 3, %v3857
  %v3859 = vrot.slane %v3838, %v3858
  %v3860 = vlaneseq
  %v3861 = vshrl.u32 %v3860, 7
  %v3862 = vsub.s32 4, %v3861
  %v3863 = vrot.slane %v3838, %v3862
  %v3864 = vlaneseq
  %v3865 = vshrl.u32 %v3864, 7
  %v3866 = vsub.s32 5, %v3865
  %v3867 = vrot.slane %v3838, %v3866
  %v3868 = vlaneseq
  %v3869 = vshrl.u32 %v3868, 7
  %v3870 = vsub.s32 6, %v3869
  %v3871 = vrot.slane %v3838, %v3870
  %v3872 = vlaneseq
  %v3873 = vshrl.u32 %v3872, 7
  %v3874 = vsub.s32 0, %v3873
  %v3875 = vrot.slane %v3841, %v3874
  %v3876 = vlaneseq
  %v3877 = vshrl.u32 %v3876, 7
  %v3878 = vsub.s32 1, %v3877
  %v3879 = vrot.slane %v3841, %v3878
  %v3880 = vlaneseq
  %v3881 = vshrl.u32 %v3880, 7
  %v3882 = vsub.s32 2, %v3881
  %v3883 = vrot.slane %v3841, %v3882
  %v3884 = vlaneseq
  %v3885 = vshrl.u32 %v3884, 7
  %v3886 = vsub.s32 3, %v3885
  %v3887 = vrot.slane %v3841, %v3886
  %v3888 = vlaneseq
  %v3889 = vshrl.u32 %v3888, 7
  %v3890 = vsub.s32 4, %v3889
  %v3891 = vrot.slane %v3841, %v3890
  %v3892 = vlaneseq
  %v3893 = vshrl.u32 %v3892, 7
  %v3894 = vsub.s32 5, %v3893
  %v3895 = vrot.slane %v3841, %v3894
  %v3896 = vlaneseq
  %v3897 = vshrl.u32 %v3896, 7
  %v3898 = vsub.s32 6, %v3897
  %v3899 = vrot.slane %v3841, %v3898
  %vm3914 = vcmp.eq.f32.partialorder %v3696, %v3847
  %vm3915 = vcmp.eq.f32.partialorder %v3697, %v3851
  %vm3916 = vcmp.eq.f32.partialorder %v3698, %v3855
  %vm3917 = vcmp.eq.f32.partialorder %v3699, %v3859
  %vm3918 = vcmp.eq.f32.partialorder %v3700, %v3863
  %vm3919 = vcmp.eq.f32.partialorder %v3701, %v3867
  %vm3920 = vcmp.eq.f32.partialorder %v3702, %v3871
  %vm3921 = vcmp.eq.f32.partialorder %v3703, %v3875
  %vm3922 = vcmp.eq.f32.partialorder %v3704, %v3879
  %vm3923 = vcmp.eq.f32.partialorder %v3705, %v3883
  %vm3924 = vcmp.eq.f32.partialorder %v3706, %v3887
  %vm3925 = vcmp.eq.f32.partialorder %v3707, %v3891
  %vm3926 = vcmp.eq.f32.partialorder %v3708, %v3895
  %vm3927 = vcmp.eq.f32.partialorder %v3709, %v3899
  %v3928 = vsel %vm3914, %v1050, 7
  %v3929 = vsel %vm3915, %v1050, 7
  %v3930 = vsel %vm3916, %v1050, 7
  %v3931 = vsel %vm3917, %v1050, 7
  %v3932 = vsel %vm3918, %v1050, 7
  %v3933 = vsel %vm3919, %v1050, 7
  %v3934 = vsel %vm3920, %v1050, 7
  %v3935 = vsel %vm3921, %v1050, 7
  %v3936 = vsel %vm3922, %v1050, 7
  %v3937 = vsel %vm3923, %v1050, 7
  %v3938 = vsel %vm3924, %v1050, 7
  %v3939 = vsel %vm3925, %v1050, 7
  %v3940 = vsel %vm3926, %v1050, 7
  %v3941 = vsel %vm3927, %v1050, 7
  %3942 = vset.pattern.permute.xlu0 0
  %3943 = vperm.xlu0 %3942, %v3928
  %v3944 = vpop.permute.xlu0 %3943
  %3945 = vset.pattern.permute.xlu0 0
  %3946 = vperm.xlu0 %3945, %v3929
  %v3947 = vpop.permute.xlu0 %3946
  %3948 = vset.pattern.permute.xlu0 0
  %3949 = vperm.xlu0 %3948, %v3930
  %v3950 = vpop.permute.xlu0 %3949
  %3951 = vset.pattern.permute.xlu0 0
  %3952 = vperm.xlu0 %3951, %v3931
  %v3953 = vpop.permute.xlu0 %3952
  %3954 = vset.pattern.permute.xlu0 0
  %3955 = vperm.xlu0 %3954, %v3932
  %v3956 = vpop.permute.xlu0 %3955
  %3957 = vset.pattern.permute.xlu0 0
  %3958 = vperm.xlu0 %3957, %v3933
  %v3959 = vpop.permute.xlu0 %3958
  %3960 = vset.pattern.permute.xlu0 0
  %3961 = vperm.xlu0 %3960, %v3934
  %v3962 = vpop.permute.xlu0 %3961
  %3963 = vset.pattern.permute.xlu0 0
  %3964 = vperm.xlu0 %3963, %v3935
  %v3965 = vpop.permute.xlu0 %3964
  %3966 = vset.pattern.permute.xlu0 0
  %3967 = vperm.xlu0 %3966, %v3936
  %v3968 = vpop.permute.xlu0 %3967
  %3969 = vset.pattern.permute.xlu0 0
  %3970 = vperm.xlu0 %3969, %v3937
  %v3971 = vpop.permute.xlu0 %3970
  %3972 = vset.pattern.permute.xlu0 0
  %3973 = vperm.xlu0 %3972, %v3938
  %v3974 = vpop.permute.xlu0 %3973
  %3975 = vset.pattern.permute.xlu0 0
  %3976 = vperm.xlu0 %3975, %v3939
  %v3977 = vpop.permute.xlu0 %3976
  %3978 = vset.pattern.permute.xlu0 0
  %3979 = vperm.xlu0 %3978, %v3940
  %v3980 = vpop.permute.xlu0 %3979
  %3981 = vset.pattern.permute.xlu0 0
  %3982 = vperm.xlu0 %3981, %v3941
  %v3983 = vpop.permute.xlu0 %3982
  %v3984 = vlaneseq
  %v3985 = vshrl.u32 %v3984, 7
  %v3986 = vsub.s32 %v19, %v3985
  %v3987 = vrot.slane %v3944, %v3986
  %v3988 = vlaneseq
  %v3989 = vshrl.u32 %v3988, 7
  %v3990 = vsub.s32 %v19, %v3989
  %v3991 = vrot.slane %v3947, %v3990
  %v3992 = vlaneseq
  %v3993 = vshrl.u32 %v3992, 7
  %v3994 = vsub.s32 %v19, %v3993
  %v3995 = vrot.slane %v3950, %v3994
  %v3996 = vlaneseq
  %v3997 = vshrl.u32 %v3996, 7
  %v3998 = vsub.s32 %v19, %v3997
  %v3999 = vrot.slane %v3953, %v3998
  %v4000 = vlaneseq
  %v4001 = vshrl.u32 %v4000, 7
  %v4002 = vsub.s32 %v19, %v4001
  %v4003 = vrot.slane %v3956, %v4002
  %v4004 = vlaneseq
  %v4005 = vshrl.u32 %v4004, 7
  %v4006 = vsub.s32 %v19, %v4005
  %v4007 = vrot.slane %v3959, %v4006
  %v4008 = vlaneseq
  %v4009 = vshrl.u32 %v4008, 7
  %v4010 = vsub.s32 %v19, %v4009
  %v4011 = vrot.slane %v3962, %v4010
  %v4012 = vlaneseq
  %v4013 = vshrl.u32 %v4012, 7
  %v4014 = vsub.s32 %v19, %v4013
  %v4015 = vrot.slane %v3965, %v4014
  %v4016 = vlaneseq
  %v4017 = vshrl.u32 %v4016, 7
  %v4018 = vsub.s32 %v19, %v4017
  %v4019 = vrot.slane %v3968, %v4018
  %v4020 = vlaneseq
  %v4021 = vshrl.u32 %v4020, 7
  %v4022 = vsub.s32 %v19, %v4021
  %v4023 = vrot.slane %v3971, %v4022
  %v4024 = vlaneseq
  %v4025 = vshrl.u32 %v4024, 7
  %v4026 = vsub.s32 %v19, %v4025
  %v4027 = vrot.slane %v3974, %v4026
  %v4028 = vlaneseq
  %v4029 = vshrl.u32 %v4028, 7
  %v4030 = vsub.s32 %v19, %v4029
  %v4031 = vrot.slane %v3977, %v4030
  %v4032 = vlaneseq
  %v4033 = vshrl.u32 %v4032, 7
  %v4034 = vsub.s32 %v19, %v4033
  %v4035 = vrot.slane %v3980, %v4034
  %v4036 = vlaneseq
  %v4037 = vshrl.u32 %v4036, 7
  %v4038 = vsub.s32 %v19, %v4037
  %v4039 = vrot.slane %v3983, %v4038
  %v4040 = vsel %vm190, %v3991, %v3987
  %v4041 = vsel %vm505, %v3995, %v4040
  %v4042 = vsel %vm507, %v3999, %v4041
  %v4043 = vsel %vm509, %v4003, %v4042
  %v4044 = vsel %vm511, %v4007, %v4043
  %v4045 = vsel %vm513, %v4011, %v4044
  %v4046 = vsel %vm190, %v4019, %v4015
  %v4047 = vsel %vm505, %v4023, %v4046
  %v4048 = vsel %vm507, %v4027, %v4047
  %v4049 = vsel %vm509, %v4031, %v4048
  %v4050 = vsel %vm511, %v4035, %v4049
  %v4051 = vsel %vm513, %v4039, %v4050
  %v4052 = vsel %vm75, %v4045, 2147483647
  %v4053 = vand.u32 %v4052, 65535
  %v4054 = vshra.s32 %v4052, 16
  %v4055 = vcvt.s32.f32 %v4053
  %v4056 = vcvt.s32.f32 %v4054
  %4057 = vmin.xlane.f32.xlu0 %v4056
  %v4058 = vpop.xlane.xlu0 %4057
  %vm4059 = vcmp.eq.f32.partialorder %v4056, %v4058
  %v4060 = vsel %vm4059, %v4055, inf
  %4061 = vmin.xlane.f32.xlu0 %v4060
  %v4062 = vpop.xlane.xlu0 %4061
  %v4063 = vcvt.f32.s32 %v4062
  %v4064 = vcvt.f32.s32 %v4058
  %v4065 = vshll.u32 %v4064, 16
  %v4066 = vadd.s32 %v4065, %v4063
  %v4067 = vsel %vm75, %v4051, 2147483647
  %v4068 = vand.u32 %v4067, 65535
  %v4069 = vshra.s32 %v4067, 16
  %v4070 = vcvt.s32.f32 %v4068
  %v4071 = vcvt.s32.f32 %v4069
  %4072 = vmin.xlane.f32.xlu0 %v4071
  %v4073 = vpop.xlane.xlu0 %4072
  %vm4074 = vcmp.eq.f32.partialorder %v4071, %v4073
  %v4075 = vsel %vm4074, %v4070, inf
  %4076 = vmin.xlane.f32.xlu0 %v4075
  %v4077 = vpop.xlane.xlu0 %4076
  %v4078 = vcvt.f32.s32 %v4077
  %v4079 = vcvt.f32.s32 %v4073
  %v4080 = vshll.u32 %v4079, 16
  %v4081 = vadd.s32 %v4080, %v4078
  %v4082 = vlaneseq
  %v4083 = vshrl.u32 %v4082, 7
  %v4084 = vsub.s32 %v19, %v4083
  %v4085 = vrot.slane %v4066, %v4084
  %v4086 = vlaneseq
  %v4087 = vshrl.u32 %v4086, 7
  %v4088 = vsub.s32 %v19, %v4087
  %v4089 = vrot.slane %v4081, %v4088
  %v4090 = vsel %vm190, %v4089, %v4085
  %s4091 = scalar_lea.vmem %s4, 8
  %4092 = vst.msk [vmem:[%s4091] sm:$0x3] %vm192, %v4090
  %v4094 = vlaneseq
  %v4095 = vshrl.u32 %v4094, 7
  %v4096 = vsub.s32 0, %v4095
  %v4097 = vrot.slane %v3160, %v4096
  %4099 = vbcast.lane.b32.xlu0 %v4097, 256
  %v4100 = vpop.permute.xlu0 %4099
  %v4101 = vlaneseq
  %v4102 = vshrl.u32 %v4101, 7
  %v4103 = vsub.s32 1, %v4102
  %v4104 = vrot.slane %v3160, %v4103
  %4106 = vbcast.lane.b32.xlu0 %v4104, 256
  %v4107 = vpop.permute.xlu0 %4106
  %v4110 = vadd.f32 %v3838, %v4100
  %v4111 = vadd.f32 %v3841, %v4107
  %v4112 = vmul.f32 %v4110, %v3668
  %v4113 = vmul.f32 %v4111, %v3672
  %v4114 = vmul.f32 %v3157, %v3685
  %v4115 = vmul.f32 %v3158, %v3689
  %v4116 = vadd.f32 %v4112, %v4114
  %v4117 = vadd.f32 %v4113, %v4115
  %s4118 = scalar_lea.vmem %s0, 10
  %v4119 = vld [vmem:[%s4118] sm:$0x3]
  %s4120 = scalar_lea.vmem %s2, 10
  %v4121 = vld [vmem:[%s4120] sm:$0x3]
  %v4122 = vadd.f32 %v3694, %v228
  %v4123 = vadd.f32 %v3694, %v235
  %v4124 = vadd.f32 %v3694, %v242
  %v4125 = vadd.f32 %v3694, %v249
  %v4126 = vadd.f32 %v3694, %v256
  %v4127 = vadd.f32 %v3694, %v263
  %v4128 = vadd.f32 %v3694, %v270
  %v4129 = vadd.f32 %v3695, %v228
  %v4130 = vadd.f32 %v3695, %v235
  %v4131 = vadd.f32 %v3695, %v242
  %v4132 = vadd.f32 %v3695, %v249
  %v4133 = vadd.f32 %v3695, %v256
  %v4134 = vadd.f32 %v3695, %v263
  %v4135 = vadd.f32 %v3695, %v270
  %v4136 = vlaneseq
  %v4137 = vshrl.u32 %v4136, 7
  %v4138 = vsub.s32 0, %v4137
  %v4139 = vrot.slane %v4119, %v4138
  %4141 = vbcast.lane.b32.xlu0 %v4139, 256
  %v4142 = vpop.permute.xlu0 %4141
  %v4143 = vlaneseq
  %v4144 = vshrl.u32 %v4143, 7
  %v4145 = vsub.s32 1, %v4144
  %v4146 = vrot.slane %v4119, %v4145
  %4148 = vbcast.lane.b32.xlu0 %v4146, 256
  %v4149 = vpop.permute.xlu0 %4148
  %v4152 = vlaneseq
  %v4153 = vshrl.u32 %v4152, 7
  %v4154 = vsub.s32 0, %v4153
  %v4155 = vrot.slane %v4142, %v4154
  %v4156 = vlaneseq
  %v4157 = vshrl.u32 %v4156, 7
  %v4158 = vsub.s32 1, %v4157
  %v4159 = vrot.slane %v4142, %v4158
  %v4160 = vlaneseq
  %v4161 = vshrl.u32 %v4160, 7
  %v4162 = vsub.s32 2, %v4161
  %v4163 = vrot.slane %v4142, %v4162
  %v4164 = vlaneseq
  %v4165 = vshrl.u32 %v4164, 7
  %v4166 = vsub.s32 3, %v4165
  %v4167 = vrot.slane %v4142, %v4166
  %v4168 = vlaneseq
  %v4169 = vshrl.u32 %v4168, 7
  %v4170 = vsub.s32 4, %v4169
  %v4171 = vrot.slane %v4142, %v4170
  %v4172 = vlaneseq
  %v4173 = vshrl.u32 %v4172, 7
  %v4174 = vsub.s32 5, %v4173
  %v4175 = vrot.slane %v4142, %v4174
  %v4176 = vlaneseq
  %v4177 = vshrl.u32 %v4176, 7
  %v4178 = vsub.s32 6, %v4177
  %v4179 = vrot.slane %v4142, %v4178
  %v4180 = vlaneseq
  %v4181 = vshrl.u32 %v4180, 7
  %v4182 = vsub.s32 0, %v4181
  %v4183 = vrot.slane %v4149, %v4182
  %v4184 = vlaneseq
  %v4185 = vshrl.u32 %v4184, 7
  %v4186 = vsub.s32 1, %v4185
  %v4187 = vrot.slane %v4149, %v4186
  %v4188 = vlaneseq
  %v4189 = vshrl.u32 %v4188, 7
  %v4190 = vsub.s32 2, %v4189
  %v4191 = vrot.slane %v4149, %v4190
  %v4192 = vlaneseq
  %v4193 = vshrl.u32 %v4192, 7
  %v4194 = vsub.s32 3, %v4193
  %v4195 = vrot.slane %v4149, %v4194
  %v4196 = vlaneseq
  %v4197 = vshrl.u32 %v4196, 7
  %v4198 = vsub.s32 4, %v4197
  %v4199 = vrot.slane %v4149, %v4198
  %v4200 = vlaneseq
  %v4201 = vshrl.u32 %v4200, 7
  %v4202 = vsub.s32 5, %v4201
  %v4203 = vrot.slane %v4149, %v4202
  %v4204 = vlaneseq
  %v4205 = vshrl.u32 %v4204, 7
  %v4206 = vsub.s32 6, %v4205
  %v4207 = vrot.slane %v4149, %v4206
  %v4222 = vadd.f32 %v4122, %v4155
  %v4223 = vadd.f32 %v4123, %v4159
  %v4224 = vadd.f32 %v4124, %v4163
  %v4225 = vadd.f32 %v4125, %v4167
  %v4226 = vadd.f32 %v4126, %v4171
  %v4227 = vadd.f32 %v4127, %v4175
  %v4228 = vadd.f32 %v4128, %v4179
  %v4229 = vadd.f32 %v4129, %v4183
  %v4230 = vadd.f32 %v4130, %v4187
  %v4231 = vadd.f32 %v4131, %v4191
  %v4232 = vadd.f32 %v4132, %v4195
  %v4233 = vadd.f32 %v4133, %v4199
  %v4234 = vadd.f32 %v4134, %v4203
  %v4235 = vadd.f32 %v4135, %v4207
  %4250 = vset.pattern.permute.xlu0 0
  %4251 = vperm.xlu0 %4250, %v4222
  %v4252 = vpop.permute.xlu0 %4251
  %4253 = vset.pattern.permute.xlu0 0
  %4254 = vperm.xlu0 %4253, %v4223
  %v4255 = vpop.permute.xlu0 %4254
  %4256 = vset.pattern.permute.xlu0 0
  %4257 = vperm.xlu0 %4256, %v4224
  %v4258 = vpop.permute.xlu0 %4257
  %4259 = vset.pattern.permute.xlu0 0
  %4260 = vperm.xlu0 %4259, %v4225
  %v4261 = vpop.permute.xlu0 %4260
  %4262 = vset.pattern.permute.xlu0 0
  %4263 = vperm.xlu0 %4262, %v4226
  %v4264 = vpop.permute.xlu0 %4263
  %4265 = vset.pattern.permute.xlu0 0
  %4266 = vperm.xlu0 %4265, %v4227
  %v4267 = vpop.permute.xlu0 %4266
  %4268 = vset.pattern.permute.xlu0 0
  %4269 = vperm.xlu0 %4268, %v4228
  %v4270 = vpop.permute.xlu0 %4269
  %4271 = vset.pattern.permute.xlu0 0
  %4272 = vperm.xlu0 %4271, %v4229
  %v4273 = vpop.permute.xlu0 %4272
  %4274 = vset.pattern.permute.xlu0 0
  %4275 = vperm.xlu0 %4274, %v4230
  %v4276 = vpop.permute.xlu0 %4275
  %4277 = vset.pattern.permute.xlu0 0
  %4278 = vperm.xlu0 %4277, %v4231
  %v4279 = vpop.permute.xlu0 %4278
  %4280 = vset.pattern.permute.xlu0 0
  %4281 = vperm.xlu0 %4280, %v4232
  %v4282 = vpop.permute.xlu0 %4281
  %4283 = vset.pattern.permute.xlu0 0
  %4284 = vperm.xlu0 %4283, %v4233
  %v4285 = vpop.permute.xlu0 %4284
  %4286 = vset.pattern.permute.xlu0 0
  %4287 = vperm.xlu0 %4286, %v4234
  %v4288 = vpop.permute.xlu0 %4287
  %4289 = vset.pattern.permute.xlu0 0
  %4290 = vperm.xlu0 %4289, %v4235
  %v4291 = vpop.permute.xlu0 %4290
  %v4292 = vlaneseq
  %v4293 = vshrl.u32 %v4292, 7
  %v4294 = vsub.s32 %v19, %v4293
  %v4295 = vrot.slane %v4252, %v4294
  %v4296 = vlaneseq
  %v4297 = vshrl.u32 %v4296, 7
  %v4298 = vsub.s32 %v19, %v4297
  %v4299 = vrot.slane %v4255, %v4298
  %v4300 = vlaneseq
  %v4301 = vshrl.u32 %v4300, 7
  %v4302 = vsub.s32 %v19, %v4301
  %v4303 = vrot.slane %v4258, %v4302
  %v4304 = vlaneseq
  %v4305 = vshrl.u32 %v4304, 7
  %v4306 = vsub.s32 %v19, %v4305
  %v4307 = vrot.slane %v4261, %v4306
  %v4308 = vlaneseq
  %v4309 = vshrl.u32 %v4308, 7
  %v4310 = vsub.s32 %v19, %v4309
  %v4311 = vrot.slane %v4264, %v4310
  %v4312 = vlaneseq
  %v4313 = vshrl.u32 %v4312, 7
  %v4314 = vsub.s32 %v19, %v4313
  %v4315 = vrot.slane %v4267, %v4314
  %v4316 = vlaneseq
  %v4317 = vshrl.u32 %v4316, 7
  %v4318 = vsub.s32 %v19, %v4317
  %v4319 = vrot.slane %v4270, %v4318
  %v4320 = vlaneseq
  %v4321 = vshrl.u32 %v4320, 7
  %v4322 = vsub.s32 %v19, %v4321
  %v4323 = vrot.slane %v4273, %v4322
  %v4324 = vlaneseq
  %v4325 = vshrl.u32 %v4324, 7
  %v4326 = vsub.s32 %v19, %v4325
  %v4327 = vrot.slane %v4276, %v4326
  %v4328 = vlaneseq
  %v4329 = vshrl.u32 %v4328, 7
  %v4330 = vsub.s32 %v19, %v4329
  %v4331 = vrot.slane %v4279, %v4330
  %v4332 = vlaneseq
  %v4333 = vshrl.u32 %v4332, 7
  %v4334 = vsub.s32 %v19, %v4333
  %v4335 = vrot.slane %v4282, %v4334
  %v4336 = vlaneseq
  %v4337 = vshrl.u32 %v4336, 7
  %v4338 = vsub.s32 %v19, %v4337
  %v4339 = vrot.slane %v4285, %v4338
  %v4340 = vlaneseq
  %v4341 = vshrl.u32 %v4340, 7
  %v4342 = vsub.s32 %v19, %v4341
  %v4343 = vrot.slane %v4288, %v4342
  %v4344 = vlaneseq
  %v4345 = vshrl.u32 %v4344, 7
  %v4346 = vsub.s32 %v19, %v4345
  %v4347 = vrot.slane %v4291, %v4346
  %v4348 = vsel %vm190, %v4299, %v4295
  %v4349 = vsel %vm505, %v4303, %v4348
  %v4350 = vsel %vm507, %v4307, %v4349
  %v4351 = vsel %vm509, %v4311, %v4350
  %v4352 = vsel %vm511, %v4315, %v4351
  %v4353 = vsel %vm513, %v4319, %v4352
  %v4354 = vsel %vm190, %v4327, %v4323
  %v4355 = vsel %vm505, %v4331, %v4354
  %v4356 = vsel %vm507, %v4335, %v4355
  %v4357 = vsel %vm509, %v4339, %v4356
  %v4358 = vsel %vm511, %v4343, %v4357
  %v4359 = vsel %vm513, %v4347, %v4358
  %v4362 = vsel %vm75, %v4353, -inf
  %4363 = vmax.xlane.f32.xlu0 %v4362
  %v4364 = vpop.xlane.xlu0 %4363
  %v4365 = vsel %vm75, %v4359, -inf
  %4366 = vmax.xlane.f32.xlu0 %v4365
  %v4367 = vpop.xlane.xlu0 %4366
  %v4370 = vlaneseq
  %v4371 = vshrl.u32 %v4370, 7
  %v4372 = vsub.s32 0, %v4371
  %v4373 = vrot.slane %v4364, %v4372
  %v4374 = vlaneseq
  %v4375 = vshrl.u32 %v4374, 7
  %v4376 = vsub.s32 1, %v4375
  %v4377 = vrot.slane %v4364, %v4376
  %v4378 = vlaneseq
  %v4379 = vshrl.u32 %v4378, 7
  %v4380 = vsub.s32 2, %v4379
  %v4381 = vrot.slane %v4364, %v4380
  %v4382 = vlaneseq
  %v4383 = vshrl.u32 %v4382, 7
  %v4384 = vsub.s32 3, %v4383
  %v4385 = vrot.slane %v4364, %v4384
  %v4386 = vlaneseq
  %v4387 = vshrl.u32 %v4386, 7
  %v4388 = vsub.s32 4, %v4387
  %v4389 = vrot.slane %v4364, %v4388
  %v4390 = vlaneseq
  %v4391 = vshrl.u32 %v4390, 7
  %v4392 = vsub.s32 5, %v4391
  %v4393 = vrot.slane %v4364, %v4392
  %v4394 = vlaneseq
  %v4395 = vshrl.u32 %v4394, 7
  %v4396 = vsub.s32 6, %v4395
  %v4397 = vrot.slane %v4364, %v4396
  %v4398 = vlaneseq
  %v4399 = vshrl.u32 %v4398, 7
  %v4400 = vsub.s32 0, %v4399
  %v4401 = vrot.slane %v4367, %v4400
  %v4402 = vlaneseq
  %v4403 = vshrl.u32 %v4402, 7
  %v4404 = vsub.s32 1, %v4403
  %v4405 = vrot.slane %v4367, %v4404
  %v4406 = vlaneseq
  %v4407 = vshrl.u32 %v4406, 7
  %v4408 = vsub.s32 2, %v4407
  %v4409 = vrot.slane %v4367, %v4408
  %v4410 = vlaneseq
  %v4411 = vshrl.u32 %v4410, 7
  %v4412 = vsub.s32 3, %v4411
  %v4413 = vrot.slane %v4367, %v4412
  %v4414 = vlaneseq
  %v4415 = vshrl.u32 %v4414, 7
  %v4416 = vsub.s32 4, %v4415
  %v4417 = vrot.slane %v4367, %v4416
  %v4418 = vlaneseq
  %v4419 = vshrl.u32 %v4418, 7
  %v4420 = vsub.s32 5, %v4419
  %v4421 = vrot.slane %v4367, %v4420
  %v4422 = vlaneseq
  %v4423 = vshrl.u32 %v4422, 7
  %v4424 = vsub.s32 6, %v4423
  %v4425 = vrot.slane %v4367, %v4424
  %v4440 = vsub.f32 %v4222, %v4373
  %v4441 = vsub.f32 %v4223, %v4377
  %v4442 = vsub.f32 %v4224, %v4381
  %v4443 = vsub.f32 %v4225, %v4385
  %v4444 = vsub.f32 %v4226, %v4389
  %v4445 = vsub.f32 %v4227, %v4393
  %v4446 = vsub.f32 %v4228, %v4397
  %v4447 = vsub.f32 %v4229, %v4401
  %v4448 = vsub.f32 %v4230, %v4405
  %v4449 = vsub.f32 %v4231, %v4409
  %v4450 = vsub.f32 %v4232, %v4413
  %v4451 = vsub.f32 %v4233, %v4417
  %v4452 = vsub.f32 %v4234, %v4421
  %v4453 = vsub.f32 %v4235, %v4425
  %v4454 = vmul.f32 %v4440, 1.442695
  %v4455 = vpow.pop %v4454
  %v4456 = vmul.f32 %v4441, 1.442695
  %v4457 = vpow.pop %v4456
  %v4458 = vmul.f32 %v4442, 1.442695
  %v4459 = vpow.pop %v4458
  %v4460 = vmul.f32 %v4443, 1.442695
  %v4461 = vpow.pop %v4460
  %v4462 = vmul.f32 %v4444, 1.442695
  %v4463 = vpow.pop %v4462
  %v4464 = vmul.f32 %v4445, 1.442695
  %v4465 = vpow.pop %v4464
  %v4466 = vmul.f32 %v4446, 1.442695
  %v4467 = vpow.pop %v4466
  %v4468 = vmul.f32 %v4447, 1.442695
  %v4469 = vpow.pop %v4468
  %v4470 = vmul.f32 %v4448, 1.442695
  %v4471 = vpow.pop %v4470
  %v4472 = vmul.f32 %v4449, 1.442695
  %v4473 = vpow.pop %v4472
  %v4474 = vmul.f32 %v4450, 1.442695
  %v4475 = vpow.pop %v4474
  %v4476 = vmul.f32 %v4451, 1.442695
  %v4477 = vpow.pop %v4476
  %v4478 = vmul.f32 %v4452, 1.442695
  %v4479 = vpow.pop %v4478
  %v4480 = vmul.f32 %v4453, 1.442695
  %v4481 = vpow.pop %v4480
  %4496 = vset.pattern.permute.xlu0 0
  %4497 = vperm.xlu0 %4496, %v4455
  %v4498 = vpop.permute.xlu0 %4497
  %4499 = vset.pattern.permute.xlu0 0
  %4500 = vperm.xlu0 %4499, %v4457
  %v4501 = vpop.permute.xlu0 %4500
  %4502 = vset.pattern.permute.xlu0 0
  %4503 = vperm.xlu0 %4502, %v4459
  %v4504 = vpop.permute.xlu0 %4503
  %4505 = vset.pattern.permute.xlu0 0
  %4506 = vperm.xlu0 %4505, %v4461
  %v4507 = vpop.permute.xlu0 %4506
  %4508 = vset.pattern.permute.xlu0 0
  %4509 = vperm.xlu0 %4508, %v4463
  %v4510 = vpop.permute.xlu0 %4509
  %4511 = vset.pattern.permute.xlu0 0
  %4512 = vperm.xlu0 %4511, %v4465
  %v4513 = vpop.permute.xlu0 %4512
  %4514 = vset.pattern.permute.xlu0 0
  %4515 = vperm.xlu0 %4514, %v4467
  %v4516 = vpop.permute.xlu0 %4515
  %4517 = vset.pattern.permute.xlu0 0
  %4518 = vperm.xlu0 %4517, %v4469
  %v4519 = vpop.permute.xlu0 %4518
  %4520 = vset.pattern.permute.xlu0 0
  %4521 = vperm.xlu0 %4520, %v4471
  %v4522 = vpop.permute.xlu0 %4521
  %4523 = vset.pattern.permute.xlu0 0
  %4524 = vperm.xlu0 %4523, %v4473
  %v4525 = vpop.permute.xlu0 %4524
  %4526 = vset.pattern.permute.xlu0 0
  %4527 = vperm.xlu0 %4526, %v4475
  %v4528 = vpop.permute.xlu0 %4527
  %4529 = vset.pattern.permute.xlu0 0
  %4530 = vperm.xlu0 %4529, %v4477
  %v4531 = vpop.permute.xlu0 %4530
  %4532 = vset.pattern.permute.xlu0 0
  %4533 = vperm.xlu0 %4532, %v4479
  %v4534 = vpop.permute.xlu0 %4533
  %4535 = vset.pattern.permute.xlu0 0
  %4536 = vperm.xlu0 %4535, %v4481
  %v4537 = vpop.permute.xlu0 %4536
  %v4538 = vlaneseq
  %v4539 = vshrl.u32 %v4538, 7
  %v4540 = vsub.s32 %v19, %v4539
  %v4541 = vrot.slane %v4498, %v4540
  %v4542 = vlaneseq
  %v4543 = vshrl.u32 %v4542, 7
  %v4544 = vsub.s32 %v19, %v4543
  %v4545 = vrot.slane %v4501, %v4544
  %v4546 = vlaneseq
  %v4547 = vshrl.u32 %v4546, 7
  %v4548 = vsub.s32 %v19, %v4547
  %v4549 = vrot.slane %v4504, %v4548
  %v4550 = vlaneseq
  %v4551 = vshrl.u32 %v4550, 7
  %v4552 = vsub.s32 %v19, %v4551
  %v4553 = vrot.slane %v4507, %v4552
  %v4554 = vlaneseq
  %v4555 = vshrl.u32 %v4554, 7
  %v4556 = vsub.s32 %v19, %v4555
  %v4557 = vrot.slane %v4510, %v4556
  %v4558 = vlaneseq
  %v4559 = vshrl.u32 %v4558, 7
  %v4560 = vsub.s32 %v19, %v4559
  %v4561 = vrot.slane %v4513, %v4560
  %v4562 = vlaneseq
  %v4563 = vshrl.u32 %v4562, 7
  %v4564 = vsub.s32 %v19, %v4563
  %v4565 = vrot.slane %v4516, %v4564
  %v4566 = vlaneseq
  %v4567 = vshrl.u32 %v4566, 7
  %v4568 = vsub.s32 %v19, %v4567
  %v4569 = vrot.slane %v4519, %v4568
  %v4570 = vlaneseq
  %v4571 = vshrl.u32 %v4570, 7
  %v4572 = vsub.s32 %v19, %v4571
  %v4573 = vrot.slane %v4522, %v4572
  %v4574 = vlaneseq
  %v4575 = vshrl.u32 %v4574, 7
  %v4576 = vsub.s32 %v19, %v4575
  %v4577 = vrot.slane %v4525, %v4576
  %v4578 = vlaneseq
  %v4579 = vshrl.u32 %v4578, 7
  %v4580 = vsub.s32 %v19, %v4579
  %v4581 = vrot.slane %v4528, %v4580
  %v4582 = vlaneseq
  %v4583 = vshrl.u32 %v4582, 7
  %v4584 = vsub.s32 %v19, %v4583
  %v4585 = vrot.slane %v4531, %v4584
  %v4586 = vlaneseq
  %v4587 = vshrl.u32 %v4586, 7
  %v4588 = vsub.s32 %v19, %v4587
  %v4589 = vrot.slane %v4534, %v4588
  %v4590 = vlaneseq
  %v4591 = vshrl.u32 %v4590, 7
  %v4592 = vsub.s32 %v19, %v4591
  %v4593 = vrot.slane %v4537, %v4592
  %v4594 = vsel %vm190, %v4545, %v4541
  %v4595 = vsel %vm505, %v4549, %v4594
  %v4596 = vsel %vm507, %v4553, %v4595
  %v4597 = vsel %vm509, %v4557, %v4596
  %v4598 = vsel %vm511, %v4561, %v4597
  %v4599 = vsel %vm513, %v4565, %v4598
  %v4600 = vsel %vm190, %v4573, %v4569
  %v4601 = vsel %vm505, %v4577, %v4600
  %v4602 = vsel %vm507, %v4581, %v4601
  %v4603 = vsel %vm509, %v4585, %v4602
  %v4604 = vsel %vm511, %v4589, %v4603
  %v4605 = vsel %vm513, %v4593, %v4604
  %v4608 = vsel %vm75, %v4599, 0.0
  %4609 = vadd.xlane.f32.xlu0 %v4608
  %v4610 = vpop.xlane.xlu0 %4609
  %v4611 = vsel %vm75, %v4605, 0.0
  %4612 = vadd.xlane.f32.xlu0 %v4611
  %v4613 = vpop.xlane.xlu0 %4612
  %v4614 = vlog2.pop %v4610
  %v4615 = vmul.f32 %v4614, 0.6931472
  %v4616 = vlog2.pop %v4613
  %v4617 = vmul.f32 %v4616, 0.6931472
  %v4618 = vadd.f32 %v4364, %v4615
  %v4619 = vadd.f32 %v4367, %v4617
  %4621 = vset.pattern.permute.xlu0 0
  %4622 = vperm.xlu0 %4621, %v4121
  %v4623 = vpop.permute.xlu0 %4622
  %v4624 = vlaneseq
  %v4625 = vshrl.u32 %v4624, 7
  %v4626 = vsub.s32 0, %v4625
  %v4627 = vrot.slane %v4623, %v4626
  %v4628 = vlaneseq
  %v4629 = vshrl.u32 %v4628, 7
  %v4630 = vsub.s32 1, %v4629
  %v4631 = vrot.slane %v4623, %v4630
  %v4634 = vmul.f32 %v4618, %v4627
  %v4635 = vmul.f32 %v4619, %v4631
  %v4636 = vsub.f32 1.0, %v4121
  %4638 = vset.pattern.permute.xlu0 0
  %4639 = vperm.xlu0 %4638, %v4636
  %v4640 = vpop.permute.xlu0 %4639
  %v4641 = vlaneseq
  %v4642 = vshrl.u32 %v4641, 7
  %v4643 = vsub.s32 0, %v4642
  %v4644 = vrot.slane %v4640, %v4643
  %v4645 = vlaneseq
  %v4646 = vshrl.u32 %v4645, 7
  %v4647 = vsub.s32 1, %v4646
  %v4648 = vrot.slane %v4640, %v4647
  %v4651 = vmul.f32 %v3694, %v4644
  %v4652 = vmul.f32 %v3695, %v4648
  %v4653 = vadd.f32 %v4634, %v4651
  %v4654 = vadd.f32 %v4635, %v4652
  %v4655 = vadd.f32 %v4116, %v228
  %v4656 = vadd.f32 %v4116, %v235
  %v4657 = vadd.f32 %v4116, %v242
  %v4658 = vadd.f32 %v4116, %v249
  %v4659 = vadd.f32 %v4116, %v256
  %v4660 = vadd.f32 %v4116, %v263
  %v4661 = vadd.f32 %v4116, %v270
  %v4662 = vadd.f32 %v4117, %v228
  %v4663 = vadd.f32 %v4117, %v235
  %v4664 = vadd.f32 %v4117, %v242
  %v4665 = vadd.f32 %v4117, %v249
  %v4666 = vadd.f32 %v4117, %v256
  %v4667 = vadd.f32 %v4117, %v263
  %v4668 = vadd.f32 %v4117, %v270
  %4683 = vset.pattern.permute.xlu0 0
  %4684 = vperm.xlu0 %4683, %v4655
  %v4685 = vpop.permute.xlu0 %4684
  %4686 = vset.pattern.permute.xlu0 0
  %4687 = vperm.xlu0 %4686, %v4656
  %v4688 = vpop.permute.xlu0 %4687
  %4689 = vset.pattern.permute.xlu0 0
  %4690 = vperm.xlu0 %4689, %v4657
  %v4691 = vpop.permute.xlu0 %4690
  %4692 = vset.pattern.permute.xlu0 0
  %4693 = vperm.xlu0 %4692, %v4658
  %v4694 = vpop.permute.xlu0 %4693
  %4695 = vset.pattern.permute.xlu0 0
  %4696 = vperm.xlu0 %4695, %v4659
  %v4697 = vpop.permute.xlu0 %4696
  %4698 = vset.pattern.permute.xlu0 0
  %4699 = vperm.xlu0 %4698, %v4660
  %v4700 = vpop.permute.xlu0 %4699
  %4701 = vset.pattern.permute.xlu0 0
  %4702 = vperm.xlu0 %4701, %v4661
  %v4703 = vpop.permute.xlu0 %4702
  %4704 = vset.pattern.permute.xlu0 0
  %4705 = vperm.xlu0 %4704, %v4662
  %v4706 = vpop.permute.xlu0 %4705
  %4707 = vset.pattern.permute.xlu0 0
  %4708 = vperm.xlu0 %4707, %v4663
  %v4709 = vpop.permute.xlu0 %4708
  %4710 = vset.pattern.permute.xlu0 0
  %4711 = vperm.xlu0 %4710, %v4664
  %v4712 = vpop.permute.xlu0 %4711
  %4713 = vset.pattern.permute.xlu0 0
  %4714 = vperm.xlu0 %4713, %v4665
  %v4715 = vpop.permute.xlu0 %4714
  %4716 = vset.pattern.permute.xlu0 0
  %4717 = vperm.xlu0 %4716, %v4666
  %v4718 = vpop.permute.xlu0 %4717
  %4719 = vset.pattern.permute.xlu0 0
  %4720 = vperm.xlu0 %4719, %v4667
  %v4721 = vpop.permute.xlu0 %4720
  %4722 = vset.pattern.permute.xlu0 0
  %4723 = vperm.xlu0 %4722, %v4668
  %v4724 = vpop.permute.xlu0 %4723
  %v4725 = vlaneseq
  %v4726 = vshrl.u32 %v4725, 7
  %v4727 = vsub.s32 %v19, %v4726
  %v4728 = vrot.slane %v4685, %v4727
  %v4729 = vlaneseq
  %v4730 = vshrl.u32 %v4729, 7
  %v4731 = vsub.s32 %v19, %v4730
  %v4732 = vrot.slane %v4688, %v4731
  %v4733 = vlaneseq
  %v4734 = vshrl.u32 %v4733, 7
  %v4735 = vsub.s32 %v19, %v4734
  %v4736 = vrot.slane %v4691, %v4735
  %v4737 = vlaneseq
  %v4738 = vshrl.u32 %v4737, 7
  %v4739 = vsub.s32 %v19, %v4738
  %v4740 = vrot.slane %v4694, %v4739
  %v4741 = vlaneseq
  %v4742 = vshrl.u32 %v4741, 7
  %v4743 = vsub.s32 %v19, %v4742
  %v4744 = vrot.slane %v4697, %v4743
  %v4745 = vlaneseq
  %v4746 = vshrl.u32 %v4745, 7
  %v4747 = vsub.s32 %v19, %v4746
  %v4748 = vrot.slane %v4700, %v4747
  %v4749 = vlaneseq
  %v4750 = vshrl.u32 %v4749, 7
  %v4751 = vsub.s32 %v19, %v4750
  %v4752 = vrot.slane %v4703, %v4751
  %v4753 = vlaneseq
  %v4754 = vshrl.u32 %v4753, 7
  %v4755 = vsub.s32 %v19, %v4754
  %v4756 = vrot.slane %v4706, %v4755
  %v4757 = vlaneseq
  %v4758 = vshrl.u32 %v4757, 7
  %v4759 = vsub.s32 %v19, %v4758
  %v4760 = vrot.slane %v4709, %v4759
  %v4761 = vlaneseq
  %v4762 = vshrl.u32 %v4761, 7
  %v4763 = vsub.s32 %v19, %v4762
  %v4764 = vrot.slane %v4712, %v4763
  %v4765 = vlaneseq
  %v4766 = vshrl.u32 %v4765, 7
  %v4767 = vsub.s32 %v19, %v4766
  %v4768 = vrot.slane %v4715, %v4767
  %v4769 = vlaneseq
  %v4770 = vshrl.u32 %v4769, 7
  %v4771 = vsub.s32 %v19, %v4770
  %v4772 = vrot.slane %v4718, %v4771
  %v4773 = vlaneseq
  %v4774 = vshrl.u32 %v4773, 7
  %v4775 = vsub.s32 %v19, %v4774
  %v4776 = vrot.slane %v4721, %v4775
  %v4777 = vlaneseq
  %v4778 = vshrl.u32 %v4777, 7
  %v4779 = vsub.s32 %v19, %v4778
  %v4780 = vrot.slane %v4724, %v4779
  %v4781 = vsel %vm190, %v4732, %v4728
  %v4782 = vsel %vm505, %v4736, %v4781
  %v4783 = vsel %vm507, %v4740, %v4782
  %v4784 = vsel %vm509, %v4744, %v4783
  %v4785 = vsel %vm511, %v4748, %v4784
  %v4786 = vsel %vm513, %v4752, %v4785
  %v4787 = vsel %vm190, %v4760, %v4756
  %v4788 = vsel %vm505, %v4764, %v4787
  %v4789 = vsel %vm507, %v4768, %v4788
  %v4790 = vsel %vm509, %v4772, %v4789
  %v4791 = vsel %vm511, %v4776, %v4790
  %v4792 = vsel %vm513, %v4780, %v4791
  %v4795 = vsel %vm75, %v4786, -inf
  %4796 = vmax.xlane.f32.xlu0 %v4795
  %v4797 = vpop.xlane.xlu0 %4796
  %v4798 = vsel %vm75, %v4792, -inf
  %4799 = vmax.xlane.f32.xlu0 %v4798
  %v4800 = vpop.xlane.xlu0 %4799
  %v4803 = vlaneseq
  %v4804 = vshrl.u32 %v4803, 7
  %v4805 = vsub.s32 0, %v4804
  %v4806 = vrot.slane %v4797, %v4805
  %v4807 = vlaneseq
  %v4808 = vshrl.u32 %v4807, 7
  %v4809 = vsub.s32 1, %v4808
  %v4810 = vrot.slane %v4797, %v4809
  %v4811 = vlaneseq
  %v4812 = vshrl.u32 %v4811, 7
  %v4813 = vsub.s32 2, %v4812
  %v4814 = vrot.slane %v4797, %v4813
  %v4815 = vlaneseq
  %v4816 = vshrl.u32 %v4815, 7
  %v4817 = vsub.s32 3, %v4816
  %v4818 = vrot.slane %v4797, %v4817
  %v4819 = vlaneseq
  %v4820 = vshrl.u32 %v4819, 7
  %v4821 = vsub.s32 4, %v4820
  %v4822 = vrot.slane %v4797, %v4821
  %v4823 = vlaneseq
  %v4824 = vshrl.u32 %v4823, 7
  %v4825 = vsub.s32 5, %v4824
  %v4826 = vrot.slane %v4797, %v4825
  %v4827 = vlaneseq
  %v4828 = vshrl.u32 %v4827, 7
  %v4829 = vsub.s32 6, %v4828
  %v4830 = vrot.slane %v4797, %v4829
  %v4831 = vlaneseq
  %v4832 = vshrl.u32 %v4831, 7
  %v4833 = vsub.s32 0, %v4832
  %v4834 = vrot.slane %v4800, %v4833
  %v4835 = vlaneseq
  %v4836 = vshrl.u32 %v4835, 7
  %v4837 = vsub.s32 1, %v4836
  %v4838 = vrot.slane %v4800, %v4837
  %v4839 = vlaneseq
  %v4840 = vshrl.u32 %v4839, 7
  %v4841 = vsub.s32 2, %v4840
  %v4842 = vrot.slane %v4800, %v4841
  %v4843 = vlaneseq
  %v4844 = vshrl.u32 %v4843, 7
  %v4845 = vsub.s32 3, %v4844
  %v4846 = vrot.slane %v4800, %v4845
  %v4847 = vlaneseq
  %v4848 = vshrl.u32 %v4847, 7
  %v4849 = vsub.s32 4, %v4848
  %v4850 = vrot.slane %v4800, %v4849
  %v4851 = vlaneseq
  %v4852 = vshrl.u32 %v4851, 7
  %v4853 = vsub.s32 5, %v4852
  %v4854 = vrot.slane %v4800, %v4853
  %v4855 = vlaneseq
  %v4856 = vshrl.u32 %v4855, 7
  %v4857 = vsub.s32 6, %v4856
  %v4858 = vrot.slane %v4800, %v4857
  %vm4873 = vcmp.eq.f32.partialorder %v4655, %v4806
  %vm4874 = vcmp.eq.f32.partialorder %v4656, %v4810
  %vm4875 = vcmp.eq.f32.partialorder %v4657, %v4814
  %vm4876 = vcmp.eq.f32.partialorder %v4658, %v4818
  %vm4877 = vcmp.eq.f32.partialorder %v4659, %v4822
  %vm4878 = vcmp.eq.f32.partialorder %v4660, %v4826
  %vm4879 = vcmp.eq.f32.partialorder %v4661, %v4830
  %vm4880 = vcmp.eq.f32.partialorder %v4662, %v4834
  %vm4881 = vcmp.eq.f32.partialorder %v4663, %v4838
  %vm4882 = vcmp.eq.f32.partialorder %v4664, %v4842
  %vm4883 = vcmp.eq.f32.partialorder %v4665, %v4846
  %vm4884 = vcmp.eq.f32.partialorder %v4666, %v4850
  %vm4885 = vcmp.eq.f32.partialorder %v4667, %v4854
  %vm4886 = vcmp.eq.f32.partialorder %v4668, %v4858
  %v4887 = vsel %vm4873, %v1050, 7
  %v4888 = vsel %vm4874, %v1050, 7
  %v4889 = vsel %vm4875, %v1050, 7
  %v4890 = vsel %vm4876, %v1050, 7
  %v4891 = vsel %vm4877, %v1050, 7
  %v4892 = vsel %vm4878, %v1050, 7
  %v4893 = vsel %vm4879, %v1050, 7
  %v4894 = vsel %vm4880, %v1050, 7
  %v4895 = vsel %vm4881, %v1050, 7
  %v4896 = vsel %vm4882, %v1050, 7
  %v4897 = vsel %vm4883, %v1050, 7
  %v4898 = vsel %vm4884, %v1050, 7
  %v4899 = vsel %vm4885, %v1050, 7
  %v4900 = vsel %vm4886, %v1050, 7
  %4901 = vset.pattern.permute.xlu0 0
  %4902 = vperm.xlu0 %4901, %v4887
  %v4903 = vpop.permute.xlu0 %4902
  %4904 = vset.pattern.permute.xlu0 0
  %4905 = vperm.xlu0 %4904, %v4888
  %v4906 = vpop.permute.xlu0 %4905
  %4907 = vset.pattern.permute.xlu0 0
  %4908 = vperm.xlu0 %4907, %v4889
  %v4909 = vpop.permute.xlu0 %4908
  %4910 = vset.pattern.permute.xlu0 0
  %4911 = vperm.xlu0 %4910, %v4890
  %v4912 = vpop.permute.xlu0 %4911
  %4913 = vset.pattern.permute.xlu0 0
  %4914 = vperm.xlu0 %4913, %v4891
  %v4915 = vpop.permute.xlu0 %4914
  %4916 = vset.pattern.permute.xlu0 0
  %4917 = vperm.xlu0 %4916, %v4892
  %v4918 = vpop.permute.xlu0 %4917
  %4919 = vset.pattern.permute.xlu0 0
  %4920 = vperm.xlu0 %4919, %v4893
  %v4921 = vpop.permute.xlu0 %4920
  %4922 = vset.pattern.permute.xlu0 0
  %4923 = vperm.xlu0 %4922, %v4894
  %v4924 = vpop.permute.xlu0 %4923
  %4925 = vset.pattern.permute.xlu0 0
  %4926 = vperm.xlu0 %4925, %v4895
  %v4927 = vpop.permute.xlu0 %4926
  %4928 = vset.pattern.permute.xlu0 0
  %4929 = vperm.xlu0 %4928, %v4896
  %v4930 = vpop.permute.xlu0 %4929
  %4931 = vset.pattern.permute.xlu0 0
  %4932 = vperm.xlu0 %4931, %v4897
  %v4933 = vpop.permute.xlu0 %4932
  %4934 = vset.pattern.permute.xlu0 0
  %4935 = vperm.xlu0 %4934, %v4898
  %v4936 = vpop.permute.xlu0 %4935
  %4937 = vset.pattern.permute.xlu0 0
  %4938 = vperm.xlu0 %4937, %v4899
  %v4939 = vpop.permute.xlu0 %4938
  %4940 = vset.pattern.permute.xlu0 0
  %4941 = vperm.xlu0 %4940, %v4900
  %v4942 = vpop.permute.xlu0 %4941
  %v4943 = vlaneseq
  %v4944 = vshrl.u32 %v4943, 7
  %v4945 = vsub.s32 %v19, %v4944
  %v4946 = vrot.slane %v4903, %v4945
  %v4947 = vlaneseq
  %v4948 = vshrl.u32 %v4947, 7
  %v4949 = vsub.s32 %v19, %v4948
  %v4950 = vrot.slane %v4906, %v4949
  %v4951 = vlaneseq
  %v4952 = vshrl.u32 %v4951, 7
  %v4953 = vsub.s32 %v19, %v4952
  %v4954 = vrot.slane %v4909, %v4953
  %v4955 = vlaneseq
  %v4956 = vshrl.u32 %v4955, 7
  %v4957 = vsub.s32 %v19, %v4956
  %v4958 = vrot.slane %v4912, %v4957
  %v4959 = vlaneseq
  %v4960 = vshrl.u32 %v4959, 7
  %v4961 = vsub.s32 %v19, %v4960
  %v4962 = vrot.slane %v4915, %v4961
  %v4963 = vlaneseq
  %v4964 = vshrl.u32 %v4963, 7
  %v4965 = vsub.s32 %v19, %v4964
  %v4966 = vrot.slane %v4918, %v4965
  %v4967 = vlaneseq
  %v4968 = vshrl.u32 %v4967, 7
  %v4969 = vsub.s32 %v19, %v4968
  %v4970 = vrot.slane %v4921, %v4969
  %v4971 = vlaneseq
  %v4972 = vshrl.u32 %v4971, 7
  %v4973 = vsub.s32 %v19, %v4972
  %v4974 = vrot.slane %v4924, %v4973
  %v4975 = vlaneseq
  %v4976 = vshrl.u32 %v4975, 7
  %v4977 = vsub.s32 %v19, %v4976
  %v4978 = vrot.slane %v4927, %v4977
  %v4979 = vlaneseq
  %v4980 = vshrl.u32 %v4979, 7
  %v4981 = vsub.s32 %v19, %v4980
  %v4982 = vrot.slane %v4930, %v4981
  %v4983 = vlaneseq
  %v4984 = vshrl.u32 %v4983, 7
  %v4985 = vsub.s32 %v19, %v4984
  %v4986 = vrot.slane %v4933, %v4985
  %v4987 = vlaneseq
  %v4988 = vshrl.u32 %v4987, 7
  %v4989 = vsub.s32 %v19, %v4988
  %v4990 = vrot.slane %v4936, %v4989
  %v4991 = vlaneseq
  %v4992 = vshrl.u32 %v4991, 7
  %v4993 = vsub.s32 %v19, %v4992
  %v4994 = vrot.slane %v4939, %v4993
  %v4995 = vlaneseq
  %v4996 = vshrl.u32 %v4995, 7
  %v4997 = vsub.s32 %v19, %v4996
  %v4998 = vrot.slane %v4942, %v4997
  %v4999 = vsel %vm190, %v4950, %v4946
  %v5000 = vsel %vm505, %v4954, %v4999
  %v5001 = vsel %vm507, %v4958, %v5000
  %v5002 = vsel %vm509, %v4962, %v5001
  %v5003 = vsel %vm511, %v4966, %v5002
  %v5004 = vsel %vm513, %v4970, %v5003
  %v5005 = vsel %vm190, %v4978, %v4974
  %v5006 = vsel %vm505, %v4982, %v5005
  %v5007 = vsel %vm507, %v4986, %v5006
  %v5008 = vsel %vm509, %v4990, %v5007
  %v5009 = vsel %vm511, %v4994, %v5008
  %v5010 = vsel %vm513, %v4998, %v5009
  %v5011 = vsel %vm75, %v5004, 2147483647
  %v5012 = vand.u32 %v5011, 65535
  %v5013 = vshra.s32 %v5011, 16
  %v5014 = vcvt.s32.f32 %v5012
  %v5015 = vcvt.s32.f32 %v5013
  %5016 = vmin.xlane.f32.xlu0 %v5015
  %v5017 = vpop.xlane.xlu0 %5016
  %vm5018 = vcmp.eq.f32.partialorder %v5015, %v5017
  %v5019 = vsel %vm5018, %v5014, inf
  %5020 = vmin.xlane.f32.xlu0 %v5019
  %v5021 = vpop.xlane.xlu0 %5020
  %v5022 = vcvt.f32.s32 %v5021
  %v5023 = vcvt.f32.s32 %v5017
  %v5024 = vshll.u32 %v5023, 16
  %v5025 = vadd.s32 %v5024, %v5022
  %v5026 = vsel %vm75, %v5010, 2147483647
  %v5027 = vand.u32 %v5026, 65535
  %v5028 = vshra.s32 %v5026, 16
  %v5029 = vcvt.s32.f32 %v5027
  %v5030 = vcvt.s32.f32 %v5028
  %5031 = vmin.xlane.f32.xlu0 %v5030
  %v5032 = vpop.xlane.xlu0 %5031
  %vm5033 = vcmp.eq.f32.partialorder %v5030, %v5032
  %v5034 = vsel %vm5033, %v5029, inf
  %5035 = vmin.xlane.f32.xlu0 %v5034
  %v5036 = vpop.xlane.xlu0 %5035
  %v5037 = vcvt.f32.s32 %v5036
  %v5038 = vcvt.f32.s32 %v5032
  %v5039 = vshll.u32 %v5038, 16
  %v5040 = vadd.s32 %v5039, %v5037
  %v5041 = vlaneseq
  %v5042 = vshrl.u32 %v5041, 7
  %v5043 = vsub.s32 %v19, %v5042
  %v5044 = vrot.slane %v5025, %v5043
  %v5045 = vlaneseq
  %v5046 = vshrl.u32 %v5045, 7
  %v5047 = vsub.s32 %v19, %v5046
  %v5048 = vrot.slane %v5040, %v5047
  %v5049 = vsel %vm190, %v5048, %v5044
  %s5050 = scalar_lea.vmem %s4, 10
  %5051 = vst.msk [vmem:[%s5050] sm:$0x3] %vm192, %v5049
  %v5053 = vlaneseq
  %v5054 = vshrl.u32 %v5053, 7
  %v5055 = vsub.s32 0, %v5054
  %v5056 = vrot.slane %v4119, %v5055
  %5058 = vbcast.lane.b32.xlu0 %v5056, 256
  %v5059 = vpop.permute.xlu0 %5058
  %v5060 = vlaneseq
  %v5061 = vshrl.u32 %v5060, 7
  %v5062 = vsub.s32 1, %v5061
  %v5063 = vrot.slane %v4119, %v5062
  %5065 = vbcast.lane.b32.xlu0 %v5063, 256
  %v5066 = vpop.permute.xlu0 %5065
  %v5069 = vadd.f32 %v4797, %v5059
  %v5070 = vadd.f32 %v4800, %v5066
  %v5071 = vmul.f32 %v5069, %v4627
  %v5072 = vmul.f32 %v5070, %v4631
  %v5073 = vmul.f32 %v4116, %v4644
  %v5074 = vmul.f32 %v4117, %v4648
  %v5075 = vadd.f32 %v5071, %v5073
  %v5076 = vadd.f32 %v5072, %v5074
  %s5077 = scalar_lea.vmem %s0, 12
  %v5078 = vld [vmem:[%s5077] sm:$0x3]
  %s5079 = scalar_lea.vmem %s2, 12
  %v5080 = vld [vmem:[%s5079] sm:$0x3]
  %v5081 = vadd.f32 %v4653, %v228
  %v5082 = vadd.f32 %v4653, %v235
  %v5083 = vadd.f32 %v4653, %v242
  %v5084 = vadd.f32 %v4653, %v249
  %v5085 = vadd.f32 %v4653, %v256
  %v5086 = vadd.f32 %v4653, %v263
  %v5087 = vadd.f32 %v4653, %v270
  %v5088 = vadd.f32 %v4654, %v228
  %v5089 = vadd.f32 %v4654, %v235
  %v5090 = vadd.f32 %v4654, %v242
  %v5091 = vadd.f32 %v4654, %v249
  %v5092 = vadd.f32 %v4654, %v256
  %v5093 = vadd.f32 %v4654, %v263
  %v5094 = vadd.f32 %v4654, %v270
  %v5095 = vlaneseq
  %v5096 = vshrl.u32 %v5095, 7
  %v5097 = vsub.s32 0, %v5096
  %v5098 = vrot.slane %v5078, %v5097
  %5100 = vbcast.lane.b32.xlu0 %v5098, 256
  %v5101 = vpop.permute.xlu0 %5100
  %v5102 = vlaneseq
  %v5103 = vshrl.u32 %v5102, 7
  %v5104 = vsub.s32 1, %v5103
  %v5105 = vrot.slane %v5078, %v5104
  %5107 = vbcast.lane.b32.xlu0 %v5105, 256
  %v5108 = vpop.permute.xlu0 %5107
  %v5111 = vlaneseq
  %v5112 = vshrl.u32 %v5111, 7
  %v5113 = vsub.s32 0, %v5112
  %v5114 = vrot.slane %v5101, %v5113
  %v5115 = vlaneseq
  %v5116 = vshrl.u32 %v5115, 7
  %v5117 = vsub.s32 1, %v5116
  %v5118 = vrot.slane %v5101, %v5117
  %v5119 = vlaneseq
  %v5120 = vshrl.u32 %v5119, 7
  %v5121 = vsub.s32 2, %v5120
  %v5122 = vrot.slane %v5101, %v5121
  %v5123 = vlaneseq
  %v5124 = vshrl.u32 %v5123, 7
  %v5125 = vsub.s32 3, %v5124
  %v5126 = vrot.slane %v5101, %v5125
  %v5127 = vlaneseq
  %v5128 = vshrl.u32 %v5127, 7
  %v5129 = vsub.s32 4, %v5128
  %v5130 = vrot.slane %v5101, %v5129
  %v5131 = vlaneseq
  %v5132 = vshrl.u32 %v5131, 7
  %v5133 = vsub.s32 5, %v5132
  %v5134 = vrot.slane %v5101, %v5133
  %v5135 = vlaneseq
  %v5136 = vshrl.u32 %v5135, 7
  %v5137 = vsub.s32 6, %v5136
  %v5138 = vrot.slane %v5101, %v5137
  %v5139 = vlaneseq
  %v5140 = vshrl.u32 %v5139, 7
  %v5141 = vsub.s32 0, %v5140
  %v5142 = vrot.slane %v5108, %v5141
  %v5143 = vlaneseq
  %v5144 = vshrl.u32 %v5143, 7
  %v5145 = vsub.s32 1, %v5144
  %v5146 = vrot.slane %v5108, %v5145
  %v5147 = vlaneseq
  %v5148 = vshrl.u32 %v5147, 7
  %v5149 = vsub.s32 2, %v5148
  %v5150 = vrot.slane %v5108, %v5149
  %v5151 = vlaneseq
  %v5152 = vshrl.u32 %v5151, 7
  %v5153 = vsub.s32 3, %v5152
  %v5154 = vrot.slane %v5108, %v5153
  %v5155 = vlaneseq
  %v5156 = vshrl.u32 %v5155, 7
  %v5157 = vsub.s32 4, %v5156
  %v5158 = vrot.slane %v5108, %v5157
  %v5159 = vlaneseq
  %v5160 = vshrl.u32 %v5159, 7
  %v5161 = vsub.s32 5, %v5160
  %v5162 = vrot.slane %v5108, %v5161
  %v5163 = vlaneseq
  %v5164 = vshrl.u32 %v5163, 7
  %v5165 = vsub.s32 6, %v5164
  %v5166 = vrot.slane %v5108, %v5165
  %v5181 = vadd.f32 %v5081, %v5114
  %v5182 = vadd.f32 %v5082, %v5118
  %v5183 = vadd.f32 %v5083, %v5122
  %v5184 = vadd.f32 %v5084, %v5126
  %v5185 = vadd.f32 %v5085, %v5130
  %v5186 = vadd.f32 %v5086, %v5134
  %v5187 = vadd.f32 %v5087, %v5138
  %v5188 = vadd.f32 %v5088, %v5142
  %v5189 = vadd.f32 %v5089, %v5146
  %v5190 = vadd.f32 %v5090, %v5150
  %v5191 = vadd.f32 %v5091, %v5154
  %v5192 = vadd.f32 %v5092, %v5158
  %v5193 = vadd.f32 %v5093, %v5162
  %v5194 = vadd.f32 %v5094, %v5166
  %5209 = vset.pattern.permute.xlu0 0
  %5210 = vperm.xlu0 %5209, %v5181
  %v5211 = vpop.permute.xlu0 %5210
  %5212 = vset.pattern.permute.xlu0 0
  %5213 = vperm.xlu0 %5212, %v5182
  %v5214 = vpop.permute.xlu0 %5213
  %5215 = vset.pattern.permute.xlu0 0
  %5216 = vperm.xlu0 %5215, %v5183
  %v5217 = vpop.permute.xlu0 %5216
  %5218 = vset.pattern.permute.xlu0 0
  %5219 = vperm.xlu0 %5218, %v5184
  %v5220 = vpop.permute.xlu0 %5219
  %5221 = vset.pattern.permute.xlu0 0
  %5222 = vperm.xlu0 %5221, %v5185
  %v5223 = vpop.permute.xlu0 %5222
  %5224 = vset.pattern.permute.xlu0 0
  %5225 = vperm.xlu0 %5224, %v5186
  %v5226 = vpop.permute.xlu0 %5225
  %5227 = vset.pattern.permute.xlu0 0
  %5228 = vperm.xlu0 %5227, %v5187
  %v5229 = vpop.permute.xlu0 %5228
  %5230 = vset.pattern.permute.xlu0 0
  %5231 = vperm.xlu0 %5230, %v5188
  %v5232 = vpop.permute.xlu0 %5231
  %5233 = vset.pattern.permute.xlu0 0
  %5234 = vperm.xlu0 %5233, %v5189
  %v5235 = vpop.permute.xlu0 %5234
  %5236 = vset.pattern.permute.xlu0 0
  %5237 = vperm.xlu0 %5236, %v5190
  %v5238 = vpop.permute.xlu0 %5237
  %5239 = vset.pattern.permute.xlu0 0
  %5240 = vperm.xlu0 %5239, %v5191
  %v5241 = vpop.permute.xlu0 %5240
  %5242 = vset.pattern.permute.xlu0 0
  %5243 = vperm.xlu0 %5242, %v5192
  %v5244 = vpop.permute.xlu0 %5243
  %5245 = vset.pattern.permute.xlu0 0
  %5246 = vperm.xlu0 %5245, %v5193
  %v5247 = vpop.permute.xlu0 %5246
  %5248 = vset.pattern.permute.xlu0 0
  %5249 = vperm.xlu0 %5248, %v5194
  %v5250 = vpop.permute.xlu0 %5249
  %v5251 = vlaneseq
  %v5252 = vshrl.u32 %v5251, 7
  %v5253 = vsub.s32 %v19, %v5252
  %v5254 = vrot.slane %v5211, %v5253
  %v5255 = vlaneseq
  %v5256 = vshrl.u32 %v5255, 7
  %v5257 = vsub.s32 %v19, %v5256
  %v5258 = vrot.slane %v5214, %v5257
  %v5259 = vlaneseq
  %v5260 = vshrl.u32 %v5259, 7
  %v5261 = vsub.s32 %v19, %v5260
  %v5262 = vrot.slane %v5217, %v5261
  %v5263 = vlaneseq
  %v5264 = vshrl.u32 %v5263, 7
  %v5265 = vsub.s32 %v19, %v5264
  %v5266 = vrot.slane %v5220, %v5265
  %v5267 = vlaneseq
  %v5268 = vshrl.u32 %v5267, 7
  %v5269 = vsub.s32 %v19, %v5268
  %v5270 = vrot.slane %v5223, %v5269
  %v5271 = vlaneseq
  %v5272 = vshrl.u32 %v5271, 7
  %v5273 = vsub.s32 %v19, %v5272
  %v5274 = vrot.slane %v5226, %v5273
  %v5275 = vlaneseq
  %v5276 = vshrl.u32 %v5275, 7
  %v5277 = vsub.s32 %v19, %v5276
  %v5278 = vrot.slane %v5229, %v5277
  %v5279 = vlaneseq
  %v5280 = vshrl.u32 %v5279, 7
  %v5281 = vsub.s32 %v19, %v5280
  %v5282 = vrot.slane %v5232, %v5281
  %v5283 = vlaneseq
  %v5284 = vshrl.u32 %v5283, 7
  %v5285 = vsub.s32 %v19, %v5284
  %v5286 = vrot.slane %v5235, %v5285
  %v5287 = vlaneseq
  %v5288 = vshrl.u32 %v5287, 7
  %v5289 = vsub.s32 %v19, %v5288
  %v5290 = vrot.slane %v5238, %v5289
  %v5291 = vlaneseq
  %v5292 = vshrl.u32 %v5291, 7
  %v5293 = vsub.s32 %v19, %v5292
  %v5294 = vrot.slane %v5241, %v5293
  %v5295 = vlaneseq
  %v5296 = vshrl.u32 %v5295, 7
  %v5297 = vsub.s32 %v19, %v5296
  %v5298 = vrot.slane %v5244, %v5297
  %v5299 = vlaneseq
  %v5300 = vshrl.u32 %v5299, 7
  %v5301 = vsub.s32 %v19, %v5300
  %v5302 = vrot.slane %v5247, %v5301
  %v5303 = vlaneseq
  %v5304 = vshrl.u32 %v5303, 7
  %v5305 = vsub.s32 %v19, %v5304
  %v5306 = vrot.slane %v5250, %v5305
  %v5307 = vsel %vm190, %v5258, %v5254
  %v5308 = vsel %vm505, %v5262, %v5307
  %v5309 = vsel %vm507, %v5266, %v5308
  %v5310 = vsel %vm509, %v5270, %v5309
  %v5311 = vsel %vm511, %v5274, %v5310
  %v5312 = vsel %vm513, %v5278, %v5311
  %v5313 = vsel %vm190, %v5286, %v5282
  %v5314 = vsel %vm505, %v5290, %v5313
  %v5315 = vsel %vm507, %v5294, %v5314
  %v5316 = vsel %vm509, %v5298, %v5315
  %v5317 = vsel %vm511, %v5302, %v5316
  %v5318 = vsel %vm513, %v5306, %v5317
  %v5321 = vsel %vm75, %v5312, -inf
  %5322 = vmax.xlane.f32.xlu0 %v5321
  %v5323 = vpop.xlane.xlu0 %5322
  %v5324 = vsel %vm75, %v5318, -inf
  %5325 = vmax.xlane.f32.xlu0 %v5324
  %v5326 = vpop.xlane.xlu0 %5325
  %v5329 = vlaneseq
  %v5330 = vshrl.u32 %v5329, 7
  %v5331 = vsub.s32 0, %v5330
  %v5332 = vrot.slane %v5323, %v5331
  %v5333 = vlaneseq
  %v5334 = vshrl.u32 %v5333, 7
  %v5335 = vsub.s32 1, %v5334
  %v5336 = vrot.slane %v5323, %v5335
  %v5337 = vlaneseq
  %v5338 = vshrl.u32 %v5337, 7
  %v5339 = vsub.s32 2, %v5338
  %v5340 = vrot.slane %v5323, %v5339
  %v5341 = vlaneseq
  %v5342 = vshrl.u32 %v5341, 7
  %v5343 = vsub.s32 3, %v5342
  %v5344 = vrot.slane %v5323, %v5343
  %v5345 = vlaneseq
  %v5346 = vshrl.u32 %v5345, 7
  %v5347 = vsub.s32 4, %v5346
  %v5348 = vrot.slane %v5323, %v5347
  %v5349 = vlaneseq
  %v5350 = vshrl.u32 %v5349, 7
  %v5351 = vsub.s32 5, %v5350
  %v5352 = vrot.slane %v5323, %v5351
  %v5353 = vlaneseq
  %v5354 = vshrl.u32 %v5353, 7
  %v5355 = vsub.s32 6, %v5354
  %v5356 = vrot.slane %v5323, %v5355
  %v5357 = vlaneseq
  %v5358 = vshrl.u32 %v5357, 7
  %v5359 = vsub.s32 0, %v5358
  %v5360 = vrot.slane %v5326, %v5359
  %v5361 = vlaneseq
  %v5362 = vshrl.u32 %v5361, 7
  %v5363 = vsub.s32 1, %v5362
  %v5364 = vrot.slane %v5326, %v5363
  %v5365 = vlaneseq
  %v5366 = vshrl.u32 %v5365, 7
  %v5367 = vsub.s32 2, %v5366
  %v5368 = vrot.slane %v5326, %v5367
  %v5369 = vlaneseq
  %v5370 = vshrl.u32 %v5369, 7
  %v5371 = vsub.s32 3, %v5370
  %v5372 = vrot.slane %v5326, %v5371
  %v5373 = vlaneseq
  %v5374 = vshrl.u32 %v5373, 7
  %v5375 = vsub.s32 4, %v5374
  %v5376 = vrot.slane %v5326, %v5375
  %v5377 = vlaneseq
  %v5378 = vshrl.u32 %v5377, 7
  %v5379 = vsub.s32 5, %v5378
  %v5380 = vrot.slane %v5326, %v5379
  %v5381 = vlaneseq
  %v5382 = vshrl.u32 %v5381, 7
  %v5383 = vsub.s32 6, %v5382
  %v5384 = vrot.slane %v5326, %v5383
  %v5399 = vsub.f32 %v5181, %v5332
  %v5400 = vsub.f32 %v5182, %v5336
  %v5401 = vsub.f32 %v5183, %v5340
  %v5402 = vsub.f32 %v5184, %v5344
  %v5403 = vsub.f32 %v5185, %v5348
  %v5404 = vsub.f32 %v5186, %v5352
  %v5405 = vsub.f32 %v5187, %v5356
  %v5406 = vsub.f32 %v5188, %v5360
  %v5407 = vsub.f32 %v5189, %v5364
  %v5408 = vsub.f32 %v5190, %v5368
  %v5409 = vsub.f32 %v5191, %v5372
  %v5410 = vsub.f32 %v5192, %v5376
  %v5411 = vsub.f32 %v5193, %v5380
  %v5412 = vsub.f32 %v5194, %v5384
  %v5413 = vmul.f32 %v5399, 1.442695
  %v5414 = vpow.pop %v5413
  %v5415 = vmul.f32 %v5400, 1.442695
  %v5416 = vpow.pop %v5415
  %v5417 = vmul.f32 %v5401, 1.442695
  %v5418 = vpow.pop %v5417
  %v5419 = vmul.f32 %v5402, 1.442695
  %v5420 = vpow.pop %v5419
  %v5421 = vmul.f32 %v5403, 1.442695
  %v5422 = vpow.pop %v5421
  %v5423 = vmul.f32 %v5404, 1.442695
  %v5424 = vpow.pop %v5423
  %v5425 = vmul.f32 %v5405, 1.442695
  %v5426 = vpow.pop %v5425
  %v5427 = vmul.f32 %v5406, 1.442695
  %v5428 = vpow.pop %v5427
  %v5429 = vmul.f32 %v5407, 1.442695
  %v5430 = vpow.pop %v5429
  %v5431 = vmul.f32 %v5408, 1.442695
  %v5432 = vpow.pop %v5431
  %v5433 = vmul.f32 %v5409, 1.442695
  %v5434 = vpow.pop %v5433
  %v5435 = vmul.f32 %v5410, 1.442695
  %v5436 = vpow.pop %v5435
  %v5437 = vmul.f32 %v5411, 1.442695
  %v5438 = vpow.pop %v5437
  %v5439 = vmul.f32 %v5412, 1.442695
  %v5440 = vpow.pop %v5439
  %5455 = vset.pattern.permute.xlu0 0
  %5456 = vperm.xlu0 %5455, %v5414
  %v5457 = vpop.permute.xlu0 %5456
  %5458 = vset.pattern.permute.xlu0 0
  %5459 = vperm.xlu0 %5458, %v5416
  %v5460 = vpop.permute.xlu0 %5459
  %5461 = vset.pattern.permute.xlu0 0
  %5462 = vperm.xlu0 %5461, %v5418
  %v5463 = vpop.permute.xlu0 %5462
  %5464 = vset.pattern.permute.xlu0 0
  %5465 = vperm.xlu0 %5464, %v5420
  %v5466 = vpop.permute.xlu0 %5465
  %5467 = vset.pattern.permute.xlu0 0
  %5468 = vperm.xlu0 %5467, %v5422
  %v5469 = vpop.permute.xlu0 %5468
  %5470 = vset.pattern.permute.xlu0 0
  %5471 = vperm.xlu0 %5470, %v5424
  %v5472 = vpop.permute.xlu0 %5471
  %5473 = vset.pattern.permute.xlu0 0
  %5474 = vperm.xlu0 %5473, %v5426
  %v5475 = vpop.permute.xlu0 %5474
  %5476 = vset.pattern.permute.xlu0 0
  %5477 = vperm.xlu0 %5476, %v5428
  %v5478 = vpop.permute.xlu0 %5477
  %5479 = vset.pattern.permute.xlu0 0
  %5480 = vperm.xlu0 %5479, %v5430
  %v5481 = vpop.permute.xlu0 %5480
  %5482 = vset.pattern.permute.xlu0 0
  %5483 = vperm.xlu0 %5482, %v5432
  %v5484 = vpop.permute.xlu0 %5483
  %5485 = vset.pattern.permute.xlu0 0
  %5486 = vperm.xlu0 %5485, %v5434
  %v5487 = vpop.permute.xlu0 %5486
  %5488 = vset.pattern.permute.xlu0 0
  %5489 = vperm.xlu0 %5488, %v5436
  %v5490 = vpop.permute.xlu0 %5489
  %5491 = vset.pattern.permute.xlu0 0
  %5492 = vperm.xlu0 %5491, %v5438
  %v5493 = vpop.permute.xlu0 %5492
  %5494 = vset.pattern.permute.xlu0 0
  %5495 = vperm.xlu0 %5494, %v5440
  %v5496 = vpop.permute.xlu0 %5495
  %v5497 = vlaneseq
  %v5498 = vshrl.u32 %v5497, 7
  %v5499 = vsub.s32 %v19, %v5498
  %v5500 = vrot.slane %v5457, %v5499
  %v5501 = vlaneseq
  %v5502 = vshrl.u32 %v5501, 7
  %v5503 = vsub.s32 %v19, %v5502
  %v5504 = vrot.slane %v5460, %v5503
  %v5505 = vlaneseq
  %v5506 = vshrl.u32 %v5505, 7
  %v5507 = vsub.s32 %v19, %v5506
  %v5508 = vrot.slane %v5463, %v5507
  %v5509 = vlaneseq
  %v5510 = vshrl.u32 %v5509, 7
  %v5511 = vsub.s32 %v19, %v5510
  %v5512 = vrot.slane %v5466, %v5511
  %v5513 = vlaneseq
  %v5514 = vshrl.u32 %v5513, 7
  %v5515 = vsub.s32 %v19, %v5514
  %v5516 = vrot.slane %v5469, %v5515
  %v5517 = vlaneseq
  %v5518 = vshrl.u32 %v5517, 7
  %v5519 = vsub.s32 %v19, %v5518
  %v5520 = vrot.slane %v5472, %v5519
  %v5521 = vlaneseq
  %v5522 = vshrl.u32 %v5521, 7
  %v5523 = vsub.s32 %v19, %v5522
  %v5524 = vrot.slane %v5475, %v5523
  %v5525 = vlaneseq
  %v5526 = vshrl.u32 %v5525, 7
  %v5527 = vsub.s32 %v19, %v5526
  %v5528 = vrot.slane %v5478, %v5527
  %v5529 = vlaneseq
  %v5530 = vshrl.u32 %v5529, 7
  %v5531 = vsub.s32 %v19, %v5530
  %v5532 = vrot.slane %v5481, %v5531
  %v5533 = vlaneseq
  %v5534 = vshrl.u32 %v5533, 7
  %v5535 = vsub.s32 %v19, %v5534
  %v5536 = vrot.slane %v5484, %v5535
  %v5537 = vlaneseq
  %v5538 = vshrl.u32 %v5537, 7
  %v5539 = vsub.s32 %v19, %v5538
  %v5540 = vrot.slane %v5487, %v5539
  %v5541 = vlaneseq
  %v5542 = vshrl.u32 %v5541, 7
  %v5543 = vsub.s32 %v19, %v5542
  %v5544 = vrot.slane %v5490, %v5543
  %v5545 = vlaneseq
  %v5546 = vshrl.u32 %v5545, 7
  %v5547 = vsub.s32 %v19, %v5546
  %v5548 = vrot.slane %v5493, %v5547
  %v5549 = vlaneseq
  %v5550 = vshrl.u32 %v5549, 7
  %v5551 = vsub.s32 %v19, %v5550
  %v5552 = vrot.slane %v5496, %v5551
  %v5553 = vsel %vm190, %v5504, %v5500
  %v5554 = vsel %vm505, %v5508, %v5553
  %v5555 = vsel %vm507, %v5512, %v5554
  %v5556 = vsel %vm509, %v5516, %v5555
  %v5557 = vsel %vm511, %v5520, %v5556
  %v5558 = vsel %vm513, %v5524, %v5557
  %v5559 = vsel %vm190, %v5532, %v5528
  %v5560 = vsel %vm505, %v5536, %v5559
  %v5561 = vsel %vm507, %v5540, %v5560
  %v5562 = vsel %vm509, %v5544, %v5561
  %v5563 = vsel %vm511, %v5548, %v5562
  %v5564 = vsel %vm513, %v5552, %v5563
  %v5567 = vsel %vm75, %v5558, 0.0
  %5568 = vadd.xlane.f32.xlu0 %v5567
  %v5569 = vpop.xlane.xlu0 %5568
  %v5570 = vsel %vm75, %v5564, 0.0
  %5571 = vadd.xlane.f32.xlu0 %v5570
  %v5572 = vpop.xlane.xlu0 %5571
  %v5573 = vlog2.pop %v5569
  %v5574 = vmul.f32 %v5573, 0.6931472
  %v5575 = vlog2.pop %v5572
  %v5576 = vmul.f32 %v5575, 0.6931472
  %v5577 = vadd.f32 %v5323, %v5574
  %v5578 = vadd.f32 %v5326, %v5576
  %5580 = vset.pattern.permute.xlu0 0
  %5581 = vperm.xlu0 %5580, %v5080
  %v5582 = vpop.permute.xlu0 %5581
  %v5583 = vlaneseq
  %v5584 = vshrl.u32 %v5583, 7
  %v5585 = vsub.s32 0, %v5584
  %v5586 = vrot.slane %v5582, %v5585
  %v5587 = vlaneseq
  %v5588 = vshrl.u32 %v5587, 7
  %v5589 = vsub.s32 1, %v5588
  %v5590 = vrot.slane %v5582, %v5589
  %v5593 = vmul.f32 %v5577, %v5586
  %v5594 = vmul.f32 %v5578, %v5590
  %v5595 = vsub.f32 1.0, %v5080
  %5597 = vset.pattern.permute.xlu0 0
  %5598 = vperm.xlu0 %5597, %v5595
  %v5599 = vpop.permute.xlu0 %5598
  %v5600 = vlaneseq
  %v5601 = vshrl.u32 %v5600, 7
  %v5602 = vsub.s32 0, %v5601
  %v5603 = vrot.slane %v5599, %v5602
  %v5604 = vlaneseq
  %v5605 = vshrl.u32 %v5604, 7
  %v5606 = vsub.s32 1, %v5605
  %v5607 = vrot.slane %v5599, %v5606
  %v5610 = vmul.f32 %v4653, %v5603
  %v5611 = vmul.f32 %v4654, %v5607
  %v5612 = vadd.f32 %v5593, %v5610
  %v5613 = vadd.f32 %v5594, %v5611
  %v5614 = vadd.f32 %v5075, %v228
  %v5615 = vadd.f32 %v5075, %v235
  %v5616 = vadd.f32 %v5075, %v242
  %v5617 = vadd.f32 %v5075, %v249
  %v5618 = vadd.f32 %v5075, %v256
  %v5619 = vadd.f32 %v5075, %v263
  %v5620 = vadd.f32 %v5075, %v270
  %v5621 = vadd.f32 %v5076, %v228
  %v5622 = vadd.f32 %v5076, %v235
  %v5623 = vadd.f32 %v5076, %v242
  %v5624 = vadd.f32 %v5076, %v249
  %v5625 = vadd.f32 %v5076, %v256
  %v5626 = vadd.f32 %v5076, %v263
  %v5627 = vadd.f32 %v5076, %v270
  %5642 = vset.pattern.permute.xlu0 0
  %5643 = vperm.xlu0 %5642, %v5614
  %v5644 = vpop.permute.xlu0 %5643
  %5645 = vset.pattern.permute.xlu0 0
  %5646 = vperm.xlu0 %5645, %v5615
  %v5647 = vpop.permute.xlu0 %5646
  %5648 = vset.pattern.permute.xlu0 0
  %5649 = vperm.xlu0 %5648, %v5616
  %v5650 = vpop.permute.xlu0 %5649
  %5651 = vset.pattern.permute.xlu0 0
  %5652 = vperm.xlu0 %5651, %v5617
  %v5653 = vpop.permute.xlu0 %5652
  %5654 = vset.pattern.permute.xlu0 0
  %5655 = vperm.xlu0 %5654, %v5618
  %v5656 = vpop.permute.xlu0 %5655
  %5657 = vset.pattern.permute.xlu0 0
  %5658 = vperm.xlu0 %5657, %v5619
  %v5659 = vpop.permute.xlu0 %5658
  %5660 = vset.pattern.permute.xlu0 0
  %5661 = vperm.xlu0 %5660, %v5620
  %v5662 = vpop.permute.xlu0 %5661
  %5663 = vset.pattern.permute.xlu0 0
  %5664 = vperm.xlu0 %5663, %v5621
  %v5665 = vpop.permute.xlu0 %5664
  %5666 = vset.pattern.permute.xlu0 0
  %5667 = vperm.xlu0 %5666, %v5622
  %v5668 = vpop.permute.xlu0 %5667
  %5669 = vset.pattern.permute.xlu0 0
  %5670 = vperm.xlu0 %5669, %v5623
  %v5671 = vpop.permute.xlu0 %5670
  %5672 = vset.pattern.permute.xlu0 0
  %5673 = vperm.xlu0 %5672, %v5624
  %v5674 = vpop.permute.xlu0 %5673
  %5675 = vset.pattern.permute.xlu0 0
  %5676 = vperm.xlu0 %5675, %v5625
  %v5677 = vpop.permute.xlu0 %5676
  %5678 = vset.pattern.permute.xlu0 0
  %5679 = vperm.xlu0 %5678, %v5626
  %v5680 = vpop.permute.xlu0 %5679
  %5681 = vset.pattern.permute.xlu0 0
  %5682 = vperm.xlu0 %5681, %v5627
  %v5683 = vpop.permute.xlu0 %5682
  %v5684 = vlaneseq
  %v5685 = vshrl.u32 %v5684, 7
  %v5686 = vsub.s32 %v19, %v5685
  %v5687 = vrot.slane %v5644, %v5686
  %v5688 = vlaneseq
  %v5689 = vshrl.u32 %v5688, 7
  %v5690 = vsub.s32 %v19, %v5689
  %v5691 = vrot.slane %v5647, %v5690
  %v5692 = vlaneseq
  %v5693 = vshrl.u32 %v5692, 7
  %v5694 = vsub.s32 %v19, %v5693
  %v5695 = vrot.slane %v5650, %v5694
  %v5696 = vlaneseq
  %v5697 = vshrl.u32 %v5696, 7
  %v5698 = vsub.s32 %v19, %v5697
  %v5699 = vrot.slane %v5653, %v5698
  %v5700 = vlaneseq
  %v5701 = vshrl.u32 %v5700, 7
  %v5702 = vsub.s32 %v19, %v5701
  %v5703 = vrot.slane %v5656, %v5702
  %v5704 = vlaneseq
  %v5705 = vshrl.u32 %v5704, 7
  %v5706 = vsub.s32 %v19, %v5705
  %v5707 = vrot.slane %v5659, %v5706
  %v5708 = vlaneseq
  %v5709 = vshrl.u32 %v5708, 7
  %v5710 = vsub.s32 %v19, %v5709
  %v5711 = vrot.slane %v5662, %v5710
  %v5712 = vlaneseq
  %v5713 = vshrl.u32 %v5712, 7
  %v5714 = vsub.s32 %v19, %v5713
  %v5715 = vrot.slane %v5665, %v5714
  %v5716 = vlaneseq
  %v5717 = vshrl.u32 %v5716, 7
  %v5718 = vsub.s32 %v19, %v5717
  %v5719 = vrot.slane %v5668, %v5718
  %v5720 = vlaneseq
  %v5721 = vshrl.u32 %v5720, 7
  %v5722 = vsub.s32 %v19, %v5721
  %v5723 = vrot.slane %v5671, %v5722
  %v5724 = vlaneseq
  %v5725 = vshrl.u32 %v5724, 7
  %v5726 = vsub.s32 %v19, %v5725
  %v5727 = vrot.slane %v5674, %v5726
  %v5728 = vlaneseq
  %v5729 = vshrl.u32 %v5728, 7
  %v5730 = vsub.s32 %v19, %v5729
  %v5731 = vrot.slane %v5677, %v5730
  %v5732 = vlaneseq
  %v5733 = vshrl.u32 %v5732, 7
  %v5734 = vsub.s32 %v19, %v5733
  %v5735 = vrot.slane %v5680, %v5734
  %v5736 = vlaneseq
  %v5737 = vshrl.u32 %v5736, 7
  %v5738 = vsub.s32 %v19, %v5737
  %v5739 = vrot.slane %v5683, %v5738
  %v5740 = vsel %vm190, %v5691, %v5687
  %v5741 = vsel %vm505, %v5695, %v5740
  %v5742 = vsel %vm507, %v5699, %v5741
  %v5743 = vsel %vm509, %v5703, %v5742
  %v5744 = vsel %vm511, %v5707, %v5743
  %v5745 = vsel %vm513, %v5711, %v5744
  %v5746 = vsel %vm190, %v5719, %v5715
  %v5747 = vsel %vm505, %v5723, %v5746
  %v5748 = vsel %vm507, %v5727, %v5747
  %v5749 = vsel %vm509, %v5731, %v5748
  %v5750 = vsel %vm511, %v5735, %v5749
  %v5751 = vsel %vm513, %v5739, %v5750
  %v5754 = vsel %vm75, %v5745, -inf
  %5755 = vmax.xlane.f32.xlu0 %v5754
  %v5756 = vpop.xlane.xlu0 %5755
  %v5757 = vsel %vm75, %v5751, -inf
  %5758 = vmax.xlane.f32.xlu0 %v5757
  %v5759 = vpop.xlane.xlu0 %5758
  %v5762 = vlaneseq
  %v5763 = vshrl.u32 %v5762, 7
  %v5764 = vsub.s32 0, %v5763
  %v5765 = vrot.slane %v5756, %v5764
  %v5766 = vlaneseq
  %v5767 = vshrl.u32 %v5766, 7
  %v5768 = vsub.s32 1, %v5767
  %v5769 = vrot.slane %v5756, %v5768
  %v5770 = vlaneseq
  %v5771 = vshrl.u32 %v5770, 7
  %v5772 = vsub.s32 2, %v5771
  %v5773 = vrot.slane %v5756, %v5772
  %v5774 = vlaneseq
  %v5775 = vshrl.u32 %v5774, 7
  %v5776 = vsub.s32 3, %v5775
  %v5777 = vrot.slane %v5756, %v5776
  %v5778 = vlaneseq
  %v5779 = vshrl.u32 %v5778, 7
  %v5780 = vsub.s32 4, %v5779
  %v5781 = vrot.slane %v5756, %v5780
  %v5782 = vlaneseq
  %v5783 = vshrl.u32 %v5782, 7
  %v5784 = vsub.s32 5, %v5783
  %v5785 = vrot.slane %v5756, %v5784
  %v5786 = vlaneseq
  %v5787 = vshrl.u32 %v5786, 7
  %v5788 = vsub.s32 6, %v5787
  %v5789 = vrot.slane %v5756, %v5788
  %v5790 = vlaneseq
  %v5791 = vshrl.u32 %v5790, 7
  %v5792 = vsub.s32 0, %v5791
  %v5793 = vrot.slane %v5759, %v5792
  %v5794 = vlaneseq
  %v5795 = vshrl.u32 %v5794, 7
  %v5796 = vsub.s32 1, %v5795
  %v5797 = vrot.slane %v5759, %v5796
  %v5798 = vlaneseq
  %v5799 = vshrl.u32 %v5798, 7
  %v5800 = vsub.s32 2, %v5799
  %v5801 = vrot.slane %v5759, %v5800
  %v5802 = vlaneseq
  %v5803 = vshrl.u32 %v5802, 7
  %v5804 = vsub.s32 3, %v5803
  %v5805 = vrot.slane %v5759, %v5804
  %v5806 = vlaneseq
  %v5807 = vshrl.u32 %v5806, 7
  %v5808 = vsub.s32 4, %v5807
  %v5809 = vrot.slane %v5759, %v5808
  %v5810 = vlaneseq
  %v5811 = vshrl.u32 %v5810, 7
  %v5812 = vsub.s32 5, %v5811
  %v5813 = vrot.slane %v5759, %v5812
  %v5814 = vlaneseq
  %v5815 = vshrl.u32 %v5814, 7
  %v5816 = vsub.s32 6, %v5815
  %v5817 = vrot.slane %v5759, %v5816
  %vm5832 = vcmp.eq.f32.partialorder %v5614, %v5765
  %vm5833 = vcmp.eq.f32.partialorder %v5615, %v5769
  %vm5834 = vcmp.eq.f32.partialorder %v5616, %v5773
  %vm5835 = vcmp.eq.f32.partialorder %v5617, %v5777
  %vm5836 = vcmp.eq.f32.partialorder %v5618, %v5781
  %vm5837 = vcmp.eq.f32.partialorder %v5619, %v5785
  %vm5838 = vcmp.eq.f32.partialorder %v5620, %v5789
  %vm5839 = vcmp.eq.f32.partialorder %v5621, %v5793
  %vm5840 = vcmp.eq.f32.partialorder %v5622, %v5797
  %vm5841 = vcmp.eq.f32.partialorder %v5623, %v5801
  %vm5842 = vcmp.eq.f32.partialorder %v5624, %v5805
  %vm5843 = vcmp.eq.f32.partialorder %v5625, %v5809
  %vm5844 = vcmp.eq.f32.partialorder %v5626, %v5813
  %vm5845 = vcmp.eq.f32.partialorder %v5627, %v5817
  %v5846 = vsel %vm5832, %v1050, 7
  %v5847 = vsel %vm5833, %v1050, 7
  %v5848 = vsel %vm5834, %v1050, 7
  %v5849 = vsel %vm5835, %v1050, 7
  %v5850 = vsel %vm5836, %v1050, 7
  %v5851 = vsel %vm5837, %v1050, 7
  %v5852 = vsel %vm5838, %v1050, 7
  %v5853 = vsel %vm5839, %v1050, 7
  %v5854 = vsel %vm5840, %v1050, 7
  %v5855 = vsel %vm5841, %v1050, 7
  %v5856 = vsel %vm5842, %v1050, 7
  %v5857 = vsel %vm5843, %v1050, 7
  %v5858 = vsel %vm5844, %v1050, 7
  %v5859 = vsel %vm5845, %v1050, 7
  %5860 = vset.pattern.permute.xlu0 0
  %5861 = vperm.xlu0 %5860, %v5846
  %v5862 = vpop.permute.xlu0 %5861
  %5863 = vset.pattern.permute.xlu0 0
  %5864 = vperm.xlu0 %5863, %v5847
  %v5865 = vpop.permute.xlu0 %5864
  %5866 = vset.pattern.permute.xlu0 0
  %5867 = vperm.xlu0 %5866, %v5848
  %v5868 = vpop.permute.xlu0 %5867
  %5869 = vset.pattern.permute.xlu0 0
  %5870 = vperm.xlu0 %5869, %v5849
  %v5871 = vpop.permute.xlu0 %5870
  %5872 = vset.pattern.permute.xlu0 0
  %5873 = vperm.xlu0 %5872, %v5850
  %v5874 = vpop.permute.xlu0 %5873
  %5875 = vset.pattern.permute.xlu0 0
  %5876 = vperm.xlu0 %5875, %v5851
  %v5877 = vpop.permute.xlu0 %5876
  %5878 = vset.pattern.permute.xlu0 0
  %5879 = vperm.xlu0 %5878, %v5852
  %v5880 = vpop.permute.xlu0 %5879
  %5881 = vset.pattern.permute.xlu0 0
  %5882 = vperm.xlu0 %5881, %v5853
  %v5883 = vpop.permute.xlu0 %5882
  %5884 = vset.pattern.permute.xlu0 0
  %5885 = vperm.xlu0 %5884, %v5854
  %v5886 = vpop.permute.xlu0 %5885
  %5887 = vset.pattern.permute.xlu0 0
  %5888 = vperm.xlu0 %5887, %v5855
  %v5889 = vpop.permute.xlu0 %5888
  %5890 = vset.pattern.permute.xlu0 0
  %5891 = vperm.xlu0 %5890, %v5856
  %v5892 = vpop.permute.xlu0 %5891
  %5893 = vset.pattern.permute.xlu0 0
  %5894 = vperm.xlu0 %5893, %v5857
  %v5895 = vpop.permute.xlu0 %5894
  %5896 = vset.pattern.permute.xlu0 0
  %5897 = vperm.xlu0 %5896, %v5858
  %v5898 = vpop.permute.xlu0 %5897
  %5899 = vset.pattern.permute.xlu0 0
  %5900 = vperm.xlu0 %5899, %v5859
  %v5901 = vpop.permute.xlu0 %5900
  %v5902 = vlaneseq
  %v5903 = vshrl.u32 %v5902, 7
  %v5904 = vsub.s32 %v19, %v5903
  %v5905 = vrot.slane %v5862, %v5904
  %v5906 = vlaneseq
  %v5907 = vshrl.u32 %v5906, 7
  %v5908 = vsub.s32 %v19, %v5907
  %v5909 = vrot.slane %v5865, %v5908
  %v5910 = vlaneseq
  %v5911 = vshrl.u32 %v5910, 7
  %v5912 = vsub.s32 %v19, %v5911
  %v5913 = vrot.slane %v5868, %v5912
  %v5914 = vlaneseq
  %v5915 = vshrl.u32 %v5914, 7
  %v5916 = vsub.s32 %v19, %v5915
  %v5917 = vrot.slane %v5871, %v5916
  %v5918 = vlaneseq
  %v5919 = vshrl.u32 %v5918, 7
  %v5920 = vsub.s32 %v19, %v5919
  %v5921 = vrot.slane %v5874, %v5920
  %v5922 = vlaneseq
  %v5923 = vshrl.u32 %v5922, 7
  %v5924 = vsub.s32 %v19, %v5923
  %v5925 = vrot.slane %v5877, %v5924
  %v5926 = vlaneseq
  %v5927 = vshrl.u32 %v5926, 7
  %v5928 = vsub.s32 %v19, %v5927
  %v5929 = vrot.slane %v5880, %v5928
  %v5930 = vlaneseq
  %v5931 = vshrl.u32 %v5930, 7
  %v5932 = vsub.s32 %v19, %v5931
  %v5933 = vrot.slane %v5883, %v5932
  %v5934 = vlaneseq
  %v5935 = vshrl.u32 %v5934, 7
  %v5936 = vsub.s32 %v19, %v5935
  %v5937 = vrot.slane %v5886, %v5936
  %v5938 = vlaneseq
  %v5939 = vshrl.u32 %v5938, 7
  %v5940 = vsub.s32 %v19, %v5939
  %v5941 = vrot.slane %v5889, %v5940
  %v5942 = vlaneseq
  %v5943 = vshrl.u32 %v5942, 7
  %v5944 = vsub.s32 %v19, %v5943
  %v5945 = vrot.slane %v5892, %v5944
  %v5946 = vlaneseq
  %v5947 = vshrl.u32 %v5946, 7
  %v5948 = vsub.s32 %v19, %v5947
  %v5949 = vrot.slane %v5895, %v5948
  %v5950 = vlaneseq
  %v5951 = vshrl.u32 %v5950, 7
  %v5952 = vsub.s32 %v19, %v5951
  %v5953 = vrot.slane %v5898, %v5952
  %v5954 = vlaneseq
  %v5955 = vshrl.u32 %v5954, 7
  %v5956 = vsub.s32 %v19, %v5955
  %v5957 = vrot.slane %v5901, %v5956
  %v5958 = vsel %vm190, %v5909, %v5905
  %v5959 = vsel %vm505, %v5913, %v5958
  %v5960 = vsel %vm507, %v5917, %v5959
  %v5961 = vsel %vm509, %v5921, %v5960
  %v5962 = vsel %vm511, %v5925, %v5961
  %v5963 = vsel %vm513, %v5929, %v5962
  %v5964 = vsel %vm190, %v5937, %v5933
  %v5965 = vsel %vm505, %v5941, %v5964
  %v5966 = vsel %vm507, %v5945, %v5965
  %v5967 = vsel %vm509, %v5949, %v5966
  %v5968 = vsel %vm511, %v5953, %v5967
  %v5969 = vsel %vm513, %v5957, %v5968
  %v5970 = vsel %vm75, %v5963, 2147483647
  %v5971 = vand.u32 %v5970, 65535
  %v5972 = vshra.s32 %v5970, 16
  %v5973 = vcvt.s32.f32 %v5971
  %v5974 = vcvt.s32.f32 %v5972
  %5975 = vmin.xlane.f32.xlu0 %v5974
  %v5976 = vpop.xlane.xlu0 %5975
  %vm5977 = vcmp.eq.f32.partialorder %v5974, %v5976
  %v5978 = vsel %vm5977, %v5973, inf
  %5979 = vmin.xlane.f32.xlu0 %v5978
  %v5980 = vpop.xlane.xlu0 %5979
  %v5981 = vcvt.f32.s32 %v5980
  %v5982 = vcvt.f32.s32 %v5976
  %v5983 = vshll.u32 %v5982, 16
  %v5984 = vadd.s32 %v5983, %v5981
  %v5985 = vsel %vm75, %v5969, 2147483647
  %v5986 = vand.u32 %v5985, 65535
  %v5987 = vshra.s32 %v5985, 16
  %v5988 = vcvt.s32.f32 %v5986
  %v5989 = vcvt.s32.f32 %v5987
  %5990 = vmin.xlane.f32.xlu0 %v5989
  %v5991 = vpop.xlane.xlu0 %5990
  %vm5992 = vcmp.eq.f32.partialorder %v5989, %v5991
  %v5993 = vsel %vm5992, %v5988, inf
  %5994 = vmin.xlane.f32.xlu0 %v5993
  %v5995 = vpop.xlane.xlu0 %5994
  %v5996 = vcvt.f32.s32 %v5995
  %v5997 = vcvt.f32.s32 %v5991
  %v5998 = vshll.u32 %v5997, 16
  %v5999 = vadd.s32 %v5998, %v5996
  %v6000 = vlaneseq
  %v6001 = vshrl.u32 %v6000, 7
  %v6002 = vsub.s32 %v19, %v6001
  %v6003 = vrot.slane %v5984, %v6002
  %v6004 = vlaneseq
  %v6005 = vshrl.u32 %v6004, 7
  %v6006 = vsub.s32 %v19, %v6005
  %v6007 = vrot.slane %v5999, %v6006
  %v6008 = vsel %vm190, %v6007, %v6003
  %s6009 = scalar_lea.vmem %s4, 12
  %6010 = vst.msk [vmem:[%s6009] sm:$0x3] %vm192, %v6008
  %v6012 = vlaneseq
  %v6013 = vshrl.u32 %v6012, 7
  %v6014 = vsub.s32 0, %v6013
  %v6015 = vrot.slane %v5078, %v6014
  %6017 = vbcast.lane.b32.xlu0 %v6015, 256
  %v6018 = vpop.permute.xlu0 %6017
  %v6019 = vlaneseq
  %v6020 = vshrl.u32 %v6019, 7
  %v6021 = vsub.s32 1, %v6020
  %v6022 = vrot.slane %v5078, %v6021
  %6024 = vbcast.lane.b32.xlu0 %v6022, 256
  %v6025 = vpop.permute.xlu0 %6024
  %v6028 = vadd.f32 %v5756, %v6018
  %v6029 = vadd.f32 %v5759, %v6025
  %v6030 = vmul.f32 %v6028, %v5586
  %v6031 = vmul.f32 %v6029, %v5590
  %v6032 = vmul.f32 %v5075, %v5603
  %v6033 = vmul.f32 %v5076, %v5607
  %v6034 = vadd.f32 %v6030, %v6032
  %v6035 = vadd.f32 %v6031, %v6033
  %s6036 = scalar_lea.vmem %s0, 14
  %v6037 = vld [vmem:[%s6036] sm:$0x3]
  %s6038 = scalar_lea.vmem %s2, 14
  %v6039 = vld [vmem:[%s6038] sm:$0x3]
  %v6040 = vadd.f32 %v5612, %v228
  %v6041 = vadd.f32 %v5612, %v235
  %v6042 = vadd.f32 %v5612, %v242
  %v6043 = vadd.f32 %v5612, %v249
  %v6044 = vadd.f32 %v5612, %v256
  %v6045 = vadd.f32 %v5612, %v263
  %v6046 = vadd.f32 %v5612, %v270
  %v6047 = vadd.f32 %v5613, %v228
  %v6048 = vadd.f32 %v5613, %v235
  %v6049 = vadd.f32 %v5613, %v242
  %v6050 = vadd.f32 %v5613, %v249
  %v6051 = vadd.f32 %v5613, %v256
  %v6052 = vadd.f32 %v5613, %v263
  %v6053 = vadd.f32 %v5613, %v270
  %v6054 = vlaneseq
  %v6055 = vshrl.u32 %v6054, 7
  %v6056 = vsub.s32 0, %v6055
  %v6057 = vrot.slane %v6037, %v6056
  %6059 = vbcast.lane.b32.xlu0 %v6057, 256
  %v6060 = vpop.permute.xlu0 %6059
  %v6061 = vlaneseq
  %v6062 = vshrl.u32 %v6061, 7
  %v6063 = vsub.s32 1, %v6062
  %v6064 = vrot.slane %v6037, %v6063
  %6066 = vbcast.lane.b32.xlu0 %v6064, 256
  %v6067 = vpop.permute.xlu0 %6066
  %v6070 = vlaneseq
  %v6071 = vshrl.u32 %v6070, 7
  %v6072 = vsub.s32 0, %v6071
  %v6073 = vrot.slane %v6060, %v6072
  %v6074 = vlaneseq
  %v6075 = vshrl.u32 %v6074, 7
  %v6076 = vsub.s32 1, %v6075
  %v6077 = vrot.slane %v6060, %v6076
  %v6078 = vlaneseq
  %v6079 = vshrl.u32 %v6078, 7
  %v6080 = vsub.s32 2, %v6079
  %v6081 = vrot.slane %v6060, %v6080
  %v6082 = vlaneseq
  %v6083 = vshrl.u32 %v6082, 7
  %v6084 = vsub.s32 3, %v6083
  %v6085 = vrot.slane %v6060, %v6084
  %v6086 = vlaneseq
  %v6087 = vshrl.u32 %v6086, 7
  %v6088 = vsub.s32 4, %v6087
  %v6089 = vrot.slane %v6060, %v6088
  %v6090 = vlaneseq
  %v6091 = vshrl.u32 %v6090, 7
  %v6092 = vsub.s32 5, %v6091
  %v6093 = vrot.slane %v6060, %v6092
  %v6094 = vlaneseq
  %v6095 = vshrl.u32 %v6094, 7
  %v6096 = vsub.s32 6, %v6095
  %v6097 = vrot.slane %v6060, %v6096
  %v6098 = vlaneseq
  %v6099 = vshrl.u32 %v6098, 7
  %v6100 = vsub.s32 0, %v6099
  %v6101 = vrot.slane %v6067, %v6100
  %v6102 = vlaneseq
  %v6103 = vshrl.u32 %v6102, 7
  %v6104 = vsub.s32 1, %v6103
  %v6105 = vrot.slane %v6067, %v6104
  %v6106 = vlaneseq
  %v6107 = vshrl.u32 %v6106, 7
  %v6108 = vsub.s32 2, %v6107
  %v6109 = vrot.slane %v6067, %v6108
  %v6110 = vlaneseq
  %v6111 = vshrl.u32 %v6110, 7
  %v6112 = vsub.s32 3, %v6111
  %v6113 = vrot.slane %v6067, %v6112
  %v6114 = vlaneseq
  %v6115 = vshrl.u32 %v6114, 7
  %v6116 = vsub.s32 4, %v6115
  %v6117 = vrot.slane %v6067, %v6116
  %v6118 = vlaneseq
  %v6119 = vshrl.u32 %v6118, 7
  %v6120 = vsub.s32 5, %v6119
  %v6121 = vrot.slane %v6067, %v6120
  %v6122 = vlaneseq
  %v6123 = vshrl.u32 %v6122, 7
  %v6124 = vsub.s32 6, %v6123
  %v6125 = vrot.slane %v6067, %v6124
  %v6140 = vadd.f32 %v6040, %v6073
  %v6141 = vadd.f32 %v6041, %v6077
  %v6142 = vadd.f32 %v6042, %v6081
  %v6143 = vadd.f32 %v6043, %v6085
  %v6144 = vadd.f32 %v6044, %v6089
  %v6145 = vadd.f32 %v6045, %v6093
  %v6146 = vadd.f32 %v6046, %v6097
  %v6147 = vadd.f32 %v6047, %v6101
  %v6148 = vadd.f32 %v6048, %v6105
  %v6149 = vadd.f32 %v6049, %v6109
  %v6150 = vadd.f32 %v6050, %v6113
  %v6151 = vadd.f32 %v6051, %v6117
  %v6152 = vadd.f32 %v6052, %v6121
  %v6153 = vadd.f32 %v6053, %v6125
  %6168 = vset.pattern.permute.xlu0 0
  %6169 = vperm.xlu0 %6168, %v6140
  %v6170 = vpop.permute.xlu0 %6169
  %6171 = vset.pattern.permute.xlu0 0
  %6172 = vperm.xlu0 %6171, %v6141
  %v6173 = vpop.permute.xlu0 %6172
  %6174 = vset.pattern.permute.xlu0 0
  %6175 = vperm.xlu0 %6174, %v6142
  %v6176 = vpop.permute.xlu0 %6175
  %6177 = vset.pattern.permute.xlu0 0
  %6178 = vperm.xlu0 %6177, %v6143
  %v6179 = vpop.permute.xlu0 %6178
  %6180 = vset.pattern.permute.xlu0 0
  %6181 = vperm.xlu0 %6180, %v6144
  %v6182 = vpop.permute.xlu0 %6181
  %6183 = vset.pattern.permute.xlu0 0
  %6184 = vperm.xlu0 %6183, %v6145
  %v6185 = vpop.permute.xlu0 %6184
  %6186 = vset.pattern.permute.xlu0 0
  %6187 = vperm.xlu0 %6186, %v6146
  %v6188 = vpop.permute.xlu0 %6187
  %6189 = vset.pattern.permute.xlu0 0
  %6190 = vperm.xlu0 %6189, %v6147
  %v6191 = vpop.permute.xlu0 %6190
  %6192 = vset.pattern.permute.xlu0 0
  %6193 = vperm.xlu0 %6192, %v6148
  %v6194 = vpop.permute.xlu0 %6193
  %6195 = vset.pattern.permute.xlu0 0
  %6196 = vperm.xlu0 %6195, %v6149
  %v6197 = vpop.permute.xlu0 %6196
  %6198 = vset.pattern.permute.xlu0 0
  %6199 = vperm.xlu0 %6198, %v6150
  %v6200 = vpop.permute.xlu0 %6199
  %6201 = vset.pattern.permute.xlu0 0
  %6202 = vperm.xlu0 %6201, %v6151
  %v6203 = vpop.permute.xlu0 %6202
  %6204 = vset.pattern.permute.xlu0 0
  %6205 = vperm.xlu0 %6204, %v6152
  %v6206 = vpop.permute.xlu0 %6205
  %6207 = vset.pattern.permute.xlu0 0
  %6208 = vperm.xlu0 %6207, %v6153
  %v6209 = vpop.permute.xlu0 %6208
  %v6210 = vlaneseq
  %v6211 = vshrl.u32 %v6210, 7
  %v6212 = vsub.s32 %v19, %v6211
  %v6213 = vrot.slane %v6170, %v6212
  %v6214 = vlaneseq
  %v6215 = vshrl.u32 %v6214, 7
  %v6216 = vsub.s32 %v19, %v6215
  %v6217 = vrot.slane %v6173, %v6216
  %v6218 = vlaneseq
  %v6219 = vshrl.u32 %v6218, 7
  %v6220 = vsub.s32 %v19, %v6219
  %v6221 = vrot.slane %v6176, %v6220
  %v6222 = vlaneseq
  %v6223 = vshrl.u32 %v6222, 7
  %v6224 = vsub.s32 %v19, %v6223
  %v6225 = vrot.slane %v6179, %v6224
  %v6226 = vlaneseq
  %v6227 = vshrl.u32 %v6226, 7
  %v6228 = vsub.s32 %v19, %v6227
  %v6229 = vrot.slane %v6182, %v6228
  %v6230 = vlaneseq
  %v6231 = vshrl.u32 %v6230, 7
  %v6232 = vsub.s32 %v19, %v6231
  %v6233 = vrot.slane %v6185, %v6232
  %v6234 = vlaneseq
  %v6235 = vshrl.u32 %v6234, 7
  %v6236 = vsub.s32 %v19, %v6235
  %v6237 = vrot.slane %v6188, %v6236
  %v6238 = vlaneseq
  %v6239 = vshrl.u32 %v6238, 7
  %v6240 = vsub.s32 %v19, %v6239
  %v6241 = vrot.slane %v6191, %v6240
  %v6242 = vlaneseq
  %v6243 = vshrl.u32 %v6242, 7
  %v6244 = vsub.s32 %v19, %v6243
  %v6245 = vrot.slane %v6194, %v6244
  %v6246 = vlaneseq
  %v6247 = vshrl.u32 %v6246, 7
  %v6248 = vsub.s32 %v19, %v6247
  %v6249 = vrot.slane %v6197, %v6248
  %v6250 = vlaneseq
  %v6251 = vshrl.u32 %v6250, 7
  %v6252 = vsub.s32 %v19, %v6251
  %v6253 = vrot.slane %v6200, %v6252
  %v6254 = vlaneseq
  %v6255 = vshrl.u32 %v6254, 7
  %v6256 = vsub.s32 %v19, %v6255
  %v6257 = vrot.slane %v6203, %v6256
  %v6258 = vlaneseq
  %v6259 = vshrl.u32 %v6258, 7
  %v6260 = vsub.s32 %v19, %v6259
  %v6261 = vrot.slane %v6206, %v6260
  %v6262 = vlaneseq
  %v6263 = vshrl.u32 %v6262, 7
  %v6264 = vsub.s32 %v19, %v6263
  %v6265 = vrot.slane %v6209, %v6264
  %v6266 = vsel %vm190, %v6217, %v6213
  %v6267 = vsel %vm505, %v6221, %v6266
  %v6268 = vsel %vm507, %v6225, %v6267
  %v6269 = vsel %vm509, %v6229, %v6268
  %v6270 = vsel %vm511, %v6233, %v6269
  %v6271 = vsel %vm513, %v6237, %v6270
  %v6272 = vsel %vm190, %v6245, %v6241
  %v6273 = vsel %vm505, %v6249, %v6272
  %v6274 = vsel %vm507, %v6253, %v6273
  %v6275 = vsel %vm509, %v6257, %v6274
  %v6276 = vsel %vm511, %v6261, %v6275
  %v6277 = vsel %vm513, %v6265, %v6276
  %v6280 = vsel %vm75, %v6271, -inf
  %6281 = vmax.xlane.f32.xlu0 %v6280
  %v6282 = vpop.xlane.xlu0 %6281
  %v6283 = vsel %vm75, %v6277, -inf
  %6284 = vmax.xlane.f32.xlu0 %v6283
  %v6285 = vpop.xlane.xlu0 %6284
  %v6288 = vlaneseq
  %v6289 = vshrl.u32 %v6288, 7
  %v6290 = vsub.s32 0, %v6289
  %v6291 = vrot.slane %v6282, %v6290
  %v6292 = vlaneseq
  %v6293 = vshrl.u32 %v6292, 7
  %v6294 = vsub.s32 1, %v6293
  %v6295 = vrot.slane %v6282, %v6294
  %v6296 = vlaneseq
  %v6297 = vshrl.u32 %v6296, 7
  %v6298 = vsub.s32 2, %v6297
  %v6299 = vrot.slane %v6282, %v6298
  %v6300 = vlaneseq
  %v6301 = vshrl.u32 %v6300, 7
  %v6302 = vsub.s32 3, %v6301
  %v6303 = vrot.slane %v6282, %v6302
  %v6304 = vlaneseq
  %v6305 = vshrl.u32 %v6304, 7
  %v6306 = vsub.s32 4, %v6305
  %v6307 = vrot.slane %v6282, %v6306
  %v6308 = vlaneseq
  %v6309 = vshrl.u32 %v6308, 7
  %v6310 = vsub.s32 5, %v6309
  %v6311 = vrot.slane %v6282, %v6310
  %v6312 = vlaneseq
  %v6313 = vshrl.u32 %v6312, 7
  %v6314 = vsub.s32 6, %v6313
  %v6315 = vrot.slane %v6282, %v6314
  %v6316 = vlaneseq
  %v6317 = vshrl.u32 %v6316, 7
  %v6318 = vsub.s32 0, %v6317
  %v6319 = vrot.slane %v6285, %v6318
  %v6320 = vlaneseq
  %v6321 = vshrl.u32 %v6320, 7
  %v6322 = vsub.s32 1, %v6321
  %v6323 = vrot.slane %v6285, %v6322
  %v6324 = vlaneseq
  %v6325 = vshrl.u32 %v6324, 7
  %v6326 = vsub.s32 2, %v6325
  %v6327 = vrot.slane %v6285, %v6326
  %v6328 = vlaneseq
  %v6329 = vshrl.u32 %v6328, 7
  %v6330 = vsub.s32 3, %v6329
  %v6331 = vrot.slane %v6285, %v6330
  %v6332 = vlaneseq
  %v6333 = vshrl.u32 %v6332, 7
  %v6334 = vsub.s32 4, %v6333
  %v6335 = vrot.slane %v6285, %v6334
  %v6336 = vlaneseq
  %v6337 = vshrl.u32 %v6336, 7
  %v6338 = vsub.s32 5, %v6337
  %v6339 = vrot.slane %v6285, %v6338
  %v6340 = vlaneseq
  %v6341 = vshrl.u32 %v6340, 7
  %v6342 = vsub.s32 6, %v6341
  %v6343 = vrot.slane %v6285, %v6342
  %v6358 = vsub.f32 %v6140, %v6291
  %v6359 = vsub.f32 %v6141, %v6295
  %v6360 = vsub.f32 %v6142, %v6299
  %v6361 = vsub.f32 %v6143, %v6303
  %v6362 = vsub.f32 %v6144, %v6307
  %v6363 = vsub.f32 %v6145, %v6311
  %v6364 = vsub.f32 %v6146, %v6315
  %v6365 = vsub.f32 %v6147, %v6319
  %v6366 = vsub.f32 %v6148, %v6323
  %v6367 = vsub.f32 %v6149, %v6327
  %v6368 = vsub.f32 %v6150, %v6331
  %v6369 = vsub.f32 %v6151, %v6335
  %v6370 = vsub.f32 %v6152, %v6339
  %v6371 = vsub.f32 %v6153, %v6343
  %v6372 = vmul.f32 %v6358, 1.442695
  %v6373 = vpow.pop %v6372
  %v6374 = vmul.f32 %v6359, 1.442695
  %v6375 = vpow.pop %v6374
  %v6376 = vmul.f32 %v6360, 1.442695
  %v6377 = vpow.pop %v6376
  %v6378 = vmul.f32 %v6361, 1.442695
  %v6379 = vpow.pop %v6378
  %v6380 = vmul.f32 %v6362, 1.442695
  %v6381 = vpow.pop %v6380
  %v6382 = vmul.f32 %v6363, 1.442695
  %v6383 = vpow.pop %v6382
  %v6384 = vmul.f32 %v6364, 1.442695
  %v6385 = vpow.pop %v6384
  %v6386 = vmul.f32 %v6365, 1.442695
  %v6387 = vpow.pop %v6386
  %v6388 = vmul.f32 %v6366, 1.442695
  %v6389 = vpow.pop %v6388
  %v6390 = vmul.f32 %v6367, 1.442695
  %v6391 = vpow.pop %v6390
  %v6392 = vmul.f32 %v6368, 1.442695
  %v6393 = vpow.pop %v6392
  %v6394 = vmul.f32 %v6369, 1.442695
  %v6395 = vpow.pop %v6394
  %v6396 = vmul.f32 %v6370, 1.442695
  %v6397 = vpow.pop %v6396
  %v6398 = vmul.f32 %v6371, 1.442695
  %v6399 = vpow.pop %v6398
  %6414 = vset.pattern.permute.xlu0 0
  %6415 = vperm.xlu0 %6414, %v6373
  %v6416 = vpop.permute.xlu0 %6415
  %6417 = vset.pattern.permute.xlu0 0
  %6418 = vperm.xlu0 %6417, %v6375
  %v6419 = vpop.permute.xlu0 %6418
  %6420 = vset.pattern.permute.xlu0 0
  %6421 = vperm.xlu0 %6420, %v6377
  %v6422 = vpop.permute.xlu0 %6421
  %6423 = vset.pattern.permute.xlu0 0
  %6424 = vperm.xlu0 %6423, %v6379
  %v6425 = vpop.permute.xlu0 %6424
  %6426 = vset.pattern.permute.xlu0 0
  %6427 = vperm.xlu0 %6426, %v6381
  %v6428 = vpop.permute.xlu0 %6427
  %6429 = vset.pattern.permute.xlu0 0
  %6430 = vperm.xlu0 %6429, %v6383
  %v6431 = vpop.permute.xlu0 %6430
  %6432 = vset.pattern.permute.xlu0 0
  %6433 = vperm.xlu0 %6432, %v6385
  %v6434 = vpop.permute.xlu0 %6433
  %6435 = vset.pattern.permute.xlu0 0
  %6436 = vperm.xlu0 %6435, %v6387
  %v6437 = vpop.permute.xlu0 %6436
  %6438 = vset.pattern.permute.xlu0 0
  %6439 = vperm.xlu0 %6438, %v6389
  %v6440 = vpop.permute.xlu0 %6439
  %6441 = vset.pattern.permute.xlu0 0
  %6442 = vperm.xlu0 %6441, %v6391
  %v6443 = vpop.permute.xlu0 %6442
  %6444 = vset.pattern.permute.xlu0 0
  %6445 = vperm.xlu0 %6444, %v6393
  %v6446 = vpop.permute.xlu0 %6445
  %6447 = vset.pattern.permute.xlu0 0
  %6448 = vperm.xlu0 %6447, %v6395
  %v6449 = vpop.permute.xlu0 %6448
  %6450 = vset.pattern.permute.xlu0 0
  %6451 = vperm.xlu0 %6450, %v6397
  %v6452 = vpop.permute.xlu0 %6451
  %6453 = vset.pattern.permute.xlu0 0
  %6454 = vperm.xlu0 %6453, %v6399
  %v6455 = vpop.permute.xlu0 %6454
  %v6456 = vlaneseq
  %v6457 = vshrl.u32 %v6456, 7
  %v6458 = vsub.s32 %v19, %v6457
  %v6459 = vrot.slane %v6416, %v6458
  %v6460 = vlaneseq
  %v6461 = vshrl.u32 %v6460, 7
  %v6462 = vsub.s32 %v19, %v6461
  %v6463 = vrot.slane %v6419, %v6462
  %v6464 = vlaneseq
  %v6465 = vshrl.u32 %v6464, 7
  %v6466 = vsub.s32 %v19, %v6465
  %v6467 = vrot.slane %v6422, %v6466
  %v6468 = vlaneseq
  %v6469 = vshrl.u32 %v6468, 7
  %v6470 = vsub.s32 %v19, %v6469
  %v6471 = vrot.slane %v6425, %v6470
  %v6472 = vlaneseq
  %v6473 = vshrl.u32 %v6472, 7
  %v6474 = vsub.s32 %v19, %v6473
  %v6475 = vrot.slane %v6428, %v6474
  %v6476 = vlaneseq
  %v6477 = vshrl.u32 %v6476, 7
  %v6478 = vsub.s32 %v19, %v6477
  %v6479 = vrot.slane %v6431, %v6478
  %v6480 = vlaneseq
  %v6481 = vshrl.u32 %v6480, 7
  %v6482 = vsub.s32 %v19, %v6481
  %v6483 = vrot.slane %v6434, %v6482
  %v6484 = vlaneseq
  %v6485 = vshrl.u32 %v6484, 7
  %v6486 = vsub.s32 %v19, %v6485
  %v6487 = vrot.slane %v6437, %v6486
  %v6488 = vlaneseq
  %v6489 = vshrl.u32 %v6488, 7
  %v6490 = vsub.s32 %v19, %v6489
  %v6491 = vrot.slane %v6440, %v6490
  %v6492 = vlaneseq
  %v6493 = vshrl.u32 %v6492, 7
  %v6494 = vsub.s32 %v19, %v6493
  %v6495 = vrot.slane %v6443, %v6494
  %v6496 = vlaneseq
  %v6497 = vshrl.u32 %v6496, 7
  %v6498 = vsub.s32 %v19, %v6497
  %v6499 = vrot.slane %v6446, %v6498
  %v6500 = vlaneseq
  %v6501 = vshrl.u32 %v6500, 7
  %v6502 = vsub.s32 %v19, %v6501
  %v6503 = vrot.slane %v6449, %v6502
  %v6504 = vlaneseq
  %v6505 = vshrl.u32 %v6504, 7
  %v6506 = vsub.s32 %v19, %v6505
  %v6507 = vrot.slane %v6452, %v6506
  %v6508 = vlaneseq
  %v6509 = vshrl.u32 %v6508, 7
  %v6510 = vsub.s32 %v19, %v6509
  %v6511 = vrot.slane %v6455, %v6510
  %v6512 = vsel %vm190, %v6463, %v6459
  %v6513 = vsel %vm505, %v6467, %v6512
  %v6514 = vsel %vm507, %v6471, %v6513
  %v6515 = vsel %vm509, %v6475, %v6514
  %v6516 = vsel %vm511, %v6479, %v6515
  %v6517 = vsel %vm513, %v6483, %v6516
  %v6518 = vsel %vm190, %v6491, %v6487
  %v6519 = vsel %vm505, %v6495, %v6518
  %v6520 = vsel %vm507, %v6499, %v6519
  %v6521 = vsel %vm509, %v6503, %v6520
  %v6522 = vsel %vm511, %v6507, %v6521
  %v6523 = vsel %vm513, %v6511, %v6522
  %v6526 = vsel %vm75, %v6517, 0.0
  %6527 = vadd.xlane.f32.xlu0 %v6526
  %v6528 = vpop.xlane.xlu0 %6527
  %v6529 = vsel %vm75, %v6523, 0.0
  %6530 = vadd.xlane.f32.xlu0 %v6529
  %v6531 = vpop.xlane.xlu0 %6530
  %v6532 = vlog2.pop %v6528
  %v6533 = vmul.f32 %v6532, 0.6931472
  %v6534 = vlog2.pop %v6531
  %v6535 = vmul.f32 %v6534, 0.6931472
  %v6536 = vadd.f32 %v6282, %v6533
  %v6537 = vadd.f32 %v6285, %v6535
  %6539 = vset.pattern.permute.xlu0 0
  %6540 = vperm.xlu0 %6539, %v6039
  %v6541 = vpop.permute.xlu0 %6540
  %v6542 = vlaneseq
  %v6543 = vshrl.u32 %v6542, 7
  %v6544 = vsub.s32 0, %v6543
  %v6545 = vrot.slane %v6541, %v6544
  %v6546 = vlaneseq
  %v6547 = vshrl.u32 %v6546, 7
  %v6548 = vsub.s32 1, %v6547
  %v6549 = vrot.slane %v6541, %v6548
  %v6552 = vmul.f32 %v6536, %v6545
  %v6553 = vmul.f32 %v6537, %v6549
  %v6554 = vsub.f32 1.0, %v6039
  %6556 = vset.pattern.permute.xlu0 0
  %6557 = vperm.xlu0 %6556, %v6554
  %v6558 = vpop.permute.xlu0 %6557
  %v6559 = vlaneseq
  %v6560 = vshrl.u32 %v6559, 7
  %v6561 = vsub.s32 0, %v6560
  %v6562 = vrot.slane %v6558, %v6561
  %v6563 = vlaneseq
  %v6564 = vshrl.u32 %v6563, 7
  %v6565 = vsub.s32 1, %v6564
  %v6566 = vrot.slane %v6558, %v6565
  %v6569 = vmul.f32 %v5612, %v6562
  %v6570 = vmul.f32 %v5613, %v6566
  %v6571 = vadd.f32 %v6552, %v6569
  %v6572 = vadd.f32 %v6553, %v6570
  %v6573 = vadd.f32 %v6034, %v228
  %v6574 = vadd.f32 %v6034, %v235
  %v6575 = vadd.f32 %v6034, %v242
  %v6576 = vadd.f32 %v6034, %v249
  %v6577 = vadd.f32 %v6034, %v256
  %v6578 = vadd.f32 %v6034, %v263
  %v6579 = vadd.f32 %v6034, %v270
  %v6580 = vadd.f32 %v6035, %v228
  %v6581 = vadd.f32 %v6035, %v235
  %v6582 = vadd.f32 %v6035, %v242
  %v6583 = vadd.f32 %v6035, %v249
  %v6584 = vadd.f32 %v6035, %v256
  %v6585 = vadd.f32 %v6035, %v263
  %v6586 = vadd.f32 %v6035, %v270
  %6601 = vset.pattern.permute.xlu0 0
  %6602 = vperm.xlu0 %6601, %v6573
  %v6603 = vpop.permute.xlu0 %6602
  %6604 = vset.pattern.permute.xlu0 0
  %6605 = vperm.xlu0 %6604, %v6574
  %v6606 = vpop.permute.xlu0 %6605
  %6607 = vset.pattern.permute.xlu0 0
  %6608 = vperm.xlu0 %6607, %v6575
  %v6609 = vpop.permute.xlu0 %6608
  %6610 = vset.pattern.permute.xlu0 0
  %6611 = vperm.xlu0 %6610, %v6576
  %v6612 = vpop.permute.xlu0 %6611
  %6613 = vset.pattern.permute.xlu0 0
  %6614 = vperm.xlu0 %6613, %v6577
  %v6615 = vpop.permute.xlu0 %6614
  %6616 = vset.pattern.permute.xlu0 0
  %6617 = vperm.xlu0 %6616, %v6578
  %v6618 = vpop.permute.xlu0 %6617
  %6619 = vset.pattern.permute.xlu0 0
  %6620 = vperm.xlu0 %6619, %v6579
  %v6621 = vpop.permute.xlu0 %6620
  %6622 = vset.pattern.permute.xlu0 0
  %6623 = vperm.xlu0 %6622, %v6580
  %v6624 = vpop.permute.xlu0 %6623
  %6625 = vset.pattern.permute.xlu0 0
  %6626 = vperm.xlu0 %6625, %v6581
  %v6627 = vpop.permute.xlu0 %6626
  %6628 = vset.pattern.permute.xlu0 0
  %6629 = vperm.xlu0 %6628, %v6582
  %v6630 = vpop.permute.xlu0 %6629
  %6631 = vset.pattern.permute.xlu0 0
  %6632 = vperm.xlu0 %6631, %v6583
  %v6633 = vpop.permute.xlu0 %6632
  %6634 = vset.pattern.permute.xlu0 0
  %6635 = vperm.xlu0 %6634, %v6584
  %v6636 = vpop.permute.xlu0 %6635
  %6637 = vset.pattern.permute.xlu0 0
  %6638 = vperm.xlu0 %6637, %v6585
  %v6639 = vpop.permute.xlu0 %6638
  %6640 = vset.pattern.permute.xlu0 0
  %6641 = vperm.xlu0 %6640, %v6586
  %v6642 = vpop.permute.xlu0 %6641
  %v6643 = vlaneseq
  %v6644 = vshrl.u32 %v6643, 7
  %v6645 = vsub.s32 %v19, %v6644
  %v6646 = vrot.slane %v6603, %v6645
  %v6647 = vlaneseq
  %v6648 = vshrl.u32 %v6647, 7
  %v6649 = vsub.s32 %v19, %v6648
  %v6650 = vrot.slane %v6606, %v6649
  %v6651 = vlaneseq
  %v6652 = vshrl.u32 %v6651, 7
  %v6653 = vsub.s32 %v19, %v6652
  %v6654 = vrot.slane %v6609, %v6653
  %v6655 = vlaneseq
  %v6656 = vshrl.u32 %v6655, 7
  %v6657 = vsub.s32 %v19, %v6656
  %v6658 = vrot.slane %v6612, %v6657
  %v6659 = vlaneseq
  %v6660 = vshrl.u32 %v6659, 7
  %v6661 = vsub.s32 %v19, %v6660
  %v6662 = vrot.slane %v6615, %v6661
  %v6663 = vlaneseq
  %v6664 = vshrl.u32 %v6663, 7
  %v6665 = vsub.s32 %v19, %v6664
  %v6666 = vrot.slane %v6618, %v6665
  %v6667 = vlaneseq
  %v6668 = vshrl.u32 %v6667, 7
  %v6669 = vsub.s32 %v19, %v6668
  %v6670 = vrot.slane %v6621, %v6669
  %v6671 = vlaneseq
  %v6672 = vshrl.u32 %v6671, 7
  %v6673 = vsub.s32 %v19, %v6672
  %v6674 = vrot.slane %v6624, %v6673
  %v6675 = vlaneseq
  %v6676 = vshrl.u32 %v6675, 7
  %v6677 = vsub.s32 %v19, %v6676
  %v6678 = vrot.slane %v6627, %v6677
  %v6679 = vlaneseq
  %v6680 = vshrl.u32 %v6679, 7
  %v6681 = vsub.s32 %v19, %v6680
  %v6682 = vrot.slane %v6630, %v6681
  %v6683 = vlaneseq
  %v6684 = vshrl.u32 %v6683, 7
  %v6685 = vsub.s32 %v19, %v6684
  %v6686 = vrot.slane %v6633, %v6685
  %v6687 = vlaneseq
  %v6688 = vshrl.u32 %v6687, 7
  %v6689 = vsub.s32 %v19, %v6688
  %v6690 = vrot.slane %v6636, %v6689
  %v6691 = vlaneseq
  %v6692 = vshrl.u32 %v6691, 7
  %v6693 = vsub.s32 %v19, %v6692
  %v6694 = vrot.slane %v6639, %v6693
  %v6695 = vlaneseq
  %v6696 = vshrl.u32 %v6695, 7
  %v6697 = vsub.s32 %v19, %v6696
  %v6698 = vrot.slane %v6642, %v6697
  %v6699 = vsel %vm190, %v6650, %v6646
  %v6700 = vsel %vm505, %v6654, %v6699
  %v6701 = vsel %vm507, %v6658, %v6700
  %v6702 = vsel %vm509, %v6662, %v6701
  %v6703 = vsel %vm511, %v6666, %v6702
  %v6704 = vsel %vm513, %v6670, %v6703
  %v6705 = vsel %vm190, %v6678, %v6674
  %v6706 = vsel %vm505, %v6682, %v6705
  %v6707 = vsel %vm507, %v6686, %v6706
  %v6708 = vsel %vm509, %v6690, %v6707
  %v6709 = vsel %vm511, %v6694, %v6708
  %v6710 = vsel %vm513, %v6698, %v6709
  %v6713 = vsel %vm75, %v6704, -inf
  %6714 = vmax.xlane.f32.xlu0 %v6713
  %v6715 = vpop.xlane.xlu0 %6714
  %v6716 = vsel %vm75, %v6710, -inf
  %6717 = vmax.xlane.f32.xlu0 %v6716
  %v6718 = vpop.xlane.xlu0 %6717
  %v6721 = vlaneseq
  %v6722 = vshrl.u32 %v6721, 7
  %v6723 = vsub.s32 0, %v6722
  %v6724 = vrot.slane %v6715, %v6723
  %v6725 = vlaneseq
  %v6726 = vshrl.u32 %v6725, 7
  %v6727 = vsub.s32 1, %v6726
  %v6728 = vrot.slane %v6715, %v6727
  %v6729 = vlaneseq
  %v6730 = vshrl.u32 %v6729, 7
  %v6731 = vsub.s32 2, %v6730
  %v6732 = vrot.slane %v6715, %v6731
  %v6733 = vlaneseq
  %v6734 = vshrl.u32 %v6733, 7
  %v6735 = vsub.s32 3, %v6734
  %v6736 = vrot.slane %v6715, %v6735
  %v6737 = vlaneseq
  %v6738 = vshrl.u32 %v6737, 7
  %v6739 = vsub.s32 4, %v6738
  %v6740 = vrot.slane %v6715, %v6739
  %v6741 = vlaneseq
  %v6742 = vshrl.u32 %v6741, 7
  %v6743 = vsub.s32 5, %v6742
  %v6744 = vrot.slane %v6715, %v6743
  %v6745 = vlaneseq
  %v6746 = vshrl.u32 %v6745, 7
  %v6747 = vsub.s32 6, %v6746
  %v6748 = vrot.slane %v6715, %v6747
  %v6749 = vlaneseq
  %v6750 = vshrl.u32 %v6749, 7
  %v6751 = vsub.s32 0, %v6750
  %v6752 = vrot.slane %v6718, %v6751
  %v6753 = vlaneseq
  %v6754 = vshrl.u32 %v6753, 7
  %v6755 = vsub.s32 1, %v6754
  %v6756 = vrot.slane %v6718, %v6755
  %v6757 = vlaneseq
  %v6758 = vshrl.u32 %v6757, 7
  %v6759 = vsub.s32 2, %v6758
  %v6760 = vrot.slane %v6718, %v6759
  %v6761 = vlaneseq
  %v6762 = vshrl.u32 %v6761, 7
  %v6763 = vsub.s32 3, %v6762
  %v6764 = vrot.slane %v6718, %v6763
  %v6765 = vlaneseq
  %v6766 = vshrl.u32 %v6765, 7
  %v6767 = vsub.s32 4, %v6766
  %v6768 = vrot.slane %v6718, %v6767
  %v6769 = vlaneseq
  %v6770 = vshrl.u32 %v6769, 7
  %v6771 = vsub.s32 5, %v6770
  %v6772 = vrot.slane %v6718, %v6771
  %v6773 = vlaneseq
  %v6774 = vshrl.u32 %v6773, 7
  %v6775 = vsub.s32 6, %v6774
  %v6776 = vrot.slane %v6718, %v6775
  %vm6791 = vcmp.eq.f32.partialorder %v6573, %v6724
  %vm6792 = vcmp.eq.f32.partialorder %v6574, %v6728
  %vm6793 = vcmp.eq.f32.partialorder %v6575, %v6732
  %vm6794 = vcmp.eq.f32.partialorder %v6576, %v6736
  %vm6795 = vcmp.eq.f32.partialorder %v6577, %v6740
  %vm6796 = vcmp.eq.f32.partialorder %v6578, %v6744
  %vm6797 = vcmp.eq.f32.partialorder %v6579, %v6748
  %vm6798 = vcmp.eq.f32.partialorder %v6580, %v6752
  %vm6799 = vcmp.eq.f32.partialorder %v6581, %v6756
  %vm6800 = vcmp.eq.f32.partialorder %v6582, %v6760
  %vm6801 = vcmp.eq.f32.partialorder %v6583, %v6764
  %vm6802 = vcmp.eq.f32.partialorder %v6584, %v6768
  %vm6803 = vcmp.eq.f32.partialorder %v6585, %v6772
  %vm6804 = vcmp.eq.f32.partialorder %v6586, %v6776
  %v6805 = vsel %vm6791, %v1050, 7
  %v6806 = vsel %vm6792, %v1050, 7
  %v6807 = vsel %vm6793, %v1050, 7
  %v6808 = vsel %vm6794, %v1050, 7
  %v6809 = vsel %vm6795, %v1050, 7
  %v6810 = vsel %vm6796, %v1050, 7
  %v6811 = vsel %vm6797, %v1050, 7
  %v6812 = vsel %vm6798, %v1050, 7
  %v6813 = vsel %vm6799, %v1050, 7
  %v6814 = vsel %vm6800, %v1050, 7
  %v6815 = vsel %vm6801, %v1050, 7
  %v6816 = vsel %vm6802, %v1050, 7
  %v6817 = vsel %vm6803, %v1050, 7
  %v6818 = vsel %vm6804, %v1050, 7
  %6819 = vset.pattern.permute.xlu0 0
  %6820 = vperm.xlu0 %6819, %v6805
  %v6821 = vpop.permute.xlu0 %6820
  %6822 = vset.pattern.permute.xlu0 0
  %6823 = vperm.xlu0 %6822, %v6806
  %v6824 = vpop.permute.xlu0 %6823
  %6825 = vset.pattern.permute.xlu0 0
  %6826 = vperm.xlu0 %6825, %v6807
  %v6827 = vpop.permute.xlu0 %6826
  %6828 = vset.pattern.permute.xlu0 0
  %6829 = vperm.xlu0 %6828, %v6808
  %v6830 = vpop.permute.xlu0 %6829
  %6831 = vset.pattern.permute.xlu0 0
  %6832 = vperm.xlu0 %6831, %v6809
  %v6833 = vpop.permute.xlu0 %6832
  %6834 = vset.pattern.permute.xlu0 0
  %6835 = vperm.xlu0 %6834, %v6810
  %v6836 = vpop.permute.xlu0 %6835
  %6837 = vset.pattern.permute.xlu0 0
  %6838 = vperm.xlu0 %6837, %v6811
  %v6839 = vpop.permute.xlu0 %6838
  %6840 = vset.pattern.permute.xlu0 0
  %6841 = vperm.xlu0 %6840, %v6812
  %v6842 = vpop.permute.xlu0 %6841
  %6843 = vset.pattern.permute.xlu0 0
  %6844 = vperm.xlu0 %6843, %v6813
  %v6845 = vpop.permute.xlu0 %6844
  %6846 = vset.pattern.permute.xlu0 0
  %6847 = vperm.xlu0 %6846, %v6814
  %v6848 = vpop.permute.xlu0 %6847
  %6849 = vset.pattern.permute.xlu0 0
  %6850 = vperm.xlu0 %6849, %v6815
  %v6851 = vpop.permute.xlu0 %6850
  %6852 = vset.pattern.permute.xlu0 0
  %6853 = vperm.xlu0 %6852, %v6816
  %v6854 = vpop.permute.xlu0 %6853
  %6855 = vset.pattern.permute.xlu0 0
  %6856 = vperm.xlu0 %6855, %v6817
  %v6857 = vpop.permute.xlu0 %6856
  %6858 = vset.pattern.permute.xlu0 0
  %6859 = vperm.xlu0 %6858, %v6818
  %v6860 = vpop.permute.xlu0 %6859
  %v6861 = vlaneseq
  %v6862 = vshrl.u32 %v6861, 7
  %v6863 = vsub.s32 %v19, %v6862
  %v6864 = vrot.slane %v6821, %v6863
  %v6865 = vlaneseq
  %v6866 = vshrl.u32 %v6865, 7
  %v6867 = vsub.s32 %v19, %v6866
  %v6868 = vrot.slane %v6824, %v6867
  %v6869 = vlaneseq
  %v6870 = vshrl.u32 %v6869, 7
  %v6871 = vsub.s32 %v19, %v6870
  %v6872 = vrot.slane %v6827, %v6871
  %v6873 = vlaneseq
  %v6874 = vshrl.u32 %v6873, 7
  %v6875 = vsub.s32 %v19, %v6874
  %v6876 = vrot.slane %v6830, %v6875
  %v6877 = vlaneseq
  %v6878 = vshrl.u32 %v6877, 7
  %v6879 = vsub.s32 %v19, %v6878
  %v6880 = vrot.slane %v6833, %v6879
  %v6881 = vlaneseq
  %v6882 = vshrl.u32 %v6881, 7
  %v6883 = vsub.s32 %v19, %v6882
  %v6884 = vrot.slane %v6836, %v6883
  %v6885 = vlaneseq
  %v6886 = vshrl.u32 %v6885, 7
  %v6887 = vsub.s32 %v19, %v6886
  %v6888 = vrot.slane %v6839, %v6887
  %v6889 = vlaneseq
  %v6890 = vshrl.u32 %v6889, 7
  %v6891 = vsub.s32 %v19, %v6890
  %v6892 = vrot.slane %v6842, %v6891
  %v6893 = vlaneseq
  %v6894 = vshrl.u32 %v6893, 7
  %v6895 = vsub.s32 %v19, %v6894
  %v6896 = vrot.slane %v6845, %v6895
  %v6897 = vlaneseq
  %v6898 = vshrl.u32 %v6897, 7
  %v6899 = vsub.s32 %v19, %v6898
  %v6900 = vrot.slane %v6848, %v6899
  %v6901 = vlaneseq
  %v6902 = vshrl.u32 %v6901, 7
  %v6903 = vsub.s32 %v19, %v6902
  %v6904 = vrot.slane %v6851, %v6903
  %v6905 = vlaneseq
  %v6906 = vshrl.u32 %v6905, 7
  %v6907 = vsub.s32 %v19, %v6906
  %v6908 = vrot.slane %v6854, %v6907
  %v6909 = vlaneseq
  %v6910 = vshrl.u32 %v6909, 7
  %v6911 = vsub.s32 %v19, %v6910
  %v6912 = vrot.slane %v6857, %v6911
  %v6913 = vlaneseq
  %v6914 = vshrl.u32 %v6913, 7
  %v6915 = vsub.s32 %v19, %v6914
  %v6916 = vrot.slane %v6860, %v6915
  %v6917 = vsel %vm190, %v6868, %v6864
  %v6918 = vsel %vm505, %v6872, %v6917
  %v6919 = vsel %vm507, %v6876, %v6918
  %v6920 = vsel %vm509, %v6880, %v6919
  %v6921 = vsel %vm511, %v6884, %v6920
  %v6922 = vsel %vm513, %v6888, %v6921
  %v6923 = vsel %vm190, %v6896, %v6892
  %v6924 = vsel %vm505, %v6900, %v6923
  %v6925 = vsel %vm507, %v6904, %v6924
  %v6926 = vsel %vm509, %v6908, %v6925
  %v6927 = vsel %vm511, %v6912, %v6926
  %v6928 = vsel %vm513, %v6916, %v6927
  %v6929 = vsel %vm75, %v6922, 2147483647
  %v6930 = vand.u32 %v6929, 65535
  %v6931 = vshra.s32 %v6929, 16
  %v6932 = vcvt.s32.f32 %v6930
  %v6933 = vcvt.s32.f32 %v6931
  %6934 = vmin.xlane.f32.xlu0 %v6933
  %v6935 = vpop.xlane.xlu0 %6934
  %vm6936 = vcmp.eq.f32.partialorder %v6933, %v6935
  %v6937 = vsel %vm6936, %v6932, inf
  %6938 = vmin.xlane.f32.xlu0 %v6937
  %v6939 = vpop.xlane.xlu0 %6938
  %v6940 = vcvt.f32.s32 %v6939
  %v6941 = vcvt.f32.s32 %v6935
  %v6942 = vshll.u32 %v6941, 16
  %v6943 = vadd.s32 %v6942, %v6940
  %v6944 = vsel %vm75, %v6928, 2147483647
  %v6945 = vand.u32 %v6944, 65535
  %v6946 = vshra.s32 %v6944, 16
  %v6947 = vcvt.s32.f32 %v6945
  %v6948 = vcvt.s32.f32 %v6946
  %6949 = vmin.xlane.f32.xlu0 %v6948
  %v6950 = vpop.xlane.xlu0 %6949
  %vm6951 = vcmp.eq.f32.partialorder %v6948, %v6950
  %v6952 = vsel %vm6951, %v6947, inf
  %6953 = vmin.xlane.f32.xlu0 %v6952
  %v6954 = vpop.xlane.xlu0 %6953
  %v6955 = vcvt.f32.s32 %v6954
  %v6956 = vcvt.f32.s32 %v6950
  %v6957 = vshll.u32 %v6956, 16
  %v6958 = vadd.s32 %v6957, %v6955
  %v6959 = vlaneseq
  %v6960 = vshrl.u32 %v6959, 7
  %v6961 = vsub.s32 %v19, %v6960
  %v6962 = vrot.slane %v6943, %v6961
  %v6963 = vlaneseq
  %v6964 = vshrl.u32 %v6963, 7
  %v6965 = vsub.s32 %v19, %v6964
  %v6966 = vrot.slane %v6958, %v6965
  %v6967 = vsel %vm190, %v6966, %v6962
  %s6968 = scalar_lea.vmem %s4, 14
  %6969 = vst.msk [vmem:[%s6968] sm:$0x3] %vm192, %v6967
  %v6971 = vlaneseq
  %v6972 = vshrl.u32 %v6971, 7
  %v6973 = vsub.s32 0, %v6972
  %v6974 = vrot.slane %v6037, %v6973
  %6976 = vbcast.lane.b32.xlu0 %v6974, 256
  %v6977 = vpop.permute.xlu0 %6976
  %v6978 = vlaneseq
  %v6979 = vshrl.u32 %v6978, 7
  %v6980 = vsub.s32 1, %v6979
  %v6981 = vrot.slane %v6037, %v6980
  %6983 = vbcast.lane.b32.xlu0 %v6981, 256
  %v6984 = vpop.permute.xlu0 %6983
  %v6987 = vadd.f32 %v6715, %v6977
  %v6988 = vadd.f32 %v6718, %v6984
  %v6989 = vmul.f32 %v6987, %v6545
  %v6990 = vmul.f32 %v6988, %v6549
  %v6991 = vmul.f32 %v6034, %v6562
  %v6992 = vmul.f32 %v6035, %v6566
  %v6993 = vadd.f32 %v6989, %v6991
  %v6994 = vadd.f32 %v6990, %v6992
  %v6995 = vlaneseq
  %v6996 = vshrl.u32 %v6995, 7
  %v6997 = vsub.s32 6, %v6996
  %v6998 = vrot.slane %v17, %v6997
  %7001 = vbcast.lane.b32.xlu0 %v6998, 256
  %v7002 = vpop.permute.xlu0 %7001
  %v7004 = vadd.f32 %v6571, %v7002
  %v7005 = vadd.f32 %v6572, %v7002
  %7008 = vset.pattern.permute.xlu0 0
  %7009 = vperm.xlu0 %7008, %v7004
  %v7010 = vpop.permute.xlu0 %7009
  %7011 = vset.pattern.permute.xlu0 0
  %7012 = vperm.xlu0 %7011, %v7005
  %v7013 = vpop.permute.xlu0 %7012
  %v7014 = vlaneseq
  %v7015 = vshrl.u32 %v7014, 7
  %v7016 = vsub.s32 %v19, %v7015
  %v7017 = vrot.slane %v7010, %v7016
  %v7018 = vlaneseq
  %v7019 = vshrl.u32 %v7018, 7
  %v7020 = vsub.s32 %v19, %v7019
  %v7021 = vrot.slane %v7013, %v7020
  %v7022 = vsel %vm190, %v7021, %v7017
  %v7024 = vsel %vm192, %v7022, -inf
  %7025 = vmax.xlane.f32.xlu0 %v7024
  %v7026 = vpop.xlane.xlu0 %7025
  %v7028 = vlaneseq
  %v7029 = vshrl.u32 %v7028, 7
  %v7030 = vsub.s32 0, %v7029
  %v7031 = vrot.slane %v7026, %v7030
  %v7032 = vlaneseq
  %v7033 = vshrl.u32 %v7032, 7
  %v7034 = vsub.s32 1, %v7033
  %v7035 = vrot.slane %v7026, %v7034
  %v7038 = vsub.f32 %v7004, %v7031
  %v7039 = vsub.f32 %v7005, %v7035
  %v7040 = vmul.f32 %v7038, 1.442695
  %v7041 = vpow.pop %v7040
  %v7042 = vmul.f32 %v7039, 1.442695
  %v7043 = vpow.pop %v7042
  %7046 = vset.pattern.permute.xlu0 0
  %7047 = vperm.xlu0 %7046, %v7041
  %v7048 = vpop.permute.xlu0 %7047
  %7049 = vset.pattern.permute.xlu0 0
  %7050 = vperm.xlu0 %7049, %v7043
  %v7051 = vpop.permute.xlu0 %7050
  %v7052 = vlaneseq
  %v7053 = vshrl.u32 %v7052, 7
  %v7054 = vsub.s32 %v19, %v7053
  %v7055 = vrot.slane %v7048, %v7054
  %v7056 = vlaneseq
  %v7057 = vshrl.u32 %v7056, 7
  %v7058 = vsub.s32 %v19, %v7057
  %v7059 = vrot.slane %v7051, %v7058
  %v7060 = vsel %vm190, %v7059, %v7055
  %v7062 = vsel %vm192, %v7060, 0.0
  %7063 = vadd.xlane.f32.xlu0 %v7062
  %v7064 = vpop.xlane.xlu0 %7063
  %v7065 = vlog2.pop %v7064
  %v7066 = vmul.f32 %v7065, 0.6931472
  %v7067 = vadd.f32 %v7026, %v7066
  %vm7068 = vcmask 1024
  %7069 = vst.msk [vmem:[%s3] sm:$0x3] %vm7068, %v7067
  %v7070 = vadd.f32 %v6993, %v7002
  %v7071 = vadd.f32 %v6994, %v7002
  %7074 = vset.pattern.permute.xlu0 0
  %7075 = vperm.xlu0 %7074, %v7070
  %v7076 = vpop.permute.xlu0 %7075
  %7077 = vset.pattern.permute.xlu0 0
  %7078 = vperm.xlu0 %7077, %v7071
  %v7079 = vpop.permute.xlu0 %7078
  %v7080 = vlaneseq
  %v7081 = vshrl.u32 %v7080, 7
  %v7082 = vsub.s32 %v19, %v7081
  %v7083 = vrot.slane %v7076, %v7082
  %v7084 = vlaneseq
  %v7085 = vshrl.u32 %v7084, 7
  %v7086 = vsub.s32 %v19, %v7085
  %v7087 = vrot.slane %v7079, %v7086
  %v7088 = vsel %vm190, %v7087, %v7083
  %7090 = vst.msk [vmem:[%s5] sm:$0x3] %vm192, %v7088
  // Predicated region
  $region14: #{_lambda_.15} parent=0 // pred_check
    _
  $region15: #{_lambda_.15} parent=0 // pred_check_branch
    %7092 = sbr.rel (0) target = $region17
  $region16: #{_lambda_.15} parent=0 // pred_region
    _
  $region17: #{_lambda_.15} parent=0 // pred_fallthru
    _
  // Predicated region
  $region18: #{_lambda_.15} parent=0 // pred_check
    _
  $region19: #{_lambda_.15} parent=0 // pred_check_branch
    %7094 = sbr.rel (0) target = $region21
  $region20: #{_lambda_.15} parent=0 // pred_region
    _
  $region21: #{_lambda_.15} parent=0 // pred_fallthru
    _
  // Predicated region
  $region22: #{_lambda_.15} parent=0 // pred_check
    _
  $region23: #{_lambda_.15} parent=0 // pred_check_branch
    %7096 = sbr.rel (0) target = $region25
  $region24: #{_lambda_.15} parent=0 // pred_region
    _
  $region25: #{_lambda_.15} parent=0 // pred_fallthru
    _
  // Predicated region
  $region26: #{_lambda_.15} parent=0 // pred_check
    _
  $region27: #{_lambda_.15} parent=0 // pred_check_branch
    %7098 = sbr.rel (0) target = $region29
  $region28: #{_lambda_.15} parent=0 // pred_region
    _
  $region29: #{_lambda_.15} parent=0 // pred_fallthru
    _
  // Predicated region
  $region30: #{_lambda_.15} parent=0 // pred_check
    _
  $region31: #{_lambda_.15} parent=0 // pred_check_branch
    %7100 = sbr.rel (0) target = $region33
  $region32: #{_lambda_.15} parent=0 // pred_region
    _
  $region33: #{_lambda_.15} parent=0 // pred_fallthru
    _
  // Predicated region
  $region34: #{_lambda_.15} parent=0 // pred_check
    _
  $region35: #{_lambda_.15} parent=0 // pred_check_branch
    %7102 = sbr.rel (0) target = $region37
  $region36: #{_lambda_.15} parent=0 // pred_region
    _
  $region37: #{_lambda_.15} parent=0 // pred_fallthru
    _

</llo_original>
